<compile_context>
chip_gen: v5e
topology: v5e:2x2
jax: 0.10.0
libtpu: 0.0.40
codegen_flags: <defaults>
</compile_context>

<pallas_src>
import functools

import jax
import jax.numpy as jnp
from jax import lax
from jax.experimental import pallas as pl
from jax.experimental.pallas import tpu as pltpu

C1 = 40            # conv1 output channels
C2 = 60            # _CNN_OUT_CHANS
NUM_CLASSES = 32   # len(SYMBOL_SET): SYMBOL_SET is undefined in the reference; fixed to 32 here.
MAX_BBLK = 32      # max batch elements processed per grid step


def _mynet_kernel(xpad_ref, w1_ref, b1_ref, w2_ref, b2_ref, wc_ref, bc_ref,
                  out_ref, s1_ref, s2_ref, *, H, W, Bblk):
    Hq, Wq = H // 2, W // 2
    Hh, Wh = H // 4, W // 4

    # ---- Conv2d(1, C1, 3, padding=1): one im2col matmul on the MXU ---------
    # Hoist the lane->trailing-dim relayout: do it ONCE on the padded input,
    # then every tap is a cheap major/sublane slice of the same slab.
    xc = xpad_ref[...][..., None]                            # (Bblk, H+2, W+2, 1)
    patches1 = jnp.concatenate(
        [xc[:, dy:dy + H, dx:dx + W, :] for dy in range(3) for dx in range(3)],
        axis=-1)                                             # (Bblk, H, W, 9)
    c1 = jnp.dot(patches1.reshape(Bblk * H * W, 9), w1_ref[...],
                 preferred_element_type=jnp.float32) + b1_ref[...]

    # ---- MaxPool2d(2) + ReLU: pool H on the value first (layout no-op), ----
    # ---- stage half-size result, strided-ref pool over W --------------------
    c1 = jnp.max(c1.reshape(Bblk * Hq, 2, W, C1), axis=1)    # (Bblk*Hq, W, C1)
    s1_ref[...] = c1.reshape(Bblk, Hq, W, C1)
    r1 = jnp.maximum(
        jnp.maximum(s1_ref[:, :, pl.ds(0, Wq, 2), :],
                    s1_ref[:, :, pl.ds(1, Wq, 2), :]),
        0.0)                                                 # (Bblk, Hq, Wq, C1)

    # ---- Conv2d(C1, C2, 3, padding=1): 9 accumulating MXU dots --------------
    zr = jnp.zeros((Bblk, 1, Wq, C1), jnp.float32)
    zc = jnp.zeros((Bblk, Hq + 2, 1, C1), jnp.float32)
    p = jnp.concatenate([zr, r1, zr], axis=1)                # pad H
    p = jnp.concatenate([zc, p, zc], axis=2)                 # pad W -> (Bblk,Hq+2,Wq+2,C1)
    M2 = Bblk * Hq * Wq
    acc = jnp.zeros((M2, C2), jnp.float32)
    for dy in range(3):
        for dx in range(3):
            k = dy * 3 + dx
            acc += jnp.dot(p[:, dy:dy + Hq, dx:dx + Wq, :].reshape(M2, C1),
                           w2_ref[k * C1:(k + 1) * C1, :],   # 8-aligned sublane slice
                           preferred_element_type=jnp.float32)
    c2 = acc + b2_ref[...]

    # ---- MaxPool2d(2) + ReLU (same pool-H-first pattern) --------------------
    c2 = jnp.max(c2.reshape(Bblk * Hh, 2, Wq, C2), axis=1)   # (Bblk*Hh, Wq, C2)
    s2_ref[...] = c2.reshape(Bblk, Hh, Wq, C2)
    r2 = jnp.maximum(
        jnp.maximum(s2_ref[:, :, pl.ds(0, Wh, 2), :],
                    s2_ref[:, :, pl.ds(1, Wh, 2), :]),
        0.0)                                                 # (Bblk, Hh, Wh, C2)

    # ---- AdaptiveAvgPool2d((1, None)): mean over the H axis -----------------
    feat = jnp.mean(r2, axis=1)                              # (Bblk, Wh, C2)

    # ---- Linear(C2, NUM_CLASSES): single flat dot, no weight broadcast ------
    logits = jnp.dot(feat.reshape(Bblk * Wh, C2), wc_ref[...],
                     preferred_element_type=jnp.float32) + bc_ref[...]
    logits = logits.reshape(Bblk, Wh, NUM_CLASSES)

    # ---- LogSoftmax over the class dim; lane-dense store --------------------
    m = jnp.max(logits, axis=-1, keepdims=True)
    sh = logits - m
    lse = jnp.log(jnp.sum(jnp.exp(sh), axis=-1, keepdims=True))
    out_ref[...] = (sh - lse).reshape(Bblk, Wh * NUM_CLASSES)


def _round_up(n, m):
    return ((n + m - 1) // m) * m


def _choose_block_b(B, max_block=MAX_BBLK):
    """Adaptive batch block: multiple of 8, <= max_block; keep >= 2 grid steps
    when possible so the 'parallel' batch axis can shard across both v7x TCs."""
    bb = min(max_block, _round_up(B, 8))
    while bb > 8 and _round_up(B, bb) // bb < 2:
        bb = max(8, (bb // 2 // 8) * 8)
    return bb


def _vmem_limit_bytes(block_b, H, W):
    """Rough lane-padded working-set estimate, with headroom, capped for v7x."""
    lanes = lambda c: _round_up(c, 128)
    Hq, Wq, Hh = H // 2, W // 2, H // 4
    xpad = 2 * block_b * (H + 2) * lanes(W + 2) * 4          # double-buffered input
    s1 = block_b * Hq * W * lanes(C1) * 4                    # conv1 staging scratch
    s2 = block_b * Hh * Wq * lanes(C2) * 4                   # conv2 staging scratch
    live = 3 * block_b * H * W * lanes(C1) * 4               # patches1 / c1 / slack
    est = xpad + s1 + s2 + live + (4 << 20)
    return int(min(max(est, 32 << 20), 48 << 20))


def mynet_forward(x_nchw, kernel_params, block_b=None):
    w1, b1, w2, b2, wc, bc = kernel_params
    B, Cin, H, W = x_nchw.shape
    assert Cin == 1 and H % 4 == 0 and W % 16 == 0
    Wh = W // 4

    if block_b is None:
        block_b = _choose_block_b(B)
    Bp = _round_up(B, block_b)

    # pad batch to a multiple of the batch block, pad spatial ring for conv1
    x = x_nchw[:, 0, :, :]                                   # (B, H, W)
    xpad = jnp.pad(x, ((0, Bp - B), (1, 1), (1, 1)))         # (Bp, H+2, W+2)

    kernel = functools.partial(_mynet_kernel, H=H, W=W, Bblk=block_b)
    out = pl.pallas_call(
        kernel,
        out_shape=jax.ShapeDtypeStruct((Bp, Wh * NUM_CLASSES), jnp.float32),
        grid_spec=pltpu.PrefetchScalarGridSpec(
            num_scalar_prefetch=0,
            grid=(Bp // block_b,),
            in_specs=[
                pl.BlockSpec((block_b, H + 2, W + 2), lambda b: (b, 0, 0)),
                pl.BlockSpec((9, C1), lambda b: (0, 0)),
                pl.BlockSpec((1, C1), lambda b: (0, 0)),
                pl.BlockSpec((9 * C1, C2), lambda b: (0, 0)),
                pl.BlockSpec((1, C2), lambda b: (0, 0)),
                pl.BlockSpec((C2, NUM_CLASSES), lambda b: (0, 0)),
                pl.BlockSpec((1, NUM_CLASSES), lambda b: (0, 0)),
            ],
            out_specs=pl.BlockSpec((block_b, Wh * NUM_CLASSES), lambda b: (b, 0)),
            scratch_shapes=[
                pltpu.VMEM((block_b, H // 2, W, C1), jnp.float32),        # conv1, H-pooled
                pltpu.VMEM((block_b, H // 4, W // 2, C2), jnp.float32),   # conv2, H-pooled
            ],
        ),
        compiler_params=pltpu.CompilerParams(
            dimension_semantics=("parallel",),
            vmem_limit_bytes=_vmem_limit_bytes(block_b, H, W)),
    )(xpad, w1, b1, w2, b2, wc, bc)

    # torch: x.permute(1, 0, 2) -> (seq=W//4, batch, classes)
    out = out[:B].reshape(B, Wh, NUM_CLASSES)
    return jnp.transpose(out, (1, 0, 2))


def init_torch_layout_params(key):
    """Deterministic params in PyTorch layouts (OIHW conv weights, (out,in) linear)."""
    ks = jax.random.split(key, 6)
    k1 = 1.0 / (1 * 9) ** 0.5
    w1t = jax.random.uniform(ks[0], (C1, 1, 3, 3), jnp.float32, -k1, k1)
    b1 = jax.random.uniform(ks[1], (C1,), jnp.float32, -k1, k1)
    k2 = 1.0 / (C1 * 9) ** 0.5
    w2t = jax.random.uniform(ks[2], (C2, C1, 3, 3), jnp.float32, -k2, k2)
    b2 = jax.random.uniform(ks[3], (C2,), jnp.float32, -k2, k2)
    kc = 1.0 / C2 ** 0.5
    wct = jax.random.uniform(ks[4], (NUM_CLASSES, C2), jnp.float32, -kc, kc)
    bc = jax.random.uniform(ks[5], (NUM_CLASSES,), jnp.float32, -kc, kc)
    return w1t, b1, w2t, b2, wct, bc


def to_kernel_params(torch_params):
    """All layout plumbing happens here, outside the kernel."""
    w1t, b1, w2t, b2, wct, bc = torch_params
    w1 = jnp.transpose(w1t[:, 0], (1, 2, 0)).reshape(9, C1)        # (k=dy*3+dx, cout)
    w2 = jnp.transpose(w2t, (2, 3, 1, 0)).reshape(9 * C1, C2)      # (k*C1+cin, cout)
    wc = wct.T                                                     # (C2, NUM_CLASSES)
    return (w1, b1.reshape(1, C1), w2, b2.reshape(1, C2),
            wc, bc.reshape(1, NUM_CLASSES))


def reference_forward(x_nchw, torch_params):
    """Pure-JAX reference mirroring the PyTorch forward exactly."""
    w1t, b1, w2t, b2, wct, bc = torch_params
    dn = ('NCHW', 'OIHW', 'NCHW')
    y = lax.conv_general_dilated(x_nchw, w1t, (1, 1), ((1, 1), (1, 1)),
                                 dimension_numbers=dn) + b1[None, :, None, None]
    y = lax.reduce_window(y, -jnp.inf, lax.max, (1, 1, 2, 2), (1, 1, 2, 2), 'VALID')
    y = jnp.maximum(y, 0.0)
    y = lax.conv_general_dilated(y, w2t, (1, 1), ((1, 1), (1, 1)),
                                 dimension_numbers=dn) + b2[None, :, None, None]
    y = lax.reduce_window(y, -jnp.inf, lax.max, (1, 1, 2, 2), (1, 1, 2, 2), 'VALID')
    y = jnp.maximum(y, 0.0)                             # (B, C2, H/4, W/4)
    y = jnp.mean(y, axis=2, keepdims=True)              # AdaptiveAvgPool2d((1, None))
    B, _, _, Whh = y.shape
    y = jnp.transpose(y, (0, 3, 1, 2)).reshape(B, Whh, C2)
    logits = y @ wct.T + bc
    logits = jnp.transpose(logits, (1, 0, 2))
    return jax.nn.log_softmax(logits, axis=2)


if __name__ == "__main__":
    key = jax.random.PRNGKey(0)
    pkey, xkey = jax.random.split(key)
    torch_params = init_torch_layout_params(pkey)
    kparams = to_kernel_params(torch_params)

    B, H, W = 2, 16, 16
    x = jax.random.normal(xkey, (B, 1, H, W), jnp.float32)

    out = mynet_forward(x, kparams)
    out = jax.block_until_ready(out)
    assert out.shape == (W // 4, B, NUM_CLASSES)

    ref = reference_forward(x, torch_params)
    max_err = float(jnp.max(jnp.abs(out - ref)))
    if max_err > 5e-4:
        raise AssertionError(f"Pallas/JAX mismatch, max abs err = {max_err}")

    print("KERNEL_OK")
</pallas_src>

<mosaic_0001>
module attributes {stable_mosaic.version = 11 : i64} {
  func.func @_mynet_kernel(%arg0: i32, %arg1: memref<8x18x18xf32, #tpu.memory_space<vmem>>, %arg2: memref<9x40xf32, #tpu.memory_space<vmem>>, %arg3: memref<1x40xf32, #tpu.memory_space<vmem>>, %arg4: memref<360x60xf32, #tpu.memory_space<vmem>>, %arg5: memref<1x60xf32, #tpu.memory_space<vmem>>, %arg6: memref<60x32xf32, #tpu.memory_space<vmem>>, %arg7: memref<1x32xf32, #tpu.memory_space<vmem>>, %arg8: memref<8x128xf32, #tpu.memory_space<vmem>>, %arg9: memref<8x8x16x40xf32, #tpu.memory_space<vmem>>, %arg10: memref<8x4x8x60xf32, #tpu.memory_space<vmem>>) attributes {dimension_semantics = [#tpu.dimension_semantics<parallel>], iteration_bounds = array<i64: 1>, scalar_prefetch = 0 : i64, scratch_operands = 2 : i64, tpu.core_type = #tpu.core_type<tc>, window_params = [{transform_indices = @transform_0, window_bounds = array<i64: 8, 18, 18>}, {pipeline_mode = #tpu.pipeline_mode<synchronous>, transform_indices = @transform_1, window_bounds = array<i64: 9, 40>}, {pipeline_mode = #tpu.pipeline_mode<synchronous>, transform_indices = @transform_2, window_bounds = array<i64: 1, 40>}, {pipeline_mode = #tpu.pipeline_mode<synchronous>, transform_indices = @transform_3, window_bounds = array<i64: 360, 60>}, {pipeline_mode = #tpu.pipeline_mode<synchronous>, transform_indices = @transform_4, window_bounds = array<i64: 1, 60>}, {pipeline_mode = #tpu.pipeline_mode<synchronous>, transform_indices = @transform_5, window_bounds = array<i64: 60, 32>}, {pipeline_mode = #tpu.pipeline_mode<synchronous>, transform_indices = @transform_6, window_bounds = array<i64: 1, 32>}, {transform_indices = @transform_7, window_bounds = array<i64: 8, 128>}]} {
    %c0 = arith.constant 0 : index
    %c0_0 = arith.constant 0 : index
    %c0_1 = arith.constant 0 : index
    %0 = vector.load %arg1[%c0, %c0_0, %c0_1] : memref<8x18x18xf32, #tpu.memory_space<vmem>>, vector<8x18x18xf32>
    %1 = vector.shape_cast %0 : vector<8x18x18xf32> to vector<8x18x18x1xf32>
    %2 = vector.extract_strided_slice %1 {offsets = [0, 0, 0, 0], sizes = [8, 16, 16, 1], strides = [1, 1, 1, 1]} : vector<8x18x18x1xf32> to vector<8x16x16x1xf32>
    %3 = vector.extract_strided_slice %1 {offsets = [0, 0, 1, 0], sizes = [8, 16, 16, 1], strides = [1, 1, 1, 1]} : vector<8x18x18x1xf32> to vector<8x16x16x1xf32>
    %4 = vector.extract_strided_slice %1 {offsets = [0, 0, 2, 0], sizes = [8, 16, 16, 1], strides = [1, 1, 1, 1]} : vector<8x18x18x1xf32> to vector<8x16x16x1xf32>
    %5 = vector.extract_strided_slice %1 {offsets = [0, 1, 0, 0], sizes = [8, 16, 16, 1], strides = [1, 1, 1, 1]} : vector<8x18x18x1xf32> to vector<8x16x16x1xf32>
    %6 = vector.extract_strided_slice %1 {offsets = [0, 1, 1, 0], sizes = [8, 16, 16, 1], strides = [1, 1, 1, 1]} : vector<8x18x18x1xf32> to vector<8x16x16x1xf32>
    %7 = vector.extract_strided_slice %1 {offsets = [0, 1, 2, 0], sizes = [8, 16, 16, 1], strides = [1, 1, 1, 1]} : vector<8x18x18x1xf32> to vector<8x16x16x1xf32>
    %8 = vector.extract_strided_slice %1 {offsets = [0, 2, 0, 0], sizes = [8, 16, 16, 1], strides = [1, 1, 1, 1]} : vector<8x18x18x1xf32> to vector<8x16x16x1xf32>
    %9 = vector.extract_strided_slice %1 {offsets = [0, 2, 1, 0], sizes = [8, 16, 16, 1], strides = [1, 1, 1, 1]} : vector<8x18x18x1xf32> to vector<8x16x16x1xf32>
    %10 = vector.extract_strided_slice %1 {offsets = [0, 2, 2, 0], sizes = [8, 16, 16, 1], strides = [1, 1, 1, 1]} : vector<8x18x18x1xf32> to vector<8x16x16x1xf32>
    %11 = tpu.concatenate %2, %3, %4, %5, %6, %7, %8, %9, %10 in 3 : vector<8x16x16x1xf32>, vector<8x16x16x1xf32>, vector<8x16x16x1xf32>, vector<8x16x16x1xf32>, vector<8x16x16x1xf32>, vector<8x16x16x1xf32>, vector<8x16x16x1xf32>, vector<8x16x16x1xf32>, vector<8x16x16x1xf32> -> vector<8x16x16x9xf32>
    %12 = vector.shape_cast %11 : vector<8x16x16x9xf32> to vector<2048x9xf32>
    %c0_2 = arith.constant 0 : index
    %c0_3 = arith.constant 0 : index
    %13 = vector.load %arg2[%c0_2, %c0_3] : memref<9x40xf32, #tpu.memory_space<vmem>>, vector<9x40xf32>
    %cst = arith.constant dense<0.000000e+00> : vector<2048x40xf32>
    %14 = tpu.matmul %12, %13, %cst {dimension_numbers = #tpu.dot_dimension_numbers<[1], [0], [0], [1], [0, 0, 1, 1], [], []>} : vector<2048x9xf32>, vector<9x40xf32>, vector<2048x40xf32> -> vector<2048x40xf32>
    %c0_4 = arith.constant 0 : index
    %c0_5 = arith.constant 0 : index
    %15 = vector.load %arg3[%c0_4, %c0_5] : memref<1x40xf32, #tpu.memory_space<vmem>>, vector<1x40xf32>
    %16 = vector.broadcast %15 : vector<1x40xf32> to vector<2048x40xf32>
    %17 = arith.addf %14, %16 : vector<2048x40xf32>
    %18 = vector.shape_cast %17 : vector<2048x40xf32> to vector<64x2x16x40xf32>
    %cst_6 = arith.constant dense<0xFF800000> : vector<64x16x40xf32>
    %19 = vector.multi_reduction <maximumf>, %18, %cst_6 [1] : vector<64x2x16x40xf32> to vector<64x16x40xf32>
    %20 = vector.shape_cast %19 : vector<64x16x40xf32> to vector<8x8x16x40xf32>
    %c0_7 = arith.constant 0 : index
    %c0_8 = arith.constant 0 : index
    %c0_9 = arith.constant 0 : index
    %c0_10 = arith.constant 0 : index
    %21 = vector.load %arg9[%c0_7, %c0_8, %c0_9, %c0_10] : memref<8x8x16x40xf32, #tpu.memory_space<vmem>>, vector<8x8x16x40xf32>
    tpu.vector_store %arg9[%c0_7, %c0_8, %c0_9, %c0_10], %20 {strides = array<i32>} : memref<8x8x16x40xf32, #tpu.memory_space<vmem>>, vector<8x8x16x40xf32>,
    %c0_11 = arith.constant 0 : index
    %c0_12 = arith.constant 0 : index
    %c0_13 = arith.constant 0 : index
    %c0_14 = arith.constant 0 : index
    %22 = tpu.strided_load %arg9[%c0_11, %c0_12, %c0_13, %c0_14] {strides = array<i32: 1, 1, 2, 1>} : memref<8x8x16x40xf32, #tpu.memory_space<vmem>>, vector<8x8x8x40xf32>
    %c0_15 = arith.constant 0 : index
    %c0_16 = arith.constant 0 : index
    %c1 = arith.constant 1 : index
    %c0_17 = arith.constant 0 : index
    %23 = tpu.strided_load %arg9[%c0_15, %c0_16, %c1, %c0_17] {strides = array<i32: 1, 1, 2, 1>} : memref<8x8x16x40xf32, #tpu.memory_space<vmem>>, vector<8x8x8x40xf32>
    %24 = arith.maximumf %22, %23 : vector<8x8x8x40xf32>
    %cst_18 = arith.constant 0.000000e+00 : f32
    %25 = vector.broadcast %cst_18 : f32 to vector<8x8x8x40xf32>
    %26 = arith.maximumf %24, %25 : vector<8x8x8x40xf32>
    %cst_19 = arith.constant 0.000000e+00 : f32
    %27 = vector.broadcast %cst_19 : f32 to vector<8x1x8x40xf32>
    %cst_20 = arith.constant 0.000000e+00 : f32
    %28 = vector.broadcast %cst_20 : f32 to vector<8x10x1x40xf32>
    %29 = tpu.concatenate %27, %26, %27 in 1 : vector<8x1x8x40xf32>, vector<8x8x8x40xf32>, vector<8x1x8x40xf32> -> vector<8x10x8x40xf32>
    %30 = tpu.concatenate %28, %29, %28 in 2 : vector<8x10x1x40xf32>, vector<8x10x8x40xf32>, vector<8x10x1x40xf32> -> vector<8x10x10x40xf32>
    %cst_21 = arith.constant 0.000000e+00 : f32
    %31 = vector.broadcast %cst_21 : f32 to vector<512x60xf32>
    %32 = vector.extract_strided_slice %30 {offsets = [0, 0, 0, 0], sizes = [8, 8, 8, 40], strides = [1, 1, 1, 1]} : vector<8x10x10x40xf32> to vector<8x8x8x40xf32>
    %33 = vector.shape_cast %32 : vector<8x8x8x40xf32> to vector<512x40xf32>
    %c0_22 = arith.constant 0 : index
    %c0_23 = arith.constant 0 : index
    %34 = vector.load %arg4[%c0_22, %c0_23] : memref<360x60xf32, #tpu.memory_space<vmem>>, vector<40x60xf32>
    %cst_24 = arith.constant dense<0.000000e+00> : vector<512x60xf32>
    %35 = tpu.matmul %33, %34, %cst_24 {dimension_numbers = #tpu.dot_dimension_numbers<[1], [0], [0], [1], [0, 0, 1, 1], [], []>} : vector<512x40xf32>, vector<40x60xf32>, vector<512x60xf32> -> vector<512x60xf32>
    %36 = arith.addf %31, %35 : vector<512x60xf32>
    %37 = vector.extract_strided_slice %30 {offsets = [0, 0, 1, 0], sizes = [8, 8, 8, 40], strides = [1, 1, 1, 1]} : vector<8x10x10x40xf32> to vector<8x8x8x40xf32>
    %38 = vector.shape_cast %37 : vector<8x8x8x40xf32> to vector<512x40xf32>
    %c40 = arith.constant 40 : index
    %c0_25 = arith.constant 0 : index
    %39 = vector.load %arg4[%c40, %c0_25] : memref<360x60xf32, #tpu.memory_space<vmem>>, vector<40x60xf32>
    %cst_26 = arith.constant dense<0.000000e+00> : vector<512x60xf32>
    %40 = tpu.matmul %38, %39, %cst_26 {dimension_numbers = #tpu.dot_dimension_numbers<[1], [0], [0], [1], [0, 0, 1, 1], [], []>} : vector<512x40xf32>, vector<40x60xf32>, vector<512x60xf32> -> vector<512x60xf32>
    %41 = arith.addf %36, %40 : vector<512x60xf32>
    %42 = vector.extract_strided_slice %30 {offsets = [0, 0, 2, 0], sizes = [8, 8, 8, 40], strides = [1, 1, 1, 1]} : vector<8x10x10x40xf32> to vector<8x8x8x40xf32>
    %43 = vector.shape_cast %42 : vector<8x8x8x40xf32> to vector<512x40xf32>
    %c80 = arith.constant 80 : index
    %c0_27 = arith.constant 0 : index
    %44 = vector.load %arg4[%c80, %c0_27] : memref<360x60xf32, #tpu.memory_space<vmem>>, vector<40x60xf32>
    %cst_28 = arith.constant dense<0.000000e+00> : vector<512x60xf32>
    %45 = tpu.matmul %43, %44, %cst_28 {dimension_numbers = #tpu.dot_dimension_numbers<[1], [0], [0], [1], [0, 0, 1, 1], [], []>} : vector<512x40xf32>, vector<40x60xf32>, vector<512x60xf32> -> vector<512x60xf32>
    %46 = arith.addf %41, %45 : vector<512x60xf32>
    %47 = vector.extract_strided_slice %30 {offsets = [0, 1, 0, 0], sizes = [8, 8, 8, 40], strides = [1, 1, 1, 1]} : vector<8x10x10x40xf32> to vector<8x8x8x40xf32>
    %48 = vector.shape_cast %47 : vector<8x8x8x40xf32> to vector<512x40xf32>
    %c120 = arith.constant 120 : index
    %c0_29 = arith.constant 0 : index
    %49 = vector.load %arg4[%c120, %c0_29] : memref<360x60xf32, #tpu.memory_space<vmem>>, vector<40x60xf32>
    %cst_30 = arith.constant dense<0.000000e+00> : vector<512x60xf32>
    %50 = tpu.matmul %48, %49, %cst_30 {dimension_numbers = #tpu.dot_dimension_numbers<[1], [0], [0], [1], [0, 0, 1, 1], [], []>} : vector<512x40xf32>, vector<40x60xf32>, vector<512x60xf32> -> vector<512x60xf32>
    %51 = arith.addf %46, %50 : vector<512x60xf32>
    %52 = vector.extract_strided_slice %30 {offsets = [0, 1, 1, 0], sizes = [8, 8, 8, 40], strides = [1, 1, 1, 1]} : vector<8x10x10x40xf32> to vector<8x8x8x40xf32>
    %53 = vector.shape_cast %52 : vector<8x8x8x40xf32> to vector<512x40xf32>
    %c160 = arith.constant 160 : index
    %c0_31 = arith.constant 0 : index
    %54 = vector.load %arg4[%c160, %c0_31] : memref<360x60xf32, #tpu.memory_space<vmem>>, vector<40x60xf32>
    %cst_32 = arith.constant dense<0.000000e+00> : vector<512x60xf32>
    %55 = tpu.matmul %53, %54, %cst_32 {dimension_numbers = #tpu.dot_dimension_numbers<[1], [0], [0], [1], [0, 0, 1, 1], [], []>} : vector<512x40xf32>, vector<40x60xf32>, vector<512x60xf32> -> vector<512x60xf32>
    %56 = arith.addf %51, %55 : vector<512x60xf32>
    %57 = vector.extract_strided_slice %30 {offsets = [0, 1, 2, 0], sizes = [8, 8, 8, 40], strides = [1, 1, 1, 1]} : vector<8x10x10x40xf32> to vector<8x8x8x40xf32>
    %58 = vector.shape_cast %57 : vector<8x8x8x40xf32> to vector<512x40xf32>
    %c200 = arith.constant 200 : index
    %c0_33 = arith.constant 0 : index
    %59 = vector.load %arg4[%c200, %c0_33] : memref<360x60xf32, #tpu.memory_space<vmem>>, vector<40x60xf32>
    %cst_34 = arith.constant dense<0.000000e+00> : vector<512x60xf32>
    %60 = tpu.matmul %58, %59, %cst_34 {dimension_numbers = #tpu.dot_dimension_numbers<[1], [0], [0], [1], [0, 0, 1, 1], [], []>} : vector<512x40xf32>, vector<40x60xf32>, vector<512x60xf32> -> vector<512x60xf32>
    %61 = arith.addf %56, %60 : vector<512x60xf32>
    %62 = vector.extract_strided_slice %30 {offsets = [0, 2, 0, 0], sizes = [8, 8, 8, 40], strides = [1, 1, 1, 1]} : vector<8x10x10x40xf32> to vector<8x8x8x40xf32>
    %63 = vector.shape_cast %62 : vector<8x8x8x40xf32> to vector<512x40xf32>
    %c240 = arith.constant 240 : index
    %c0_35 = arith.constant 0 : index
    %64 = vector.load %arg4[%c240, %c0_35] : memref<360x60xf32, #tpu.memory_space<vmem>>, vector<40x60xf32>
    %cst_36 = arith.constant dense<0.000000e+00> : vector<512x60xf32>
    %65 = tpu.matmul %63, %64, %cst_36 {dimension_numbers = #tpu.dot_dimension_numbers<[1], [0], [0], [1], [0, 0, 1, 1], [], []>} : vector<512x40xf32>, vector<40x60xf32>, vector<512x60xf32> -> vector<512x60xf32>
    %66 = arith.addf %61, %65 : vector<512x60xf32>
    %67 = vector.extract_strided_slice %30 {offsets = [0, 2, 1, 0], sizes = [8, 8, 8, 40], strides = [1, 1, 1, 1]} : vector<8x10x10x40xf32> to vector<8x8x8x40xf32>
    %68 = vector.shape_cast %67 : vector<8x8x8x40xf32> to vector<512x40xf32>
    %c280 = arith.constant 280 : index
    %c0_37 = arith.constant 0 : index
    %69 = vector.load %arg4[%c280, %c0_37] : memref<360x60xf32, #tpu.memory_space<vmem>>, vector<40x60xf32>
    %cst_38 = arith.constant dense<0.000000e+00> : vector<512x60xf32>
    %70 = tpu.matmul %68, %69, %cst_38 {dimension_numbers = #tpu.dot_dimension_numbers<[1], [0], [0], [1], [0, 0, 1, 1], [], []>} : vector<512x40xf32>, vector<40x60xf32>, vector<512x60xf32> -> vector<512x60xf32>
    %71 = arith.addf %66, %70 : vector<512x60xf32>
    %72 = vector.extract_strided_slice %30 {offsets = [0, 2, 2, 0], sizes = [8, 8, 8, 40], strides = [1, 1, 1, 1]} : vector<8x10x10x40xf32> to vector<8x8x8x40xf32>
    %73 = vector.shape_cast %72 : vector<8x8x8x40xf32> to vector<512x40xf32>
    %c320 = arith.constant 320 : index
    %c0_39 = arith.constant 0 : index
    %74 = vector.load %arg4[%c320, %c0_39] : memref<360x60xf32, #tpu.memory_space<vmem>>, vector<40x60xf32>
    %cst_40 = arith.constant dense<0.000000e+00> : vector<512x60xf32>
    %75 = tpu.matmul %73, %74, %cst_40 {dimension_numbers = #tpu.dot_dimension_numbers<[1], [0], [0], [1], [0, 0, 1, 1], [], []>} : vector<512x40xf32>, vector<40x60xf32>, vector<512x60xf32> -> vector<512x60xf32>
    %76 = arith.addf %71, %75 : vector<512x60xf32>
    %c0_41 = arith.constant 0 : index
    %c0_42 = arith.constant 0 : index
    %77 = vector.load %arg5[%c0_41, %c0_42] : memref<1x60xf32, #tpu.memory_space<vmem>>, vector<1x60xf32>
    %78 = vector.broadcast %77 : vector<1x60xf32> to vector<512x60xf32>
    %79 = arith.addf %76, %78 : vector<512x60xf32>
    %80 = vector.shape_cast %79 : vector<512x60xf32> to vector<32x2x8x60xf32>
    %cst_43 = arith.constant dense<0xFF800000> : vector<32x8x60xf32>
    %81 = vector.multi_reduction <maximumf>, %80, %cst_43 [1] : vector<32x2x8x60xf32> to vector<32x8x60xf32>
    %82 = vector.shape_cast %81 : vector<32x8x60xf32> to vector<8x4x8x60xf32>
    %c0_44 = arith.constant 0 : index
    %c0_45 = arith.constant 0 : index
    %c0_46 = arith.constant 0 : index
    %c0_47 = arith.constant 0 : index
    %83 = vector.load %arg10[%c0_44, %c0_45, %c0_46, %c0_47] : memref<8x4x8x60xf32, #tpu.memory_space<vmem>>, vector<8x4x8x60xf32>
    tpu.vector_store %arg10[%c0_44, %c0_45, %c0_46, %c0_47], %82 {strides = array<i32>} : memref<8x4x8x60xf32, #tpu.memory_space<vmem>>, vector<8x4x8x60xf32>,
    %c0_48 = arith.constant 0 : index
    %c0_49 = arith.constant 0 : index
    %c0_50 = arith.constant 0 : index
    %c0_51 = arith.constant 0 : index
    %84 = tpu.strided_load %arg10[%c0_48, %c0_49, %c0_50, %c0_51] {strides = array<i32: 1, 1, 2, 1>} : memref<8x4x8x60xf32, #tpu.memory_space<vmem>>, vector<8x4x4x60xf32>
    %c0_52 = arith.constant 0 : index
    %c0_53 = arith.constant 0 : index
    %c1_54 = arith.constant 1 : index
    %c0_55 = arith.constant 0 : index
    %85 = tpu.strided_load %arg10[%c0_52, %c0_53, %c1_54, %c0_55] {strides = array<i32: 1, 1, 2, 1>} : memref<8x4x8x60xf32, #tpu.memory_space<vmem>>, vector<8x4x4x60xf32>
    %86 = arith.maximumf %84, %85 : vector<8x4x4x60xf32>
    %cst_56 = arith.constant 0.000000e+00 : f32
    %87 = vector.broadcast %cst_56 : f32 to vector<8x4x4x60xf32>
    %88 = arith.maximumf %86, %87 : vector<8x4x4x60xf32>
    %cst_57 = arith.constant dense<0.000000e+00> : vector<8x4x60xf32>
    %89 = vector.multi_reduction <add>, %88, %cst_57 [1] : vector<8x4x4x60xf32> to vector<8x4x60xf32>
    %cst_58 = arith.constant 4.000000e+00 : f32
    %90 = vector.broadcast %cst_58 : f32 to vector<8x4x60xf32>
    %91 = arith.divf %89, %90 : vector<8x4x60xf32>
    %92 = vector.shape_cast %91 : vector<8x4x60xf32> to vector<32x60xf32>
    %c0_59 = arith.constant 0 : index
    %c0_60 = arith.constant 0 : index
    %93 = vector.load %arg6[%c0_59, %c0_60] : memref<60x32xf32, #tpu.memory_space<vmem>>, vector<60x32xf32>
    %cst_61 = arith.constant dense<0.000000e+00> : vector<32x32xf32>
    %94 = tpu.matmul %92, %93, %cst_61 {dimension_numbers = #tpu.dot_dimension_numbers<[1], [0], [0], [1], [0, 0, 1, 1], [], []>} : vector<32x60xf32>, vector<60x32xf32>, vector<32x32xf32> -> vector<32x32xf32>
    %c0_62 = arith.constant 0 : index
    %c0_63 = arith.constant 0 : index
    %95 = vector.load %arg7[%c0_62, %c0_63] : memref<1x32xf32, #tpu.memory_space<vmem>>, vector<1x32xf32>
    %96 = vector.broadcast %95 : vector<1x32xf32> to vector<32x32xf32>
    %97 = arith.addf %94, %96 : vector<32x32xf32>
    %98 = vector.shape_cast %97 : vector<32x32xf32> to vector<8x4x32xf32>
    %cst_64 = arith.constant dense<0xFF800000> : vector<8x4xf32>
    %99 = vector.multi_reduction <maximumf>, %98, %cst_64 [2] : vector<8x4x32xf32> to vector<8x4xf32>
    %100 = vector.shape_cast %99 : vector<8x4xf32> to vector<8x4x1xf32>
    %101 = vector.broadcast %100 : vector<8x4x1xf32> to vector<8x4x32xf32>
    %102 = arith.subf %98, %101 : vector<8x4x32xf32>
    %103 = math.exp %102 : vector<8x4x32xf32>
    %cst_65 = arith.constant dense<0.000000e+00> : vector<8x4xf32>
    %104 = vector.multi_reduction <add>, %103, %cst_65 [2] : vector<8x4x32xf32> to vector<8x4xf32>
    %105 = vector.shape_cast %104 : vector<8x4xf32> to vector<8x4x1xf32>
    %106 = math.log %105 : vector<8x4x1xf32>
    %107 = vector.broadcast %106 : vector<8x4x1xf32> to vector<8x4x32xf32>
    %108 = arith.subf %102, %107 : vector<8x4x32xf32>
    %109 = vector.shape_cast %108 : vector<8x4x32xf32> to vector<8x128xf32>
    %c0_66 = arith.constant 0 : index
    %c0_67 = arith.constant 0 : index
    %110 = vector.load %arg8[%c0_66, %c0_67] : memref<8x128xf32, #tpu.memory_space<vmem>>, vector<8x128xf32>
    tpu.vector_store %arg8[%c0_66, %c0_67], %109 {strides = array<i32>} : memref<8x128xf32, #tpu.memory_space<vmem>>, vector<8x128xf32>,
    return
  }
  func.func @transform_0(%arg0: i32) -> (i32, i32, i32) {
    %c0_i32 = arith.constant 0 : i32
    %c0_i32_0 = arith.constant 0 : i32
    %c0_i32_1 = arith.constant 0 : i32
    return %arg0, %c0_i32, %c0_i32_0 : i32, i32, i32
  }
  func.func @transform_1(%arg0: i32) -> (i32, i32) {
    %c0_i32 = arith.constant 0 : i32
    %c0_i32_0 = arith.constant 0 : i32
    %c0_i32_1 = arith.constant 0 : i32
    return %c0_i32, %c0_i32_0 : i32, i32
  }
  func.func @transform_2(%arg0: i32) -> (i32, i32) {
    %c0_i32 = arith.constant 0 : i32
    %c0_i32_0 = arith.constant 0 : i32
    %c0_i32_1 = arith.constant 0 : i32
    return %c0_i32, %c0_i32_0 : i32, i32
  }
  func.func @transform_3(%arg0: i32) -> (i32, i32) {
    %c0_i32 = arith.constant 0 : i32
    %c0_i32_0 = arith.constant 0 : i32
    %c0_i32_1 = arith.constant 0 : i32
    return %c0_i32, %c0_i32_0 : i32, i32
  }
  func.func @transform_4(%arg0: i32) -> (i32, i32) {
    %c0_i32 = arith.constant 0 : i32
    %c0_i32_0 = arith.constant 0 : i32
    %c0_i32_1 = arith.constant 0 : i32
    return %c0_i32, %c0_i32_0 : i32, i32
  }
  func.func @transform_5(%arg0: i32) -> (i32, i32) {
    %c0_i32 = arith.constant 0 : i32
    %c0_i32_0 = arith.constant 0 : i32
    %c0_i32_1 = arith.constant 0 : i32
    return %c0_i32, %c0_i32_0 : i32, i32
  }
  func.func @transform_6(%arg0: i32) -> (i32, i32) {
    %c0_i32 = arith.constant 0 : i32
    %c0_i32_0 = arith.constant 0 : i32
    %c0_i32_1 = arith.constant 0 : i32
    return %c0_i32, %c0_i32_0 : i32, i32
  }
  func.func @transform_7(%arg0: i32) -> (i32, i32) {
    %c0_i32 = arith.constant 0 : i32
    %c0_i32_0 = arith.constant 0 : i32
    return %arg0, %c0_i32 : i32, i32
  }
}

</mosaic_0001>

<llo_original>
// kernel: tpu_custom_call.1
$region0: #{tpu_custom_call.1}
  #allocation0 [shape = 'u32[]', space=smem, size = 0x4, offset = 0x4, fixed_abs, tag = 'smem constant byte address 0x4 - core index']
  #allocation1 [shape = 'u32[72,128]{1,0:T(1,128)}', space=vmem, size = 0x9000, scoped, tag = 'internal scratch']
  #allocation2 [shape = 'f32[8,8,16,40]{3,2,1,0:T(8,128)}', space=vmem, size = 0x80000, scoped, tag = 'scratch operand']
  #allocation3 [shape = 'f32[8,4,8,60]{3,2,1,0:T(8,128)}', space=vmem, size = 0x20000, scoped, tag = 'scratch operand']
  %s0 = inlined_call_operand.vmem [shape: f32[8,18,18], index: 0, kind: input, shape index: {}]
  %s1 = inlined_call_operand.vmem [shape: f32[9,40], index: 1, kind: input, shape index: {}]
  %s2 = inlined_call_operand.vmem [shape: f32[1,40], index: 2, kind: input, shape index: {}]
  %s3 = inlined_call_operand.vmem [shape: f32[360,60], index: 3, kind: input, shape index: {}]
  %s4 = inlined_call_operand.vmem [shape: f32[1,60], index: 4, kind: input, shape index: {}]
  %s5 = inlined_call_operand.vmem [shape: f32[60,32], index: 5, kind: input, shape index: {}]
  %s6 = inlined_call_operand.vmem [shape: f32[1,32], index: 6, kind: input, shape index: {}]
  %s7 = inlined_call_operand.hbm [shape: f32[8,128], index: 7, kind: output, shape index: {}]
  %s8 = sld [smem:[#allocation0]]
  $region38: #{tpu_custom_call.1} parent=0
    _
  %s10 = ssub.s32 1, %s8
  %s11 = scalar_select 0, %s10, %s8
  $region1: #{tpu_custom_call.1} parent=0
    #allocation4 [shape = 'u8[4096]{0}', space=vmem, size = 0x1000, scoped, tag = 'output window, operand 0, single buffered']
    #allocation5 [shape = 's32[1]{0}', space=sflag, size = 0x4, scoped, tag = 'scoped memory for tpu_custom_call.1']
    %12 = vsyncpa [#allocation5], 0
    // Predicated region
    $region2: #{tpu_custom_call.1} parent=1 // pred_check
      _
    $region3: #{tpu_custom_call.1} parent=1 // pred_check_branch
      %14 = sbr.rel (0) target = $region5
    $region4: #{tpu_custom_call.1} parent=1 // pred_region
      _
    $region5: #{tpu_custom_call.1} parent=1 // pred_fallthru
      _
    // Predicated region
    $region6: #{tpu_custom_call.1} parent=1 // pred_check
      _
    $region7: #{tpu_custom_call.1} parent=1 // pred_check_branch
      %16 = sbr.rel (0) target = $region9
    $region8: #{tpu_custom_call.1} parent=1 // pred_region
      _
    $region9: #{tpu_custom_call.1} parent=1 // pred_fallthru
      _
    // Predicated region
    $region10: #{tpu_custom_call.1} parent=1 // pred_check
      _
    $region11: #{tpu_custom_call.1} parent=1 // pred_check_branch
      %18 = sbr.rel (0) target = $region13
    $region12: #{tpu_custom_call.1} parent=1 // pred_region
      _
    $region13: #{tpu_custom_call.1} parent=1 // pred_fallthru
      _
    // Predicated region
    $region14: #{tpu_custom_call.1} parent=1 // pred_check
      _
    $region15: #{tpu_custom_call.1} parent=1 // pred_check_branch
      %20 = sbr.rel (0) target = $region17
    $region16: #{tpu_custom_call.1} parent=1 // pred_region
      _
    $region17: #{tpu_custom_call.1} parent=1 // pred_fallthru
      _
    // Predicated region
    $region18: #{tpu_custom_call.1} parent=1 // pred_check
      _
    $region19: #{tpu_custom_call.1} parent=1 // pred_check_branch
      %22 = sbr.rel (0) target = $region21
    $region20: #{tpu_custom_call.1} parent=1 // pred_region
      _
    $region21: #{tpu_custom_call.1} parent=1 // pred_fallthru
      _
    // Predicated region
    $region22: #{tpu_custom_call.1} parent=1 // pred_check
      _
    $region23: #{tpu_custom_call.1} parent=1 // pred_check_branch
      %24 = sbr.rel (0) target = $region25
    $region24: #{tpu_custom_call.1} parent=1 // pred_region
      _
    $region25: #{tpu_custom_call.1} parent=1 // pred_fallthru
      _
    // Predicated region
    $region26: #{tpu_custom_call.1} parent=1 // pred_check
      _
    $region27: #{tpu_custom_call.1} parent=1 // pred_check_branch
      %26 = sbr.rel (0) target = $region29
    $region28: #{tpu_custom_call.1} parent=1 // pred_region
      _
    $region29: #{tpu_custom_call.1} parent=1 // pred_fallthru
      _
    %v27 = vld [vmem:[%s0] sm:$0xff]
    %v28 = vld [vmem:[%s0 + $0x8] sm:$0xff]
    %v29 = vld [vmem:[%s0 + $0x10] sm:$0x3]
    %v30 = vld [vmem:[%s0 + $0x18] sm:$0xff]
    %v31 = vld [vmem:[%s0 + $0x20] sm:$0xff]
    %v32 = vld [vmem:[%s0 + $0x28] sm:$0x3]
    %v33 = vld [vmem:[%s0 + $0x30] sm:$0xff]
    %v34 = vld [vmem:[%s0 + $0x38] sm:$0xff]
    %v35 = vld [vmem:[%s0 + $0x40] sm:$0x3]
    %v36 = vld [vmem:[%s0 + $0x48] sm:$0xff]
    %v37 = vld [vmem:[%s0 + $0x50] sm:$0xff]
    %v38 = vld [vmem:[%s0 + $0x58] sm:$0x3]
    %v39 = vld [vmem:[%s0 + $0x60] sm:$0xff]
    %v40 = vld [vmem:[%s0 + $0x68] sm:$0xff]
    %v41 = vld [vmem:[%s0 + $0x70] sm:$0x3]
    %v42 = vld [vmem:[%s0 + $0x78] sm:$0xff]
    %v43 = vld [vmem:[%s0 + $0x80] sm:$0xff]
    %v44 = vld [vmem:[%s0 + $0x88] sm:$0x3]
    %v45 = vld [vmem:[%s0 + $0x90] sm:$0xff]
    %v46 = vld [vmem:[%s0 + $0x98] sm:$0xff]
    %v47 = vld [vmem:[%s0 + $0xa0] sm:$0x3]
    %v48 = vld [vmem:[%s0 + $0xa8] sm:$0xff]
    %v49 = vld [vmem:[%s0 + $0xb0] sm:$0xff]
    %v50 = vld [vmem:[%s0 + $0xb8] sm:$0x3]
    %v51 = vperm.slane %v27, 0
    %v52 = vlaneseq
    %v53 = vshrl.u32 %v52, 7
    %55 = vset.pattern.permute.xlu0 %v53
    %56 = vperm.xlu0 %55, %v51
    %v57 = vpop.permute.xlu0 %56
    %v58 = vlaneseq
    %v59 = vshrl.u32 %v58, 7
    %v60 = vadd.s32 %v59, 8
    %61 = vset.pattern.permute.xlu0 %v60
    %62 = vperm.xlu0 %61, %v51
    %v63 = vpop.permute.xlu0 %62
    %v64 = vlaneseq
    %v65 = vshrl.u32 %v64, 7
    %v66 = vadd.s32 %v65, 16
    %67 = vset.pattern.permute.xlu0 %v66
    %68 = vperm.xlu0 %67, %v51
    %v69 = vpop.permute.xlu0 %68
    %v70 = vperm.slane %v27, 1
    %v71 = vlaneseq
    %v72 = vshrl.u32 %v71, 7
    %74 = vset.pattern.permute.xlu0 %v72
    %75 = vperm.xlu0 %74, %v70
    %v76 = vpop.permute.xlu0 %75
    %v77 = vlaneseq
    %v78 = vshrl.u32 %v77, 7
    %v79 = vadd.s32 %v78, 8
    %80 = vset.pattern.permute.xlu0 %v79
    %81 = vperm.xlu0 %80, %v70
    %v82 = vpop.permute.xlu0 %81
    %v83 = vlaneseq
    %v84 = vshrl.u32 %v83, 7
    %v85 = vadd.s32 %v84, 16
    %86 = vset.pattern.permute.xlu0 %v85
    %87 = vperm.xlu0 %86, %v70
    %v88 = vpop.permute.xlu0 %87
    %v89 = vperm.slane %v27, 2
    %v90 = vlaneseq
    %v91 = vshrl.u32 %v90, 7
    %93 = vset.pattern.permute.xlu0 %v91
    %94 = vperm.xlu0 %93, %v89
    %v95 = vpop.permute.xlu0 %94
    %v96 = vlaneseq
    %v97 = vshrl.u32 %v96, 7
    %v98 = vadd.s32 %v97, 8
    %99 = vset.pattern.permute.xlu0 %v98
    %100 = vperm.xlu0 %99, %v89
    %v101 = vpop.permute.xlu0 %100
    %v102 = vlaneseq
    %v103 = vshrl.u32 %v102, 7
    %v104 = vadd.s32 %v103, 16
    %105 = vset.pattern.permute.xlu0 %v104
    %106 = vperm.xlu0 %105, %v89
    %v107 = vpop.permute.xlu0 %106
    %v108 = vperm.slane %v27, 3
    %v109 = vlaneseq
    %v110 = vshrl.u32 %v109, 7
    %112 = vset.pattern.permute.xlu0 %v110
    %113 = vperm.xlu0 %112, %v108
    %v114 = vpop.permute.xlu0 %113
    %v115 = vlaneseq
    %v116 = vshrl.u32 %v115, 7
    %v117 = vadd.s32 %v116, 8
    %118 = vset.pattern.permute.xlu0 %v117
    %119 = vperm.xlu0 %118, %v108
    %v120 = vpop.permute.xlu0 %119
    %v121 = vlaneseq
    %v122 = vshrl.u32 %v121, 7
    %v123 = vadd.s32 %v122, 16
    %124 = vset.pattern.permute.xlu0 %v123
    %125 = vperm.xlu0 %124, %v108
    %v126 = vpop.permute.xlu0 %125
    %v127 = vperm.slane %v27, 4
    %v128 = vlaneseq
    %v129 = vshrl.u32 %v128, 7
    %131 = vset.pattern.permute.xlu0 %v129
    %132 = vperm.xlu0 %131, %v127
    %v133 = vpop.permute.xlu0 %132
    %v134 = vlaneseq
    %v135 = vshrl.u32 %v134, 7
    %v136 = vadd.s32 %v135, 8
    %137 = vset.pattern.permute.xlu0 %v136
    %138 = vperm.xlu0 %137, %v127
    %v139 = vpop.permute.xlu0 %138
    %v140 = vlaneseq
    %v141 = vshrl.u32 %v140, 7
    %v142 = vadd.s32 %v141, 16
    %143 = vset.pattern.permute.xlu0 %v142
    %144 = vperm.xlu0 %143, %v127
    %v145 = vpop.permute.xlu0 %144
    %v146 = vperm.slane %v27, 5
    %v147 = vlaneseq
    %v148 = vshrl.u32 %v147, 7
    %150 = vset.pattern.permute.xlu0 %v148
    %151 = vperm.xlu0 %150, %v146
    %v152 = vpop.permute.xlu0 %151
    %v153 = vlaneseq
    %v154 = vshrl.u32 %v153, 7
    %v155 = vadd.s32 %v154, 8
    %156 = vset.pattern.permute.xlu0 %v155
    %157 = vperm.xlu0 %156, %v146
    %v158 = vpop.permute.xlu0 %157
    %v159 = vlaneseq
    %v160 = vshrl.u32 %v159, 7
    %v161 = vadd.s32 %v160, 16
    %162 = vset.pattern.permute.xlu0 %v161
    %163 = vperm.xlu0 %162, %v146
    %v164 = vpop.permute.xlu0 %163
    %v165 = vperm.slane %v27, 6
    %v166 = vlaneseq
    %v167 = vshrl.u32 %v166, 7
    %169 = vset.pattern.permute.xlu0 %v167
    %170 = vperm.xlu0 %169, %v165
    %v171 = vpop.permute.xlu0 %170
    %v172 = vlaneseq
    %v173 = vshrl.u32 %v172, 7
    %v174 = vadd.s32 %v173, 8
    %175 = vset.pattern.permute.xlu0 %v174
    %176 = vperm.xlu0 %175, %v165
    %v177 = vpop.permute.xlu0 %176
    %v178 = vlaneseq
    %v179 = vshrl.u32 %v178, 7
    %v180 = vadd.s32 %v179, 16
    %181 = vset.pattern.permute.xlu0 %v180
    %182 = vperm.xlu0 %181, %v165
    %v183 = vpop.permute.xlu0 %182
    %v184 = vperm.slane %v27, 7
    %v185 = vlaneseq
    %v186 = vshrl.u32 %v185, 7
    %188 = vset.pattern.permute.xlu0 %v186
    %189 = vperm.xlu0 %188, %v184
    %v190 = vpop.permute.xlu0 %189
    %v191 = vlaneseq
    %v192 = vshrl.u32 %v191, 7
    %v193 = vadd.s32 %v192, 8
    %194 = vset.pattern.permute.xlu0 %v193
    %195 = vperm.xlu0 %194, %v184
    %v196 = vpop.permute.xlu0 %195
    %v197 = vlaneseq
    %v198 = vshrl.u32 %v197, 7
    %v199 = vadd.s32 %v198, 16
    %200 = vset.pattern.permute.xlu0 %v199
    %201 = vperm.xlu0 %200, %v184
    %v202 = vpop.permute.xlu0 %201
    %v203 = vperm.slane %v28, 0
    %v204 = vlaneseq
    %v205 = vshrl.u32 %v204, 7
    %207 = vset.pattern.permute.xlu0 %v205
    %208 = vperm.xlu0 %207, %v203
    %v209 = vpop.permute.xlu0 %208
    %v210 = vlaneseq
    %v211 = vshrl.u32 %v210, 7
    %v212 = vadd.s32 %v211, 8
    %213 = vset.pattern.permute.xlu0 %v212
    %214 = vperm.xlu0 %213, %v203
    %v215 = vpop.permute.xlu0 %214
    %v216 = vlaneseq
    %v217 = vshrl.u32 %v216, 7
    %v218 = vadd.s32 %v217, 16
    %219 = vset.pattern.permute.xlu0 %v218
    %220 = vperm.xlu0 %219, %v203
    %v221 = vpop.permute.xlu0 %220
    %v222 = vperm.slane %v28, 1
    %v223 = vlaneseq
    %v224 = vshrl.u32 %v223, 7
    %226 = vset.pattern.permute.xlu0 %v224
    %227 = vperm.xlu0 %226, %v222
    %v228 = vpop.permute.xlu0 %227
    %v229 = vlaneseq
    %v230 = vshrl.u32 %v229, 7
    %v231 = vadd.s32 %v230, 8
    %232 = vset.pattern.permute.xlu0 %v231
    %233 = vperm.xlu0 %232, %v222
    %v234 = vpop.permute.xlu0 %233
    %v235 = vlaneseq
    %v236 = vshrl.u32 %v235, 7
    %v237 = vadd.s32 %v236, 16
    %238 = vset.pattern.permute.xlu0 %v237
    %239 = vperm.xlu0 %238, %v222
    %v240 = vpop.permute.xlu0 %239
    %v241 = vperm.slane %v28, 2
    %v242 = vlaneseq
    %v243 = vshrl.u32 %v242, 7
    %245 = vset.pattern.permute.xlu0 %v243
    %246 = vperm.xlu0 %245, %v241
    %v247 = vpop.permute.xlu0 %246
    %v248 = vlaneseq
    %v249 = vshrl.u32 %v248, 7
    %v250 = vadd.s32 %v249, 8
    %251 = vset.pattern.permute.xlu0 %v250
    %252 = vperm.xlu0 %251, %v241
    %v253 = vpop.permute.xlu0 %252
    %v254 = vlaneseq
    %v255 = vshrl.u32 %v254, 7
    %v256 = vadd.s32 %v255, 16
    %257 = vset.pattern.permute.xlu0 %v256
    %258 = vperm.xlu0 %257, %v241
    %v259 = vpop.permute.xlu0 %258
    %v260 = vperm.slane %v28, 3
    %v261 = vlaneseq
    %v262 = vshrl.u32 %v261, 7
    %264 = vset.pattern.permute.xlu0 %v262
    %265 = vperm.xlu0 %264, %v260
    %v266 = vpop.permute.xlu0 %265
    %v267 = vlaneseq
    %v268 = vshrl.u32 %v267, 7
    %v269 = vadd.s32 %v268, 8
    %270 = vset.pattern.permute.xlu0 %v269
    %271 = vperm.xlu0 %270, %v260
    %v272 = vpop.permute.xlu0 %271
    %v273 = vlaneseq
    %v274 = vshrl.u32 %v273, 7
    %v275 = vadd.s32 %v274, 16
    %276 = vset.pattern.permute.xlu0 %v275
    %277 = vperm.xlu0 %276, %v260
    %v278 = vpop.permute.xlu0 %277
    %v279 = vperm.slane %v28, 4
    %v280 = vlaneseq
    %v281 = vshrl.u32 %v280, 7
    %283 = vset.pattern.permute.xlu0 %v281
    %284 = vperm.xlu0 %283, %v279
    %v285 = vpop.permute.xlu0 %284
    %v286 = vlaneseq
    %v287 = vshrl.u32 %v286, 7
    %v288 = vadd.s32 %v287, 8
    %289 = vset.pattern.permute.xlu0 %v288
    %290 = vperm.xlu0 %289, %v279
    %v291 = vpop.permute.xlu0 %290
    %v292 = vlaneseq
    %v293 = vshrl.u32 %v292, 7
    %v294 = vadd.s32 %v293, 16
    %295 = vset.pattern.permute.xlu0 %v294
    %296 = vperm.xlu0 %295, %v279
    %v297 = vpop.permute.xlu0 %296
    %v298 = vperm.slane %v28, 5
    %v299 = vlaneseq
    %v300 = vshrl.u32 %v299, 7
    %302 = vset.pattern.permute.xlu0 %v300
    %303 = vperm.xlu0 %302, %v298
    %v304 = vpop.permute.xlu0 %303
    %v305 = vlaneseq
    %v306 = vshrl.u32 %v305, 7
    %v307 = vadd.s32 %v306, 8
    %308 = vset.pattern.permute.xlu0 %v307
    %309 = vperm.xlu0 %308, %v298
    %v310 = vpop.permute.xlu0 %309
    %v311 = vlaneseq
    %v312 = vshrl.u32 %v311, 7
    %v313 = vadd.s32 %v312, 16
    %314 = vset.pattern.permute.xlu0 %v313
    %315 = vperm.xlu0 %314, %v298
    %v316 = vpop.permute.xlu0 %315
    %v317 = vperm.slane %v28, 6
    %v318 = vlaneseq
    %v319 = vshrl.u32 %v318, 7
    %321 = vset.pattern.permute.xlu0 %v319
    %322 = vperm.xlu0 %321, %v317
    %v323 = vpop.permute.xlu0 %322
    %v324 = vlaneseq
    %v325 = vshrl.u32 %v324, 7
    %v326 = vadd.s32 %v325, 8
    %327 = vset.pattern.permute.xlu0 %v326
    %328 = vperm.xlu0 %327, %v317
    %v329 = vpop.permute.xlu0 %328
    %v330 = vlaneseq
    %v331 = vshrl.u32 %v330, 7
    %v332 = vadd.s32 %v331, 16
    %333 = vset.pattern.permute.xlu0 %v332
    %334 = vperm.xlu0 %333, %v317
    %v335 = vpop.permute.xlu0 %334
    %v336 = vperm.slane %v28, 7
    %v337 = vlaneseq
    %v338 = vshrl.u32 %v337, 7
    %340 = vset.pattern.permute.xlu0 %v338
    %341 = vperm.xlu0 %340, %v336
    %v342 = vpop.permute.xlu0 %341
    %v343 = vlaneseq
    %v344 = vshrl.u32 %v343, 7
    %v345 = vadd.s32 %v344, 8
    %346 = vset.pattern.permute.xlu0 %v345
    %347 = vperm.xlu0 %346, %v336
    %v348 = vpop.permute.xlu0 %347
    %v349 = vlaneseq
    %v350 = vshrl.u32 %v349, 7
    %v351 = vadd.s32 %v350, 16
    %352 = vset.pattern.permute.xlu0 %v351
    %353 = vperm.xlu0 %352, %v336
    %v354 = vpop.permute.xlu0 %353
    %v355 = vperm.slane %v29, 0
    %v356 = vlaneseq
    %v357 = vshrl.u32 %v356, 7
    %359 = vset.pattern.permute.xlu0 %v357
    %360 = vperm.xlu0 %359, %v355
    %v361 = vpop.permute.xlu0 %360
    %v362 = vlaneseq
    %v363 = vshrl.u32 %v362, 7
    %v364 = vadd.s32 %v363, 8
    %365 = vset.pattern.permute.xlu0 %v364
    %366 = vperm.xlu0 %365, %v355
    %v367 = vpop.permute.xlu0 %366
    %v368 = vlaneseq
    %v369 = vshrl.u32 %v368, 7
    %v370 = vadd.s32 %v369, 16
    %371 = vset.pattern.permute.xlu0 %v370
    %372 = vperm.xlu0 %371, %v355
    %v373 = vpop.permute.xlu0 %372
    %v374 = vperm.slane %v29, 1
    %v375 = vlaneseq
    %v376 = vshrl.u32 %v375, 7
    %378 = vset.pattern.permute.xlu0 %v376
    %379 = vperm.xlu0 %378, %v374
    %v380 = vpop.permute.xlu0 %379
    %v381 = vlaneseq
    %v382 = vshrl.u32 %v381, 7
    %v383 = vadd.s32 %v382, 8
    %384 = vset.pattern.permute.xlu0 %v383
    %385 = vperm.xlu0 %384, %v374
    %v386 = vpop.permute.xlu0 %385
    %v387 = vlaneseq
    %v388 = vshrl.u32 %v387, 7
    %v389 = vadd.s32 %v388, 16
    %390 = vset.pattern.permute.xlu0 %v389
    %391 = vperm.xlu0 %390, %v374
    %v392 = vpop.permute.xlu0 %391
    %v393 = vperm.slane %v30, 0
    %v394 = vlaneseq
    %v395 = vshrl.u32 %v394, 7
    %397 = vset.pattern.permute.xlu0 %v395
    %398 = vperm.xlu0 %397, %v393
    %v399 = vpop.permute.xlu0 %398
    %v400 = vlaneseq
    %v401 = vshrl.u32 %v400, 7
    %v402 = vadd.s32 %v401, 8
    %403 = vset.pattern.permute.xlu0 %v402
    %404 = vperm.xlu0 %403, %v393
    %v405 = vpop.permute.xlu0 %404
    %v406 = vlaneseq
    %v407 = vshrl.u32 %v406, 7
    %v408 = vadd.s32 %v407, 16
    %409 = vset.pattern.permute.xlu0 %v408
    %410 = vperm.xlu0 %409, %v393
    %v411 = vpop.permute.xlu0 %410
    %v412 = vperm.slane %v30, 1
    %v413 = vlaneseq
    %v414 = vshrl.u32 %v413, 7
    %416 = vset.pattern.permute.xlu0 %v414
    %417 = vperm.xlu0 %416, %v412
    %v418 = vpop.permute.xlu0 %417
    %v419 = vlaneseq
    %v420 = vshrl.u32 %v419, 7
    %v421 = vadd.s32 %v420, 8
    %422 = vset.pattern.permute.xlu0 %v421
    %423 = vperm.xlu0 %422, %v412
    %v424 = vpop.permute.xlu0 %423
    %v425 = vlaneseq
    %v426 = vshrl.u32 %v425, 7
    %v427 = vadd.s32 %v426, 16
    %428 = vset.pattern.permute.xlu0 %v427
    %429 = vperm.xlu0 %428, %v412
    %v430 = vpop.permute.xlu0 %429
    %v431 = vperm.slane %v30, 2
    %v432 = vlaneseq
    %v433 = vshrl.u32 %v432, 7
    %435 = vset.pattern.permute.xlu0 %v433
    %436 = vperm.xlu0 %435, %v431
    %v437 = vpop.permute.xlu0 %436
    %v438 = vlaneseq
    %v439 = vshrl.u32 %v438, 7
    %v440 = vadd.s32 %v439, 8
    %441 = vset.pattern.permute.xlu0 %v440
    %442 = vperm.xlu0 %441, %v431
    %v443 = vpop.permute.xlu0 %442
    %v444 = vlaneseq
    %v445 = vshrl.u32 %v444, 7
    %v446 = vadd.s32 %v445, 16
    %447 = vset.pattern.permute.xlu0 %v446
    %448 = vperm.xlu0 %447, %v431
    %v449 = vpop.permute.xlu0 %448
    %v450 = vperm.slane %v30, 3
    %v451 = vlaneseq
    %v452 = vshrl.u32 %v451, 7
    %454 = vset.pattern.permute.xlu0 %v452
    %455 = vperm.xlu0 %454, %v450
    %v456 = vpop.permute.xlu0 %455
    %v457 = vlaneseq
    %v458 = vshrl.u32 %v457, 7
    %v459 = vadd.s32 %v458, 8
    %460 = vset.pattern.permute.xlu0 %v459
    %461 = vperm.xlu0 %460, %v450
    %v462 = vpop.permute.xlu0 %461
    %v463 = vlaneseq
    %v464 = vshrl.u32 %v463, 7
    %v465 = vadd.s32 %v464, 16
    %466 = vset.pattern.permute.xlu0 %v465
    %467 = vperm.xlu0 %466, %v450
    %v468 = vpop.permute.xlu0 %467
    %v469 = vperm.slane %v30, 4
    %v470 = vlaneseq
    %v471 = vshrl.u32 %v470, 7
    %473 = vset.pattern.permute.xlu0 %v471
    %474 = vperm.xlu0 %473, %v469
    %v475 = vpop.permute.xlu0 %474
    %v476 = vlaneseq
    %v477 = vshrl.u32 %v476, 7
    %v478 = vadd.s32 %v477, 8
    %479 = vset.pattern.permute.xlu0 %v478
    %480 = vperm.xlu0 %479, %v469
    %v481 = vpop.permute.xlu0 %480
    %v482 = vlaneseq
    %v483 = vshrl.u32 %v482, 7
    %v484 = vadd.s32 %v483, 16
    %485 = vset.pattern.permute.xlu0 %v484
    %486 = vperm.xlu0 %485, %v469
    %v487 = vpop.permute.xlu0 %486
    %v488 = vperm.slane %v30, 5
    %v489 = vlaneseq
    %v490 = vshrl.u32 %v489, 7
    %492 = vset.pattern.permute.xlu0 %v490
    %493 = vperm.xlu0 %492, %v488
    %v494 = vpop.permute.xlu0 %493
    %v495 = vlaneseq
    %v496 = vshrl.u32 %v495, 7
    %v497 = vadd.s32 %v496, 8
    %498 = vset.pattern.permute.xlu0 %v497
    %499 = vperm.xlu0 %498, %v488
    %v500 = vpop.permute.xlu0 %499
    %v501 = vlaneseq
    %v502 = vshrl.u32 %v501, 7
    %v503 = vadd.s32 %v502, 16
    %504 = vset.pattern.permute.xlu0 %v503
    %505 = vperm.xlu0 %504, %v488
    %v506 = vpop.permute.xlu0 %505
    %v507 = vperm.slane %v30, 6
    %v508 = vlaneseq
    %v509 = vshrl.u32 %v508, 7
    %511 = vset.pattern.permute.xlu0 %v509
    %512 = vperm.xlu0 %511, %v507
    %v513 = vpop.permute.xlu0 %512
    %v514 = vlaneseq
    %v515 = vshrl.u32 %v514, 7
    %v516 = vadd.s32 %v515, 8
    %517 = vset.pattern.permute.xlu0 %v516
    %518 = vperm.xlu0 %517, %v507
    %v519 = vpop.permute.xlu0 %518
    %v520 = vlaneseq
    %v521 = vshrl.u32 %v520, 7
    %v522 = vadd.s32 %v521, 16
    %523 = vset.pattern.permute.xlu0 %v522
    %524 = vperm.xlu0 %523, %v507
    %v525 = vpop.permute.xlu0 %524
    %v526 = vperm.slane %v30, 7
    %v527 = vlaneseq
    %v528 = vshrl.u32 %v527, 7
    %530 = vset.pattern.permute.xlu0 %v528
    %531 = vperm.xlu0 %530, %v526
    %v532 = vpop.permute.xlu0 %531
    %v533 = vlaneseq
    %v534 = vshrl.u32 %v533, 7
    %v535 = vadd.s32 %v534, 8
    %536 = vset.pattern.permute.xlu0 %v535
    %537 = vperm.xlu0 %536, %v526
    %v538 = vpop.permute.xlu0 %537
    %v539 = vlaneseq
    %v540 = vshrl.u32 %v539, 7
    %v541 = vadd.s32 %v540, 16
    %542 = vset.pattern.permute.xlu0 %v541
    %543 = vperm.xlu0 %542, %v526
    %v544 = vpop.permute.xlu0 %543
    %v545 = vperm.slane %v31, 0
    %v546 = vlaneseq
    %v547 = vshrl.u32 %v546, 7
    %549 = vset.pattern.permute.xlu0 %v547
    %550 = vperm.xlu0 %549, %v545
    %v551 = vpop.permute.xlu0 %550
    %v552 = vlaneseq
    %v553 = vshrl.u32 %v552, 7
    %v554 = vadd.s32 %v553, 8
    %555 = vset.pattern.permute.xlu0 %v554
    %556 = vperm.xlu0 %555, %v545
    %v557 = vpop.permute.xlu0 %556
    %v558 = vlaneseq
    %v559 = vshrl.u32 %v558, 7
    %v560 = vadd.s32 %v559, 16
    %561 = vset.pattern.permute.xlu0 %v560
    %562 = vperm.xlu0 %561, %v545
    %v563 = vpop.permute.xlu0 %562
    %v564 = vperm.slane %v31, 1
    %v565 = vlaneseq
    %v566 = vshrl.u32 %v565, 7
    %568 = vset.pattern.permute.xlu0 %v566
    %569 = vperm.xlu0 %568, %v564
    %v570 = vpop.permute.xlu0 %569
    %v571 = vlaneseq
    %v572 = vshrl.u32 %v571, 7
    %v573 = vadd.s32 %v572, 8
    %574 = vset.pattern.permute.xlu0 %v573
    %575 = vperm.xlu0 %574, %v564
    %v576 = vpop.permute.xlu0 %575
    %v577 = vlaneseq
    %v578 = vshrl.u32 %v577, 7
    %v579 = vadd.s32 %v578, 16
    %580 = vset.pattern.permute.xlu0 %v579
    %581 = vperm.xlu0 %580, %v564
    %v582 = vpop.permute.xlu0 %581
    %v583 = vperm.slane %v31, 2
    %v584 = vlaneseq
    %v585 = vshrl.u32 %v584, 7
    %587 = vset.pattern.permute.xlu0 %v585
    %588 = vperm.xlu0 %587, %v583
    %v589 = vpop.permute.xlu0 %588
    %v590 = vlaneseq
    %v591 = vshrl.u32 %v590, 7
    %v592 = vadd.s32 %v591, 8
    %593 = vset.pattern.permute.xlu0 %v592
    %594 = vperm.xlu0 %593, %v583
    %v595 = vpop.permute.xlu0 %594
    %v596 = vlaneseq
    %v597 = vshrl.u32 %v596, 7
    %v598 = vadd.s32 %v597, 16
    %599 = vset.pattern.permute.xlu0 %v598
    %600 = vperm.xlu0 %599, %v583
    %v601 = vpop.permute.xlu0 %600
    %v602 = vperm.slane %v31, 3
    %v603 = vlaneseq
    %v604 = vshrl.u32 %v603, 7
    %606 = vset.pattern.permute.xlu0 %v604
    %607 = vperm.xlu0 %606, %v602
    %v608 = vpop.permute.xlu0 %607
    %v609 = vlaneseq
    %v610 = vshrl.u32 %v609, 7
    %v611 = vadd.s32 %v610, 8
    %612 = vset.pattern.permute.xlu0 %v611
    %613 = vperm.xlu0 %612, %v602
    %v614 = vpop.permute.xlu0 %613
    %v615 = vlaneseq
    %v616 = vshrl.u32 %v615, 7
    %v617 = vadd.s32 %v616, 16
    %618 = vset.pattern.permute.xlu0 %v617
    %619 = vperm.xlu0 %618, %v602
    %v620 = vpop.permute.xlu0 %619
    %v621 = vperm.slane %v31, 4
    %v622 = vlaneseq
    %v623 = vshrl.u32 %v622, 7
    %625 = vset.pattern.permute.xlu0 %v623
    %626 = vperm.xlu0 %625, %v621
    %v627 = vpop.permute.xlu0 %626
    %v628 = vlaneseq
    %v629 = vshrl.u32 %v628, 7
    %v630 = vadd.s32 %v629, 8
    %631 = vset.pattern.permute.xlu0 %v630
    %632 = vperm.xlu0 %631, %v621
    %v633 = vpop.permute.xlu0 %632
    %v634 = vlaneseq
    %v635 = vshrl.u32 %v634, 7
    %v636 = vadd.s32 %v635, 16
    %637 = vset.pattern.permute.xlu0 %v636
    %638 = vperm.xlu0 %637, %v621
    %v639 = vpop.permute.xlu0 %638
    %v640 = vperm.slane %v31, 5
    %v641 = vlaneseq
    %v642 = vshrl.u32 %v641, 7
    %644 = vset.pattern.permute.xlu0 %v642
    %645 = vperm.xlu0 %644, %v640
    %v646 = vpop.permute.xlu0 %645
    %v647 = vlaneseq
    %v648 = vshrl.u32 %v647, 7
    %v649 = vadd.s32 %v648, 8
    %650 = vset.pattern.permute.xlu0 %v649
    %651 = vperm.xlu0 %650, %v640
    %v652 = vpop.permute.xlu0 %651
    %v653 = vlaneseq
    %v654 = vshrl.u32 %v653, 7
    %v655 = vadd.s32 %v654, 16
    %656 = vset.pattern.permute.xlu0 %v655
    %657 = vperm.xlu0 %656, %v640
    %v658 = vpop.permute.xlu0 %657
    %v659 = vperm.slane %v31, 6
    %v660 = vlaneseq
    %v661 = vshrl.u32 %v660, 7
    %663 = vset.pattern.permute.xlu0 %v661
    %664 = vperm.xlu0 %663, %v659
    %v665 = vpop.permute.xlu0 %664
    %v666 = vlaneseq
    %v667 = vshrl.u32 %v666, 7
    %v668 = vadd.s32 %v667, 8
    %669 = vset.pattern.permute.xlu0 %v668
    %670 = vperm.xlu0 %669, %v659
    %v671 = vpop.permute.xlu0 %670
    %v672 = vlaneseq
    %v673 = vshrl.u32 %v672, 7
    %v674 = vadd.s32 %v673, 16
    %675 = vset.pattern.permute.xlu0 %v674
    %676 = vperm.xlu0 %675, %v659
    %v677 = vpop.permute.xlu0 %676
    %v678 = vperm.slane %v31, 7
    %v679 = vlaneseq
    %v680 = vshrl.u32 %v679, 7
    %682 = vset.pattern.permute.xlu0 %v680
    %683 = vperm.xlu0 %682, %v678
    %v684 = vpop.permute.xlu0 %683
    %v685 = vlaneseq
    %v686 = vshrl.u32 %v685, 7
    %v687 = vadd.s32 %v686, 8
    %688 = vset.pattern.permute.xlu0 %v687
    %689 = vperm.xlu0 %688, %v678
    %v690 = vpop.permute.xlu0 %689
    %v691 = vlaneseq
    %v692 = vshrl.u32 %v691, 7
    %v693 = vadd.s32 %v692, 16
    %694 = vset.pattern.permute.xlu0 %v693
    %695 = vperm.xlu0 %694, %v678
    %v696 = vpop.permute.xlu0 %695
    %v697 = vperm.slane %v32, 0
    %v698 = vlaneseq
    %v699 = vshrl.u32 %v698, 7
    %701 = vset.pattern.permute.xlu0 %v699
    %702 = vperm.xlu0 %701, %v697
    %v703 = vpop.permute.xlu0 %702
    %v704 = vlaneseq
    %v705 = vshrl.u32 %v704, 7
    %v706 = vadd.s32 %v705, 8
    %707 = vset.pattern.permute.xlu0 %v706
    %708 = vperm.xlu0 %707, %v697
    %v709 = vpop.permute.xlu0 %708
    %v710 = vlaneseq
    %v711 = vshrl.u32 %v710, 7
    %v712 = vadd.s32 %v711, 16
    %713 = vset.pattern.permute.xlu0 %v712
    %714 = vperm.xlu0 %713, %v697
    %v715 = vpop.permute.xlu0 %714
    %v716 = vperm.slane %v32, 1
    %v717 = vlaneseq
    %v718 = vshrl.u32 %v717, 7
    %720 = vset.pattern.permute.xlu0 %v718
    %721 = vperm.xlu0 %720, %v716
    %v722 = vpop.permute.xlu0 %721
    %v723 = vlaneseq
    %v724 = vshrl.u32 %v723, 7
    %v725 = vadd.s32 %v724, 8
    %726 = vset.pattern.permute.xlu0 %v725
    %727 = vperm.xlu0 %726, %v716
    %v728 = vpop.permute.xlu0 %727
    %v729 = vlaneseq
    %v730 = vshrl.u32 %v729, 7
    %v731 = vadd.s32 %v730, 16
    %732 = vset.pattern.permute.xlu0 %v731
    %733 = vperm.xlu0 %732, %v716
    %v734 = vpop.permute.xlu0 %733
    %v735 = vperm.slane %v33, 0
    %v736 = vlaneseq
    %v737 = vshrl.u32 %v736, 7
    %739 = vset.pattern.permute.xlu0 %v737
    %740 = vperm.xlu0 %739, %v735
    %v741 = vpop.permute.xlu0 %740
    %v742 = vlaneseq
    %v743 = vshrl.u32 %v742, 7
    %v744 = vadd.s32 %v743, 8
    %745 = vset.pattern.permute.xlu0 %v744
    %746 = vperm.xlu0 %745, %v735
    %v747 = vpop.permute.xlu0 %746
    %v748 = vlaneseq
    %v749 = vshrl.u32 %v748, 7
    %v750 = vadd.s32 %v749, 16
    %751 = vset.pattern.permute.xlu0 %v750
    %752 = vperm.xlu0 %751, %v735
    %v753 = vpop.permute.xlu0 %752
    %v754 = vperm.slane %v33, 1
    %v755 = vlaneseq
    %v756 = vshrl.u32 %v755, 7
    %758 = vset.pattern.permute.xlu0 %v756
    %759 = vperm.xlu0 %758, %v754
    %v760 = vpop.permute.xlu0 %759
    %v761 = vlaneseq
    %v762 = vshrl.u32 %v761, 7
    %v763 = vadd.s32 %v762, 8
    %764 = vset.pattern.permute.xlu0 %v763
    %765 = vperm.xlu0 %764, %v754
    %v766 = vpop.permute.xlu0 %765
    %v767 = vlaneseq
    %v768 = vshrl.u32 %v767, 7
    %v769 = vadd.s32 %v768, 16
    %770 = vset.pattern.permute.xlu0 %v769
    %771 = vperm.xlu0 %770, %v754
    %v772 = vpop.permute.xlu0 %771
    %v773 = vperm.slane %v33, 2
    %v774 = vlaneseq
    %v775 = vshrl.u32 %v774, 7
    %777 = vset.pattern.permute.xlu0 %v775
    %778 = vperm.xlu0 %777, %v773
    %v779 = vpop.permute.xlu0 %778
    %v780 = vlaneseq
    %v781 = vshrl.u32 %v780, 7
    %v782 = vadd.s32 %v781, 8
    %783 = vset.pattern.permute.xlu0 %v782
    %784 = vperm.xlu0 %783, %v773
    %v785 = vpop.permute.xlu0 %784
    %v786 = vlaneseq
    %v787 = vshrl.u32 %v786, 7
    %v788 = vadd.s32 %v787, 16
    %789 = vset.pattern.permute.xlu0 %v788
    %790 = vperm.xlu0 %789, %v773
    %v791 = vpop.permute.xlu0 %790
    %v792 = vperm.slane %v33, 3
    %v793 = vlaneseq
    %v794 = vshrl.u32 %v793, 7
    %796 = vset.pattern.permute.xlu0 %v794
    %797 = vperm.xlu0 %796, %v792
    %v798 = vpop.permute.xlu0 %797
    %v799 = vlaneseq
    %v800 = vshrl.u32 %v799, 7
    %v801 = vadd.s32 %v800, 8
    %802 = vset.pattern.permute.xlu0 %v801
    %803 = vperm.xlu0 %802, %v792
    %v804 = vpop.permute.xlu0 %803
    %v805 = vlaneseq
    %v806 = vshrl.u32 %v805, 7
    %v807 = vadd.s32 %v806, 16
    %808 = vset.pattern.permute.xlu0 %v807
    %809 = vperm.xlu0 %808, %v792
    %v810 = vpop.permute.xlu0 %809
    %v811 = vperm.slane %v33, 4
    %v812 = vlaneseq
    %v813 = vshrl.u32 %v812, 7
    %815 = vset.pattern.permute.xlu0 %v813
    %816 = vperm.xlu0 %815, %v811
    %v817 = vpop.permute.xlu0 %816
    %v818 = vlaneseq
    %v819 = vshrl.u32 %v818, 7
    %v820 = vadd.s32 %v819, 8
    %821 = vset.pattern.permute.xlu0 %v820
    %822 = vperm.xlu0 %821, %v811
    %v823 = vpop.permute.xlu0 %822
    %v824 = vlaneseq
    %v825 = vshrl.u32 %v824, 7
    %v826 = vadd.s32 %v825, 16
    %827 = vset.pattern.permute.xlu0 %v826
    %828 = vperm.xlu0 %827, %v811
    %v829 = vpop.permute.xlu0 %828
    %v830 = vperm.slane %v33, 5
    %v831 = vlaneseq
    %v832 = vshrl.u32 %v831, 7
    %834 = vset.pattern.permute.xlu0 %v832
    %835 = vperm.xlu0 %834, %v830
    %v836 = vpop.permute.xlu0 %835
    %v837 = vlaneseq
    %v838 = vshrl.u32 %v837, 7
    %v839 = vadd.s32 %v838, 8
    %840 = vset.pattern.permute.xlu0 %v839
    %841 = vperm.xlu0 %840, %v830
    %v842 = vpop.permute.xlu0 %841
    %v843 = vlaneseq
    %v844 = vshrl.u32 %v843, 7
    %v845 = vadd.s32 %v844, 16
    %846 = vset.pattern.permute.xlu0 %v845
    %847 = vperm.xlu0 %846, %v830
    %v848 = vpop.permute.xlu0 %847
    %v849 = vperm.slane %v33, 6
    %v850 = vlaneseq
    %v851 = vshrl.u32 %v850, 7
    %853 = vset.pattern.permute.xlu0 %v851
    %854 = vperm.xlu0 %853, %v849
    %v855 = vpop.permute.xlu0 %854
    %v856 = vlaneseq
    %v857 = vshrl.u32 %v856, 7
    %v858 = vadd.s32 %v857, 8
    %859 = vset.pattern.permute.xlu0 %v858
    %860 = vperm.xlu0 %859, %v849
    %v861 = vpop.permute.xlu0 %860
    %v862 = vlaneseq
    %v863 = vshrl.u32 %v862, 7
    %v864 = vadd.s32 %v863, 16
    %865 = vset.pattern.permute.xlu0 %v864
    %866 = vperm.xlu0 %865, %v849
    %v867 = vpop.permute.xlu0 %866
    %v868 = vperm.slane %v33, 7
    %v869 = vlaneseq
    %v870 = vshrl.u32 %v869, 7
    %872 = vset.pattern.permute.xlu0 %v870
    %873 = vperm.xlu0 %872, %v868
    %v874 = vpop.permute.xlu0 %873
    %v875 = vlaneseq
    %v876 = vshrl.u32 %v875, 7
    %v877 = vadd.s32 %v876, 8
    %878 = vset.pattern.permute.xlu0 %v877
    %879 = vperm.xlu0 %878, %v868
    %v880 = vpop.permute.xlu0 %879
    %v881 = vlaneseq
    %v882 = vshrl.u32 %v881, 7
    %v883 = vadd.s32 %v882, 16
    %884 = vset.pattern.permute.xlu0 %v883
    %885 = vperm.xlu0 %884, %v868
    %v886 = vpop.permute.xlu0 %885
    %v887 = vperm.slane %v34, 0
    %v888 = vlaneseq
    %v889 = vshrl.u32 %v888, 7
    %891 = vset.pattern.permute.xlu0 %v889
    %892 = vperm.xlu0 %891, %v887
    %v893 = vpop.permute.xlu0 %892
    %v894 = vlaneseq
    %v895 = vshrl.u32 %v894, 7
    %v896 = vadd.s32 %v895, 8
    %897 = vset.pattern.permute.xlu0 %v896
    %898 = vperm.xlu0 %897, %v887
    %v899 = vpop.permute.xlu0 %898
    %v900 = vlaneseq
    %v901 = vshrl.u32 %v900, 7
    %v902 = vadd.s32 %v901, 16
    %903 = vset.pattern.permute.xlu0 %v902
    %904 = vperm.xlu0 %903, %v887
    %v905 = vpop.permute.xlu0 %904
    %v906 = vperm.slane %v34, 1
    %v907 = vlaneseq
    %v908 = vshrl.u32 %v907, 7
    %910 = vset.pattern.permute.xlu0 %v908
    %911 = vperm.xlu0 %910, %v906
    %v912 = vpop.permute.xlu0 %911
    %v913 = vlaneseq
    %v914 = vshrl.u32 %v913, 7
    %v915 = vadd.s32 %v914, 8
    %916 = vset.pattern.permute.xlu0 %v915
    %917 = vperm.xlu0 %916, %v906
    %v918 = vpop.permute.xlu0 %917
    %v919 = vlaneseq
    %v920 = vshrl.u32 %v919, 7
    %v921 = vadd.s32 %v920, 16
    %922 = vset.pattern.permute.xlu0 %v921
    %923 = vperm.xlu0 %922, %v906
    %v924 = vpop.permute.xlu0 %923
    %v925 = vperm.slane %v34, 2
    %v926 = vlaneseq
    %v927 = vshrl.u32 %v926, 7
    %929 = vset.pattern.permute.xlu0 %v927
    %930 = vperm.xlu0 %929, %v925
    %v931 = vpop.permute.xlu0 %930
    %v932 = vlaneseq
    %v933 = vshrl.u32 %v932, 7
    %v934 = vadd.s32 %v933, 8
    %935 = vset.pattern.permute.xlu0 %v934
    %936 = vperm.xlu0 %935, %v925
    %v937 = vpop.permute.xlu0 %936
    %v938 = vlaneseq
    %v939 = vshrl.u32 %v938, 7
    %v940 = vadd.s32 %v939, 16
    %941 = vset.pattern.permute.xlu0 %v940
    %942 = vperm.xlu0 %941, %v925
    %v943 = vpop.permute.xlu0 %942
    %v944 = vperm.slane %v34, 3
    %v945 = vlaneseq
    %v946 = vshrl.u32 %v945, 7
    %948 = vset.pattern.permute.xlu0 %v946
    %949 = vperm.xlu0 %948, %v944
    %v950 = vpop.permute.xlu0 %949
    %v951 = vlaneseq
    %v952 = vshrl.u32 %v951, 7
    %v953 = vadd.s32 %v952, 8
    %954 = vset.pattern.permute.xlu0 %v953
    %955 = vperm.xlu0 %954, %v944
    %v956 = vpop.permute.xlu0 %955
    %v957 = vlaneseq
    %v958 = vshrl.u32 %v957, 7
    %v959 = vadd.s32 %v958, 16
    %960 = vset.pattern.permute.xlu0 %v959
    %961 = vperm.xlu0 %960, %v944
    %v962 = vpop.permute.xlu0 %961
    %v963 = vperm.slane %v34, 4
    %v964 = vlaneseq
    %v965 = vshrl.u32 %v964, 7
    %967 = vset.pattern.permute.xlu0 %v965
    %968 = vperm.xlu0 %967, %v963
    %v969 = vpop.permute.xlu0 %968
    %v970 = vlaneseq
    %v971 = vshrl.u32 %v970, 7
    %v972 = vadd.s32 %v971, 8
    %973 = vset.pattern.permute.xlu0 %v972
    %974 = vperm.xlu0 %973, %v963
    %v975 = vpop.permute.xlu0 %974
    %v976 = vlaneseq
    %v977 = vshrl.u32 %v976, 7
    %v978 = vadd.s32 %v977, 16
    %979 = vset.pattern.permute.xlu0 %v978
    %980 = vperm.xlu0 %979, %v963
    %v981 = vpop.permute.xlu0 %980
    %v982 = vperm.slane %v34, 5
    %v983 = vlaneseq
    %v984 = vshrl.u32 %v983, 7
    %986 = vset.pattern.permute.xlu0 %v984
    %987 = vperm.xlu0 %986, %v982
    %v988 = vpop.permute.xlu0 %987
    %v989 = vlaneseq
    %v990 = vshrl.u32 %v989, 7
    %v991 = vadd.s32 %v990, 8
    %992 = vset.pattern.permute.xlu0 %v991
    %993 = vperm.xlu0 %992, %v982
    %v994 = vpop.permute.xlu0 %993
    %v995 = vlaneseq
    %v996 = vshrl.u32 %v995, 7
    %v997 = vadd.s32 %v996, 16
    %998 = vset.pattern.permute.xlu0 %v997
    %999 = vperm.xlu0 %998, %v982
    %v1000 = vpop.permute.xlu0 %999
    %v1001 = vperm.slane %v34, 6
    %v1002 = vlaneseq
    %v1003 = vshrl.u32 %v1002, 7
    %1005 = vset.pattern.permute.xlu0 %v1003
    %1006 = vperm.xlu0 %1005, %v1001
    %v1007 = vpop.permute.xlu0 %1006
    %v1008 = vlaneseq
    %v1009 = vshrl.u32 %v1008, 7
    %v1010 = vadd.s32 %v1009, 8
    %1011 = vset.pattern.permute.xlu0 %v1010
    %1012 = vperm.xlu0 %1011, %v1001
    %v1013 = vpop.permute.xlu0 %1012
    %v1014 = vlaneseq
    %v1015 = vshrl.u32 %v1014, 7
    %v1016 = vadd.s32 %v1015, 16
    %1017 = vset.pattern.permute.xlu0 %v1016
    %1018 = vperm.xlu0 %1017, %v1001
    %v1019 = vpop.permute.xlu0 %1018
    %v1020 = vperm.slane %v34, 7
    %v1021 = vlaneseq
    %v1022 = vshrl.u32 %v1021, 7
    %1024 = vset.pattern.permute.xlu0 %v1022
    %1025 = vperm.xlu0 %1024, %v1020
    %v1026 = vpop.permute.xlu0 %1025
    %v1027 = vlaneseq
    %v1028 = vshrl.u32 %v1027, 7
    %v1029 = vadd.s32 %v1028, 8
    %1030 = vset.pattern.permute.xlu0 %v1029
    %1031 = vperm.xlu0 %1030, %v1020
    %v1032 = vpop.permute.xlu0 %1031
    %v1033 = vlaneseq
    %v1034 = vshrl.u32 %v1033, 7
    %v1035 = vadd.s32 %v1034, 16
    %1036 = vset.pattern.permute.xlu0 %v1035
    %1037 = vperm.xlu0 %1036, %v1020
    %v1038 = vpop.permute.xlu0 %1037
    %v1039 = vperm.slane %v35, 0
    %v1040 = vlaneseq
    %v1041 = vshrl.u32 %v1040, 7
    %1043 = vset.pattern.permute.xlu0 %v1041
    %1044 = vperm.xlu0 %1043, %v1039
    %v1045 = vpop.permute.xlu0 %1044
    %v1046 = vlaneseq
    %v1047 = vshrl.u32 %v1046, 7
    %v1048 = vadd.s32 %v1047, 8
    %1049 = vset.pattern.permute.xlu0 %v1048
    %1050 = vperm.xlu0 %1049, %v1039
    %v1051 = vpop.permute.xlu0 %1050
    %v1052 = vlaneseq
    %v1053 = vshrl.u32 %v1052, 7
    %v1054 = vadd.s32 %v1053, 16
    %1055 = vset.pattern.permute.xlu0 %v1054
    %1056 = vperm.xlu0 %1055, %v1039
    %v1057 = vpop.permute.xlu0 %1056
    %v1058 = vperm.slane %v35, 1
    %v1059 = vlaneseq
    %v1060 = vshrl.u32 %v1059, 7
    %1062 = vset.pattern.permute.xlu0 %v1060
    %1063 = vperm.xlu0 %1062, %v1058
    %v1064 = vpop.permute.xlu0 %1063
    %v1065 = vlaneseq
    %v1066 = vshrl.u32 %v1065, 7
    %v1067 = vadd.s32 %v1066, 8
    %1068 = vset.pattern.permute.xlu0 %v1067
    %1069 = vperm.xlu0 %1068, %v1058
    %v1070 = vpop.permute.xlu0 %1069
    %v1071 = vlaneseq
    %v1072 = vshrl.u32 %v1071, 7
    %v1073 = vadd.s32 %v1072, 16
    %1074 = vset.pattern.permute.xlu0 %v1073
    %1075 = vperm.xlu0 %1074, %v1058
    %v1076 = vpop.permute.xlu0 %1075
    %v1077 = vperm.slane %v36, 0
    %v1078 = vlaneseq
    %v1079 = vshrl.u32 %v1078, 7
    %1081 = vset.pattern.permute.xlu0 %v1079
    %1082 = vperm.xlu0 %1081, %v1077
    %v1083 = vpop.permute.xlu0 %1082
    %v1084 = vlaneseq
    %v1085 = vshrl.u32 %v1084, 7
    %v1086 = vadd.s32 %v1085, 8
    %1087 = vset.pattern.permute.xlu0 %v1086
    %1088 = vperm.xlu0 %1087, %v1077
    %v1089 = vpop.permute.xlu0 %1088
    %v1090 = vlaneseq
    %v1091 = vshrl.u32 %v1090, 7
    %v1092 = vadd.s32 %v1091, 16
    %1093 = vset.pattern.permute.xlu0 %v1092
    %1094 = vperm.xlu0 %1093, %v1077
    %v1095 = vpop.permute.xlu0 %1094
    %v1096 = vperm.slane %v36, 1
    %v1097 = vlaneseq
    %v1098 = vshrl.u32 %v1097, 7
    %1100 = vset.pattern.permute.xlu0 %v1098
    %1101 = vperm.xlu0 %1100, %v1096
    %v1102 = vpop.permute.xlu0 %1101
    %v1103 = vlaneseq
    %v1104 = vshrl.u32 %v1103, 7
    %v1105 = vadd.s32 %v1104, 8
    %1106 = vset.pattern.permute.xlu0 %v1105
    %1107 = vperm.xlu0 %1106, %v1096
    %v1108 = vpop.permute.xlu0 %1107
    %v1109 = vlaneseq
    %v1110 = vshrl.u32 %v1109, 7
    %v1111 = vadd.s32 %v1110, 16
    %1112 = vset.pattern.permute.xlu0 %v1111
    %1113 = vperm.xlu0 %1112, %v1096
    %v1114 = vpop.permute.xlu0 %1113
    %v1115 = vperm.slane %v36, 2
    %v1116 = vlaneseq
    %v1117 = vshrl.u32 %v1116, 7
    %1119 = vset.pattern.permute.xlu0 %v1117
    %1120 = vperm.xlu0 %1119, %v1115
    %v1121 = vpop.permute.xlu0 %1120
    %v1122 = vlaneseq
    %v1123 = vshrl.u32 %v1122, 7
    %v1124 = vadd.s32 %v1123, 8
    %1125 = vset.pattern.permute.xlu0 %v1124
    %1126 = vperm.xlu0 %1125, %v1115
    %v1127 = vpop.permute.xlu0 %1126
    %v1128 = vlaneseq
    %v1129 = vshrl.u32 %v1128, 7
    %v1130 = vadd.s32 %v1129, 16
    %1131 = vset.pattern.permute.xlu0 %v1130
    %1132 = vperm.xlu0 %1131, %v1115
    %v1133 = vpop.permute.xlu0 %1132
    %v1134 = vperm.slane %v36, 3
    %v1135 = vlaneseq
    %v1136 = vshrl.u32 %v1135, 7
    %1138 = vset.pattern.permute.xlu0 %v1136
    %1139 = vperm.xlu0 %1138, %v1134
    %v1140 = vpop.permute.xlu0 %1139
    %v1141 = vlaneseq
    %v1142 = vshrl.u32 %v1141, 7
    %v1143 = vadd.s32 %v1142, 8
    %1144 = vset.pattern.permute.xlu0 %v1143
    %1145 = vperm.xlu0 %1144, %v1134
    %v1146 = vpop.permute.xlu0 %1145
    %v1147 = vlaneseq
    %v1148 = vshrl.u32 %v1147, 7
    %v1149 = vadd.s32 %v1148, 16
    %1150 = vset.pattern.permute.xlu0 %v1149
    %1151 = vperm.xlu0 %1150, %v1134
    %v1152 = vpop.permute.xlu0 %1151
    %v1153 = vperm.slane %v36, 4
    %v1154 = vlaneseq
    %v1155 = vshrl.u32 %v1154, 7
    %1157 = vset.pattern.permute.xlu0 %v1155
    %1158 = vperm.xlu0 %1157, %v1153
    %v1159 = vpop.permute.xlu0 %1158
    %v1160 = vlaneseq
    %v1161 = vshrl.u32 %v1160, 7
    %v1162 = vadd.s32 %v1161, 8
    %1163 = vset.pattern.permute.xlu0 %v1162
    %1164 = vperm.xlu0 %1163, %v1153
    %v1165 = vpop.permute.xlu0 %1164
    %v1166 = vlaneseq
    %v1167 = vshrl.u32 %v1166, 7
    %v1168 = vadd.s32 %v1167, 16
    %1169 = vset.pattern.permute.xlu0 %v1168
    %1170 = vperm.xlu0 %1169, %v1153
    %v1171 = vpop.permute.xlu0 %1170
    %v1172 = vperm.slane %v36, 5
    %v1173 = vlaneseq
    %v1174 = vshrl.u32 %v1173, 7
    %1176 = vset.pattern.permute.xlu0 %v1174
    %1177 = vperm.xlu0 %1176, %v1172
    %v1178 = vpop.permute.xlu0 %1177
    %v1179 = vlaneseq
    %v1180 = vshrl.u32 %v1179, 7
    %v1181 = vadd.s32 %v1180, 8
    %1182 = vset.pattern.permute.xlu0 %v1181
    %1183 = vperm.xlu0 %1182, %v1172
    %v1184 = vpop.permute.xlu0 %1183
    %v1185 = vlaneseq
    %v1186 = vshrl.u32 %v1185, 7
    %v1187 = vadd.s32 %v1186, 16
    %1188 = vset.pattern.permute.xlu0 %v1187
    %1189 = vperm.xlu0 %1188, %v1172
    %v1190 = vpop.permute.xlu0 %1189
    %v1191 = vperm.slane %v36, 6
    %v1192 = vlaneseq
    %v1193 = vshrl.u32 %v1192, 7
    %1195 = vset.pattern.permute.xlu0 %v1193
    %1196 = vperm.xlu0 %1195, %v1191
    %v1197 = vpop.permute.xlu0 %1196
    %v1198 = vlaneseq
    %v1199 = vshrl.u32 %v1198, 7
    %v1200 = vadd.s32 %v1199, 8
    %1201 = vset.pattern.permute.xlu0 %v1200
    %1202 = vperm.xlu0 %1201, %v1191
    %v1203 = vpop.permute.xlu0 %1202
    %v1204 = vlaneseq
    %v1205 = vshrl.u32 %v1204, 7
    %v1206 = vadd.s32 %v1205, 16
    %1207 = vset.pattern.permute.xlu0 %v1206
    %1208 = vperm.xlu0 %1207, %v1191
    %v1209 = vpop.permute.xlu0 %1208
    %v1210 = vperm.slane %v36, 7
    %v1211 = vlaneseq
    %v1212 = vshrl.u32 %v1211, 7
    %1214 = vset.pattern.permute.xlu0 %v1212
    %1215 = vperm.xlu0 %1214, %v1210
    %v1216 = vpop.permute.xlu0 %1215
    %v1217 = vlaneseq
    %v1218 = vshrl.u32 %v1217, 7
    %v1219 = vadd.s32 %v1218, 8
    %1220 = vset.pattern.permute.xlu0 %v1219
    %1221 = vperm.xlu0 %1220, %v1210
    %v1222 = vpop.permute.xlu0 %1221
    %v1223 = vlaneseq
    %v1224 = vshrl.u32 %v1223, 7
    %v1225 = vadd.s32 %v1224, 16
    %1226 = vset.pattern.permute.xlu0 %v1225
    %1227 = vperm.xlu0 %1226, %v1210
    %v1228 = vpop.permute.xlu0 %1227
    %v1229 = vperm.slane %v37, 0
    %v1230 = vlaneseq
    %v1231 = vshrl.u32 %v1230, 7
    %1233 = vset.pattern.permute.xlu0 %v1231
    %1234 = vperm.xlu0 %1233, %v1229
    %v1235 = vpop.permute.xlu0 %1234
    %v1236 = vlaneseq
    %v1237 = vshrl.u32 %v1236, 7
    %v1238 = vadd.s32 %v1237, 8
    %1239 = vset.pattern.permute.xlu0 %v1238
    %1240 = vperm.xlu0 %1239, %v1229
    %v1241 = vpop.permute.xlu0 %1240
    %v1242 = vlaneseq
    %v1243 = vshrl.u32 %v1242, 7
    %v1244 = vadd.s32 %v1243, 16
    %1245 = vset.pattern.permute.xlu0 %v1244
    %1246 = vperm.xlu0 %1245, %v1229
    %v1247 = vpop.permute.xlu0 %1246
    %v1248 = vperm.slane %v37, 1
    %v1249 = vlaneseq
    %v1250 = vshrl.u32 %v1249, 7
    %1252 = vset.pattern.permute.xlu0 %v1250
    %1253 = vperm.xlu0 %1252, %v1248
    %v1254 = vpop.permute.xlu0 %1253
    %v1255 = vlaneseq
    %v1256 = vshrl.u32 %v1255, 7
    %v1257 = vadd.s32 %v1256, 8
    %1258 = vset.pattern.permute.xlu0 %v1257
    %1259 = vperm.xlu0 %1258, %v1248
    %v1260 = vpop.permute.xlu0 %1259
    %v1261 = vlaneseq
    %v1262 = vshrl.u32 %v1261, 7
    %v1263 = vadd.s32 %v1262, 16
    %1264 = vset.pattern.permute.xlu0 %v1263
    %1265 = vperm.xlu0 %1264, %v1248
    %v1266 = vpop.permute.xlu0 %1265
    %v1267 = vperm.slane %v37, 2
    %v1268 = vlaneseq
    %v1269 = vshrl.u32 %v1268, 7
    %1271 = vset.pattern.permute.xlu0 %v1269
    %1272 = vperm.xlu0 %1271, %v1267
    %v1273 = vpop.permute.xlu0 %1272
    %v1274 = vlaneseq
    %v1275 = vshrl.u32 %v1274, 7
    %v1276 = vadd.s32 %v1275, 8
    %1277 = vset.pattern.permute.xlu0 %v1276
    %1278 = vperm.xlu0 %1277, %v1267
    %v1279 = vpop.permute.xlu0 %1278
    %v1280 = vlaneseq
    %v1281 = vshrl.u32 %v1280, 7
    %v1282 = vadd.s32 %v1281, 16
    %1283 = vset.pattern.permute.xlu0 %v1282
    %1284 = vperm.xlu0 %1283, %v1267
    %v1285 = vpop.permute.xlu0 %1284
    %v1286 = vperm.slane %v37, 3
    %v1287 = vlaneseq
    %v1288 = vshrl.u32 %v1287, 7
    %1290 = vset.pattern.permute.xlu0 %v1288
    %1291 = vperm.xlu0 %1290, %v1286
    %v1292 = vpop.permute.xlu0 %1291
    %v1293 = vlaneseq
    %v1294 = vshrl.u32 %v1293, 7
    %v1295 = vadd.s32 %v1294, 8
    %1296 = vset.pattern.permute.xlu0 %v1295
    %1297 = vperm.xlu0 %1296, %v1286
    %v1298 = vpop.permute.xlu0 %1297
    %v1299 = vlaneseq
    %v1300 = vshrl.u32 %v1299, 7
    %v1301 = vadd.s32 %v1300, 16
    %1302 = vset.pattern.permute.xlu0 %v1301
    %1303 = vperm.xlu0 %1302, %v1286
    %v1304 = vpop.permute.xlu0 %1303
    %v1305 = vperm.slane %v37, 4
    %v1306 = vlaneseq
    %v1307 = vshrl.u32 %v1306, 7
    %1309 = vset.pattern.permute.xlu0 %v1307
    %1310 = vperm.xlu0 %1309, %v1305
    %v1311 = vpop.permute.xlu0 %1310
    %v1312 = vlaneseq
    %v1313 = vshrl.u32 %v1312, 7
    %v1314 = vadd.s32 %v1313, 8
    %1315 = vset.pattern.permute.xlu0 %v1314
    %1316 = vperm.xlu0 %1315, %v1305
    %v1317 = vpop.permute.xlu0 %1316
    %v1318 = vlaneseq
    %v1319 = vshrl.u32 %v1318, 7
    %v1320 = vadd.s32 %v1319, 16
    %1321 = vset.pattern.permute.xlu0 %v1320
    %1322 = vperm.xlu0 %1321, %v1305
    %v1323 = vpop.permute.xlu0 %1322
    %v1324 = vperm.slane %v37, 5
    %v1325 = vlaneseq
    %v1326 = vshrl.u32 %v1325, 7
    %1328 = vset.pattern.permute.xlu0 %v1326
    %1329 = vperm.xlu0 %1328, %v1324
    %v1330 = vpop.permute.xlu0 %1329
    %v1331 = vlaneseq
    %v1332 = vshrl.u32 %v1331, 7
    %v1333 = vadd.s32 %v1332, 8
    %1334 = vset.pattern.permute.xlu0 %v1333
    %1335 = vperm.xlu0 %1334, %v1324
    %v1336 = vpop.permute.xlu0 %1335
    %v1337 = vlaneseq
    %v1338 = vshrl.u32 %v1337, 7
    %v1339 = vadd.s32 %v1338, 16
    %1340 = vset.pattern.permute.xlu0 %v1339
    %1341 = vperm.xlu0 %1340, %v1324
    %v1342 = vpop.permute.xlu0 %1341
    %v1343 = vperm.slane %v37, 6
    %v1344 = vlaneseq
    %v1345 = vshrl.u32 %v1344, 7
    %1347 = vset.pattern.permute.xlu0 %v1345
    %1348 = vperm.xlu0 %1347, %v1343
    %v1349 = vpop.permute.xlu0 %1348
    %v1350 = vlaneseq
    %v1351 = vshrl.u32 %v1350, 7
    %v1352 = vadd.s32 %v1351, 8
    %1353 = vset.pattern.permute.xlu0 %v1352
    %1354 = vperm.xlu0 %1353, %v1343
    %v1355 = vpop.permute.xlu0 %1354
    %v1356 = vlaneseq
    %v1357 = vshrl.u32 %v1356, 7
    %v1358 = vadd.s32 %v1357, 16
    %1359 = vset.pattern.permute.xlu0 %v1358
    %1360 = vperm.xlu0 %1359, %v1343
    %v1361 = vpop.permute.xlu0 %1360
    %v1362 = vperm.slane %v37, 7
    %v1363 = vlaneseq
    %v1364 = vshrl.u32 %v1363, 7
    %1366 = vset.pattern.permute.xlu0 %v1364
    %1367 = vperm.xlu0 %1366, %v1362
    %v1368 = vpop.permute.xlu0 %1367
    %v1369 = vlaneseq
    %v1370 = vshrl.u32 %v1369, 7
    %v1371 = vadd.s32 %v1370, 8
    %1372 = vset.pattern.permute.xlu0 %v1371
    %1373 = vperm.xlu0 %1372, %v1362
    %v1374 = vpop.permute.xlu0 %1373
    %v1375 = vlaneseq
    %v1376 = vshrl.u32 %v1375, 7
    %v1377 = vadd.s32 %v1376, 16
    %1378 = vset.pattern.permute.xlu0 %v1377
    %1379 = vperm.xlu0 %1378, %v1362
    %v1380 = vpop.permute.xlu0 %1379
    %v1381 = vperm.slane %v38, 0
    %v1382 = vlaneseq
    %v1383 = vshrl.u32 %v1382, 7
    %1385 = vset.pattern.permute.xlu0 %v1383
    %1386 = vperm.xlu0 %1385, %v1381
    %v1387 = vpop.permute.xlu0 %1386
    %v1388 = vlaneseq
    %v1389 = vshrl.u32 %v1388, 7
    %v1390 = vadd.s32 %v1389, 8
    %1391 = vset.pattern.permute.xlu0 %v1390
    %1392 = vperm.xlu0 %1391, %v1381
    %v1393 = vpop.permute.xlu0 %1392
    %v1394 = vlaneseq
    %v1395 = vshrl.u32 %v1394, 7
    %v1396 = vadd.s32 %v1395, 16
    %1397 = vset.pattern.permute.xlu0 %v1396
    %1398 = vperm.xlu0 %1397, %v1381
    %v1399 = vpop.permute.xlu0 %1398
    %v1400 = vperm.slane %v38, 1
    %v1401 = vlaneseq
    %v1402 = vshrl.u32 %v1401, 7
    %1404 = vset.pattern.permute.xlu0 %v1402
    %1405 = vperm.xlu0 %1404, %v1400
    %v1406 = vpop.permute.xlu0 %1405
    %v1407 = vlaneseq
    %v1408 = vshrl.u32 %v1407, 7
    %v1409 = vadd.s32 %v1408, 8
    %1410 = vset.pattern.permute.xlu0 %v1409
    %1411 = vperm.xlu0 %1410, %v1400
    %v1412 = vpop.permute.xlu0 %1411
    %v1413 = vlaneseq
    %v1414 = vshrl.u32 %v1413, 7
    %v1415 = vadd.s32 %v1414, 16
    %1416 = vset.pattern.permute.xlu0 %v1415
    %1417 = vperm.xlu0 %1416, %v1400
    %v1418 = vpop.permute.xlu0 %1417
    %v1419 = vperm.slane %v39, 0
    %v1420 = vlaneseq
    %v1421 = vshrl.u32 %v1420, 7
    %1423 = vset.pattern.permute.xlu0 %v1421
    %1424 = vperm.xlu0 %1423, %v1419
    %v1425 = vpop.permute.xlu0 %1424
    %v1426 = vlaneseq
    %v1427 = vshrl.u32 %v1426, 7
    %v1428 = vadd.s32 %v1427, 8
    %1429 = vset.pattern.permute.xlu0 %v1428
    %1430 = vperm.xlu0 %1429, %v1419
    %v1431 = vpop.permute.xlu0 %1430
    %v1432 = vlaneseq
    %v1433 = vshrl.u32 %v1432, 7
    %v1434 = vadd.s32 %v1433, 16
    %1435 = vset.pattern.permute.xlu0 %v1434
    %1436 = vperm.xlu0 %1435, %v1419
    %v1437 = vpop.permute.xlu0 %1436
    %v1438 = vperm.slane %v39, 1
    %v1439 = vlaneseq
    %v1440 = vshrl.u32 %v1439, 7
    %1442 = vset.pattern.permute.xlu0 %v1440
    %1443 = vperm.xlu0 %1442, %v1438
    %v1444 = vpop.permute.xlu0 %1443
    %v1445 = vlaneseq
    %v1446 = vshrl.u32 %v1445, 7
    %v1447 = vadd.s32 %v1446, 8
    %1448 = vset.pattern.permute.xlu0 %v1447
    %1449 = vperm.xlu0 %1448, %v1438
    %v1450 = vpop.permute.xlu0 %1449
    %v1451 = vlaneseq
    %v1452 = vshrl.u32 %v1451, 7
    %v1453 = vadd.s32 %v1452, 16
    %1454 = vset.pattern.permute.xlu0 %v1453
    %1455 = vperm.xlu0 %1454, %v1438
    %v1456 = vpop.permute.xlu0 %1455
    %v1457 = vperm.slane %v39, 2
    %v1458 = vlaneseq
    %v1459 = vshrl.u32 %v1458, 7
    %1461 = vset.pattern.permute.xlu0 %v1459
    %1462 = vperm.xlu0 %1461, %v1457
    %v1463 = vpop.permute.xlu0 %1462
    %v1464 = vlaneseq
    %v1465 = vshrl.u32 %v1464, 7
    %v1466 = vadd.s32 %v1465, 8
    %1467 = vset.pattern.permute.xlu0 %v1466
    %1468 = vperm.xlu0 %1467, %v1457
    %v1469 = vpop.permute.xlu0 %1468
    %v1470 = vlaneseq
    %v1471 = vshrl.u32 %v1470, 7
    %v1472 = vadd.s32 %v1471, 16
    %1473 = vset.pattern.permute.xlu0 %v1472
    %1474 = vperm.xlu0 %1473, %v1457
    %v1475 = vpop.permute.xlu0 %1474
    %v1476 = vperm.slane %v39, 3
    %v1477 = vlaneseq
    %v1478 = vshrl.u32 %v1477, 7
    %1480 = vset.pattern.permute.xlu0 %v1478
    %1481 = vperm.xlu0 %1480, %v1476
    %v1482 = vpop.permute.xlu0 %1481
    %v1483 = vlaneseq
    %v1484 = vshrl.u32 %v1483, 7
    %v1485 = vadd.s32 %v1484, 8
    %1486 = vset.pattern.permute.xlu0 %v1485
    %1487 = vperm.xlu0 %1486, %v1476
    %v1488 = vpop.permute.xlu0 %1487
    %v1489 = vlaneseq
    %v1490 = vshrl.u32 %v1489, 7
    %v1491 = vadd.s32 %v1490, 16
    %1492 = vset.pattern.permute.xlu0 %v1491
    %1493 = vperm.xlu0 %1492, %v1476
    %v1494 = vpop.permute.xlu0 %1493
    %v1495 = vperm.slane %v39, 4
    %v1496 = vlaneseq
    %v1497 = vshrl.u32 %v1496, 7
    %1499 = vset.pattern.permute.xlu0 %v1497
    %1500 = vperm.xlu0 %1499, %v1495
    %v1501 = vpop.permute.xlu0 %1500
    %v1502 = vlaneseq
    %v1503 = vshrl.u32 %v1502, 7
    %v1504 = vadd.s32 %v1503, 8
    %1505 = vset.pattern.permute.xlu0 %v1504
    %1506 = vperm.xlu0 %1505, %v1495
    %v1507 = vpop.permute.xlu0 %1506
    %v1508 = vlaneseq
    %v1509 = vshrl.u32 %v1508, 7
    %v1510 = vadd.s32 %v1509, 16
    %1511 = vset.pattern.permute.xlu0 %v1510
    %1512 = vperm.xlu0 %1511, %v1495
    %v1513 = vpop.permute.xlu0 %1512
    %v1514 = vperm.slane %v39, 5
    %v1515 = vlaneseq
    %v1516 = vshrl.u32 %v1515, 7
    %1518 = vset.pattern.permute.xlu0 %v1516
    %1519 = vperm.xlu0 %1518, %v1514
    %v1520 = vpop.permute.xlu0 %1519
    %v1521 = vlaneseq
    %v1522 = vshrl.u32 %v1521, 7
    %v1523 = vadd.s32 %v1522, 8
    %1524 = vset.pattern.permute.xlu0 %v1523
    %1525 = vperm.xlu0 %1524, %v1514
    %v1526 = vpop.permute.xlu0 %1525
    %v1527 = vlaneseq
    %v1528 = vshrl.u32 %v1527, 7
    %v1529 = vadd.s32 %v1528, 16
    %1530 = vset.pattern.permute.xlu0 %v1529
    %1531 = vperm.xlu0 %1530, %v1514
    %v1532 = vpop.permute.xlu0 %1531
    %v1533 = vperm.slane %v39, 6
    %v1534 = vlaneseq
    %v1535 = vshrl.u32 %v1534, 7
    %1537 = vset.pattern.permute.xlu0 %v1535
    %1538 = vperm.xlu0 %1537, %v1533
    %v1539 = vpop.permute.xlu0 %1538
    %v1540 = vlaneseq
    %v1541 = vshrl.u32 %v1540, 7
    %v1542 = vadd.s32 %v1541, 8
    %1543 = vset.pattern.permute.xlu0 %v1542
    %1544 = vperm.xlu0 %1543, %v1533
    %v1545 = vpop.permute.xlu0 %1544
    %v1546 = vlaneseq
    %v1547 = vshrl.u32 %v1546, 7
    %v1548 = vadd.s32 %v1547, 16
    %1549 = vset.pattern.permute.xlu0 %v1548
    %1550 = vperm.xlu0 %1549, %v1533
    %v1551 = vpop.permute.xlu0 %1550
    %v1552 = vperm.slane %v39, 7
    %v1553 = vlaneseq
    %v1554 = vshrl.u32 %v1553, 7
    %1556 = vset.pattern.permute.xlu0 %v1554
    %1557 = vperm.xlu0 %1556, %v1552
    %v1558 = vpop.permute.xlu0 %1557
    %v1559 = vlaneseq
    %v1560 = vshrl.u32 %v1559, 7
    %v1561 = vadd.s32 %v1560, 8
    %1562 = vset.pattern.permute.xlu0 %v1561
    %1563 = vperm.xlu0 %1562, %v1552
    %v1564 = vpop.permute.xlu0 %1563
    %v1565 = vlaneseq
    %v1566 = vshrl.u32 %v1565, 7
    %v1567 = vadd.s32 %v1566, 16
    %1568 = vset.pattern.permute.xlu0 %v1567
    %1569 = vperm.xlu0 %1568, %v1552
    %v1570 = vpop.permute.xlu0 %1569
    %v1571 = vperm.slane %v40, 0
    %v1572 = vlaneseq
    %v1573 = vshrl.u32 %v1572, 7
    %1575 = vset.pattern.permute.xlu0 %v1573
    %1576 = vperm.xlu0 %1575, %v1571
    %v1577 = vpop.permute.xlu0 %1576
    %v1578 = vlaneseq
    %v1579 = vshrl.u32 %v1578, 7
    %v1580 = vadd.s32 %v1579, 8
    %1581 = vset.pattern.permute.xlu0 %v1580
    %1582 = vperm.xlu0 %1581, %v1571
    %v1583 = vpop.permute.xlu0 %1582
    %v1584 = vlaneseq
    %v1585 = vshrl.u32 %v1584, 7
    %v1586 = vadd.s32 %v1585, 16
    %1587 = vset.pattern.permute.xlu0 %v1586
    %1588 = vperm.xlu0 %1587, %v1571
    %v1589 = vpop.permute.xlu0 %1588
    %v1590 = vperm.slane %v40, 1
    %v1591 = vlaneseq
    %v1592 = vshrl.u32 %v1591, 7
    %1594 = vset.pattern.permute.xlu0 %v1592
    %1595 = vperm.xlu0 %1594, %v1590
    %v1596 = vpop.permute.xlu0 %1595
    %v1597 = vlaneseq
    %v1598 = vshrl.u32 %v1597, 7
    %v1599 = vadd.s32 %v1598, 8
    %1600 = vset.pattern.permute.xlu0 %v1599
    %1601 = vperm.xlu0 %1600, %v1590
    %v1602 = vpop.permute.xlu0 %1601
    %v1603 = vlaneseq
    %v1604 = vshrl.u32 %v1603, 7
    %v1605 = vadd.s32 %v1604, 16
    %1606 = vset.pattern.permute.xlu0 %v1605
    %1607 = vperm.xlu0 %1606, %v1590
    %v1608 = vpop.permute.xlu0 %1607
    %v1609 = vperm.slane %v40, 2
    %v1610 = vlaneseq
    %v1611 = vshrl.u32 %v1610, 7
    %1613 = vset.pattern.permute.xlu0 %v1611
    %1614 = vperm.xlu0 %1613, %v1609
    %v1615 = vpop.permute.xlu0 %1614
    %v1616 = vlaneseq
    %v1617 = vshrl.u32 %v1616, 7
    %v1618 = vadd.s32 %v1617, 8
    %1619 = vset.pattern.permute.xlu0 %v1618
    %1620 = vperm.xlu0 %1619, %v1609
    %v1621 = vpop.permute.xlu0 %1620
    %v1622 = vlaneseq
    %v1623 = vshrl.u32 %v1622, 7
    %v1624 = vadd.s32 %v1623, 16
    %1625 = vset.pattern.permute.xlu0 %v1624
    %1626 = vperm.xlu0 %1625, %v1609
    %v1627 = vpop.permute.xlu0 %1626
    %v1628 = vperm.slane %v40, 3
    %v1629 = vlaneseq
    %v1630 = vshrl.u32 %v1629, 7
    %1632 = vset.pattern.permute.xlu0 %v1630
    %1633 = vperm.xlu0 %1632, %v1628
    %v1634 = vpop.permute.xlu0 %1633
    %v1635 = vlaneseq
    %v1636 = vshrl.u32 %v1635, 7
    %v1637 = vadd.s32 %v1636, 8
    %1638 = vset.pattern.permute.xlu0 %v1637
    %1639 = vperm.xlu0 %1638, %v1628
    %v1640 = vpop.permute.xlu0 %1639
    %v1641 = vlaneseq
    %v1642 = vshrl.u32 %v1641, 7
    %v1643 = vadd.s32 %v1642, 16
    %1644 = vset.pattern.permute.xlu0 %v1643
    %1645 = vperm.xlu0 %1644, %v1628
    %v1646 = vpop.permute.xlu0 %1645
    %v1647 = vperm.slane %v40, 4
    %v1648 = vlaneseq
    %v1649 = vshrl.u32 %v1648, 7
    %1651 = vset.pattern.permute.xlu0 %v1649
    %1652 = vperm.xlu0 %1651, %v1647
    %v1653 = vpop.permute.xlu0 %1652
    %v1654 = vlaneseq
    %v1655 = vshrl.u32 %v1654, 7
    %v1656 = vadd.s32 %v1655, 8
    %1657 = vset.pattern.permute.xlu0 %v1656
    %1658 = vperm.xlu0 %1657, %v1647
    %v1659 = vpop.permute.xlu0 %1658
    %v1660 = vlaneseq
    %v1661 = vshrl.u32 %v1660, 7
    %v1662 = vadd.s32 %v1661, 16
    %1663 = vset.pattern.permute.xlu0 %v1662
    %1664 = vperm.xlu0 %1663, %v1647
    %v1665 = vpop.permute.xlu0 %1664
    %v1666 = vperm.slane %v40, 5
    %v1667 = vlaneseq
    %v1668 = vshrl.u32 %v1667, 7
    %1670 = vset.pattern.permute.xlu0 %v1668
    %1671 = vperm.xlu0 %1670, %v1666
    %v1672 = vpop.permute.xlu0 %1671
    %v1673 = vlaneseq
    %v1674 = vshrl.u32 %v1673, 7
    %v1675 = vadd.s32 %v1674, 8
    %1676 = vset.pattern.permute.xlu0 %v1675
    %1677 = vperm.xlu0 %1676, %v1666
    %v1678 = vpop.permute.xlu0 %1677
    %v1679 = vlaneseq
    %v1680 = vshrl.u32 %v1679, 7
    %v1681 = vadd.s32 %v1680, 16
    %1682 = vset.pattern.permute.xlu0 %v1681
    %1683 = vperm.xlu0 %1682, %v1666
    %v1684 = vpop.permute.xlu0 %1683
    %v1685 = vperm.slane %v40, 6
    %v1686 = vlaneseq
    %v1687 = vshrl.u32 %v1686, 7
    %1689 = vset.pattern.permute.xlu0 %v1687
    %1690 = vperm.xlu0 %1689, %v1685
    %v1691 = vpop.permute.xlu0 %1690
    %v1692 = vlaneseq
    %v1693 = vshrl.u32 %v1692, 7
    %v1694 = vadd.s32 %v1693, 8
    %1695 = vset.pattern.permute.xlu0 %v1694
    %1696 = vperm.xlu0 %1695, %v1685
    %v1697 = vpop.permute.xlu0 %1696
    %v1698 = vlaneseq
    %v1699 = vshrl.u32 %v1698, 7
    %v1700 = vadd.s32 %v1699, 16
    %1701 = vset.pattern.permute.xlu0 %v1700
    %1702 = vperm.xlu0 %1701, %v1685
    %v1703 = vpop.permute.xlu0 %1702
    %v1704 = vperm.slane %v40, 7
    %v1705 = vlaneseq
    %v1706 = vshrl.u32 %v1705, 7
    %1708 = vset.pattern.permute.xlu0 %v1706
    %1709 = vperm.xlu0 %1708, %v1704
    %v1710 = vpop.permute.xlu0 %1709
    %v1711 = vlaneseq
    %v1712 = vshrl.u32 %v1711, 7
    %v1713 = vadd.s32 %v1712, 8
    %1714 = vset.pattern.permute.xlu0 %v1713
    %1715 = vperm.xlu0 %1714, %v1704
    %v1716 = vpop.permute.xlu0 %1715
    %v1717 = vlaneseq
    %v1718 = vshrl.u32 %v1717, 7
    %v1719 = vadd.s32 %v1718, 16
    %1720 = vset.pattern.permute.xlu0 %v1719
    %1721 = vperm.xlu0 %1720, %v1704
    %v1722 = vpop.permute.xlu0 %1721
    %v1723 = vperm.slane %v41, 0
    %v1724 = vlaneseq
    %v1725 = vshrl.u32 %v1724, 7
    %1727 = vset.pattern.permute.xlu0 %v1725
    %1728 = vperm.xlu0 %1727, %v1723
    %v1729 = vpop.permute.xlu0 %1728
    %v1730 = vlaneseq
    %v1731 = vshrl.u32 %v1730, 7
    %v1732 = vadd.s32 %v1731, 8
    %1733 = vset.pattern.permute.xlu0 %v1732
    %1734 = vperm.xlu0 %1733, %v1723
    %v1735 = vpop.permute.xlu0 %1734
    %v1736 = vlaneseq
    %v1737 = vshrl.u32 %v1736, 7
    %v1738 = vadd.s32 %v1737, 16
    %1739 = vset.pattern.permute.xlu0 %v1738
    %1740 = vperm.xlu0 %1739, %v1723
    %v1741 = vpop.permute.xlu0 %1740
    %v1742 = vperm.slane %v41, 1
    %v1743 = vlaneseq
    %v1744 = vshrl.u32 %v1743, 7
    %1746 = vset.pattern.permute.xlu0 %v1744
    %1747 = vperm.xlu0 %1746, %v1742
    %v1748 = vpop.permute.xlu0 %1747
    %v1749 = vlaneseq
    %v1750 = vshrl.u32 %v1749, 7
    %v1751 = vadd.s32 %v1750, 8
    %1752 = vset.pattern.permute.xlu0 %v1751
    %1753 = vperm.xlu0 %1752, %v1742
    %v1754 = vpop.permute.xlu0 %1753
    %v1755 = vlaneseq
    %v1756 = vshrl.u32 %v1755, 7
    %v1757 = vadd.s32 %v1756, 16
    %1758 = vset.pattern.permute.xlu0 %v1757
    %1759 = vperm.xlu0 %1758, %v1742
    %v1760 = vpop.permute.xlu0 %1759
    %v1761 = vperm.slane %v42, 0
    %v1762 = vlaneseq
    %v1763 = vshrl.u32 %v1762, 7
    %1765 = vset.pattern.permute.xlu0 %v1763
    %1766 = vperm.xlu0 %1765, %v1761
    %v1767 = vpop.permute.xlu0 %1766
    %v1768 = vlaneseq
    %v1769 = vshrl.u32 %v1768, 7
    %v1770 = vadd.s32 %v1769, 8
    %1771 = vset.pattern.permute.xlu0 %v1770
    %1772 = vperm.xlu0 %1771, %v1761
    %v1773 = vpop.permute.xlu0 %1772
    %v1774 = vlaneseq
    %v1775 = vshrl.u32 %v1774, 7
    %v1776 = vadd.s32 %v1775, 16
    %1777 = vset.pattern.permute.xlu0 %v1776
    %1778 = vperm.xlu0 %1777, %v1761
    %v1779 = vpop.permute.xlu0 %1778
    %v1780 = vperm.slane %v42, 1
    %v1781 = vlaneseq
    %v1782 = vshrl.u32 %v1781, 7
    %1784 = vset.pattern.permute.xlu0 %v1782
    %1785 = vperm.xlu0 %1784, %v1780
    %v1786 = vpop.permute.xlu0 %1785
    %v1787 = vlaneseq
    %v1788 = vshrl.u32 %v1787, 7
    %v1789 = vadd.s32 %v1788, 8
    %1790 = vset.pattern.permute.xlu0 %v1789
    %1791 = vperm.xlu0 %1790, %v1780
    %v1792 = vpop.permute.xlu0 %1791
    %v1793 = vlaneseq
    %v1794 = vshrl.u32 %v1793, 7
    %v1795 = vadd.s32 %v1794, 16
    %1796 = vset.pattern.permute.xlu0 %v1795
    %1797 = vperm.xlu0 %1796, %v1780
    %v1798 = vpop.permute.xlu0 %1797
    %v1799 = vperm.slane %v42, 2
    %v1800 = vlaneseq
    %v1801 = vshrl.u32 %v1800, 7
    %1803 = vset.pattern.permute.xlu0 %v1801
    %1804 = vperm.xlu0 %1803, %v1799
    %v1805 = vpop.permute.xlu0 %1804
    %v1806 = vlaneseq
    %v1807 = vshrl.u32 %v1806, 7
    %v1808 = vadd.s32 %v1807, 8
    %1809 = vset.pattern.permute.xlu0 %v1808
    %1810 = vperm.xlu0 %1809, %v1799
    %v1811 = vpop.permute.xlu0 %1810
    %v1812 = vlaneseq
    %v1813 = vshrl.u32 %v1812, 7
    %v1814 = vadd.s32 %v1813, 16
    %1815 = vset.pattern.permute.xlu0 %v1814
    %1816 = vperm.xlu0 %1815, %v1799
    %v1817 = vpop.permute.xlu0 %1816
    %v1818 = vperm.slane %v42, 3
    %v1819 = vlaneseq
    %v1820 = vshrl.u32 %v1819, 7
    %1822 = vset.pattern.permute.xlu0 %v1820
    %1823 = vperm.xlu0 %1822, %v1818
    %v1824 = vpop.permute.xlu0 %1823
    %v1825 = vlaneseq
    %v1826 = vshrl.u32 %v1825, 7
    %v1827 = vadd.s32 %v1826, 8
    %1828 = vset.pattern.permute.xlu0 %v1827
    %1829 = vperm.xlu0 %1828, %v1818
    %v1830 = vpop.permute.xlu0 %1829
    %v1831 = vlaneseq
    %v1832 = vshrl.u32 %v1831, 7
    %v1833 = vadd.s32 %v1832, 16
    %1834 = vset.pattern.permute.xlu0 %v1833
    %1835 = vperm.xlu0 %1834, %v1818
    %v1836 = vpop.permute.xlu0 %1835
    %v1837 = vperm.slane %v42, 4
    %v1838 = vlaneseq
    %v1839 = vshrl.u32 %v1838, 7
    %1841 = vset.pattern.permute.xlu0 %v1839
    %1842 = vperm.xlu0 %1841, %v1837
    %v1843 = vpop.permute.xlu0 %1842
    %v1844 = vlaneseq
    %v1845 = vshrl.u32 %v1844, 7
    %v1846 = vadd.s32 %v1845, 8
    %1847 = vset.pattern.permute.xlu0 %v1846
    %1848 = vperm.xlu0 %1847, %v1837
    %v1849 = vpop.permute.xlu0 %1848
    %v1850 = vlaneseq
    %v1851 = vshrl.u32 %v1850, 7
    %v1852 = vadd.s32 %v1851, 16
    %1853 = vset.pattern.permute.xlu0 %v1852
    %1854 = vperm.xlu0 %1853, %v1837
    %v1855 = vpop.permute.xlu0 %1854
    %v1856 = vperm.slane %v42, 5
    %v1857 = vlaneseq
    %v1858 = vshrl.u32 %v1857, 7
    %1860 = vset.pattern.permute.xlu0 %v1858
    %1861 = vperm.xlu0 %1860, %v1856
    %v1862 = vpop.permute.xlu0 %1861
    %v1863 = vlaneseq
    %v1864 = vshrl.u32 %v1863, 7
    %v1865 = vadd.s32 %v1864, 8
    %1866 = vset.pattern.permute.xlu0 %v1865
    %1867 = vperm.xlu0 %1866, %v1856
    %v1868 = vpop.permute.xlu0 %1867
    %v1869 = vlaneseq
    %v1870 = vshrl.u32 %v1869, 7
    %v1871 = vadd.s32 %v1870, 16
    %1872 = vset.pattern.permute.xlu0 %v1871
    %1873 = vperm.xlu0 %1872, %v1856
    %v1874 = vpop.permute.xlu0 %1873
    %v1875 = vperm.slane %v42, 6
    %v1876 = vlaneseq
    %v1877 = vshrl.u32 %v1876, 7
    %1879 = vset.pattern.permute.xlu0 %v1877
    %1880 = vperm.xlu0 %1879, %v1875
    %v1881 = vpop.permute.xlu0 %1880
    %v1882 = vlaneseq
    %v1883 = vshrl.u32 %v1882, 7
    %v1884 = vadd.s32 %v1883, 8
    %1885 = vset.pattern.permute.xlu0 %v1884
    %1886 = vperm.xlu0 %1885, %v1875
    %v1887 = vpop.permute.xlu0 %1886
    %v1888 = vlaneseq
    %v1889 = vshrl.u32 %v1888, 7
    %v1890 = vadd.s32 %v1889, 16
    %1891 = vset.pattern.permute.xlu0 %v1890
    %1892 = vperm.xlu0 %1891, %v1875
    %v1893 = vpop.permute.xlu0 %1892
    %v1894 = vperm.slane %v42, 7
    %v1895 = vlaneseq
    %v1896 = vshrl.u32 %v1895, 7
    %1898 = vset.pattern.permute.xlu0 %v1896
    %1899 = vperm.xlu0 %1898, %v1894
    %v1900 = vpop.permute.xlu0 %1899
    %v1901 = vlaneseq
    %v1902 = vshrl.u32 %v1901, 7
    %v1903 = vadd.s32 %v1902, 8
    %1904 = vset.pattern.permute.xlu0 %v1903
    %1905 = vperm.xlu0 %1904, %v1894
    %v1906 = vpop.permute.xlu0 %1905
    %v1907 = vlaneseq
    %v1908 = vshrl.u32 %v1907, 7
    %v1909 = vadd.s32 %v1908, 16
    %1910 = vset.pattern.permute.xlu0 %v1909
    %1911 = vperm.xlu0 %1910, %v1894
    %v1912 = vpop.permute.xlu0 %1911
    %v1913 = vperm.slane %v43, 0
    %v1914 = vlaneseq
    %v1915 = vshrl.u32 %v1914, 7
    %1917 = vset.pattern.permute.xlu0 %v1915
    %1918 = vperm.xlu0 %1917, %v1913
    %v1919 = vpop.permute.xlu0 %1918
    %v1920 = vlaneseq
    %v1921 = vshrl.u32 %v1920, 7
    %v1922 = vadd.s32 %v1921, 8
    %1923 = vset.pattern.permute.xlu0 %v1922
    %1924 = vperm.xlu0 %1923, %v1913
    %v1925 = vpop.permute.xlu0 %1924
    %v1926 = vlaneseq
    %v1927 = vshrl.u32 %v1926, 7
    %v1928 = vadd.s32 %v1927, 16
    %1929 = vset.pattern.permute.xlu0 %v1928
    %1930 = vperm.xlu0 %1929, %v1913
    %v1931 = vpop.permute.xlu0 %1930
    %v1932 = vperm.slane %v43, 1
    %v1933 = vlaneseq
    %v1934 = vshrl.u32 %v1933, 7
    %1936 = vset.pattern.permute.xlu0 %v1934
    %1937 = vperm.xlu0 %1936, %v1932
    %v1938 = vpop.permute.xlu0 %1937
    %v1939 = vlaneseq
    %v1940 = vshrl.u32 %v1939, 7
    %v1941 = vadd.s32 %v1940, 8
    %1942 = vset.pattern.permute.xlu0 %v1941
    %1943 = vperm.xlu0 %1942, %v1932
    %v1944 = vpop.permute.xlu0 %1943
    %v1945 = vlaneseq
    %v1946 = vshrl.u32 %v1945, 7
    %v1947 = vadd.s32 %v1946, 16
    %1948 = vset.pattern.permute.xlu0 %v1947
    %1949 = vperm.xlu0 %1948, %v1932
    %v1950 = vpop.permute.xlu0 %1949
    %v1951 = vperm.slane %v43, 2
    %v1952 = vlaneseq
    %v1953 = vshrl.u32 %v1952, 7
    %1955 = vset.pattern.permute.xlu0 %v1953
    %1956 = vperm.xlu0 %1955, %v1951
    %v1957 = vpop.permute.xlu0 %1956
    %v1958 = vlaneseq
    %v1959 = vshrl.u32 %v1958, 7
    %v1960 = vadd.s32 %v1959, 8
    %1961 = vset.pattern.permute.xlu0 %v1960
    %1962 = vperm.xlu0 %1961, %v1951
    %v1963 = vpop.permute.xlu0 %1962
    %v1964 = vlaneseq
    %v1965 = vshrl.u32 %v1964, 7
    %v1966 = vadd.s32 %v1965, 16
    %1967 = vset.pattern.permute.xlu0 %v1966
    %1968 = vperm.xlu0 %1967, %v1951
    %v1969 = vpop.permute.xlu0 %1968
    %v1970 = vperm.slane %v43, 3
    %v1971 = vlaneseq
    %v1972 = vshrl.u32 %v1971, 7
    %1974 = vset.pattern.permute.xlu0 %v1972
    %1975 = vperm.xlu0 %1974, %v1970
    %v1976 = vpop.permute.xlu0 %1975
    %v1977 = vlaneseq
    %v1978 = vshrl.u32 %v1977, 7
    %v1979 = vadd.s32 %v1978, 8
    %1980 = vset.pattern.permute.xlu0 %v1979
    %1981 = vperm.xlu0 %1980, %v1970
    %v1982 = vpop.permute.xlu0 %1981
    %v1983 = vlaneseq
    %v1984 = vshrl.u32 %v1983, 7
    %v1985 = vadd.s32 %v1984, 16
    %1986 = vset.pattern.permute.xlu0 %v1985
    %1987 = vperm.xlu0 %1986, %v1970
    %v1988 = vpop.permute.xlu0 %1987
    %v1989 = vperm.slane %v43, 4
    %v1990 = vlaneseq
    %v1991 = vshrl.u32 %v1990, 7
    %1993 = vset.pattern.permute.xlu0 %v1991
    %1994 = vperm.xlu0 %1993, %v1989
    %v1995 = vpop.permute.xlu0 %1994
    %v1996 = vlaneseq
    %v1997 = vshrl.u32 %v1996, 7
    %v1998 = vadd.s32 %v1997, 8
    %1999 = vset.pattern.permute.xlu0 %v1998
    %2000 = vperm.xlu0 %1999, %v1989
    %v2001 = vpop.permute.xlu0 %2000
    %v2002 = vlaneseq
    %v2003 = vshrl.u32 %v2002, 7
    %v2004 = vadd.s32 %v2003, 16
    %2005 = vset.pattern.permute.xlu0 %v2004
    %2006 = vperm.xlu0 %2005, %v1989
    %v2007 = vpop.permute.xlu0 %2006
    %v2008 = vperm.slane %v43, 5
    %v2009 = vlaneseq
    %v2010 = vshrl.u32 %v2009, 7
    %2012 = vset.pattern.permute.xlu0 %v2010
    %2013 = vperm.xlu0 %2012, %v2008
    %v2014 = vpop.permute.xlu0 %2013
    %v2015 = vlaneseq
    %v2016 = vshrl.u32 %v2015, 7
    %v2017 = vadd.s32 %v2016, 8
    %2018 = vset.pattern.permute.xlu0 %v2017
    %2019 = vperm.xlu0 %2018, %v2008
    %v2020 = vpop.permute.xlu0 %2019
    %v2021 = vlaneseq
    %v2022 = vshrl.u32 %v2021, 7
    %v2023 = vadd.s32 %v2022, 16
    %2024 = vset.pattern.permute.xlu0 %v2023
    %2025 = vperm.xlu0 %2024, %v2008
    %v2026 = vpop.permute.xlu0 %2025
    %v2027 = vperm.slane %v43, 6
    %v2028 = vlaneseq
    %v2029 = vshrl.u32 %v2028, 7
    %2031 = vset.pattern.permute.xlu0 %v2029
    %2032 = vperm.xlu0 %2031, %v2027
    %v2033 = vpop.permute.xlu0 %2032
    %v2034 = vlaneseq
    %v2035 = vshrl.u32 %v2034, 7
    %v2036 = vadd.s32 %v2035, 8
    %2037 = vset.pattern.permute.xlu0 %v2036
    %2038 = vperm.xlu0 %2037, %v2027
    %v2039 = vpop.permute.xlu0 %2038
    %v2040 = vlaneseq
    %v2041 = vshrl.u32 %v2040, 7
    %v2042 = vadd.s32 %v2041, 16
    %2043 = vset.pattern.permute.xlu0 %v2042
    %2044 = vperm.xlu0 %2043, %v2027
    %v2045 = vpop.permute.xlu0 %2044
    %v2046 = vperm.slane %v43, 7
    %v2047 = vlaneseq
    %v2048 = vshrl.u32 %v2047, 7
    %2050 = vset.pattern.permute.xlu0 %v2048
    %2051 = vperm.xlu0 %2050, %v2046
    %v2052 = vpop.permute.xlu0 %2051
    %v2053 = vlaneseq
    %v2054 = vshrl.u32 %v2053, 7
    %v2055 = vadd.s32 %v2054, 8
    %2056 = vset.pattern.permute.xlu0 %v2055
    %2057 = vperm.xlu0 %2056, %v2046
    %v2058 = vpop.permute.xlu0 %2057
    %v2059 = vlaneseq
    %v2060 = vshrl.u32 %v2059, 7
    %v2061 = vadd.s32 %v2060, 16
    %2062 = vset.pattern.permute.xlu0 %v2061
    %2063 = vperm.xlu0 %2062, %v2046
    %v2064 = vpop.permute.xlu0 %2063
    %v2065 = vperm.slane %v44, 0
    %v2066 = vlaneseq
    %v2067 = vshrl.u32 %v2066, 7
    %2069 = vset.pattern.permute.xlu0 %v2067
    %2070 = vperm.xlu0 %2069, %v2065
    %v2071 = vpop.permute.xlu0 %2070
    %v2072 = vlaneseq
    %v2073 = vshrl.u32 %v2072, 7
    %v2074 = vadd.s32 %v2073, 8
    %2075 = vset.pattern.permute.xlu0 %v2074
    %2076 = vperm.xlu0 %2075, %v2065
    %v2077 = vpop.permute.xlu0 %2076
    %v2078 = vlaneseq
    %v2079 = vshrl.u32 %v2078, 7
    %v2080 = vadd.s32 %v2079, 16
    %2081 = vset.pattern.permute.xlu0 %v2080
    %2082 = vperm.xlu0 %2081, %v2065
    %v2083 = vpop.permute.xlu0 %2082
    %v2084 = vperm.slane %v44, 1
    %v2085 = vlaneseq
    %v2086 = vshrl.u32 %v2085, 7
    %2088 = vset.pattern.permute.xlu0 %v2086
    %2089 = vperm.xlu0 %2088, %v2084
    %v2090 = vpop.permute.xlu0 %2089
    %v2091 = vlaneseq
    %v2092 = vshrl.u32 %v2091, 7
    %v2093 = vadd.s32 %v2092, 8
    %2094 = vset.pattern.permute.xlu0 %v2093
    %2095 = vperm.xlu0 %2094, %v2084
    %v2096 = vpop.permute.xlu0 %2095
    %v2097 = vlaneseq
    %v2098 = vshrl.u32 %v2097, 7
    %v2099 = vadd.s32 %v2098, 16
    %2100 = vset.pattern.permute.xlu0 %v2099
    %2101 = vperm.xlu0 %2100, %v2084
    %v2102 = vpop.permute.xlu0 %2101
    %v2103 = vperm.slane %v45, 0
    %v2104 = vlaneseq
    %v2105 = vshrl.u32 %v2104, 7
    %2107 = vset.pattern.permute.xlu0 %v2105
    %2108 = vperm.xlu0 %2107, %v2103
    %v2109 = vpop.permute.xlu0 %2108
    %v2110 = vlaneseq
    %v2111 = vshrl.u32 %v2110, 7
    %v2112 = vadd.s32 %v2111, 8
    %2113 = vset.pattern.permute.xlu0 %v2112
    %2114 = vperm.xlu0 %2113, %v2103
    %v2115 = vpop.permute.xlu0 %2114
    %v2116 = vlaneseq
    %v2117 = vshrl.u32 %v2116, 7
    %v2118 = vadd.s32 %v2117, 16
    %2119 = vset.pattern.permute.xlu0 %v2118
    %2120 = vperm.xlu0 %2119, %v2103
    %v2121 = vpop.permute.xlu0 %2120
    %v2122 = vperm.slane %v45, 1
    %v2123 = vlaneseq
    %v2124 = vshrl.u32 %v2123, 7
    %2126 = vset.pattern.permute.xlu0 %v2124
    %2127 = vperm.xlu0 %2126, %v2122
    %v2128 = vpop.permute.xlu0 %2127
    %v2129 = vlaneseq
    %v2130 = vshrl.u32 %v2129, 7
    %v2131 = vadd.s32 %v2130, 8
    %2132 = vset.pattern.permute.xlu0 %v2131
    %2133 = vperm.xlu0 %2132, %v2122
    %v2134 = vpop.permute.xlu0 %2133
    %v2135 = vlaneseq
    %v2136 = vshrl.u32 %v2135, 7
    %v2137 = vadd.s32 %v2136, 16
    %2138 = vset.pattern.permute.xlu0 %v2137
    %2139 = vperm.xlu0 %2138, %v2122
    %v2140 = vpop.permute.xlu0 %2139
    %v2141 = vperm.slane %v45, 2
    %v2142 = vlaneseq
    %v2143 = vshrl.u32 %v2142, 7
    %2145 = vset.pattern.permute.xlu0 %v2143
    %2146 = vperm.xlu0 %2145, %v2141
    %v2147 = vpop.permute.xlu0 %2146
    %v2148 = vlaneseq
    %v2149 = vshrl.u32 %v2148, 7
    %v2150 = vadd.s32 %v2149, 8
    %2151 = vset.pattern.permute.xlu0 %v2150
    %2152 = vperm.xlu0 %2151, %v2141
    %v2153 = vpop.permute.xlu0 %2152
    %v2154 = vlaneseq
    %v2155 = vshrl.u32 %v2154, 7
    %v2156 = vadd.s32 %v2155, 16
    %2157 = vset.pattern.permute.xlu0 %v2156
    %2158 = vperm.xlu0 %2157, %v2141
    %v2159 = vpop.permute.xlu0 %2158
    %v2160 = vperm.slane %v45, 3
    %v2161 = vlaneseq
    %v2162 = vshrl.u32 %v2161, 7
    %2164 = vset.pattern.permute.xlu0 %v2162
    %2165 = vperm.xlu0 %2164, %v2160
    %v2166 = vpop.permute.xlu0 %2165
    %v2167 = vlaneseq
    %v2168 = vshrl.u32 %v2167, 7
    %v2169 = vadd.s32 %v2168, 8
    %2170 = vset.pattern.permute.xlu0 %v2169
    %2171 = vperm.xlu0 %2170, %v2160
    %v2172 = vpop.permute.xlu0 %2171
    %v2173 = vlaneseq
    %v2174 = vshrl.u32 %v2173, 7
    %v2175 = vadd.s32 %v2174, 16
    %2176 = vset.pattern.permute.xlu0 %v2175
    %2177 = vperm.xlu0 %2176, %v2160
    %v2178 = vpop.permute.xlu0 %2177
    %v2179 = vperm.slane %v45, 4
    %v2180 = vlaneseq
    %v2181 = vshrl.u32 %v2180, 7
    %2183 = vset.pattern.permute.xlu0 %v2181
    %2184 = vperm.xlu0 %2183, %v2179
    %v2185 = vpop.permute.xlu0 %2184
    %v2186 = vlaneseq
    %v2187 = vshrl.u32 %v2186, 7
    %v2188 = vadd.s32 %v2187, 8
    %2189 = vset.pattern.permute.xlu0 %v2188
    %2190 = vperm.xlu0 %2189, %v2179
    %v2191 = vpop.permute.xlu0 %2190
    %v2192 = vlaneseq
    %v2193 = vshrl.u32 %v2192, 7
    %v2194 = vadd.s32 %v2193, 16
    %2195 = vset.pattern.permute.xlu0 %v2194
    %2196 = vperm.xlu0 %2195, %v2179
    %v2197 = vpop.permute.xlu0 %2196
    %v2198 = vperm.slane %v45, 5
    %v2199 = vlaneseq
    %v2200 = vshrl.u32 %v2199, 7
    %2202 = vset.pattern.permute.xlu0 %v2200
    %2203 = vperm.xlu0 %2202, %v2198
    %v2204 = vpop.permute.xlu0 %2203
    %v2205 = vlaneseq
    %v2206 = vshrl.u32 %v2205, 7
    %v2207 = vadd.s32 %v2206, 8
    %2208 = vset.pattern.permute.xlu0 %v2207
    %2209 = vperm.xlu0 %2208, %v2198
    %v2210 = vpop.permute.xlu0 %2209
    %v2211 = vlaneseq
    %v2212 = vshrl.u32 %v2211, 7
    %v2213 = vadd.s32 %v2212, 16
    %2214 = vset.pattern.permute.xlu0 %v2213
    %2215 = vperm.xlu0 %2214, %v2198
    %v2216 = vpop.permute.xlu0 %2215
    %v2217 = vperm.slane %v45, 6
    %v2218 = vlaneseq
    %v2219 = vshrl.u32 %v2218, 7
    %2221 = vset.pattern.permute.xlu0 %v2219
    %2222 = vperm.xlu0 %2221, %v2217
    %v2223 = vpop.permute.xlu0 %2222
    %v2224 = vlaneseq
    %v2225 = vshrl.u32 %v2224, 7
    %v2226 = vadd.s32 %v2225, 8
    %2227 = vset.pattern.permute.xlu0 %v2226
    %2228 = vperm.xlu0 %2227, %v2217
    %v2229 = vpop.permute.xlu0 %2228
    %v2230 = vlaneseq
    %v2231 = vshrl.u32 %v2230, 7
    %v2232 = vadd.s32 %v2231, 16
    %2233 = vset.pattern.permute.xlu0 %v2232
    %2234 = vperm.xlu0 %2233, %v2217
    %v2235 = vpop.permute.xlu0 %2234
    %v2236 = vperm.slane %v45, 7
    %v2237 = vlaneseq
    %v2238 = vshrl.u32 %v2237, 7
    %2240 = vset.pattern.permute.xlu0 %v2238
    %2241 = vperm.xlu0 %2240, %v2236
    %v2242 = vpop.permute.xlu0 %2241
    %v2243 = vlaneseq
    %v2244 = vshrl.u32 %v2243, 7
    %v2245 = vadd.s32 %v2244, 8
    %2246 = vset.pattern.permute.xlu0 %v2245
    %2247 = vperm.xlu0 %2246, %v2236
    %v2248 = vpop.permute.xlu0 %2247
    %v2249 = vlaneseq
    %v2250 = vshrl.u32 %v2249, 7
    %v2251 = vadd.s32 %v2250, 16
    %2252 = vset.pattern.permute.xlu0 %v2251
    %2253 = vperm.xlu0 %2252, %v2236
    %v2254 = vpop.permute.xlu0 %2253
    %v2255 = vperm.slane %v46, 0
    %v2256 = vlaneseq
    %v2257 = vshrl.u32 %v2256, 7
    %2259 = vset.pattern.permute.xlu0 %v2257
    %2260 = vperm.xlu0 %2259, %v2255
    %v2261 = vpop.permute.xlu0 %2260
    %v2262 = vlaneseq
    %v2263 = vshrl.u32 %v2262, 7
    %v2264 = vadd.s32 %v2263, 8
    %2265 = vset.pattern.permute.xlu0 %v2264
    %2266 = vperm.xlu0 %2265, %v2255
    %v2267 = vpop.permute.xlu0 %2266
    %v2268 = vlaneseq
    %v2269 = vshrl.u32 %v2268, 7
    %v2270 = vadd.s32 %v2269, 16
    %2271 = vset.pattern.permute.xlu0 %v2270
    %2272 = vperm.xlu0 %2271, %v2255
    %v2273 = vpop.permute.xlu0 %2272
    %v2274 = vperm.slane %v46, 1
    %v2275 = vlaneseq
    %v2276 = vshrl.u32 %v2275, 7
    %2278 = vset.pattern.permute.xlu0 %v2276
    %2279 = vperm.xlu0 %2278, %v2274
    %v2280 = vpop.permute.xlu0 %2279
    %v2281 = vlaneseq
    %v2282 = vshrl.u32 %v2281, 7
    %v2283 = vadd.s32 %v2282, 8
    %2284 = vset.pattern.permute.xlu0 %v2283
    %2285 = vperm.xlu0 %2284, %v2274
    %v2286 = vpop.permute.xlu0 %2285
    %v2287 = vlaneseq
    %v2288 = vshrl.u32 %v2287, 7
    %v2289 = vadd.s32 %v2288, 16
    %2290 = vset.pattern.permute.xlu0 %v2289
    %2291 = vperm.xlu0 %2290, %v2274
    %v2292 = vpop.permute.xlu0 %2291
    %v2293 = vperm.slane %v46, 2
    %v2294 = vlaneseq
    %v2295 = vshrl.u32 %v2294, 7
    %2297 = vset.pattern.permute.xlu0 %v2295
    %2298 = vperm.xlu0 %2297, %v2293
    %v2299 = vpop.permute.xlu0 %2298
    %v2300 = vlaneseq
    %v2301 = vshrl.u32 %v2300, 7
    %v2302 = vadd.s32 %v2301, 8
    %2303 = vset.pattern.permute.xlu0 %v2302
    %2304 = vperm.xlu0 %2303, %v2293
    %v2305 = vpop.permute.xlu0 %2304
    %v2306 = vlaneseq
    %v2307 = vshrl.u32 %v2306, 7
    %v2308 = vadd.s32 %v2307, 16
    %2309 = vset.pattern.permute.xlu0 %v2308
    %2310 = vperm.xlu0 %2309, %v2293
    %v2311 = vpop.permute.xlu0 %2310
    %v2312 = vperm.slane %v46, 3
    %v2313 = vlaneseq
    %v2314 = vshrl.u32 %v2313, 7
    %2316 = vset.pattern.permute.xlu0 %v2314
    %2317 = vperm.xlu0 %2316, %v2312
    %v2318 = vpop.permute.xlu0 %2317
    %v2319 = vlaneseq
    %v2320 = vshrl.u32 %v2319, 7
    %v2321 = vadd.s32 %v2320, 8
    %2322 = vset.pattern.permute.xlu0 %v2321
    %2323 = vperm.xlu0 %2322, %v2312
    %v2324 = vpop.permute.xlu0 %2323
    %v2325 = vlaneseq
    %v2326 = vshrl.u32 %v2325, 7
    %v2327 = vadd.s32 %v2326, 16
    %2328 = vset.pattern.permute.xlu0 %v2327
    %2329 = vperm.xlu0 %2328, %v2312
    %v2330 = vpop.permute.xlu0 %2329
    %v2331 = vperm.slane %v46, 4
    %v2332 = vlaneseq
    %v2333 = vshrl.u32 %v2332, 7
    %2335 = vset.pattern.permute.xlu0 %v2333
    %2336 = vperm.xlu0 %2335, %v2331
    %v2337 = vpop.permute.xlu0 %2336
    %v2338 = vlaneseq
    %v2339 = vshrl.u32 %v2338, 7
    %v2340 = vadd.s32 %v2339, 8
    %2341 = vset.pattern.permute.xlu0 %v2340
    %2342 = vperm.xlu0 %2341, %v2331
    %v2343 = vpop.permute.xlu0 %2342
    %v2344 = vlaneseq
    %v2345 = vshrl.u32 %v2344, 7
    %v2346 = vadd.s32 %v2345, 16
    %2347 = vset.pattern.permute.xlu0 %v2346
    %2348 = vperm.xlu0 %2347, %v2331
    %v2349 = vpop.permute.xlu0 %2348
    %v2350 = vperm.slane %v46, 5
    %v2351 = vlaneseq
    %v2352 = vshrl.u32 %v2351, 7
    %2354 = vset.pattern.permute.xlu0 %v2352
    %2355 = vperm.xlu0 %2354, %v2350
    %v2356 = vpop.permute.xlu0 %2355
    %v2357 = vlaneseq
    %v2358 = vshrl.u32 %v2357, 7
    %v2359 = vadd.s32 %v2358, 8
    %2360 = vset.pattern.permute.xlu0 %v2359
    %2361 = vperm.xlu0 %2360, %v2350
    %v2362 = vpop.permute.xlu0 %2361
    %v2363 = vlaneseq
    %v2364 = vshrl.u32 %v2363, 7
    %v2365 = vadd.s32 %v2364, 16
    %2366 = vset.pattern.permute.xlu0 %v2365
    %2367 = vperm.xlu0 %2366, %v2350
    %v2368 = vpop.permute.xlu0 %2367
    %v2369 = vperm.slane %v46, 6
    %v2370 = vlaneseq
    %v2371 = vshrl.u32 %v2370, 7
    %2373 = vset.pattern.permute.xlu0 %v2371
    %2374 = vperm.xlu0 %2373, %v2369
    %v2375 = vpop.permute.xlu0 %2374
    %v2376 = vlaneseq
    %v2377 = vshrl.u32 %v2376, 7
    %v2378 = vadd.s32 %v2377, 8
    %2379 = vset.pattern.permute.xlu0 %v2378
    %2380 = vperm.xlu0 %2379, %v2369
    %v2381 = vpop.permute.xlu0 %2380
    %v2382 = vlaneseq
    %v2383 = vshrl.u32 %v2382, 7
    %v2384 = vadd.s32 %v2383, 16
    %2385 = vset.pattern.permute.xlu0 %v2384
    %2386 = vperm.xlu0 %2385, %v2369
    %v2387 = vpop.permute.xlu0 %2386
    %v2388 = vperm.slane %v46, 7
    %v2389 = vlaneseq
    %v2390 = vshrl.u32 %v2389, 7
    %2392 = vset.pattern.permute.xlu0 %v2390
    %2393 = vperm.xlu0 %2392, %v2388
    %v2394 = vpop.permute.xlu0 %2393
    %v2395 = vlaneseq
    %v2396 = vshrl.u32 %v2395, 7
    %v2397 = vadd.s32 %v2396, 8
    %2398 = vset.pattern.permute.xlu0 %v2397
    %2399 = vperm.xlu0 %2398, %v2388
    %v2400 = vpop.permute.xlu0 %2399
    %v2401 = vlaneseq
    %v2402 = vshrl.u32 %v2401, 7
    %v2403 = vadd.s32 %v2402, 16
    %2404 = vset.pattern.permute.xlu0 %v2403
    %2405 = vperm.xlu0 %2404, %v2388
    %v2406 = vpop.permute.xlu0 %2405
    %v2407 = vperm.slane %v47, 0
    %v2408 = vlaneseq
    %v2409 = vshrl.u32 %v2408, 7
    %2411 = vset.pattern.permute.xlu0 %v2409
    %2412 = vperm.xlu0 %2411, %v2407
    %v2413 = vpop.permute.xlu0 %2412
    %v2414 = vlaneseq
    %v2415 = vshrl.u32 %v2414, 7
    %v2416 = vadd.s32 %v2415, 8
    %2417 = vset.pattern.permute.xlu0 %v2416
    %2418 = vperm.xlu0 %2417, %v2407
    %v2419 = vpop.permute.xlu0 %2418
    %v2420 = vlaneseq
    %v2421 = vshrl.u32 %v2420, 7
    %v2422 = vadd.s32 %v2421, 16
    %2423 = vset.pattern.permute.xlu0 %v2422
    %2424 = vperm.xlu0 %2423, %v2407
    %v2425 = vpop.permute.xlu0 %2424
    %v2426 = vperm.slane %v47, 1
    %v2427 = vlaneseq
    %v2428 = vshrl.u32 %v2427, 7
    %2430 = vset.pattern.permute.xlu0 %v2428
    %2431 = vperm.xlu0 %2430, %v2426
    %v2432 = vpop.permute.xlu0 %2431
    %v2433 = vlaneseq
    %v2434 = vshrl.u32 %v2433, 7
    %v2435 = vadd.s32 %v2434, 8
    %2436 = vset.pattern.permute.xlu0 %v2435
    %2437 = vperm.xlu0 %2436, %v2426
    %v2438 = vpop.permute.xlu0 %2437
    %v2439 = vlaneseq
    %v2440 = vshrl.u32 %v2439, 7
    %v2441 = vadd.s32 %v2440, 16
    %2442 = vset.pattern.permute.xlu0 %v2441
    %2443 = vperm.xlu0 %2442, %v2426
    %v2444 = vpop.permute.xlu0 %2443
    %v2445 = vperm.slane %v48, 0
    %v2446 = vlaneseq
    %v2447 = vshrl.u32 %v2446, 7
    %2449 = vset.pattern.permute.xlu0 %v2447
    %2450 = vperm.xlu0 %2449, %v2445
    %v2451 = vpop.permute.xlu0 %2450
    %v2452 = vlaneseq
    %v2453 = vshrl.u32 %v2452, 7
    %v2454 = vadd.s32 %v2453, 8
    %2455 = vset.pattern.permute.xlu0 %v2454
    %2456 = vperm.xlu0 %2455, %v2445
    %v2457 = vpop.permute.xlu0 %2456
    %v2458 = vlaneseq
    %v2459 = vshrl.u32 %v2458, 7
    %v2460 = vadd.s32 %v2459, 16
    %2461 = vset.pattern.permute.xlu0 %v2460
    %2462 = vperm.xlu0 %2461, %v2445
    %v2463 = vpop.permute.xlu0 %2462
    %v2464 = vperm.slane %v48, 1
    %v2465 = vlaneseq
    %v2466 = vshrl.u32 %v2465, 7
    %2468 = vset.pattern.permute.xlu0 %v2466
    %2469 = vperm.xlu0 %2468, %v2464
    %v2470 = vpop.permute.xlu0 %2469
    %v2471 = vlaneseq
    %v2472 = vshrl.u32 %v2471, 7
    %v2473 = vadd.s32 %v2472, 8
    %2474 = vset.pattern.permute.xlu0 %v2473
    %2475 = vperm.xlu0 %2474, %v2464
    %v2476 = vpop.permute.xlu0 %2475
    %v2477 = vlaneseq
    %v2478 = vshrl.u32 %v2477, 7
    %v2479 = vadd.s32 %v2478, 16
    %2480 = vset.pattern.permute.xlu0 %v2479
    %2481 = vperm.xlu0 %2480, %v2464
    %v2482 = vpop.permute.xlu0 %2481
    %v2483 = vperm.slane %v48, 2
    %v2484 = vlaneseq
    %v2485 = vshrl.u32 %v2484, 7
    %2487 = vset.pattern.permute.xlu0 %v2485
    %2488 = vperm.xlu0 %2487, %v2483
    %v2489 = vpop.permute.xlu0 %2488
    %v2490 = vlaneseq
    %v2491 = vshrl.u32 %v2490, 7
    %v2492 = vadd.s32 %v2491, 8
    %2493 = vset.pattern.permute.xlu0 %v2492
    %2494 = vperm.xlu0 %2493, %v2483
    %v2495 = vpop.permute.xlu0 %2494
    %v2496 = vlaneseq
    %v2497 = vshrl.u32 %v2496, 7
    %v2498 = vadd.s32 %v2497, 16
    %2499 = vset.pattern.permute.xlu0 %v2498
    %2500 = vperm.xlu0 %2499, %v2483
    %v2501 = vpop.permute.xlu0 %2500
    %v2502 = vperm.slane %v48, 3
    %v2503 = vlaneseq
    %v2504 = vshrl.u32 %v2503, 7
    %2506 = vset.pattern.permute.xlu0 %v2504
    %2507 = vperm.xlu0 %2506, %v2502
    %v2508 = vpop.permute.xlu0 %2507
    %v2509 = vlaneseq
    %v2510 = vshrl.u32 %v2509, 7
    %v2511 = vadd.s32 %v2510, 8
    %2512 = vset.pattern.permute.xlu0 %v2511
    %2513 = vperm.xlu0 %2512, %v2502
    %v2514 = vpop.permute.xlu0 %2513
    %v2515 = vlaneseq
    %v2516 = vshrl.u32 %v2515, 7
    %v2517 = vadd.s32 %v2516, 16
    %2518 = vset.pattern.permute.xlu0 %v2517
    %2519 = vperm.xlu0 %2518, %v2502
    %v2520 = vpop.permute.xlu0 %2519
    %v2521 = vperm.slane %v48, 4
    %v2522 = vlaneseq
    %v2523 = vshrl.u32 %v2522, 7
    %2525 = vset.pattern.permute.xlu0 %v2523
    %2526 = vperm.xlu0 %2525, %v2521
    %v2527 = vpop.permute.xlu0 %2526
    %v2528 = vlaneseq
    %v2529 = vshrl.u32 %v2528, 7
    %v2530 = vadd.s32 %v2529, 8
    %2531 = vset.pattern.permute.xlu0 %v2530
    %2532 = vperm.xlu0 %2531, %v2521
    %v2533 = vpop.permute.xlu0 %2532
    %v2534 = vlaneseq
    %v2535 = vshrl.u32 %v2534, 7
    %v2536 = vadd.s32 %v2535, 16
    %2537 = vset.pattern.permute.xlu0 %v2536
    %2538 = vperm.xlu0 %2537, %v2521
    %v2539 = vpop.permute.xlu0 %2538
    %v2540 = vperm.slane %v48, 5
    %v2541 = vlaneseq
    %v2542 = vshrl.u32 %v2541, 7
    %2544 = vset.pattern.permute.xlu0 %v2542
    %2545 = vperm.xlu0 %2544, %v2540
    %v2546 = vpop.permute.xlu0 %2545
    %v2547 = vlaneseq
    %v2548 = vshrl.u32 %v2547, 7
    %v2549 = vadd.s32 %v2548, 8
    %2550 = vset.pattern.permute.xlu0 %v2549
    %2551 = vperm.xlu0 %2550, %v2540
    %v2552 = vpop.permute.xlu0 %2551
    %v2553 = vlaneseq
    %v2554 = vshrl.u32 %v2553, 7
    %v2555 = vadd.s32 %v2554, 16
    %2556 = vset.pattern.permute.xlu0 %v2555
    %2557 = vperm.xlu0 %2556, %v2540
    %v2558 = vpop.permute.xlu0 %2557
    %v2559 = vperm.slane %v48, 6
    %v2560 = vlaneseq
    %v2561 = vshrl.u32 %v2560, 7
    %2563 = vset.pattern.permute.xlu0 %v2561
    %2564 = vperm.xlu0 %2563, %v2559
    %v2565 = vpop.permute.xlu0 %2564
    %v2566 = vlaneseq
    %v2567 = vshrl.u32 %v2566, 7
    %v2568 = vadd.s32 %v2567, 8
    %2569 = vset.pattern.permute.xlu0 %v2568
    %2570 = vperm.xlu0 %2569, %v2559
    %v2571 = vpop.permute.xlu0 %2570
    %v2572 = vlaneseq
    %v2573 = vshrl.u32 %v2572, 7
    %v2574 = vadd.s32 %v2573, 16
    %2575 = vset.pattern.permute.xlu0 %v2574
    %2576 = vperm.xlu0 %2575, %v2559
    %v2577 = vpop.permute.xlu0 %2576
    %v2578 = vperm.slane %v48, 7
    %v2579 = vlaneseq
    %v2580 = vshrl.u32 %v2579, 7
    %2582 = vset.pattern.permute.xlu0 %v2580
    %2583 = vperm.xlu0 %2582, %v2578
    %v2584 = vpop.permute.xlu0 %2583
    %v2585 = vlaneseq
    %v2586 = vshrl.u32 %v2585, 7
    %v2587 = vadd.s32 %v2586, 8
    %2588 = vset.pattern.permute.xlu0 %v2587
    %2589 = vperm.xlu0 %2588, %v2578
    %v2590 = vpop.permute.xlu0 %2589
    %v2591 = vlaneseq
    %v2592 = vshrl.u32 %v2591, 7
    %v2593 = vadd.s32 %v2592, 16
    %2594 = vset.pattern.permute.xlu0 %v2593
    %2595 = vperm.xlu0 %2594, %v2578
    %v2596 = vpop.permute.xlu0 %2595
    %v2597 = vperm.slane %v49, 0
    %v2598 = vlaneseq
    %v2599 = vshrl.u32 %v2598, 7
    %2601 = vset.pattern.permute.xlu0 %v2599
    %2602 = vperm.xlu0 %2601, %v2597
    %v2603 = vpop.permute.xlu0 %2602
    %v2604 = vlaneseq
    %v2605 = vshrl.u32 %v2604, 7
    %v2606 = vadd.s32 %v2605, 8
    %2607 = vset.pattern.permute.xlu0 %v2606
    %2608 = vperm.xlu0 %2607, %v2597
    %v2609 = vpop.permute.xlu0 %2608
    %v2610 = vlaneseq
    %v2611 = vshrl.u32 %v2610, 7
    %v2612 = vadd.s32 %v2611, 16
    %2613 = vset.pattern.permute.xlu0 %v2612
    %2614 = vperm.xlu0 %2613, %v2597
    %v2615 = vpop.permute.xlu0 %2614
    %v2616 = vperm.slane %v49, 1
    %v2617 = vlaneseq
    %v2618 = vshrl.u32 %v2617, 7
    %2620 = vset.pattern.permute.xlu0 %v2618
    %2621 = vperm.xlu0 %2620, %v2616
    %v2622 = vpop.permute.xlu0 %2621
    %v2623 = vlaneseq
    %v2624 = vshrl.u32 %v2623, 7
    %v2625 = vadd.s32 %v2624, 8
    %2626 = vset.pattern.permute.xlu0 %v2625
    %2627 = vperm.xlu0 %2626, %v2616
    %v2628 = vpop.permute.xlu0 %2627
    %v2629 = vlaneseq
    %v2630 = vshrl.u32 %v2629, 7
    %v2631 = vadd.s32 %v2630, 16
    %2632 = vset.pattern.permute.xlu0 %v2631
    %2633 = vperm.xlu0 %2632, %v2616
    %v2634 = vpop.permute.xlu0 %2633
    %v2635 = vperm.slane %v49, 2
    %v2636 = vlaneseq
    %v2637 = vshrl.u32 %v2636, 7
    %2639 = vset.pattern.permute.xlu0 %v2637
    %2640 = vperm.xlu0 %2639, %v2635
    %v2641 = vpop.permute.xlu0 %2640
    %v2642 = vlaneseq
    %v2643 = vshrl.u32 %v2642, 7
    %v2644 = vadd.s32 %v2643, 8
    %2645 = vset.pattern.permute.xlu0 %v2644
    %2646 = vperm.xlu0 %2645, %v2635
    %v2647 = vpop.permute.xlu0 %2646
    %v2648 = vlaneseq
    %v2649 = vshrl.u32 %v2648, 7
    %v2650 = vadd.s32 %v2649, 16
    %2651 = vset.pattern.permute.xlu0 %v2650
    %2652 = vperm.xlu0 %2651, %v2635
    %v2653 = vpop.permute.xlu0 %2652
    %v2654 = vperm.slane %v49, 3
    %v2655 = vlaneseq
    %v2656 = vshrl.u32 %v2655, 7
    %2658 = vset.pattern.permute.xlu0 %v2656
    %2659 = vperm.xlu0 %2658, %v2654
    %v2660 = vpop.permute.xlu0 %2659
    %v2661 = vlaneseq
    %v2662 = vshrl.u32 %v2661, 7
    %v2663 = vadd.s32 %v2662, 8
    %2664 = vset.pattern.permute.xlu0 %v2663
    %2665 = vperm.xlu0 %2664, %v2654
    %v2666 = vpop.permute.xlu0 %2665
    %v2667 = vlaneseq
    %v2668 = vshrl.u32 %v2667, 7
    %v2669 = vadd.s32 %v2668, 16
    %2670 = vset.pattern.permute.xlu0 %v2669
    %2671 = vperm.xlu0 %2670, %v2654
    %v2672 = vpop.permute.xlu0 %2671
    %v2673 = vperm.slane %v49, 4
    %v2674 = vlaneseq
    %v2675 = vshrl.u32 %v2674, 7
    %2677 = vset.pattern.permute.xlu0 %v2675
    %2678 = vperm.xlu0 %2677, %v2673
    %v2679 = vpop.permute.xlu0 %2678
    %v2680 = vlaneseq
    %v2681 = vshrl.u32 %v2680, 7
    %v2682 = vadd.s32 %v2681, 8
    %2683 = vset.pattern.permute.xlu0 %v2682
    %2684 = vperm.xlu0 %2683, %v2673
    %v2685 = vpop.permute.xlu0 %2684
    %v2686 = vlaneseq
    %v2687 = vshrl.u32 %v2686, 7
    %v2688 = vadd.s32 %v2687, 16
    %2689 = vset.pattern.permute.xlu0 %v2688
    %2690 = vperm.xlu0 %2689, %v2673
    %v2691 = vpop.permute.xlu0 %2690
    %v2692 = vperm.slane %v49, 5
    %v2693 = vlaneseq
    %v2694 = vshrl.u32 %v2693, 7
    %2696 = vset.pattern.permute.xlu0 %v2694
    %2697 = vperm.xlu0 %2696, %v2692
    %v2698 = vpop.permute.xlu0 %2697
    %v2699 = vlaneseq
    %v2700 = vshrl.u32 %v2699, 7
    %v2701 = vadd.s32 %v2700, 8
    %2702 = vset.pattern.permute.xlu0 %v2701
    %2703 = vperm.xlu0 %2702, %v2692
    %v2704 = vpop.permute.xlu0 %2703
    %v2705 = vlaneseq
    %v2706 = vshrl.u32 %v2705, 7
    %v2707 = vadd.s32 %v2706, 16
    %2708 = vset.pattern.permute.xlu0 %v2707
    %2709 = vperm.xlu0 %2708, %v2692
    %v2710 = vpop.permute.xlu0 %2709
    %v2711 = vperm.slane %v49, 6
    %v2712 = vlaneseq
    %v2713 = vshrl.u32 %v2712, 7
    %2715 = vset.pattern.permute.xlu0 %v2713
    %2716 = vperm.xlu0 %2715, %v2711
    %v2717 = vpop.permute.xlu0 %2716
    %v2718 = vlaneseq
    %v2719 = vshrl.u32 %v2718, 7
    %v2720 = vadd.s32 %v2719, 8
    %2721 = vset.pattern.permute.xlu0 %v2720
    %2722 = vperm.xlu0 %2721, %v2711
    %v2723 = vpop.permute.xlu0 %2722
    %v2724 = vlaneseq
    %v2725 = vshrl.u32 %v2724, 7
    %v2726 = vadd.s32 %v2725, 16
    %2727 = vset.pattern.permute.xlu0 %v2726
    %2728 = vperm.xlu0 %2727, %v2711
    %v2729 = vpop.permute.xlu0 %2728
    %v2730 = vperm.slane %v49, 7
    %v2731 = vlaneseq
    %v2732 = vshrl.u32 %v2731, 7
    %2734 = vset.pattern.permute.xlu0 %v2732
    %2735 = vperm.xlu0 %2734, %v2730
    %v2736 = vpop.permute.xlu0 %2735
    %v2737 = vlaneseq
    %v2738 = vshrl.u32 %v2737, 7
    %v2739 = vadd.s32 %v2738, 8
    %2740 = vset.pattern.permute.xlu0 %v2739
    %2741 = vperm.xlu0 %2740, %v2730
    %v2742 = vpop.permute.xlu0 %2741
    %v2743 = vlaneseq
    %v2744 = vshrl.u32 %v2743, 7
    %v2745 = vadd.s32 %v2744, 16
    %2746 = vset.pattern.permute.xlu0 %v2745
    %2747 = vperm.xlu0 %2746, %v2730
    %v2748 = vpop.permute.xlu0 %2747
    %v2749 = vperm.slane %v50, 0
    %v2750 = vlaneseq
    %v2751 = vshrl.u32 %v2750, 7
    %2753 = vset.pattern.permute.xlu0 %v2751
    %2754 = vperm.xlu0 %2753, %v2749
    %v2755 = vpop.permute.xlu0 %2754
    %v2756 = vlaneseq
    %v2757 = vshrl.u32 %v2756, 7
    %v2758 = vadd.s32 %v2757, 8
    %2759 = vset.pattern.permute.xlu0 %v2758
    %2760 = vperm.xlu0 %2759, %v2749
    %v2761 = vpop.permute.xlu0 %2760
    %v2762 = vlaneseq
    %v2763 = vshrl.u32 %v2762, 7
    %v2764 = vadd.s32 %v2763, 16
    %2765 = vset.pattern.permute.xlu0 %v2764
    %2766 = vperm.xlu0 %2765, %v2749
    %v2767 = vpop.permute.xlu0 %2766
    %v2768 = vperm.slane %v50, 1
    %v2769 = vlaneseq
    %v2770 = vshrl.u32 %v2769, 7
    %2772 = vset.pattern.permute.xlu0 %v2770
    %2773 = vperm.xlu0 %2772, %v2768
    %v2774 = vpop.permute.xlu0 %2773
    %v2775 = vlaneseq
    %v2776 = vshrl.u32 %v2775, 7
    %v2777 = vadd.s32 %v2776, 8
    %2778 = vset.pattern.permute.xlu0 %v2777
    %2779 = vperm.xlu0 %2778, %v2768
    %v2780 = vpop.permute.xlu0 %2779
    %v2781 = vlaneseq
    %v2782 = vshrl.u32 %v2781, 7
    %v2783 = vadd.s32 %v2782, 16
    %2784 = vset.pattern.permute.xlu0 %v2783
    %2785 = vperm.xlu0 %2784, %v2768
    %v2786 = vpop.permute.xlu0 %2785
    %vm3171 = vcmask 1046528
    %v3172 = vrot.slane %v57, 1
    %v3173 = vrot.slane %v63, 1
    %v3174 = vsel %vm3171, %v3172, %v3173
    %v3175 = vrot.slane %v69, 1
    %v3176 = vsel %vm3171, %v3173, %v3175
    %v3177 = vrot.slane %v76, 1
    %v3178 = vrot.slane %v82, 1
    %v3179 = vsel %vm3171, %v3177, %v3178
    %v3180 = vrot.slane %v88, 1
    %v3181 = vsel %vm3171, %v3178, %v3180
    %v3182 = vrot.slane %v95, 1
    %v3183 = vrot.slane %v101, 1
    %v3184 = vsel %vm3171, %v3182, %v3183
    %v3185 = vrot.slane %v107, 1
    %v3186 = vsel %vm3171, %v3183, %v3185
    %v3187 = vrot.slane %v114, 1
    %v3188 = vrot.slane %v120, 1
    %v3189 = vsel %vm3171, %v3187, %v3188
    %v3190 = vrot.slane %v126, 1
    %v3191 = vsel %vm3171, %v3188, %v3190
    %v3192 = vrot.slane %v133, 1
    %v3193 = vrot.slane %v139, 1
    %v3194 = vsel %vm3171, %v3192, %v3193
    %v3195 = vrot.slane %v145, 1
    %v3196 = vsel %vm3171, %v3193, %v3195
    %v3197 = vrot.slane %v152, 1
    %v3198 = vrot.slane %v158, 1
    %v3199 = vsel %vm3171, %v3197, %v3198
    %v3200 = vrot.slane %v164, 1
    %v3201 = vsel %vm3171, %v3198, %v3200
    %v3202 = vrot.slane %v171, 1
    %v3203 = vrot.slane %v177, 1
    %v3204 = vsel %vm3171, %v3202, %v3203
    %v3205 = vrot.slane %v183, 1
    %v3206 = vsel %vm3171, %v3203, %v3205
    %v3207 = vrot.slane %v190, 1
    %v3208 = vrot.slane %v196, 1
    %v3209 = vsel %vm3171, %v3207, %v3208
    %v3210 = vrot.slane %v202, 1
    %v3211 = vsel %vm3171, %v3208, %v3210
    %v3212 = vrot.slane %v209, 1
    %v3213 = vrot.slane %v215, 1
    %v3214 = vsel %vm3171, %v3212, %v3213
    %v3215 = vrot.slane %v221, 1
    %v3216 = vsel %vm3171, %v3213, %v3215
    %v3217 = vrot.slane %v228, 1
    %v3218 = vrot.slane %v234, 1
    %v3219 = vsel %vm3171, %v3217, %v3218
    %v3220 = vrot.slane %v240, 1
    %v3221 = vsel %vm3171, %v3218, %v3220
    %v3222 = vrot.slane %v247, 1
    %v3223 = vrot.slane %v253, 1
    %v3224 = vsel %vm3171, %v3222, %v3223
    %v3225 = vrot.slane %v259, 1
    %v3226 = vsel %vm3171, %v3223, %v3225
    %v3227 = vrot.slane %v266, 1
    %v3228 = vrot.slane %v272, 1
    %v3229 = vsel %vm3171, %v3227, %v3228
    %v3230 = vrot.slane %v278, 1
    %v3231 = vsel %vm3171, %v3228, %v3230
    %v3232 = vrot.slane %v285, 1
    %v3233 = vrot.slane %v291, 1
    %v3234 = vsel %vm3171, %v3232, %v3233
    %v3235 = vrot.slane %v297, 1
    %v3236 = vsel %vm3171, %v3233, %v3235
    %v3237 = vrot.slane %v304, 1
    %v3238 = vrot.slane %v310, 1
    %v3239 = vsel %vm3171, %v3237, %v3238
    %v3240 = vrot.slane %v316, 1
    %v3241 = vsel %vm3171, %v3238, %v3240
    %v3242 = vrot.slane %v323, 1
    %v3243 = vrot.slane %v329, 1
    %v3244 = vsel %vm3171, %v3242, %v3243
    %v3245 = vrot.slane %v335, 1
    %v3246 = vsel %vm3171, %v3243, %v3245
    %v3247 = vrot.slane %v342, 1
    %v3248 = vrot.slane %v348, 1
    %v3249 = vsel %vm3171, %v3247, %v3248
    %v3250 = vrot.slane %v354, 1
    %v3251 = vsel %vm3171, %v3248, %v3250
    %v3252 = vrot.slane %v399, 1
    %v3253 = vrot.slane %v405, 1
    %v3254 = vsel %vm3171, %v3252, %v3253
    %v3255 = vrot.slane %v411, 1
    %v3256 = vsel %vm3171, %v3253, %v3255
    %v3257 = vrot.slane %v418, 1
    %v3258 = vrot.slane %v424, 1
    %v3259 = vsel %vm3171, %v3257, %v3258
    %v3260 = vrot.slane %v430, 1
    %v3261 = vsel %vm3171, %v3258, %v3260
    %v3262 = vrot.slane %v437, 1
    %v3263 = vrot.slane %v443, 1
    %v3264 = vsel %vm3171, %v3262, %v3263
    %v3265 = vrot.slane %v449, 1
    %v3266 = vsel %vm3171, %v3263, %v3265
    %v3267 = vrot.slane %v456, 1
    %v3268 = vrot.slane %v462, 1
    %v3269 = vsel %vm3171, %v3267, %v3268
    %v3270 = vrot.slane %v468, 1
    %v3271 = vsel %vm3171, %v3268, %v3270
    %v3272 = vrot.slane %v475, 1
    %v3273 = vrot.slane %v481, 1
    %v3274 = vsel %vm3171, %v3272, %v3273
    %v3275 = vrot.slane %v487, 1
    %v3276 = vsel %vm3171, %v3273, %v3275
    %v3277 = vrot.slane %v494, 1
    %v3278 = vrot.slane %v500, 1
    %v3279 = vsel %vm3171, %v3277, %v3278
    %v3280 = vrot.slane %v506, 1
    %v3281 = vsel %vm3171, %v3278, %v3280
    %v3282 = vrot.slane %v513, 1
    %v3283 = vrot.slane %v519, 1
    %v3284 = vsel %vm3171, %v3282, %v3283
    %v3285 = vrot.slane %v525, 1
    %v3286 = vsel %vm3171, %v3283, %v3285
    %v3287 = vrot.slane %v532, 1
    %v3288 = vrot.slane %v538, 1
    %v3289 = vsel %vm3171, %v3287, %v3288
    %v3290 = vrot.slane %v544, 1
    %v3291 = vsel %vm3171, %v3288, %v3290
    %v3292 = vrot.slane %v551, 1
    %v3293 = vrot.slane %v557, 1
    %v3294 = vsel %vm3171, %v3292, %v3293
    %v3295 = vrot.slane %v563, 1
    %v3296 = vsel %vm3171, %v3293, %v3295
    %v3297 = vrot.slane %v570, 1
    %v3298 = vrot.slane %v576, 1
    %v3299 = vsel %vm3171, %v3297, %v3298
    %v3300 = vrot.slane %v582, 1
    %v3301 = vsel %vm3171, %v3298, %v3300
    %v3302 = vrot.slane %v589, 1
    %v3303 = vrot.slane %v595, 1
    %v3304 = vsel %vm3171, %v3302, %v3303
    %v3305 = vrot.slane %v601, 1
    %v3306 = vsel %vm3171, %v3303, %v3305
    %v3307 = vrot.slane %v608, 1
    %v3308 = vrot.slane %v614, 1
    %v3309 = vsel %vm3171, %v3307, %v3308
    %v3310 = vrot.slane %v620, 1
    %v3311 = vsel %vm3171, %v3308, %v3310
    %v3312 = vrot.slane %v627, 1
    %v3313 = vrot.slane %v633, 1
    %v3314 = vsel %vm3171, %v3312, %v3313
    %v3315 = vrot.slane %v639, 1
    %v3316 = vsel %vm3171, %v3313, %v3315
    %v3317 = vrot.slane %v646, 1
    %v3318 = vrot.slane %v652, 1
    %v3319 = vsel %vm3171, %v3317, %v3318
    %v3320 = vrot.slane %v658, 1
    %v3321 = vsel %vm3171, %v3318, %v3320
    %v3322 = vrot.slane %v665, 1
    %v3323 = vrot.slane %v671, 1
    %v3324 = vsel %vm3171, %v3322, %v3323
    %v3325 = vrot.slane %v677, 1
    %v3326 = vsel %vm3171, %v3323, %v3325
    %v3327 = vrot.slane %v684, 1
    %v3328 = vrot.slane %v690, 1
    %v3329 = vsel %vm3171, %v3327, %v3328
    %v3330 = vrot.slane %v696, 1
    %v3331 = vsel %vm3171, %v3328, %v3330
    %v3332 = vrot.slane %v741, 1
    %v3333 = vrot.slane %v747, 1
    %v3334 = vsel %vm3171, %v3332, %v3333
    %v3335 = vrot.slane %v753, 1
    %v3336 = vsel %vm3171, %v3333, %v3335
    %v3337 = vrot.slane %v760, 1
    %v3338 = vrot.slane %v766, 1
    %v3339 = vsel %vm3171, %v3337, %v3338
    %v3340 = vrot.slane %v772, 1
    %v3341 = vsel %vm3171, %v3338, %v3340
    %v3342 = vrot.slane %v779, 1
    %v3343 = vrot.slane %v785, 1
    %v3344 = vsel %vm3171, %v3342, %v3343
    %v3345 = vrot.slane %v791, 1
    %v3346 = vsel %vm3171, %v3343, %v3345
    %v3347 = vrot.slane %v798, 1
    %v3348 = vrot.slane %v804, 1
    %v3349 = vsel %vm3171, %v3347, %v3348
    %v3350 = vrot.slane %v810, 1
    %v3351 = vsel %vm3171, %v3348, %v3350
    %v3352 = vrot.slane %v817, 1
    %v3353 = vrot.slane %v823, 1
    %v3354 = vsel %vm3171, %v3352, %v3353
    %v3355 = vrot.slane %v829, 1
    %v3356 = vsel %vm3171, %v3353, %v3355
    %v3357 = vrot.slane %v836, 1
    %v3358 = vrot.slane %v842, 1
    %v3359 = vsel %vm3171, %v3357, %v3358
    %v3360 = vrot.slane %v848, 1
    %v3361 = vsel %vm3171, %v3358, %v3360
    %v3362 = vrot.slane %v855, 1
    %v3363 = vrot.slane %v861, 1
    %v3364 = vsel %vm3171, %v3362, %v3363
    %v3365 = vrot.slane %v867, 1
    %v3366 = vsel %vm3171, %v3363, %v3365
    %v3367 = vrot.slane %v874, 1
    %v3368 = vrot.slane %v880, 1
    %v3369 = vsel %vm3171, %v3367, %v3368
    %v3370 = vrot.slane %v886, 1
    %v3371 = vsel %vm3171, %v3368, %v3370
    %v3372 = vrot.slane %v893, 1
    %v3373 = vrot.slane %v899, 1
    %v3374 = vsel %vm3171, %v3372, %v3373
    %v3375 = vrot.slane %v905, 1
    %v3376 = vsel %vm3171, %v3373, %v3375
    %v3377 = vrot.slane %v912, 1
    %v3378 = vrot.slane %v918, 1
    %v3379 = vsel %vm3171, %v3377, %v3378
    %v3380 = vrot.slane %v924, 1
    %v3381 = vsel %vm3171, %v3378, %v3380
    %v3382 = vrot.slane %v931, 1
    %v3383 = vrot.slane %v937, 1
    %v3384 = vsel %vm3171, %v3382, %v3383
    %v3385 = vrot.slane %v943, 1
    %v3386 = vsel %vm3171, %v3383, %v3385
    %v3387 = vrot.slane %v950, 1
    %v3388 = vrot.slane %v956, 1
    %v3389 = vsel %vm3171, %v3387, %v3388
    %v3390 = vrot.slane %v962, 1
    %v3391 = vsel %vm3171, %v3388, %v3390
    %v3392 = vrot.slane %v969, 1
    %v3393 = vrot.slane %v975, 1
    %v3394 = vsel %vm3171, %v3392, %v3393
    %v3395 = vrot.slane %v981, 1
    %v3396 = vsel %vm3171, %v3393, %v3395
    %v3397 = vrot.slane %v988, 1
    %v3398 = vrot.slane %v994, 1
    %v3399 = vsel %vm3171, %v3397, %v3398
    %v3400 = vrot.slane %v1000, 1
    %v3401 = vsel %vm3171, %v3398, %v3400
    %v3402 = vrot.slane %v1007, 1
    %v3403 = vrot.slane %v1013, 1
    %v3404 = vsel %vm3171, %v3402, %v3403
    %v3405 = vrot.slane %v1019, 1
    %v3406 = vsel %vm3171, %v3403, %v3405
    %v3407 = vrot.slane %v1026, 1
    %v3408 = vrot.slane %v1032, 1
    %v3409 = vsel %vm3171, %v3407, %v3408
    %v3410 = vrot.slane %v1038, 1
    %v3411 = vsel %vm3171, %v3408, %v3410
    %v3412 = vrot.slane %v1083, 1
    %v3413 = vrot.slane %v1089, 1
    %v3414 = vsel %vm3171, %v3412, %v3413
    %v3415 = vrot.slane %v1095, 1
    %v3416 = vsel %vm3171, %v3413, %v3415
    %v3417 = vrot.slane %v1102, 1
    %v3418 = vrot.slane %v1108, 1
    %v3419 = vsel %vm3171, %v3417, %v3418
    %v3420 = vrot.slane %v1114, 1
    %v3421 = vsel %vm3171, %v3418, %v3420
    %v3422 = vrot.slane %v1121, 1
    %v3423 = vrot.slane %v1127, 1
    %v3424 = vsel %vm3171, %v3422, %v3423
    %v3425 = vrot.slane %v1133, 1
    %v3426 = vsel %vm3171, %v3423, %v3425
    %v3427 = vrot.slane %v1140, 1
    %v3428 = vrot.slane %v1146, 1
    %v3429 = vsel %vm3171, %v3427, %v3428
    %v3430 = vrot.slane %v1152, 1
    %v3431 = vsel %vm3171, %v3428, %v3430
    %v3432 = vrot.slane %v1159, 1
    %v3433 = vrot.slane %v1165, 1
    %v3434 = vsel %vm3171, %v3432, %v3433
    %v3435 = vrot.slane %v1171, 1
    %v3436 = vsel %vm3171, %v3433, %v3435
    %v3437 = vrot.slane %v1178, 1
    %v3438 = vrot.slane %v1184, 1
    %v3439 = vsel %vm3171, %v3437, %v3438
    %v3440 = vrot.slane %v1190, 1
    %v3441 = vsel %vm3171, %v3438, %v3440
    %v3442 = vrot.slane %v1197, 1
    %v3443 = vrot.slane %v1203, 1
    %v3444 = vsel %vm3171, %v3442, %v3443
    %v3445 = vrot.slane %v1209, 1
    %v3446 = vsel %vm3171, %v3443, %v3445
    %v3447 = vrot.slane %v1216, 1
    %v3448 = vrot.slane %v1222, 1
    %v3449 = vsel %vm3171, %v3447, %v3448
    %v3450 = vrot.slane %v1228, 1
    %v3451 = vsel %vm3171, %v3448, %v3450
    %v3452 = vrot.slane %v1235, 1
    %v3453 = vrot.slane %v1241, 1
    %v3454 = vsel %vm3171, %v3452, %v3453
    %v3455 = vrot.slane %v1247, 1
    %v3456 = vsel %vm3171, %v3453, %v3455
    %v3457 = vrot.slane %v1254, 1
    %v3458 = vrot.slane %v1260, 1
    %v3459 = vsel %vm3171, %v3457, %v3458
    %v3460 = vrot.slane %v1266, 1
    %v3461 = vsel %vm3171, %v3458, %v3460
    %v3462 = vrot.slane %v1273, 1
    %v3463 = vrot.slane %v1279, 1
    %v3464 = vsel %vm3171, %v3462, %v3463
    %v3465 = vrot.slane %v1285, 1
    %v3466 = vsel %vm3171, %v3463, %v3465
    %v3467 = vrot.slane %v1292, 1
    %v3468 = vrot.slane %v1298, 1
    %v3469 = vsel %vm3171, %v3467, %v3468
    %v3470 = vrot.slane %v1304, 1
    %v3471 = vsel %vm3171, %v3468, %v3470
    %v3472 = vrot.slane %v1311, 1
    %v3473 = vrot.slane %v1317, 1
    %v3474 = vsel %vm3171, %v3472, %v3473
    %v3475 = vrot.slane %v1323, 1
    %v3476 = vsel %vm3171, %v3473, %v3475
    %v3477 = vrot.slane %v1330, 1
    %v3478 = vrot.slane %v1336, 1
    %v3479 = vsel %vm3171, %v3477, %v3478
    %v3480 = vrot.slane %v1342, 1
    %v3481 = vsel %vm3171, %v3478, %v3480
    %v3482 = vrot.slane %v1349, 1
    %v3483 = vrot.slane %v1355, 1
    %v3484 = vsel %vm3171, %v3482, %v3483
    %v3485 = vrot.slane %v1361, 1
    %v3486 = vsel %vm3171, %v3483, %v3485
    %v3487 = vrot.slane %v1368, 1
    %v3488 = vrot.slane %v1374, 1
    %v3489 = vsel %vm3171, %v3487, %v3488
    %v3490 = vrot.slane %v1380, 1
    %v3491 = vsel %vm3171, %v3488, %v3490
    %v3492 = vrot.slane %v1425, 1
    %v3493 = vrot.slane %v1431, 1
    %v3494 = vsel %vm3171, %v3492, %v3493
    %v3495 = vrot.slane %v1437, 1
    %v3496 = vsel %vm3171, %v3493, %v3495
    %v3497 = vrot.slane %v1444, 1
    %v3498 = vrot.slane %v1450, 1
    %v3499 = vsel %vm3171, %v3497, %v3498
    %v3500 = vrot.slane %v1456, 1
    %v3501 = vsel %vm3171, %v3498, %v3500
    %v3502 = vrot.slane %v1463, 1
    %v3503 = vrot.slane %v1469, 1
    %v3504 = vsel %vm3171, %v3502, %v3503
    %v3505 = vrot.slane %v1475, 1
    %v3506 = vsel %vm3171, %v3503, %v3505
    %v3507 = vrot.slane %v1482, 1
    %v3508 = vrot.slane %v1488, 1
    %v3509 = vsel %vm3171, %v3507, %v3508
    %v3510 = vrot.slane %v1494, 1
    %v3511 = vsel %vm3171, %v3508, %v3510
    %v3512 = vrot.slane %v1501, 1
    %v3513 = vrot.slane %v1507, 1
    %v3514 = vsel %vm3171, %v3512, %v3513
    %v3515 = vrot.slane %v1513, 1
    %v3516 = vsel %vm3171, %v3513, %v3515
    %v3517 = vrot.slane %v1520, 1
    %v3518 = vrot.slane %v1526, 1
    %v3519 = vsel %vm3171, %v3517, %v3518
    %v3520 = vrot.slane %v1532, 1
    %v3521 = vsel %vm3171, %v3518, %v3520
    %v3522 = vrot.slane %v1539, 1
    %v3523 = vrot.slane %v1545, 1
    %v3524 = vsel %vm3171, %v3522, %v3523
    %v3525 = vrot.slane %v1551, 1
    %v3526 = vsel %vm3171, %v3523, %v3525
    %v3527 = vrot.slane %v1558, 1
    %v3528 = vrot.slane %v1564, 1
    %v3529 = vsel %vm3171, %v3527, %v3528
    %v3530 = vrot.slane %v1570, 1
    %v3531 = vsel %vm3171, %v3528, %v3530
    %v3532 = vrot.slane %v1577, 1
    %v3533 = vrot.slane %v1583, 1
    %v3534 = vsel %vm3171, %v3532, %v3533
    %v3535 = vrot.slane %v1589, 1
    %v3536 = vsel %vm3171, %v3533, %v3535
    %v3537 = vrot.slane %v1596, 1
    %v3538 = vrot.slane %v1602, 1
    %v3539 = vsel %vm3171, %v3537, %v3538
    %v3540 = vrot.slane %v1608, 1
    %v3541 = vsel %vm3171, %v3538, %v3540
    %v3542 = vrot.slane %v1615, 1
    %v3543 = vrot.slane %v1621, 1
    %v3544 = vsel %vm3171, %v3542, %v3543
    %v3545 = vrot.slane %v1627, 1
    %v3546 = vsel %vm3171, %v3543, %v3545
    %v3547 = vrot.slane %v1634, 1
    %v3548 = vrot.slane %v1640, 1
    %v3549 = vsel %vm3171, %v3547, %v3548
    %v3550 = vrot.slane %v1646, 1
    %v3551 = vsel %vm3171, %v3548, %v3550
    %v3552 = vrot.slane %v1653, 1
    %v3553 = vrot.slane %v1659, 1
    %v3554 = vsel %vm3171, %v3552, %v3553
    %v3555 = vrot.slane %v1665, 1
    %v3556 = vsel %vm3171, %v3553, %v3555
    %v3557 = vrot.slane %v1672, 1
    %v3558 = vrot.slane %v1678, 1
    %v3559 = vsel %vm3171, %v3557, %v3558
    %v3560 = vrot.slane %v1684, 1
    %v3561 = vsel %vm3171, %v3558, %v3560
    %v3562 = vrot.slane %v1691, 1
    %v3563 = vrot.slane %v1697, 1
    %v3564 = vsel %vm3171, %v3562, %v3563
    %v3565 = vrot.slane %v1703, 1
    %v3566 = vsel %vm3171, %v3563, %v3565
    %v3567 = vrot.slane %v1710, 1
    %v3568 = vrot.slane %v1716, 1
    %v3569 = vsel %vm3171, %v3567, %v3568
    %v3570 = vrot.slane %v1722, 1
    %v3571 = vsel %vm3171, %v3568, %v3570
    %v3572 = vrot.slane %v1767, 1
    %v3573 = vrot.slane %v1773, 1
    %v3574 = vsel %vm3171, %v3572, %v3573
    %v3575 = vrot.slane %v1779, 1
    %v3576 = vsel %vm3171, %v3573, %v3575
    %v3577 = vrot.slane %v1786, 1
    %v3578 = vrot.slane %v1792, 1
    %v3579 = vsel %vm3171, %v3577, %v3578
    %v3580 = vrot.slane %v1798, 1
    %v3581 = vsel %vm3171, %v3578, %v3580
    %v3582 = vrot.slane %v1805, 1
    %v3583 = vrot.slane %v1811, 1
    %v3584 = vsel %vm3171, %v3582, %v3583
    %v3585 = vrot.slane %v1817, 1
    %v3586 = vsel %vm3171, %v3583, %v3585
    %v3587 = vrot.slane %v1824, 1
    %v3588 = vrot.slane %v1830, 1
    %v3589 = vsel %vm3171, %v3587, %v3588
    %v3590 = vrot.slane %v1836, 1
    %v3591 = vsel %vm3171, %v3588, %v3590
    %v3592 = vrot.slane %v1843, 1
    %v3593 = vrot.slane %v1849, 1
    %v3594 = vsel %vm3171, %v3592, %v3593
    %v3595 = vrot.slane %v1855, 1
    %v3596 = vsel %vm3171, %v3593, %v3595
    %v3597 = vrot.slane %v1862, 1
    %v3598 = vrot.slane %v1868, 1
    %v3599 = vsel %vm3171, %v3597, %v3598
    %v3600 = vrot.slane %v1874, 1
    %v3601 = vsel %vm3171, %v3598, %v3600
    %v3602 = vrot.slane %v1881, 1
    %v3603 = vrot.slane %v1887, 1
    %v3604 = vsel %vm3171, %v3602, %v3603
    %v3605 = vrot.slane %v1893, 1
    %v3606 = vsel %vm3171, %v3603, %v3605
    %v3607 = vrot.slane %v1900, 1
    %v3608 = vrot.slane %v1906, 1
    %v3609 = vsel %vm3171, %v3607, %v3608
    %v3610 = vrot.slane %v1912, 1
    %v3611 = vsel %vm3171, %v3608, %v3610
    %v3612 = vrot.slane %v1919, 1
    %v3613 = vrot.slane %v1925, 1
    %v3614 = vsel %vm3171, %v3612, %v3613
    %v3615 = vrot.slane %v1931, 1
    %v3616 = vsel %vm3171, %v3613, %v3615
    %v3617 = vrot.slane %v1938, 1
    %v3618 = vrot.slane %v1944, 1
    %v3619 = vsel %vm3171, %v3617, %v3618
    %v3620 = vrot.slane %v1950, 1
    %v3621 = vsel %vm3171, %v3618, %v3620
    %v3622 = vrot.slane %v1957, 1
    %v3623 = vrot.slane %v1963, 1
    %v3624 = vsel %vm3171, %v3622, %v3623
    %v3625 = vrot.slane %v1969, 1
    %v3626 = vsel %vm3171, %v3623, %v3625
    %v3627 = vrot.slane %v1976, 1
    %v3628 = vrot.slane %v1982, 1
    %v3629 = vsel %vm3171, %v3627, %v3628
    %v3630 = vrot.slane %v1988, 1
    %v3631 = vsel %vm3171, %v3628, %v3630
    %v3632 = vrot.slane %v1995, 1
    %v3633 = vrot.slane %v2001, 1
    %v3634 = vsel %vm3171, %v3632, %v3633
    %v3635 = vrot.slane %v2007, 1
    %v3636 = vsel %vm3171, %v3633, %v3635
    %v3637 = vrot.slane %v2014, 1
    %v3638 = vrot.slane %v2020, 1
    %v3639 = vsel %vm3171, %v3637, %v3638
    %v3640 = vrot.slane %v2026, 1
    %v3641 = vsel %vm3171, %v3638, %v3640
    %v3642 = vrot.slane %v2033, 1
    %v3643 = vrot.slane %v2039, 1
    %v3644 = vsel %vm3171, %v3642, %v3643
    %v3645 = vrot.slane %v2045, 1
    %v3646 = vsel %vm3171, %v3643, %v3645
    %v3647 = vrot.slane %v2052, 1
    %v3648 = vrot.slane %v2058, 1
    %v3649 = vsel %vm3171, %v3647, %v3648
    %v3650 = vrot.slane %v2064, 1
    %v3651 = vsel %vm3171, %v3648, %v3650
    %v3652 = vrot.slane %v2109, 1
    %v3653 = vrot.slane %v2115, 1
    %v3654 = vsel %vm3171, %v3652, %v3653
    %v3655 = vrot.slane %v2121, 1
    %v3656 = vsel %vm3171, %v3653, %v3655
    %v3657 = vrot.slane %v2128, 1
    %v3658 = vrot.slane %v2134, 1
    %v3659 = vsel %vm3171, %v3657, %v3658
    %v3660 = vrot.slane %v2140, 1
    %v3661 = vsel %vm3171, %v3658, %v3660
    %v3662 = vrot.slane %v2147, 1
    %v3663 = vrot.slane %v2153, 1
    %v3664 = vsel %vm3171, %v3662, %v3663
    %v3665 = vrot.slane %v2159, 1
    %v3666 = vsel %vm3171, %v3663, %v3665
    %v3667 = vrot.slane %v2166, 1
    %v3668 = vrot.slane %v2172, 1
    %v3669 = vsel %vm3171, %v3667, %v3668
    %v3670 = vrot.slane %v2178, 1
    %v3671 = vsel %vm3171, %v3668, %v3670
    %v3672 = vrot.slane %v2185, 1
    %v3673 = vrot.slane %v2191, 1
    %v3674 = vsel %vm3171, %v3672, %v3673
    %v3675 = vrot.slane %v2197, 1
    %v3676 = vsel %vm3171, %v3673, %v3675
    %v3677 = vrot.slane %v2204, 1
    %v3678 = vrot.slane %v2210, 1
    %v3679 = vsel %vm3171, %v3677, %v3678
    %v3680 = vrot.slane %v2216, 1
    %v3681 = vsel %vm3171, %v3678, %v3680
    %v3682 = vrot.slane %v2223, 1
    %v3683 = vrot.slane %v2229, 1
    %v3684 = vsel %vm3171, %v3682, %v3683
    %v3685 = vrot.slane %v2235, 1
    %v3686 = vsel %vm3171, %v3683, %v3685
    %v3687 = vrot.slane %v2242, 1
    %v3688 = vrot.slane %v2248, 1
    %v3689 = vsel %vm3171, %v3687, %v3688
    %v3690 = vrot.slane %v2254, 1
    %v3691 = vsel %vm3171, %v3688, %v3690
    %v3692 = vrot.slane %v2261, 1
    %v3693 = vrot.slane %v2267, 1
    %v3694 = vsel %vm3171, %v3692, %v3693
    %v3695 = vrot.slane %v2273, 1
    %v3696 = vsel %vm3171, %v3693, %v3695
    %v3697 = vrot.slane %v2280, 1
    %v3698 = vrot.slane %v2286, 1
    %v3699 = vsel %vm3171, %v3697, %v3698
    %v3700 = vrot.slane %v2292, 1
    %v3701 = vsel %vm3171, %v3698, %v3700
    %v3702 = vrot.slane %v2299, 1
    %v3703 = vrot.slane %v2305, 1
    %v3704 = vsel %vm3171, %v3702, %v3703
    %v3705 = vrot.slane %v2311, 1
    %v3706 = vsel %vm3171, %v3703, %v3705
    %v3707 = vrot.slane %v2318, 1
    %v3708 = vrot.slane %v2324, 1
    %v3709 = vsel %vm3171, %v3707, %v3708
    %v3710 = vrot.slane %v2330, 1
    %v3711 = vsel %vm3171, %v3708, %v3710
    %v3712 = vrot.slane %v2337, 1
    %v3713 = vrot.slane %v2343, 1
    %v3714 = vsel %vm3171, %v3712, %v3713
    %v3715 = vrot.slane %v2349, 1
    %v3716 = vsel %vm3171, %v3713, %v3715
    %v3717 = vrot.slane %v2356, 1
    %v3718 = vrot.slane %v2362, 1
    %v3719 = vsel %vm3171, %v3717, %v3718
    %v3720 = vrot.slane %v2368, 1
    %v3721 = vsel %vm3171, %v3718, %v3720
    %v3722 = vrot.slane %v2375, 1
    %v3723 = vrot.slane %v2381, 1
    %v3724 = vsel %vm3171, %v3722, %v3723
    %v3725 = vrot.slane %v2387, 1
    %v3726 = vsel %vm3171, %v3723, %v3725
    %v3727 = vrot.slane %v2394, 1
    %v3728 = vrot.slane %v2400, 1
    %v3729 = vsel %vm3171, %v3727, %v3728
    %v3730 = vrot.slane %v2406, 1
    %v3731 = vsel %vm3171, %v3728, %v3730
    %v3732 = vrot.slane %v2451, 1
    %v3733 = vrot.slane %v2457, 1
    %v3734 = vsel %vm3171, %v3732, %v3733
    %v3735 = vrot.slane %v2463, 1
    %v3736 = vsel %vm3171, %v3733, %v3735
    %v3737 = vrot.slane %v2470, 1
    %v3738 = vrot.slane %v2476, 1
    %v3739 = vsel %vm3171, %v3737, %v3738
    %v3740 = vrot.slane %v2482, 1
    %v3741 = vsel %vm3171, %v3738, %v3740
    %v3742 = vrot.slane %v2489, 1
    %v3743 = vrot.slane %v2495, 1
    %v3744 = vsel %vm3171, %v3742, %v3743
    %v3745 = vrot.slane %v2501, 1
    %v3746 = vsel %vm3171, %v3743, %v3745
    %v3747 = vrot.slane %v2508, 1
    %v3748 = vrot.slane %v2514, 1
    %v3749 = vsel %vm3171, %v3747, %v3748
    %v3750 = vrot.slane %v2520, 1
    %v3751 = vsel %vm3171, %v3748, %v3750
    %v3752 = vrot.slane %v2527, 1
    %v3753 = vrot.slane %v2533, 1
    %v3754 = vsel %vm3171, %v3752, %v3753
    %v3755 = vrot.slane %v2539, 1
    %v3756 = vsel %vm3171, %v3753, %v3755
    %v3757 = vrot.slane %v2546, 1
    %v3758 = vrot.slane %v2552, 1
    %v3759 = vsel %vm3171, %v3757, %v3758
    %v3760 = vrot.slane %v2558, 1
    %v3761 = vsel %vm3171, %v3758, %v3760
    %v3762 = vrot.slane %v2565, 1
    %v3763 = vrot.slane %v2571, 1
    %v3764 = vsel %vm3171, %v3762, %v3763
    %v3765 = vrot.slane %v2577, 1
    %v3766 = vsel %vm3171, %v3763, %v3765
    %v3767 = vrot.slane %v2584, 1
    %v3768 = vrot.slane %v2590, 1
    %v3769 = vsel %vm3171, %v3767, %v3768
    %v3770 = vrot.slane %v2596, 1
    %v3771 = vsel %vm3171, %v3768, %v3770
    %v3772 = vrot.slane %v2603, 1
    %v3773 = vrot.slane %v2609, 1
    %v3774 = vsel %vm3171, %v3772, %v3773
    %v3775 = vrot.slane %v2615, 1
    %v3776 = vsel %vm3171, %v3773, %v3775
    %v3777 = vrot.slane %v2622, 1
    %v3778 = vrot.slane %v2628, 1
    %v3779 = vsel %vm3171, %v3777, %v3778
    %v3780 = vrot.slane %v2634, 1
    %v3781 = vsel %vm3171, %v3778, %v3780
    %v3782 = vrot.slane %v2641, 1
    %v3783 = vrot.slane %v2647, 1
    %v3784 = vsel %vm3171, %v3782, %v3783
    %v3785 = vrot.slane %v2653, 1
    %v3786 = vsel %vm3171, %v3783, %v3785
    %v3787 = vrot.slane %v2660, 1
    %v3788 = vrot.slane %v2666, 1
    %v3789 = vsel %vm3171, %v3787, %v3788
    %v3790 = vrot.slane %v2672, 1
    %v3791 = vsel %vm3171, %v3788, %v3790
    %v3792 = vrot.slane %v2679, 1
    %v3793 = vrot.slane %v2685, 1
    %v3794 = vsel %vm3171, %v3792, %v3793
    %v3795 = vrot.slane %v2691, 1
    %v3796 = vsel %vm3171, %v3793, %v3795
    %v3797 = vrot.slane %v2698, 1
    %v3798 = vrot.slane %v2704, 1
    %v3799 = vsel %vm3171, %v3797, %v3798
    %v3800 = vrot.slane %v2710, 1
    %v3801 = vsel %vm3171, %v3798, %v3800
    %v3802 = vrot.slane %v2717, 1
    %v3803 = vrot.slane %v2723, 1
    %v3804 = vsel %vm3171, %v3802, %v3803
    %v3805 = vrot.slane %v2729, 1
    %v3806 = vsel %vm3171, %v3803, %v3805
    %v3807 = vrot.slane %v2736, 1
    %v3808 = vrot.slane %v2742, 1
    %v3809 = vsel %vm3171, %v3807, %v3808
    %v3810 = vrot.slane %v2748, 1
    %v3811 = vsel %vm3171, %v3808, %v3810
    %vm4068 = vcmask 1045504
    %v4069 = vrot.slane %v57, 2
    %v4070 = vrot.slane %v63, 2
    %v4071 = vsel %vm4068, %v4069, %v4070
    %v4072 = vrot.slane %v69, 2
    %v4073 = vsel %vm4068, %v4070, %v4072
    %v4074 = vrot.slane %v76, 2
    %v4075 = vrot.slane %v82, 2
    %v4076 = vsel %vm4068, %v4074, %v4075
    %v4077 = vrot.slane %v88, 2
    %v4078 = vsel %vm4068, %v4075, %v4077
    %v4079 = vrot.slane %v95, 2
    %v4080 = vrot.slane %v101, 2
    %v4081 = vsel %vm4068, %v4079, %v4080
    %v4082 = vrot.slane %v107, 2
    %v4083 = vsel %vm4068, %v4080, %v4082
    %v4084 = vrot.slane %v114, 2
    %v4085 = vrot.slane %v120, 2
    %v4086 = vsel %vm4068, %v4084, %v4085
    %v4087 = vrot.slane %v126, 2
    %v4088 = vsel %vm4068, %v4085, %v4087
    %v4089 = vrot.slane %v133, 2
    %v4090 = vrot.slane %v139, 2
    %v4091 = vsel %vm4068, %v4089, %v4090
    %v4092 = vrot.slane %v145, 2
    %v4093 = vsel %vm4068, %v4090, %v4092
    %v4094 = vrot.slane %v152, 2
    %v4095 = vrot.slane %v158, 2
    %v4096 = vsel %vm4068, %v4094, %v4095
    %v4097 = vrot.slane %v164, 2
    %v4098 = vsel %vm4068, %v4095, %v4097
    %v4099 = vrot.slane %v171, 2
    %v4100 = vrot.slane %v177, 2
    %v4101 = vsel %vm4068, %v4099, %v4100
    %v4102 = vrot.slane %v183, 2
    %v4103 = vsel %vm4068, %v4100, %v4102
    %v4104 = vrot.slane %v190, 2
    %v4105 = vrot.slane %v196, 2
    %v4106 = vsel %vm4068, %v4104, %v4105
    %v4107 = vrot.slane %v202, 2
    %v4108 = vsel %vm4068, %v4105, %v4107
    %v4109 = vrot.slane %v209, 2
    %v4110 = vrot.slane %v215, 2
    %v4111 = vsel %vm4068, %v4109, %v4110
    %v4112 = vrot.slane %v221, 2
    %v4113 = vsel %vm4068, %v4110, %v4112
    %v4114 = vrot.slane %v228, 2
    %v4115 = vrot.slane %v234, 2
    %v4116 = vsel %vm4068, %v4114, %v4115
    %v4117 = vrot.slane %v240, 2
    %v4118 = vsel %vm4068, %v4115, %v4117
    %v4119 = vrot.slane %v247, 2
    %v4120 = vrot.slane %v253, 2
    %v4121 = vsel %vm4068, %v4119, %v4120
    %v4122 = vrot.slane %v259, 2
    %v4123 = vsel %vm4068, %v4120, %v4122
    %v4124 = vrot.slane %v266, 2
    %v4125 = vrot.slane %v272, 2
    %v4126 = vsel %vm4068, %v4124, %v4125
    %v4127 = vrot.slane %v278, 2
    %v4128 = vsel %vm4068, %v4125, %v4127
    %v4129 = vrot.slane %v285, 2
    %v4130 = vrot.slane %v291, 2
    %v4131 = vsel %vm4068, %v4129, %v4130
    %v4132 = vrot.slane %v297, 2
    %v4133 = vsel %vm4068, %v4130, %v4132
    %v4134 = vrot.slane %v304, 2
    %v4135 = vrot.slane %v310, 2
    %v4136 = vsel %vm4068, %v4134, %v4135
    %v4137 = vrot.slane %v316, 2
    %v4138 = vsel %vm4068, %v4135, %v4137
    %v4139 = vrot.slane %v323, 2
    %v4140 = vrot.slane %v329, 2
    %v4141 = vsel %vm4068, %v4139, %v4140
    %v4142 = vrot.slane %v335, 2
    %v4143 = vsel %vm4068, %v4140, %v4142
    %v4144 = vrot.slane %v342, 2
    %v4145 = vrot.slane %v348, 2
    %v4146 = vsel %vm4068, %v4144, %v4145
    %v4147 = vrot.slane %v354, 2
    %v4148 = vsel %vm4068, %v4145, %v4147
    %v4149 = vrot.slane %v399, 2
    %v4150 = vrot.slane %v405, 2
    %v4151 = vsel %vm4068, %v4149, %v4150
    %v4152 = vrot.slane %v411, 2
    %v4153 = vsel %vm4068, %v4150, %v4152
    %v4154 = vrot.slane %v418, 2
    %v4155 = vrot.slane %v424, 2
    %v4156 = vsel %vm4068, %v4154, %v4155
    %v4157 = vrot.slane %v430, 2
    %v4158 = vsel %vm4068, %v4155, %v4157
    %v4159 = vrot.slane %v437, 2
    %v4160 = vrot.slane %v443, 2
    %v4161 = vsel %vm4068, %v4159, %v4160
    %v4162 = vrot.slane %v449, 2
    %v4163 = vsel %vm4068, %v4160, %v4162
    %v4164 = vrot.slane %v456, 2
    %v4165 = vrot.slane %v462, 2
    %v4166 = vsel %vm4068, %v4164, %v4165
    %v4167 = vrot.slane %v468, 2
    %v4168 = vsel %vm4068, %v4165, %v4167
    %v4169 = vrot.slane %v475, 2
    %v4170 = vrot.slane %v481, 2
    %v4171 = vsel %vm4068, %v4169, %v4170
    %v4172 = vrot.slane %v487, 2
    %v4173 = vsel %vm4068, %v4170, %v4172
    %v4174 = vrot.slane %v494, 2
    %v4175 = vrot.slane %v500, 2
    %v4176 = vsel %vm4068, %v4174, %v4175
    %v4177 = vrot.slane %v506, 2
    %v4178 = vsel %vm4068, %v4175, %v4177
    %v4179 = vrot.slane %v513, 2
    %v4180 = vrot.slane %v519, 2
    %v4181 = vsel %vm4068, %v4179, %v4180
    %v4182 = vrot.slane %v525, 2
    %v4183 = vsel %vm4068, %v4180, %v4182
    %v4184 = vrot.slane %v532, 2
    %v4185 = vrot.slane %v538, 2
    %v4186 = vsel %vm4068, %v4184, %v4185
    %v4187 = vrot.slane %v544, 2
    %v4188 = vsel %vm4068, %v4185, %v4187
    %v4189 = vrot.slane %v551, 2
    %v4190 = vrot.slane %v557, 2
    %v4191 = vsel %vm4068, %v4189, %v4190
    %v4192 = vrot.slane %v563, 2
    %v4193 = vsel %vm4068, %v4190, %v4192
    %v4194 = vrot.slane %v570, 2
    %v4195 = vrot.slane %v576, 2
    %v4196 = vsel %vm4068, %v4194, %v4195
    %v4197 = vrot.slane %v582, 2
    %v4198 = vsel %vm4068, %v4195, %v4197
    %v4199 = vrot.slane %v589, 2
    %v4200 = vrot.slane %v595, 2
    %v4201 = vsel %vm4068, %v4199, %v4200
    %v4202 = vrot.slane %v601, 2
    %v4203 = vsel %vm4068, %v4200, %v4202
    %v4204 = vrot.slane %v608, 2
    %v4205 = vrot.slane %v614, 2
    %v4206 = vsel %vm4068, %v4204, %v4205
    %v4207 = vrot.slane %v620, 2
    %v4208 = vsel %vm4068, %v4205, %v4207
    %v4209 = vrot.slane %v627, 2
    %v4210 = vrot.slane %v633, 2
    %v4211 = vsel %vm4068, %v4209, %v4210
    %v4212 = vrot.slane %v639, 2
    %v4213 = vsel %vm4068, %v4210, %v4212
    %v4214 = vrot.slane %v646, 2
    %v4215 = vrot.slane %v652, 2
    %v4216 = vsel %vm4068, %v4214, %v4215
    %v4217 = vrot.slane %v658, 2
    %v4218 = vsel %vm4068, %v4215, %v4217
    %v4219 = vrot.slane %v665, 2
    %v4220 = vrot.slane %v671, 2
    %v4221 = vsel %vm4068, %v4219, %v4220
    %v4222 = vrot.slane %v677, 2
    %v4223 = vsel %vm4068, %v4220, %v4222
    %v4224 = vrot.slane %v684, 2
    %v4225 = vrot.slane %v690, 2
    %v4226 = vsel %vm4068, %v4224, %v4225
    %v4227 = vrot.slane %v696, 2
    %v4228 = vsel %vm4068, %v4225, %v4227
    %v4229 = vrot.slane %v741, 2
    %v4230 = vrot.slane %v747, 2
    %v4231 = vsel %vm4068, %v4229, %v4230
    %v4232 = vrot.slane %v753, 2
    %v4233 = vsel %vm4068, %v4230, %v4232
    %v4234 = vrot.slane %v760, 2
    %v4235 = vrot.slane %v766, 2
    %v4236 = vsel %vm4068, %v4234, %v4235
    %v4237 = vrot.slane %v772, 2
    %v4238 = vsel %vm4068, %v4235, %v4237
    %v4239 = vrot.slane %v779, 2
    %v4240 = vrot.slane %v785, 2
    %v4241 = vsel %vm4068, %v4239, %v4240
    %v4242 = vrot.slane %v791, 2
    %v4243 = vsel %vm4068, %v4240, %v4242
    %v4244 = vrot.slane %v798, 2
    %v4245 = vrot.slane %v804, 2
    %v4246 = vsel %vm4068, %v4244, %v4245
    %v4247 = vrot.slane %v810, 2
    %v4248 = vsel %vm4068, %v4245, %v4247
    %v4249 = vrot.slane %v817, 2
    %v4250 = vrot.slane %v823, 2
    %v4251 = vsel %vm4068, %v4249, %v4250
    %v4252 = vrot.slane %v829, 2
    %v4253 = vsel %vm4068, %v4250, %v4252
    %v4254 = vrot.slane %v836, 2
    %v4255 = vrot.slane %v842, 2
    %v4256 = vsel %vm4068, %v4254, %v4255
    %v4257 = vrot.slane %v848, 2
    %v4258 = vsel %vm4068, %v4255, %v4257
    %v4259 = vrot.slane %v855, 2
    %v4260 = vrot.slane %v861, 2
    %v4261 = vsel %vm4068, %v4259, %v4260
    %v4262 = vrot.slane %v867, 2
    %v4263 = vsel %vm4068, %v4260, %v4262
    %v4264 = vrot.slane %v874, 2
    %v4265 = vrot.slane %v880, 2
    %v4266 = vsel %vm4068, %v4264, %v4265
    %v4267 = vrot.slane %v886, 2
    %v4268 = vsel %vm4068, %v4265, %v4267
    %v4269 = vrot.slane %v893, 2
    %v4270 = vrot.slane %v899, 2
    %v4271 = vsel %vm4068, %v4269, %v4270
    %v4272 = vrot.slane %v905, 2
    %v4273 = vsel %vm4068, %v4270, %v4272
    %v4274 = vrot.slane %v912, 2
    %v4275 = vrot.slane %v918, 2
    %v4276 = vsel %vm4068, %v4274, %v4275
    %v4277 = vrot.slane %v924, 2
    %v4278 = vsel %vm4068, %v4275, %v4277
    %v4279 = vrot.slane %v931, 2
    %v4280 = vrot.slane %v937, 2
    %v4281 = vsel %vm4068, %v4279, %v4280
    %v4282 = vrot.slane %v943, 2
    %v4283 = vsel %vm4068, %v4280, %v4282
    %v4284 = vrot.slane %v950, 2
    %v4285 = vrot.slane %v956, 2
    %v4286 = vsel %vm4068, %v4284, %v4285
    %v4287 = vrot.slane %v962, 2
    %v4288 = vsel %vm4068, %v4285, %v4287
    %v4289 = vrot.slane %v969, 2
    %v4290 = vrot.slane %v975, 2
    %v4291 = vsel %vm4068, %v4289, %v4290
    %v4292 = vrot.slane %v981, 2
    %v4293 = vsel %vm4068, %v4290, %v4292
    %v4294 = vrot.slane %v988, 2
    %v4295 = vrot.slane %v994, 2
    %v4296 = vsel %vm4068, %v4294, %v4295
    %v4297 = vrot.slane %v1000, 2
    %v4298 = vsel %vm4068, %v4295, %v4297
    %v4299 = vrot.slane %v1007, 2
    %v4300 = vrot.slane %v1013, 2
    %v4301 = vsel %vm4068, %v4299, %v4300
    %v4302 = vrot.slane %v1019, 2
    %v4303 = vsel %vm4068, %v4300, %v4302
    %v4304 = vrot.slane %v1026, 2
    %v4305 = vrot.slane %v1032, 2
    %v4306 = vsel %vm4068, %v4304, %v4305
    %v4307 = vrot.slane %v1038, 2
    %v4308 = vsel %vm4068, %v4305, %v4307
    %v4309 = vrot.slane %v1083, 2
    %v4310 = vrot.slane %v1089, 2
    %v4311 = vsel %vm4068, %v4309, %v4310
    %v4312 = vrot.slane %v1095, 2
    %v4313 = vsel %vm4068, %v4310, %v4312
    %v4314 = vrot.slane %v1102, 2
    %v4315 = vrot.slane %v1108, 2
    %v4316 = vsel %vm4068, %v4314, %v4315
    %v4317 = vrot.slane %v1114, 2
    %v4318 = vsel %vm4068, %v4315, %v4317
    %v4319 = vrot.slane %v1121, 2
    %v4320 = vrot.slane %v1127, 2
    %v4321 = vsel %vm4068, %v4319, %v4320
    %v4322 = vrot.slane %v1133, 2
    %v4323 = vsel %vm4068, %v4320, %v4322
    %v4324 = vrot.slane %v1140, 2
    %v4325 = vrot.slane %v1146, 2
    %v4326 = vsel %vm4068, %v4324, %v4325
    %v4327 = vrot.slane %v1152, 2
    %v4328 = vsel %vm4068, %v4325, %v4327
    %v4329 = vrot.slane %v1159, 2
    %v4330 = vrot.slane %v1165, 2
    %v4331 = vsel %vm4068, %v4329, %v4330
    %v4332 = vrot.slane %v1171, 2
    %v4333 = vsel %vm4068, %v4330, %v4332
    %v4334 = vrot.slane %v1178, 2
    %v4335 = vrot.slane %v1184, 2
    %v4336 = vsel %vm4068, %v4334, %v4335
    %v4337 = vrot.slane %v1190, 2
    %v4338 = vsel %vm4068, %v4335, %v4337
    %v4339 = vrot.slane %v1197, 2
    %v4340 = vrot.slane %v1203, 2
    %v4341 = vsel %vm4068, %v4339, %v4340
    %v4342 = vrot.slane %v1209, 2
    %v4343 = vsel %vm4068, %v4340, %v4342
    %v4344 = vrot.slane %v1216, 2
    %v4345 = vrot.slane %v1222, 2
    %v4346 = vsel %vm4068, %v4344, %v4345
    %v4347 = vrot.slane %v1228, 2
    %v4348 = vsel %vm4068, %v4345, %v4347
    %v4349 = vrot.slane %v1235, 2
    %v4350 = vrot.slane %v1241, 2
    %v4351 = vsel %vm4068, %v4349, %v4350
    %v4352 = vrot.slane %v1247, 2
    %v4353 = vsel %vm4068, %v4350, %v4352
    %v4354 = vrot.slane %v1254, 2
    %v4355 = vrot.slane %v1260, 2
    %v4356 = vsel %vm4068, %v4354, %v4355
    %v4357 = vrot.slane %v1266, 2
    %v4358 = vsel %vm4068, %v4355, %v4357
    %v4359 = vrot.slane %v1273, 2
    %v4360 = vrot.slane %v1279, 2
    %v4361 = vsel %vm4068, %v4359, %v4360
    %v4362 = vrot.slane %v1285, 2
    %v4363 = vsel %vm4068, %v4360, %v4362
    %v4364 = vrot.slane %v1292, 2
    %v4365 = vrot.slane %v1298, 2
    %v4366 = vsel %vm4068, %v4364, %v4365
    %v4367 = vrot.slane %v1304, 2
    %v4368 = vsel %vm4068, %v4365, %v4367
    %v4369 = vrot.slane %v1311, 2
    %v4370 = vrot.slane %v1317, 2
    %v4371 = vsel %vm4068, %v4369, %v4370
    %v4372 = vrot.slane %v1323, 2
    %v4373 = vsel %vm4068, %v4370, %v4372
    %v4374 = vrot.slane %v1330, 2
    %v4375 = vrot.slane %v1336, 2
    %v4376 = vsel %vm4068, %v4374, %v4375
    %v4377 = vrot.slane %v1342, 2
    %v4378 = vsel %vm4068, %v4375, %v4377
    %v4379 = vrot.slane %v1349, 2
    %v4380 = vrot.slane %v1355, 2
    %v4381 = vsel %vm4068, %v4379, %v4380
    %v4382 = vrot.slane %v1361, 2
    %v4383 = vsel %vm4068, %v4380, %v4382
    %v4384 = vrot.slane %v1368, 2
    %v4385 = vrot.slane %v1374, 2
    %v4386 = vsel %vm4068, %v4384, %v4385
    %v4387 = vrot.slane %v1380, 2
    %v4388 = vsel %vm4068, %v4385, %v4387
    %v4389 = vrot.slane %v1425, 2
    %v4390 = vrot.slane %v1431, 2
    %v4391 = vsel %vm4068, %v4389, %v4390
    %v4392 = vrot.slane %v1437, 2
    %v4393 = vsel %vm4068, %v4390, %v4392
    %v4394 = vrot.slane %v1444, 2
    %v4395 = vrot.slane %v1450, 2
    %v4396 = vsel %vm4068, %v4394, %v4395
    %v4397 = vrot.slane %v1456, 2
    %v4398 = vsel %vm4068, %v4395, %v4397
    %v4399 = vrot.slane %v1463, 2
    %v4400 = vrot.slane %v1469, 2
    %v4401 = vsel %vm4068, %v4399, %v4400
    %v4402 = vrot.slane %v1475, 2
    %v4403 = vsel %vm4068, %v4400, %v4402
    %v4404 = vrot.slane %v1482, 2
    %v4405 = vrot.slane %v1488, 2
    %v4406 = vsel %vm4068, %v4404, %v4405
    %v4407 = vrot.slane %v1494, 2
    %v4408 = vsel %vm4068, %v4405, %v4407
    %v4409 = vrot.slane %v1501, 2
    %v4410 = vrot.slane %v1507, 2
    %v4411 = vsel %vm4068, %v4409, %v4410
    %v4412 = vrot.slane %v1513, 2
    %v4413 = vsel %vm4068, %v4410, %v4412
    %v4414 = vrot.slane %v1520, 2
    %v4415 = vrot.slane %v1526, 2
    %v4416 = vsel %vm4068, %v4414, %v4415
    %v4417 = vrot.slane %v1532, 2
    %v4418 = vsel %vm4068, %v4415, %v4417
    %v4419 = vrot.slane %v1539, 2
    %v4420 = vrot.slane %v1545, 2
    %v4421 = vsel %vm4068, %v4419, %v4420
    %v4422 = vrot.slane %v1551, 2
    %v4423 = vsel %vm4068, %v4420, %v4422
    %v4424 = vrot.slane %v1558, 2
    %v4425 = vrot.slane %v1564, 2
    %v4426 = vsel %vm4068, %v4424, %v4425
    %v4427 = vrot.slane %v1570, 2
    %v4428 = vsel %vm4068, %v4425, %v4427
    %v4429 = vrot.slane %v1577, 2
    %v4430 = vrot.slane %v1583, 2
    %v4431 = vsel %vm4068, %v4429, %v4430
    %v4432 = vrot.slane %v1589, 2
    %v4433 = vsel %vm4068, %v4430, %v4432
    %v4434 = vrot.slane %v1596, 2
    %v4435 = vrot.slane %v1602, 2
    %v4436 = vsel %vm4068, %v4434, %v4435
    %v4437 = vrot.slane %v1608, 2
    %v4438 = vsel %vm4068, %v4435, %v4437
    %v4439 = vrot.slane %v1615, 2
    %v4440 = vrot.slane %v1621, 2
    %v4441 = vsel %vm4068, %v4439, %v4440
    %v4442 = vrot.slane %v1627, 2
    %v4443 = vsel %vm4068, %v4440, %v4442
    %v4444 = vrot.slane %v1634, 2
    %v4445 = vrot.slane %v1640, 2
    %v4446 = vsel %vm4068, %v4444, %v4445
    %v4447 = vrot.slane %v1646, 2
    %v4448 = vsel %vm4068, %v4445, %v4447
    %v4449 = vrot.slane %v1653, 2
    %v4450 = vrot.slane %v1659, 2
    %v4451 = vsel %vm4068, %v4449, %v4450
    %v4452 = vrot.slane %v1665, 2
    %v4453 = vsel %vm4068, %v4450, %v4452
    %v4454 = vrot.slane %v1672, 2
    %v4455 = vrot.slane %v1678, 2
    %v4456 = vsel %vm4068, %v4454, %v4455
    %v4457 = vrot.slane %v1684, 2
    %v4458 = vsel %vm4068, %v4455, %v4457
    %v4459 = vrot.slane %v1691, 2
    %v4460 = vrot.slane %v1697, 2
    %v4461 = vsel %vm4068, %v4459, %v4460
    %v4462 = vrot.slane %v1703, 2
    %v4463 = vsel %vm4068, %v4460, %v4462
    %v4464 = vrot.slane %v1710, 2
    %v4465 = vrot.slane %v1716, 2
    %v4466 = vsel %vm4068, %v4464, %v4465
    %v4467 = vrot.slane %v1722, 2
    %v4468 = vsel %vm4068, %v4465, %v4467
    %v4469 = vrot.slane %v1767, 2
    %v4470 = vrot.slane %v1773, 2
    %v4471 = vsel %vm4068, %v4469, %v4470
    %v4472 = vrot.slane %v1779, 2
    %v4473 = vsel %vm4068, %v4470, %v4472
    %v4474 = vrot.slane %v1786, 2
    %v4475 = vrot.slane %v1792, 2
    %v4476 = vsel %vm4068, %v4474, %v4475
    %v4477 = vrot.slane %v1798, 2
    %v4478 = vsel %vm4068, %v4475, %v4477
    %v4479 = vrot.slane %v1805, 2
    %v4480 = vrot.slane %v1811, 2
    %v4481 = vsel %vm4068, %v4479, %v4480
    %v4482 = vrot.slane %v1817, 2
    %v4483 = vsel %vm4068, %v4480, %v4482
    %v4484 = vrot.slane %v1824, 2
    %v4485 = vrot.slane %v1830, 2
    %v4486 = vsel %vm4068, %v4484, %v4485
    %v4487 = vrot.slane %v1836, 2
    %v4488 = vsel %vm4068, %v4485, %v4487
    %v4489 = vrot.slane %v1843, 2
    %v4490 = vrot.slane %v1849, 2
    %v4491 = vsel %vm4068, %v4489, %v4490
    %v4492 = vrot.slane %v1855, 2
    %v4493 = vsel %vm4068, %v4490, %v4492
    %v4494 = vrot.slane %v1862, 2
    %v4495 = vrot.slane %v1868, 2
    %v4496 = vsel %vm4068, %v4494, %v4495
    %v4497 = vrot.slane %v1874, 2
    %v4498 = vsel %vm4068, %v4495, %v4497
    %v4499 = vrot.slane %v1881, 2
    %v4500 = vrot.slane %v1887, 2
    %v4501 = vsel %vm4068, %v4499, %v4500
    %v4502 = vrot.slane %v1893, 2
    %v4503 = vsel %vm4068, %v4500, %v4502
    %v4504 = vrot.slane %v1900, 2
    %v4505 = vrot.slane %v1906, 2
    %v4506 = vsel %vm4068, %v4504, %v4505
    %v4507 = vrot.slane %v1912, 2
    %v4508 = vsel %vm4068, %v4505, %v4507
    %v4509 = vrot.slane %v1919, 2
    %v4510 = vrot.slane %v1925, 2
    %v4511 = vsel %vm4068, %v4509, %v4510
    %v4512 = vrot.slane %v1931, 2
    %v4513 = vsel %vm4068, %v4510, %v4512
    %v4514 = vrot.slane %v1938, 2
    %v4515 = vrot.slane %v1944, 2
    %v4516 = vsel %vm4068, %v4514, %v4515
    %v4517 = vrot.slane %v1950, 2
    %v4518 = vsel %vm4068, %v4515, %v4517
    %v4519 = vrot.slane %v1957, 2
    %v4520 = vrot.slane %v1963, 2
    %v4521 = vsel %vm4068, %v4519, %v4520
    %v4522 = vrot.slane %v1969, 2
    %v4523 = vsel %vm4068, %v4520, %v4522
    %v4524 = vrot.slane %v1976, 2
    %v4525 = vrot.slane %v1982, 2
    %v4526 = vsel %vm4068, %v4524, %v4525
    %v4527 = vrot.slane %v1988, 2
    %v4528 = vsel %vm4068, %v4525, %v4527
    %v4529 = vrot.slane %v1995, 2
    %v4530 = vrot.slane %v2001, 2
    %v4531 = vsel %vm4068, %v4529, %v4530
    %v4532 = vrot.slane %v2007, 2
    %v4533 = vsel %vm4068, %v4530, %v4532
    %v4534 = vrot.slane %v2014, 2
    %v4535 = vrot.slane %v2020, 2
    %v4536 = vsel %vm4068, %v4534, %v4535
    %v4537 = vrot.slane %v2026, 2
    %v4538 = vsel %vm4068, %v4535, %v4537
    %v4539 = vrot.slane %v2033, 2
    %v4540 = vrot.slane %v2039, 2
    %v4541 = vsel %vm4068, %v4539, %v4540
    %v4542 = vrot.slane %v2045, 2
    %v4543 = vsel %vm4068, %v4540, %v4542
    %v4544 = vrot.slane %v2052, 2
    %v4545 = vrot.slane %v2058, 2
    %v4546 = vsel %vm4068, %v4544, %v4545
    %v4547 = vrot.slane %v2064, 2
    %v4548 = vsel %vm4068, %v4545, %v4547
    %v4549 = vrot.slane %v2109, 2
    %v4550 = vrot.slane %v2115, 2
    %v4551 = vsel %vm4068, %v4549, %v4550
    %v4552 = vrot.slane %v2121, 2
    %v4553 = vsel %vm4068, %v4550, %v4552
    %v4554 = vrot.slane %v2128, 2
    %v4555 = vrot.slane %v2134, 2
    %v4556 = vsel %vm4068, %v4554, %v4555
    %v4557 = vrot.slane %v2140, 2
    %v4558 = vsel %vm4068, %v4555, %v4557
    %v4559 = vrot.slane %v2147, 2
    %v4560 = vrot.slane %v2153, 2
    %v4561 = vsel %vm4068, %v4559, %v4560
    %v4562 = vrot.slane %v2159, 2
    %v4563 = vsel %vm4068, %v4560, %v4562
    %v4564 = vrot.slane %v2166, 2
    %v4565 = vrot.slane %v2172, 2
    %v4566 = vsel %vm4068, %v4564, %v4565
    %v4567 = vrot.slane %v2178, 2
    %v4568 = vsel %vm4068, %v4565, %v4567
    %v4569 = vrot.slane %v2185, 2
    %v4570 = vrot.slane %v2191, 2
    %v4571 = vsel %vm4068, %v4569, %v4570
    %v4572 = vrot.slane %v2197, 2
    %v4573 = vsel %vm4068, %v4570, %v4572
    %v4574 = vrot.slane %v2204, 2
    %v4575 = vrot.slane %v2210, 2
    %v4576 = vsel %vm4068, %v4574, %v4575
    %v4577 = vrot.slane %v2216, 2
    %v4578 = vsel %vm4068, %v4575, %v4577
    %v4579 = vrot.slane %v2223, 2
    %v4580 = vrot.slane %v2229, 2
    %v4581 = vsel %vm4068, %v4579, %v4580
    %v4582 = vrot.slane %v2235, 2
    %v4583 = vsel %vm4068, %v4580, %v4582
    %v4584 = vrot.slane %v2242, 2
    %v4585 = vrot.slane %v2248, 2
    %v4586 = vsel %vm4068, %v4584, %v4585
    %v4587 = vrot.slane %v2254, 2
    %v4588 = vsel %vm4068, %v4585, %v4587
    %v4589 = vrot.slane %v2261, 2
    %v4590 = vrot.slane %v2267, 2
    %v4591 = vsel %vm4068, %v4589, %v4590
    %v4592 = vrot.slane %v2273, 2
    %v4593 = vsel %vm4068, %v4590, %v4592
    %v4594 = vrot.slane %v2280, 2
    %v4595 = vrot.slane %v2286, 2
    %v4596 = vsel %vm4068, %v4594, %v4595
    %v4597 = vrot.slane %v2292, 2
    %v4598 = vsel %vm4068, %v4595, %v4597
    %v4599 = vrot.slane %v2299, 2
    %v4600 = vrot.slane %v2305, 2
    %v4601 = vsel %vm4068, %v4599, %v4600
    %v4602 = vrot.slane %v2311, 2
    %v4603 = vsel %vm4068, %v4600, %v4602
    %v4604 = vrot.slane %v2318, 2
    %v4605 = vrot.slane %v2324, 2
    %v4606 = vsel %vm4068, %v4604, %v4605
    %v4607 = vrot.slane %v2330, 2
    %v4608 = vsel %vm4068, %v4605, %v4607
    %v4609 = vrot.slane %v2337, 2
    %v4610 = vrot.slane %v2343, 2
    %v4611 = vsel %vm4068, %v4609, %v4610
    %v4612 = vrot.slane %v2349, 2
    %v4613 = vsel %vm4068, %v4610, %v4612
    %v4614 = vrot.slane %v2356, 2
    %v4615 = vrot.slane %v2362, 2
    %v4616 = vsel %vm4068, %v4614, %v4615
    %v4617 = vrot.slane %v2368, 2
    %v4618 = vsel %vm4068, %v4615, %v4617
    %v4619 = vrot.slane %v2375, 2
    %v4620 = vrot.slane %v2381, 2
    %v4621 = vsel %vm4068, %v4619, %v4620
    %v4622 = vrot.slane %v2387, 2
    %v4623 = vsel %vm4068, %v4620, %v4622
    %v4624 = vrot.slane %v2394, 2
    %v4625 = vrot.slane %v2400, 2
    %v4626 = vsel %vm4068, %v4624, %v4625
    %v4627 = vrot.slane %v2406, 2
    %v4628 = vsel %vm4068, %v4625, %v4627
    %v4629 = vrot.slane %v2451, 2
    %v4630 = vrot.slane %v2457, 2
    %v4631 = vsel %vm4068, %v4629, %v4630
    %v4632 = vrot.slane %v2463, 2
    %v4633 = vsel %vm4068, %v4630, %v4632
    %v4634 = vrot.slane %v2470, 2
    %v4635 = vrot.slane %v2476, 2
    %v4636 = vsel %vm4068, %v4634, %v4635
    %v4637 = vrot.slane %v2482, 2
    %v4638 = vsel %vm4068, %v4635, %v4637
    %v4639 = vrot.slane %v2489, 2
    %v4640 = vrot.slane %v2495, 2
    %v4641 = vsel %vm4068, %v4639, %v4640
    %v4642 = vrot.slane %v2501, 2
    %v4643 = vsel %vm4068, %v4640, %v4642
    %v4644 = vrot.slane %v2508, 2
    %v4645 = vrot.slane %v2514, 2
    %v4646 = vsel %vm4068, %v4644, %v4645
    %v4647 = vrot.slane %v2520, 2
    %v4648 = vsel %vm4068, %v4645, %v4647
    %v4649 = vrot.slane %v2527, 2
    %v4650 = vrot.slane %v2533, 2
    %v4651 = vsel %vm4068, %v4649, %v4650
    %v4652 = vrot.slane %v2539, 2
    %v4653 = vsel %vm4068, %v4650, %v4652
    %v4654 = vrot.slane %v2546, 2
    %v4655 = vrot.slane %v2552, 2
    %v4656 = vsel %vm4068, %v4654, %v4655
    %v4657 = vrot.slane %v2558, 2
    %v4658 = vsel %vm4068, %v4655, %v4657
    %v4659 = vrot.slane %v2565, 2
    %v4660 = vrot.slane %v2571, 2
    %v4661 = vsel %vm4068, %v4659, %v4660
    %v4662 = vrot.slane %v2577, 2
    %v4663 = vsel %vm4068, %v4660, %v4662
    %v4664 = vrot.slane %v2584, 2
    %v4665 = vrot.slane %v2590, 2
    %v4666 = vsel %vm4068, %v4664, %v4665
    %v4667 = vrot.slane %v2596, 2
    %v4668 = vsel %vm4068, %v4665, %v4667
    %v4669 = vrot.slane %v2603, 2
    %v4670 = vrot.slane %v2609, 2
    %v4671 = vsel %vm4068, %v4669, %v4670
    %v4672 = vrot.slane %v2615, 2
    %v4673 = vsel %vm4068, %v4670, %v4672
    %v4674 = vrot.slane %v2622, 2
    %v4675 = vrot.slane %v2628, 2
    %v4676 = vsel %vm4068, %v4674, %v4675
    %v4677 = vrot.slane %v2634, 2
    %v4678 = vsel %vm4068, %v4675, %v4677
    %v4679 = vrot.slane %v2641, 2
    %v4680 = vrot.slane %v2647, 2
    %v4681 = vsel %vm4068, %v4679, %v4680
    %v4682 = vrot.slane %v2653, 2
    %v4683 = vsel %vm4068, %v4680, %v4682
    %v4684 = vrot.slane %v2660, 2
    %v4685 = vrot.slane %v2666, 2
    %v4686 = vsel %vm4068, %v4684, %v4685
    %v4687 = vrot.slane %v2672, 2
    %v4688 = vsel %vm4068, %v4685, %v4687
    %v4689 = vrot.slane %v2679, 2
    %v4690 = vrot.slane %v2685, 2
    %v4691 = vsel %vm4068, %v4689, %v4690
    %v4692 = vrot.slane %v2691, 2
    %v4693 = vsel %vm4068, %v4690, %v4692
    %v4694 = vrot.slane %v2698, 2
    %v4695 = vrot.slane %v2704, 2
    %v4696 = vsel %vm4068, %v4694, %v4695
    %v4697 = vrot.slane %v2710, 2
    %v4698 = vsel %vm4068, %v4695, %v4697
    %v4699 = vrot.slane %v2717, 2
    %v4700 = vrot.slane %v2723, 2
    %v4701 = vsel %vm4068, %v4699, %v4700
    %v4702 = vrot.slane %v2729, 2
    %v4703 = vsel %vm4068, %v4700, %v4702
    %v4704 = vrot.slane %v2736, 2
    %v4705 = vrot.slane %v2742, 2
    %v4706 = vsel %vm4068, %v4704, %v4705
    %v4707 = vrot.slane %v2748, 2
    %v4708 = vsel %vm4068, %v4705, %v4707
    %v4989 = vrot.slane %v361, 1
    %v4990 = vrot.slane %v367, 1
    %v4991 = vsel %vm3171, %v4989, %v4990
    %v4992 = vrot.slane %v373, 1
    %v4993 = vsel %vm3171, %v4990, %v4992
    %v4994 = vrot.slane %v703, 1
    %v4995 = vrot.slane %v709, 1
    %v4996 = vsel %vm3171, %v4994, %v4995
    %v4997 = vrot.slane %v715, 1
    %v4998 = vsel %vm3171, %v4995, %v4997
    %v4999 = vrot.slane %v1045, 1
    %v5000 = vrot.slane %v1051, 1
    %v5001 = vsel %vm3171, %v4999, %v5000
    %v5002 = vrot.slane %v1057, 1
    %v5003 = vsel %vm3171, %v5000, %v5002
    %v5004 = vrot.slane %v1387, 1
    %v5005 = vrot.slane %v1393, 1
    %v5006 = vsel %vm3171, %v5004, %v5005
    %v5007 = vrot.slane %v1399, 1
    %v5008 = vsel %vm3171, %v5005, %v5007
    %v5009 = vrot.slane %v1729, 1
    %v5010 = vrot.slane %v1735, 1
    %v5011 = vsel %vm3171, %v5009, %v5010
    %v5012 = vrot.slane %v1741, 1
    %v5013 = vsel %vm3171, %v5010, %v5012
    %v5014 = vrot.slane %v2071, 1
    %v5015 = vrot.slane %v2077, 1
    %v5016 = vsel %vm3171, %v5014, %v5015
    %v5017 = vrot.slane %v2083, 1
    %v5018 = vsel %vm3171, %v5015, %v5017
    %v5019 = vrot.slane %v2413, 1
    %v5020 = vrot.slane %v2419, 1
    %v5021 = vsel %vm3171, %v5019, %v5020
    %v5022 = vrot.slane %v2425, 1
    %v5023 = vsel %vm3171, %v5020, %v5022
    %v5024 = vrot.slane %v2755, 1
    %v5025 = vrot.slane %v2761, 1
    %v5026 = vsel %vm3171, %v5024, %v5025
    %v5027 = vrot.slane %v2767, 1
    %v5028 = vsel %vm3171, %v5025, %v5027
    %v5045 = vrot.slane %v361, 2
    %v5046 = vrot.slane %v367, 2
    %v5047 = vsel %vm4068, %v5045, %v5046
    %v5048 = vrot.slane %v373, 2
    %v5049 = vsel %vm4068, %v5046, %v5048
    %v5050 = vrot.slane %v703, 2
    %v5051 = vrot.slane %v709, 2
    %v5052 = vsel %vm4068, %v5050, %v5051
    %v5053 = vrot.slane %v715, 2
    %v5054 = vsel %vm4068, %v5051, %v5053
    %v5055 = vrot.slane %v1045, 2
    %v5056 = vrot.slane %v1051, 2
    %v5057 = vsel %vm4068, %v5055, %v5056
    %v5058 = vrot.slane %v1057, 2
    %v5059 = vsel %vm4068, %v5056, %v5058
    %v5060 = vrot.slane %v1387, 2
    %v5061 = vrot.slane %v1393, 2
    %v5062 = vsel %vm4068, %v5060, %v5061
    %v5063 = vrot.slane %v1399, 2
    %v5064 = vsel %vm4068, %v5061, %v5063
    %v5065 = vrot.slane %v1729, 2
    %v5066 = vrot.slane %v1735, 2
    %v5067 = vsel %vm4068, %v5065, %v5066
    %v5068 = vrot.slane %v1741, 2
    %v5069 = vsel %vm4068, %v5066, %v5068
    %v5070 = vrot.slane %v2071, 2
    %v5071 = vrot.slane %v2077, 2
    %v5072 = vsel %vm4068, %v5070, %v5071
    %v5073 = vrot.slane %v2083, 2
    %v5074 = vsel %vm4068, %v5071, %v5073
    %v5075 = vrot.slane %v2413, 2
    %v5076 = vrot.slane %v2419, 2
    %v5077 = vsel %vm4068, %v5075, %v5076
    %v5078 = vrot.slane %v2425, 2
    %v5079 = vsel %vm4068, %v5076, %v5078
    %v5080 = vrot.slane %v2755, 2
    %v5081 = vrot.slane %v2761, 2
    %v5082 = vsel %vm4068, %v5080, %v5081
    %v5083 = vrot.slane %v2767, 2
    %v5084 = vsel %vm4068, %v5081, %v5083
    %v5125 = vrot.slane %v380, 1
    %v5126 = vrot.slane %v386, 1
    %v5127 = vsel %vm3171, %v5125, %v5126
    %v5128 = vrot.slane %v392, 1
    %v5129 = vsel %vm3171, %v5126, %v5128
    %v5130 = vrot.slane %v722, 1
    %v5131 = vrot.slane %v728, 1
    %v5132 = vsel %vm3171, %v5130, %v5131
    %v5133 = vrot.slane %v734, 1
    %v5134 = vsel %vm3171, %v5131, %v5133
    %v5135 = vrot.slane %v1064, 1
    %v5136 = vrot.slane %v1070, 1
    %v5137 = vsel %vm3171, %v5135, %v5136
    %v5138 = vrot.slane %v1076, 1
    %v5139 = vsel %vm3171, %v5136, %v5138
    %v5140 = vrot.slane %v1406, 1
    %v5141 = vrot.slane %v1412, 1
    %v5142 = vsel %vm3171, %v5140, %v5141
    %v5143 = vrot.slane %v1418, 1
    %v5144 = vsel %vm3171, %v5141, %v5143
    %v5145 = vrot.slane %v1748, 1
    %v5146 = vrot.slane %v1754, 1
    %v5147 = vsel %vm3171, %v5145, %v5146
    %v5148 = vrot.slane %v1760, 1
    %v5149 = vsel %vm3171, %v5146, %v5148
    %v5150 = vrot.slane %v2090, 1
    %v5151 = vrot.slane %v2096, 1
    %v5152 = vsel %vm3171, %v5150, %v5151
    %v5153 = vrot.slane %v2102, 1
    %v5154 = vsel %vm3171, %v5151, %v5153
    %v5155 = vrot.slane %v2432, 1
    %v5156 = vrot.slane %v2438, 1
    %v5157 = vsel %vm3171, %v5155, %v5156
    %v5158 = vrot.slane %v2444, 1
    %v5159 = vsel %vm3171, %v5156, %v5158
    %v5160 = vrot.slane %v2774, 1
    %v5161 = vrot.slane %v2780, 1
    %v5162 = vsel %vm3171, %v5160, %v5161
    %v5163 = vrot.slane %v2786, 1
    %v5164 = vsel %vm3171, %v5161, %v5163
    %v5181 = vrot.slane %v380, 2
    %v5182 = vrot.slane %v386, 2
    %v5183 = vsel %vm4068, %v5181, %v5182
    %v5184 = vrot.slane %v392, 2
    %v5185 = vsel %vm4068, %v5182, %v5184
    %v5186 = vrot.slane %v722, 2
    %v5187 = vrot.slane %v728, 2
    %v5188 = vsel %vm4068, %v5186, %v5187
    %v5189 = vrot.slane %v734, 2
    %v5190 = vsel %vm4068, %v5187, %v5189
    %v5191 = vrot.slane %v1064, 2
    %v5192 = vrot.slane %v1070, 2
    %v5193 = vsel %vm4068, %v5191, %v5192
    %v5194 = vrot.slane %v1076, 2
    %v5195 = vsel %vm4068, %v5192, %v5194
    %v5196 = vrot.slane %v1406, 2
    %v5197 = vrot.slane %v1412, 2
    %v5198 = vsel %vm4068, %v5196, %v5197
    %v5199 = vrot.slane %v1418, 2
    %v5200 = vsel %vm4068, %v5197, %v5199
    %v5201 = vrot.slane %v1748, 2
    %v5202 = vrot.slane %v1754, 2
    %v5203 = vsel %vm4068, %v5201, %v5202
    %v5204 = vrot.slane %v1760, 2
    %v5205 = vsel %vm4068, %v5202, %v5204
    %v5206 = vrot.slane %v2090, 2
    %v5207 = vrot.slane %v2096, 2
    %v5208 = vsel %vm4068, %v5206, %v5207
    %v5209 = vrot.slane %v2102, 2
    %v5210 = vsel %vm4068, %v5207, %v5209
    %v5211 = vrot.slane %v2432, 2
    %v5212 = vrot.slane %v2438, 2
    %v5213 = vsel %vm4068, %v5211, %v5212
    %v5214 = vrot.slane %v2444, 2
    %v5215 = vsel %vm4068, %v5212, %v5214
    %v5216 = vrot.slane %v2774, 2
    %v5217 = vrot.slane %v2780, 2
    %v5218 = vsel %vm4068, %v5216, %v5217
    %v5219 = vrot.slane %v2786, 2
    %v5220 = vsel %vm4068, %v5217, %v5219
    %vm5237 = vcmask 7168
    %v5238 = vsel %vm5237, %v57, %v3174
    %v5239 = vsel %vm5237, %v63, %v3176
    %v5240 = vsel %vm5237, %v76, %v3179
    %v5241 = vsel %vm5237, %v82, %v3181
    %v5242 = vsel %vm5237, %v95, %v3184
    %v5243 = vsel %vm5237, %v101, %v3186
    %v5244 = vsel %vm5237, %v114, %v3189
    %v5245 = vsel %vm5237, %v120, %v3191
    %v5246 = vsel %vm5237, %v133, %v3194
    %v5247 = vsel %vm5237, %v139, %v3196
    %v5248 = vsel %vm5237, %v152, %v3199
    %v5249 = vsel %vm5237, %v158, %v3201
    %v5250 = vsel %vm5237, %v171, %v3204
    %v5251 = vsel %vm5237, %v177, %v3206
    %v5252 = vsel %vm5237, %v190, %v3209
    %v5253 = vsel %vm5237, %v196, %v3211
    %v5254 = vsel %vm5237, %v209, %v3214
    %v5255 = vsel %vm5237, %v215, %v3216
    %v5256 = vsel %vm5237, %v228, %v3219
    %v5257 = vsel %vm5237, %v234, %v3221
    %v5258 = vsel %vm5237, %v247, %v3224
    %v5259 = vsel %vm5237, %v253, %v3226
    %v5260 = vsel %vm5237, %v266, %v3229
    %v5261 = vsel %vm5237, %v272, %v3231
    %v5262 = vsel %vm5237, %v285, %v3234
    %v5263 = vsel %vm5237, %v291, %v3236
    %v5264 = vsel %vm5237, %v304, %v3239
    %v5265 = vsel %vm5237, %v310, %v3241
    %v5266 = vsel %vm5237, %v323, %v3244
    %v5267 = vsel %vm5237, %v329, %v3246
    %v5268 = vsel %vm5237, %v342, %v3249
    %v5269 = vsel %vm5237, %v348, %v3251
    %v5270 = vsel %vm5237, %v399, %v3254
    %v5271 = vsel %vm5237, %v405, %v3256
    %v5272 = vsel %vm5237, %v418, %v3259
    %v5273 = vsel %vm5237, %v424, %v3261
    %v5274 = vsel %vm5237, %v437, %v3264
    %v5275 = vsel %vm5237, %v443, %v3266
    %v5276 = vsel %vm5237, %v456, %v3269
    %v5277 = vsel %vm5237, %v462, %v3271
    %v5278 = vsel %vm5237, %v475, %v3274
    %v5279 = vsel %vm5237, %v481, %v3276
    %v5280 = vsel %vm5237, %v494, %v3279
    %v5281 = vsel %vm5237, %v500, %v3281
    %v5282 = vsel %vm5237, %v513, %v3284
    %v5283 = vsel %vm5237, %v519, %v3286
    %v5284 = vsel %vm5237, %v532, %v3289
    %v5285 = vsel %vm5237, %v538, %v3291
    %v5286 = vsel %vm5237, %v551, %v3294
    %v5287 = vsel %vm5237, %v557, %v3296
    %v5288 = vsel %vm5237, %v570, %v3299
    %v5289 = vsel %vm5237, %v576, %v3301
    %v5290 = vsel %vm5237, %v589, %v3304
    %v5291 = vsel %vm5237, %v595, %v3306
    %v5292 = vsel %vm5237, %v608, %v3309
    %v5293 = vsel %vm5237, %v614, %v3311
    %v5294 = vsel %vm5237, %v627, %v3314
    %v5295 = vsel %vm5237, %v633, %v3316
    %v5296 = vsel %vm5237, %v646, %v3319
    %v5297 = vsel %vm5237, %v652, %v3321
    %v5298 = vsel %vm5237, %v665, %v3324
    %v5299 = vsel %vm5237, %v671, %v3326
    %v5300 = vsel %vm5237, %v684, %v3329
    %v5301 = vsel %vm5237, %v690, %v3331
    %v5302 = vsel %vm5237, %v741, %v3334
    %v5303 = vsel %vm5237, %v747, %v3336
    %v5304 = vsel %vm5237, %v760, %v3339
    %v5305 = vsel %vm5237, %v766, %v3341
    %v5306 = vsel %vm5237, %v779, %v3344
    %v5307 = vsel %vm5237, %v785, %v3346
    %v5308 = vsel %vm5237, %v798, %v3349
    %v5309 = vsel %vm5237, %v804, %v3351
    %v5310 = vsel %vm5237, %v817, %v3354
    %v5311 = vsel %vm5237, %v823, %v3356
    %v5312 = vsel %vm5237, %v836, %v3359
    %v5313 = vsel %vm5237, %v842, %v3361
    %v5314 = vsel %vm5237, %v855, %v3364
    %v5315 = vsel %vm5237, %v861, %v3366
    %v5316 = vsel %vm5237, %v874, %v3369
    %v5317 = vsel %vm5237, %v880, %v3371
    %v5318 = vsel %vm5237, %v893, %v3374
    %v5319 = vsel %vm5237, %v899, %v3376
    %v5320 = vsel %vm5237, %v912, %v3379
    %v5321 = vsel %vm5237, %v918, %v3381
    %v5322 = vsel %vm5237, %v931, %v3384
    %v5323 = vsel %vm5237, %v937, %v3386
    %v5324 = vsel %vm5237, %v950, %v3389
    %v5325 = vsel %vm5237, %v956, %v3391
    %v5326 = vsel %vm5237, %v969, %v3394
    %v5327 = vsel %vm5237, %v975, %v3396
    %v5328 = vsel %vm5237, %v988, %v3399
    %v5329 = vsel %vm5237, %v994, %v3401
    %v5330 = vsel %vm5237, %v1007, %v3404
    %v5331 = vsel %vm5237, %v1013, %v3406
    %v5332 = vsel %vm5237, %v1026, %v3409
    %v5333 = vsel %vm5237, %v1032, %v3411
    %v5334 = vsel %vm5237, %v1083, %v3414
    %v5335 = vsel %vm5237, %v1089, %v3416
    %v5336 = vsel %vm5237, %v1102, %v3419
    %v5337 = vsel %vm5237, %v1108, %v3421
    %v5338 = vsel %vm5237, %v1121, %v3424
    %v5339 = vsel %vm5237, %v1127, %v3426
    %v5340 = vsel %vm5237, %v1140, %v3429
    %v5341 = vsel %vm5237, %v1146, %v3431
    %v5342 = vsel %vm5237, %v1159, %v3434
    %v5343 = vsel %vm5237, %v1165, %v3436
    %v5344 = vsel %vm5237, %v1178, %v3439
    %v5345 = vsel %vm5237, %v1184, %v3441
    %v5346 = vsel %vm5237, %v1197, %v3444
    %v5347 = vsel %vm5237, %v1203, %v3446
    %v5348 = vsel %vm5237, %v1216, %v3449
    %v5349 = vsel %vm5237, %v1222, %v3451
    %v5350 = vsel %vm5237, %v1235, %v3454
    %v5351 = vsel %vm5237, %v1241, %v3456
    %v5352 = vsel %vm5237, %v1254, %v3459
    %v5353 = vsel %vm5237, %v1260, %v3461
    %v5354 = vsel %vm5237, %v1273, %v3464
    %v5355 = vsel %vm5237, %v1279, %v3466
    %v5356 = vsel %vm5237, %v1292, %v3469
    %v5357 = vsel %vm5237, %v1298, %v3471
    %v5358 = vsel %vm5237, %v1311, %v3474
    %v5359 = vsel %vm5237, %v1317, %v3476
    %v5360 = vsel %vm5237, %v1330, %v3479
    %v5361 = vsel %vm5237, %v1336, %v3481
    %v5362 = vsel %vm5237, %v1349, %v3484
    %v5363 = vsel %vm5237, %v1355, %v3486
    %v5364 = vsel %vm5237, %v1368, %v3489
    %v5365 = vsel %vm5237, %v1374, %v3491
    %v5366 = vsel %vm5237, %v1425, %v3494
    %v5367 = vsel %vm5237, %v1431, %v3496
    %v5368 = vsel %vm5237, %v1444, %v3499
    %v5369 = vsel %vm5237, %v1450, %v3501
    %v5370 = vsel %vm5237, %v1463, %v3504
    %v5371 = vsel %vm5237, %v1469, %v3506
    %v5372 = vsel %vm5237, %v1482, %v3509
    %v5373 = vsel %vm5237, %v1488, %v3511
    %v5374 = vsel %vm5237, %v1501, %v3514
    %v5375 = vsel %vm5237, %v1507, %v3516
    %v5376 = vsel %vm5237, %v1520, %v3519
    %v5377 = vsel %vm5237, %v1526, %v3521
    %v5378 = vsel %vm5237, %v1539, %v3524
    %v5379 = vsel %vm5237, %v1545, %v3526
    %v5380 = vsel %vm5237, %v1558, %v3529
    %v5381 = vsel %vm5237, %v1564, %v3531
    %v5382 = vsel %vm5237, %v1577, %v3534
    %v5383 = vsel %vm5237, %v1583, %v3536
    %v5384 = vsel %vm5237, %v1596, %v3539
    %v5385 = vsel %vm5237, %v1602, %v3541
    %v5386 = vsel %vm5237, %v1615, %v3544
    %v5387 = vsel %vm5237, %v1621, %v3546
    %v5388 = vsel %vm5237, %v1634, %v3549
    %v5389 = vsel %vm5237, %v1640, %v3551
    %v5390 = vsel %vm5237, %v1653, %v3554
    %v5391 = vsel %vm5237, %v1659, %v3556
    %v5392 = vsel %vm5237, %v1672, %v3559
    %v5393 = vsel %vm5237, %v1678, %v3561
    %v5394 = vsel %vm5237, %v1691, %v3564
    %v5395 = vsel %vm5237, %v1697, %v3566
    %v5396 = vsel %vm5237, %v1710, %v3569
    %v5397 = vsel %vm5237, %v1716, %v3571
    %v5398 = vsel %vm5237, %v1767, %v3574
    %v5399 = vsel %vm5237, %v1773, %v3576
    %v5400 = vsel %vm5237, %v1786, %v3579
    %v5401 = vsel %vm5237, %v1792, %v3581
    %v5402 = vsel %vm5237, %v1805, %v3584
    %v5403 = vsel %vm5237, %v1811, %v3586
    %v5404 = vsel %vm5237, %v1824, %v3589
    %v5405 = vsel %vm5237, %v1830, %v3591
    %v5406 = vsel %vm5237, %v1843, %v3594
    %v5407 = vsel %vm5237, %v1849, %v3596
    %v5408 = vsel %vm5237, %v1862, %v3599
    %v5409 = vsel %vm5237, %v1868, %v3601
    %v5410 = vsel %vm5237, %v1881, %v3604
    %v5411 = vsel %vm5237, %v1887, %v3606
    %v5412 = vsel %vm5237, %v1900, %v3609
    %v5413 = vsel %vm5237, %v1906, %v3611
    %v5414 = vsel %vm5237, %v1919, %v3614
    %v5415 = vsel %vm5237, %v1925, %v3616
    %v5416 = vsel %vm5237, %v1938, %v3619
    %v5417 = vsel %vm5237, %v1944, %v3621
    %v5418 = vsel %vm5237, %v1957, %v3624
    %v5419 = vsel %vm5237, %v1963, %v3626
    %v5420 = vsel %vm5237, %v1976, %v3629
    %v5421 = vsel %vm5237, %v1982, %v3631
    %v5422 = vsel %vm5237, %v1995, %v3634
    %v5423 = vsel %vm5237, %v2001, %v3636
    %v5424 = vsel %vm5237, %v2014, %v3639
    %v5425 = vsel %vm5237, %v2020, %v3641
    %v5426 = vsel %vm5237, %v2033, %v3644
    %v5427 = vsel %vm5237, %v2039, %v3646
    %v5428 = vsel %vm5237, %v2052, %v3649
    %v5429 = vsel %vm5237, %v2058, %v3651
    %v5430 = vsel %vm5237, %v2109, %v3654
    %v5431 = vsel %vm5237, %v2115, %v3656
    %v5432 = vsel %vm5237, %v2128, %v3659
    %v5433 = vsel %vm5237, %v2134, %v3661
    %v5434 = vsel %vm5237, %v2147, %v3664
    %v5435 = vsel %vm5237, %v2153, %v3666
    %v5436 = vsel %vm5237, %v2166, %v3669
    %v5437 = vsel %vm5237, %v2172, %v3671
    %v5438 = vsel %vm5237, %v2185, %v3674
    %v5439 = vsel %vm5237, %v2191, %v3676
    %v5440 = vsel %vm5237, %v2204, %v3679
    %v5441 = vsel %vm5237, %v2210, %v3681
    %v5442 = vsel %vm5237, %v2223, %v3684
    %v5443 = vsel %vm5237, %v2229, %v3686
    %v5444 = vsel %vm5237, %v2242, %v3689
    %v5445 = vsel %vm5237, %v2248, %v3691
    %v5446 = vsel %vm5237, %v2261, %v3694
    %v5447 = vsel %vm5237, %v2267, %v3696
    %v5448 = vsel %vm5237, %v2280, %v3699
    %v5449 = vsel %vm5237, %v2286, %v3701
    %v5450 = vsel %vm5237, %v2299, %v3704
    %v5451 = vsel %vm5237, %v2305, %v3706
    %v5452 = vsel %vm5237, %v2318, %v3709
    %v5453 = vsel %vm5237, %v2324, %v3711
    %v5454 = vsel %vm5237, %v2337, %v3714
    %v5455 = vsel %vm5237, %v2343, %v3716
    %v5456 = vsel %vm5237, %v2356, %v3719
    %v5457 = vsel %vm5237, %v2362, %v3721
    %v5458 = vsel %vm5237, %v2375, %v3724
    %v5459 = vsel %vm5237, %v2381, %v3726
    %v5460 = vsel %vm5237, %v2394, %v3729
    %v5461 = vsel %vm5237, %v2400, %v3731
    %v5462 = vsel %vm5237, %v2451, %v3734
    %v5463 = vsel %vm5237, %v2457, %v3736
    %v5464 = vsel %vm5237, %v2470, %v3739
    %v5465 = vsel %vm5237, %v2476, %v3741
    %v5466 = vsel %vm5237, %v2489, %v3744
    %v5467 = vsel %vm5237, %v2495, %v3746
    %v5468 = vsel %vm5237, %v2508, %v3749
    %v5469 = vsel %vm5237, %v2514, %v3751
    %v5470 = vsel %vm5237, %v2527, %v3754
    %v5471 = vsel %vm5237, %v2533, %v3756
    %v5472 = vsel %vm5237, %v2546, %v3759
    %v5473 = vsel %vm5237, %v2552, %v3761
    %v5474 = vsel %vm5237, %v2565, %v3764
    %v5475 = vsel %vm5237, %v2571, %v3766
    %v5476 = vsel %vm5237, %v2584, %v3769
    %v5477 = vsel %vm5237, %v2590, %v3771
    %v5478 = vsel %vm5237, %v2603, %v3774
    %v5479 = vsel %vm5237, %v2609, %v3776
    %v5480 = vsel %vm5237, %v2622, %v3779
    %v5481 = vsel %vm5237, %v2628, %v3781
    %v5482 = vsel %vm5237, %v2641, %v3784
    %v5483 = vsel %vm5237, %v2647, %v3786
    %v5484 = vsel %vm5237, %v2660, %v3789
    %v5485 = vsel %vm5237, %v2666, %v3791
    %v5486 = vsel %vm5237, %v2679, %v3794
    %v5487 = vsel %vm5237, %v2685, %v3796
    %v5488 = vsel %vm5237, %v2698, %v3799
    %v5489 = vsel %vm5237, %v2704, %v3801
    %v5490 = vsel %vm5237, %v2717, %v3804
    %v5491 = vsel %vm5237, %v2723, %v3806
    %v5492 = vsel %vm5237, %v2736, %v3809
    %v5493 = vsel %vm5237, %v2742, %v3811
    %vm5494 = vcmask 15360
    %v5495 = vsel %vm5494, %v5238, %v4071
    %v5496 = vsel %vm5494, %v5239, %v4073
    %v5497 = vsel %vm5494, %v5240, %v4076
    %v5498 = vsel %vm5494, %v5241, %v4078
    %v5499 = vsel %vm5494, %v5242, %v4081
    %v5500 = vsel %vm5494, %v5243, %v4083
    %v5501 = vsel %vm5494, %v5244, %v4086
    %v5502 = vsel %vm5494, %v5245, %v4088
    %v5503 = vsel %vm5494, %v5246, %v4091
    %v5504 = vsel %vm5494, %v5247, %v4093
    %v5505 = vsel %vm5494, %v5248, %v4096
    %v5506 = vsel %vm5494, %v5249, %v4098
    %v5507 = vsel %vm5494, %v5250, %v4101
    %v5508 = vsel %vm5494, %v5251, %v4103
    %v5509 = vsel %vm5494, %v5252, %v4106
    %v5510 = vsel %vm5494, %v5253, %v4108
    %v5511 = vsel %vm5494, %v5254, %v4111
    %v5512 = vsel %vm5494, %v5255, %v4113
    %v5513 = vsel %vm5494, %v5256, %v4116
    %v5514 = vsel %vm5494, %v5257, %v4118
    %v5515 = vsel %vm5494, %v5258, %v4121
    %v5516 = vsel %vm5494, %v5259, %v4123
    %v5517 = vsel %vm5494, %v5260, %v4126
    %v5518 = vsel %vm5494, %v5261, %v4128
    %v5519 = vsel %vm5494, %v5262, %v4131
    %v5520 = vsel %vm5494, %v5263, %v4133
    %v5521 = vsel %vm5494, %v5264, %v4136
    %v5522 = vsel %vm5494, %v5265, %v4138
    %v5523 = vsel %vm5494, %v5266, %v4141
    %v5524 = vsel %vm5494, %v5267, %v4143
    %v5525 = vsel %vm5494, %v5268, %v4146
    %v5526 = vsel %vm5494, %v5269, %v4148
    %v5527 = vsel %vm5494, %v5270, %v4151
    %v5528 = vsel %vm5494, %v5271, %v4153
    %v5529 = vsel %vm5494, %v5272, %v4156
    %v5530 = vsel %vm5494, %v5273, %v4158
    %v5531 = vsel %vm5494, %v5274, %v4161
    %v5532 = vsel %vm5494, %v5275, %v4163
    %v5533 = vsel %vm5494, %v5276, %v4166
    %v5534 = vsel %vm5494, %v5277, %v4168
    %v5535 = vsel %vm5494, %v5278, %v4171
    %v5536 = vsel %vm5494, %v5279, %v4173
    %v5537 = vsel %vm5494, %v5280, %v4176
    %v5538 = vsel %vm5494, %v5281, %v4178
    %v5539 = vsel %vm5494, %v5282, %v4181
    %v5540 = vsel %vm5494, %v5283, %v4183
    %v5541 = vsel %vm5494, %v5284, %v4186
    %v5542 = vsel %vm5494, %v5285, %v4188
    %v5543 = vsel %vm5494, %v5286, %v4191
    %v5544 = vsel %vm5494, %v5287, %v4193
    %v5545 = vsel %vm5494, %v5288, %v4196
    %v5546 = vsel %vm5494, %v5289, %v4198
    %v5547 = vsel %vm5494, %v5290, %v4201
    %v5548 = vsel %vm5494, %v5291, %v4203
    %v5549 = vsel %vm5494, %v5292, %v4206
    %v5550 = vsel %vm5494, %v5293, %v4208
    %v5551 = vsel %vm5494, %v5294, %v4211
    %v5552 = vsel %vm5494, %v5295, %v4213
    %v5553 = vsel %vm5494, %v5296, %v4216
    %v5554 = vsel %vm5494, %v5297, %v4218
    %v5555 = vsel %vm5494, %v5298, %v4221
    %v5556 = vsel %vm5494, %v5299, %v4223
    %v5557 = vsel %vm5494, %v5300, %v4226
    %v5558 = vsel %vm5494, %v5301, %v4228
    %v5559 = vsel %vm5494, %v5302, %v4231
    %v5560 = vsel %vm5494, %v5303, %v4233
    %v5561 = vsel %vm5494, %v5304, %v4236
    %v5562 = vsel %vm5494, %v5305, %v4238
    %v5563 = vsel %vm5494, %v5306, %v4241
    %v5564 = vsel %vm5494, %v5307, %v4243
    %v5565 = vsel %vm5494, %v5308, %v4246
    %v5566 = vsel %vm5494, %v5309, %v4248
    %v5567 = vsel %vm5494, %v5310, %v4251
    %v5568 = vsel %vm5494, %v5311, %v4253
    %v5569 = vsel %vm5494, %v5312, %v4256
    %v5570 = vsel %vm5494, %v5313, %v4258
    %v5571 = vsel %vm5494, %v5314, %v4261
    %v5572 = vsel %vm5494, %v5315, %v4263
    %v5573 = vsel %vm5494, %v5316, %v4266
    %v5574 = vsel %vm5494, %v5317, %v4268
    %v5575 = vsel %vm5494, %v5318, %v4271
    %v5576 = vsel %vm5494, %v5319, %v4273
    %v5577 = vsel %vm5494, %v5320, %v4276
    %v5578 = vsel %vm5494, %v5321, %v4278
    %v5579 = vsel %vm5494, %v5322, %v4281
    %v5580 = vsel %vm5494, %v5323, %v4283
    %v5581 = vsel %vm5494, %v5324, %v4286
    %v5582 = vsel %vm5494, %v5325, %v4288
    %v5583 = vsel %vm5494, %v5326, %v4291
    %v5584 = vsel %vm5494, %v5327, %v4293
    %v5585 = vsel %vm5494, %v5328, %v4296
    %v5586 = vsel %vm5494, %v5329, %v4298
    %v5587 = vsel %vm5494, %v5330, %v4301
    %v5588 = vsel %vm5494, %v5331, %v4303
    %v5589 = vsel %vm5494, %v5332, %v4306
    %v5590 = vsel %vm5494, %v5333, %v4308
    %v5591 = vsel %vm5494, %v5334, %v4311
    %v5592 = vsel %vm5494, %v5335, %v4313
    %v5593 = vsel %vm5494, %v5336, %v4316
    %v5594 = vsel %vm5494, %v5337, %v4318
    %v5595 = vsel %vm5494, %v5338, %v4321
    %v5596 = vsel %vm5494, %v5339, %v4323
    %v5597 = vsel %vm5494, %v5340, %v4326
    %v5598 = vsel %vm5494, %v5341, %v4328
    %v5599 = vsel %vm5494, %v5342, %v4331
    %v5600 = vsel %vm5494, %v5343, %v4333
    %v5601 = vsel %vm5494, %v5344, %v4336
    %v5602 = vsel %vm5494, %v5345, %v4338
    %v5603 = vsel %vm5494, %v5346, %v4341
    %v5604 = vsel %vm5494, %v5347, %v4343
    %v5605 = vsel %vm5494, %v5348, %v4346
    %v5606 = vsel %vm5494, %v5349, %v4348
    %v5607 = vsel %vm5494, %v5350, %v4351
    %v5608 = vsel %vm5494, %v5351, %v4353
    %v5609 = vsel %vm5494, %v5352, %v4356
    %v5610 = vsel %vm5494, %v5353, %v4358
    %v5611 = vsel %vm5494, %v5354, %v4361
    %v5612 = vsel %vm5494, %v5355, %v4363
    %v5613 = vsel %vm5494, %v5356, %v4366
    %v5614 = vsel %vm5494, %v5357, %v4368
    %v5615 = vsel %vm5494, %v5358, %v4371
    %v5616 = vsel %vm5494, %v5359, %v4373
    %v5617 = vsel %vm5494, %v5360, %v4376
    %v5618 = vsel %vm5494, %v5361, %v4378
    %v5619 = vsel %vm5494, %v5362, %v4381
    %v5620 = vsel %vm5494, %v5363, %v4383
    %v5621 = vsel %vm5494, %v5364, %v4386
    %v5622 = vsel %vm5494, %v5365, %v4388
    %v5623 = vsel %vm5494, %v5366, %v4391
    %v5624 = vsel %vm5494, %v5367, %v4393
    %v5625 = vsel %vm5494, %v5368, %v4396
    %v5626 = vsel %vm5494, %v5369, %v4398
    %v5627 = vsel %vm5494, %v5370, %v4401
    %v5628 = vsel %vm5494, %v5371, %v4403
    %v5629 = vsel %vm5494, %v5372, %v4406
    %v5630 = vsel %vm5494, %v5373, %v4408
    %v5631 = vsel %vm5494, %v5374, %v4411
    %v5632 = vsel %vm5494, %v5375, %v4413
    %v5633 = vsel %vm5494, %v5376, %v4416
    %v5634 = vsel %vm5494, %v5377, %v4418
    %v5635 = vsel %vm5494, %v5378, %v4421
    %v5636 = vsel %vm5494, %v5379, %v4423
    %v5637 = vsel %vm5494, %v5380, %v4426
    %v5638 = vsel %vm5494, %v5381, %v4428
    %v5639 = vsel %vm5494, %v5382, %v4431
    %v5640 = vsel %vm5494, %v5383, %v4433
    %v5641 = vsel %vm5494, %v5384, %v4436
    %v5642 = vsel %vm5494, %v5385, %v4438
    %v5643 = vsel %vm5494, %v5386, %v4441
    %v5644 = vsel %vm5494, %v5387, %v4443
    %v5645 = vsel %vm5494, %v5388, %v4446
    %v5646 = vsel %vm5494, %v5389, %v4448
    %v5647 = vsel %vm5494, %v5390, %v4451
    %v5648 = vsel %vm5494, %v5391, %v4453
    %v5649 = vsel %vm5494, %v5392, %v4456
    %v5650 = vsel %vm5494, %v5393, %v4458
    %v5651 = vsel %vm5494, %v5394, %v4461
    %v5652 = vsel %vm5494, %v5395, %v4463
    %v5653 = vsel %vm5494, %v5396, %v4466
    %v5654 = vsel %vm5494, %v5397, %v4468
    %v5655 = vsel %vm5494, %v5398, %v4471
    %v5656 = vsel %vm5494, %v5399, %v4473
    %v5657 = vsel %vm5494, %v5400, %v4476
    %v5658 = vsel %vm5494, %v5401, %v4478
    %v5659 = vsel %vm5494, %v5402, %v4481
    %v5660 = vsel %vm5494, %v5403, %v4483
    %v5661 = vsel %vm5494, %v5404, %v4486
    %v5662 = vsel %vm5494, %v5405, %v4488
    %v5663 = vsel %vm5494, %v5406, %v4491
    %v5664 = vsel %vm5494, %v5407, %v4493
    %v5665 = vsel %vm5494, %v5408, %v4496
    %v5666 = vsel %vm5494, %v5409, %v4498
    %v5667 = vsel %vm5494, %v5410, %v4501
    %v5668 = vsel %vm5494, %v5411, %v4503
    %v5669 = vsel %vm5494, %v5412, %v4506
    %v5670 = vsel %vm5494, %v5413, %v4508
    %v5671 = vsel %vm5494, %v5414, %v4511
    %v5672 = vsel %vm5494, %v5415, %v4513
    %v5673 = vsel %vm5494, %v5416, %v4516
    %v5674 = vsel %vm5494, %v5417, %v4518
    %v5675 = vsel %vm5494, %v5418, %v4521
    %v5676 = vsel %vm5494, %v5419, %v4523
    %v5677 = vsel %vm5494, %v5420, %v4526
    %v5678 = vsel %vm5494, %v5421, %v4528
    %v5679 = vsel %vm5494, %v5422, %v4531
    %v5680 = vsel %vm5494, %v5423, %v4533
    %v5681 = vsel %vm5494, %v5424, %v4536
    %v5682 = vsel %vm5494, %v5425, %v4538
    %v5683 = vsel %vm5494, %v5426, %v4541
    %v5684 = vsel %vm5494, %v5427, %v4543
    %v5685 = vsel %vm5494, %v5428, %v4546
    %v5686 = vsel %vm5494, %v5429, %v4548
    %v5687 = vsel %vm5494, %v5430, %v4551
    %v5688 = vsel %vm5494, %v5431, %v4553
    %v5689 = vsel %vm5494, %v5432, %v4556
    %v5690 = vsel %vm5494, %v5433, %v4558
    %v5691 = vsel %vm5494, %v5434, %v4561
    %v5692 = vsel %vm5494, %v5435, %v4563
    %v5693 = vsel %vm5494, %v5436, %v4566
    %v5694 = vsel %vm5494, %v5437, %v4568
    %v5695 = vsel %vm5494, %v5438, %v4571
    %v5696 = vsel %vm5494, %v5439, %v4573
    %v5697 = vsel %vm5494, %v5440, %v4576
    %v5698 = vsel %vm5494, %v5441, %v4578
    %v5699 = vsel %vm5494, %v5442, %v4581
    %v5700 = vsel %vm5494, %v5443, %v4583
    %v5701 = vsel %vm5494, %v5444, %v4586
    %v5702 = vsel %vm5494, %v5445, %v4588
    %v5703 = vsel %vm5494, %v5446, %v4591
    %v5704 = vsel %vm5494, %v5447, %v4593
    %v5705 = vsel %vm5494, %v5448, %v4596
    %v5706 = vsel %vm5494, %v5449, %v4598
    %v5707 = vsel %vm5494, %v5450, %v4601
    %v5708 = vsel %vm5494, %v5451, %v4603
    %v5709 = vsel %vm5494, %v5452, %v4606
    %v5710 = vsel %vm5494, %v5453, %v4608
    %v5711 = vsel %vm5494, %v5454, %v4611
    %v5712 = vsel %vm5494, %v5455, %v4613
    %v5713 = vsel %vm5494, %v5456, %v4616
    %v5714 = vsel %vm5494, %v5457, %v4618
    %v5715 = vsel %vm5494, %v5458, %v4621
    %v5716 = vsel %vm5494, %v5459, %v4623
    %v5717 = vsel %vm5494, %v5460, %v4626
    %v5718 = vsel %vm5494, %v5461, %v4628
    %v5719 = vsel %vm5494, %v5462, %v4631
    %v5720 = vsel %vm5494, %v5463, %v4633
    %v5721 = vsel %vm5494, %v5464, %v4636
    %v5722 = vsel %vm5494, %v5465, %v4638
    %v5723 = vsel %vm5494, %v5466, %v4641
    %v5724 = vsel %vm5494, %v5467, %v4643
    %v5725 = vsel %vm5494, %v5468, %v4646
    %v5726 = vsel %vm5494, %v5469, %v4648
    %v5727 = vsel %vm5494, %v5470, %v4651
    %v5728 = vsel %vm5494, %v5471, %v4653
    %v5729 = vsel %vm5494, %v5472, %v4656
    %v5730 = vsel %vm5494, %v5473, %v4658
    %v5731 = vsel %vm5494, %v5474, %v4661
    %v5732 = vsel %vm5494, %v5475, %v4663
    %v5733 = vsel %vm5494, %v5476, %v4666
    %v5734 = vsel %vm5494, %v5477, %v4668
    %v5735 = vsel %vm5494, %v5478, %v4671
    %v5736 = vsel %vm5494, %v5479, %v4673
    %v5737 = vsel %vm5494, %v5480, %v4676
    %v5738 = vsel %vm5494, %v5481, %v4678
    %v5739 = vsel %vm5494, %v5482, %v4681
    %v5740 = vsel %vm5494, %v5483, %v4683
    %v5741 = vsel %vm5494, %v5484, %v4686
    %v5742 = vsel %vm5494, %v5485, %v4688
    %v5743 = vsel %vm5494, %v5486, %v4691
    %v5744 = vsel %vm5494, %v5487, %v4693
    %v5745 = vsel %vm5494, %v5488, %v4696
    %v5746 = vsel %vm5494, %v5489, %v4698
    %v5747 = vsel %vm5494, %v5490, %v4701
    %v5748 = vsel %vm5494, %v5491, %v4703
    %v5749 = vsel %vm5494, %v5492, %v4706
    %v5750 = vsel %vm5494, %v5493, %v4708
    %vm5751 = vcmask 23552
    %v5752 = vsel %vm5751, %v5495, %v76
    %v5753 = vsel %vm5751, %v5496, %v82
    %v5754 = vsel %vm5751, %v5497, %v95
    %v5755 = vsel %vm5751, %v5498, %v101
    %v5756 = vsel %vm5751, %v5499, %v114
    %v5757 = vsel %vm5751, %v5500, %v120
    %v5758 = vsel %vm5751, %v5501, %v133
    %v5759 = vsel %vm5751, %v5502, %v139
    %v5760 = vsel %vm5751, %v5503, %v152
    %v5761 = vsel %vm5751, %v5504, %v158
    %v5762 = vsel %vm5751, %v5505, %v171
    %v5763 = vsel %vm5751, %v5506, %v177
    %v5764 = vsel %vm5751, %v5507, %v190
    %v5765 = vsel %vm5751, %v5508, %v196
    %v5766 = vsel %vm5751, %v5509, %v209
    %v5767 = vsel %vm5751, %v5510, %v215
    %v5768 = vsel %vm5751, %v5511, %v228
    %v5769 = vsel %vm5751, %v5512, %v234
    %v5770 = vsel %vm5751, %v5513, %v247
    %v5771 = vsel %vm5751, %v5514, %v253
    %v5772 = vsel %vm5751, %v5515, %v266
    %v5773 = vsel %vm5751, %v5516, %v272
    %v5774 = vsel %vm5751, %v5517, %v285
    %v5775 = vsel %vm5751, %v5518, %v291
    %v5776 = vsel %vm5751, %v5519, %v304
    %v5777 = vsel %vm5751, %v5520, %v310
    %v5778 = vsel %vm5751, %v5521, %v323
    %v5779 = vsel %vm5751, %v5522, %v329
    %v5780 = vsel %vm5751, %v5523, %v342
    %v5781 = vsel %vm5751, %v5524, %v348
    %v5782 = vsel %vm5751, %v5525, %v361
    %v5783 = vsel %vm5751, %v5526, %v367
    %v5784 = vsel %vm5751, %v5527, %v418
    %v5785 = vsel %vm5751, %v5528, %v424
    %v5786 = vsel %vm5751, %v5529, %v437
    %v5787 = vsel %vm5751, %v5530, %v443
    %v5788 = vsel %vm5751, %v5531, %v456
    %v5789 = vsel %vm5751, %v5532, %v462
    %v5790 = vsel %vm5751, %v5533, %v475
    %v5791 = vsel %vm5751, %v5534, %v481
    %v5792 = vsel %vm5751, %v5535, %v494
    %v5793 = vsel %vm5751, %v5536, %v500
    %v5794 = vsel %vm5751, %v5537, %v513
    %v5795 = vsel %vm5751, %v5538, %v519
    %v5796 = vsel %vm5751, %v5539, %v532
    %v5797 = vsel %vm5751, %v5540, %v538
    %v5798 = vsel %vm5751, %v5541, %v551
    %v5799 = vsel %vm5751, %v5542, %v557
    %v5800 = vsel %vm5751, %v5543, %v570
    %v5801 = vsel %vm5751, %v5544, %v576
    %v5802 = vsel %vm5751, %v5545, %v589
    %v5803 = vsel %vm5751, %v5546, %v595
    %v5804 = vsel %vm5751, %v5547, %v608
    %v5805 = vsel %vm5751, %v5548, %v614
    %v5806 = vsel %vm5751, %v5549, %v627
    %v5807 = vsel %vm5751, %v5550, %v633
    %v5808 = vsel %vm5751, %v5551, %v646
    %v5809 = vsel %vm5751, %v5552, %v652
    %v5810 = vsel %vm5751, %v5553, %v665
    %v5811 = vsel %vm5751, %v5554, %v671
    %v5812 = vsel %vm5751, %v5555, %v684
    %v5813 = vsel %vm5751, %v5556, %v690
    %v5814 = vsel %vm5751, %v5557, %v703
    %v5815 = vsel %vm5751, %v5558, %v709
    %v5816 = vsel %vm5751, %v5559, %v760
    %v5817 = vsel %vm5751, %v5560, %v766
    %v5818 = vsel %vm5751, %v5561, %v779
    %v5819 = vsel %vm5751, %v5562, %v785
    %v5820 = vsel %vm5751, %v5563, %v798
    %v5821 = vsel %vm5751, %v5564, %v804
    %v5822 = vsel %vm5751, %v5565, %v817
    %v5823 = vsel %vm5751, %v5566, %v823
    %v5824 = vsel %vm5751, %v5567, %v836
    %v5825 = vsel %vm5751, %v5568, %v842
    %v5826 = vsel %vm5751, %v5569, %v855
    %v5827 = vsel %vm5751, %v5570, %v861
    %v5828 = vsel %vm5751, %v5571, %v874
    %v5829 = vsel %vm5751, %v5572, %v880
    %v5830 = vsel %vm5751, %v5573, %v893
    %v5831 = vsel %vm5751, %v5574, %v899
    %v5832 = vsel %vm5751, %v5575, %v912
    %v5833 = vsel %vm5751, %v5576, %v918
    %v5834 = vsel %vm5751, %v5577, %v931
    %v5835 = vsel %vm5751, %v5578, %v937
    %v5836 = vsel %vm5751, %v5579, %v950
    %v5837 = vsel %vm5751, %v5580, %v956
    %v5838 = vsel %vm5751, %v5581, %v969
    %v5839 = vsel %vm5751, %v5582, %v975
    %v5840 = vsel %vm5751, %v5583, %v988
    %v5841 = vsel %vm5751, %v5584, %v994
    %v5842 = vsel %vm5751, %v5585, %v1007
    %v5843 = vsel %vm5751, %v5586, %v1013
    %v5844 = vsel %vm5751, %v5587, %v1026
    %v5845 = vsel %vm5751, %v5588, %v1032
    %v5846 = vsel %vm5751, %v5589, %v1045
    %v5847 = vsel %vm5751, %v5590, %v1051
    %v5848 = vsel %vm5751, %v5591, %v1102
    %v5849 = vsel %vm5751, %v5592, %v1108
    %v5850 = vsel %vm5751, %v5593, %v1121
    %v5851 = vsel %vm5751, %v5594, %v1127
    %v5852 = vsel %vm5751, %v5595, %v1140
    %v5853 = vsel %vm5751, %v5596, %v1146
    %v5854 = vsel %vm5751, %v5597, %v1159
    %v5855 = vsel %vm5751, %v5598, %v1165
    %v5856 = vsel %vm5751, %v5599, %v1178
    %v5857 = vsel %vm5751, %v5600, %v1184
    %v5858 = vsel %vm5751, %v5601, %v1197
    %v5859 = vsel %vm5751, %v5602, %v1203
    %v5860 = vsel %vm5751, %v5603, %v1216
    %v5861 = vsel %vm5751, %v5604, %v1222
    %v5862 = vsel %vm5751, %v5605, %v1235
    %v5863 = vsel %vm5751, %v5606, %v1241
    %v5864 = vsel %vm5751, %v5607, %v1254
    %v5865 = vsel %vm5751, %v5608, %v1260
    %v5866 = vsel %vm5751, %v5609, %v1273
    %v5867 = vsel %vm5751, %v5610, %v1279
    %v5868 = vsel %vm5751, %v5611, %v1292
    %v5869 = vsel %vm5751, %v5612, %v1298
    %v5870 = vsel %vm5751, %v5613, %v1311
    %v5871 = vsel %vm5751, %v5614, %v1317
    %v5872 = vsel %vm5751, %v5615, %v1330
    %v5873 = vsel %vm5751, %v5616, %v1336
    %v5874 = vsel %vm5751, %v5617, %v1349
    %v5875 = vsel %vm5751, %v5618, %v1355
    %v5876 = vsel %vm5751, %v5619, %v1368
    %v5877 = vsel %vm5751, %v5620, %v1374
    %v5878 = vsel %vm5751, %v5621, %v1387
    %v5879 = vsel %vm5751, %v5622, %v1393
    %v5880 = vsel %vm5751, %v5623, %v1444
    %v5881 = vsel %vm5751, %v5624, %v1450
    %v5882 = vsel %vm5751, %v5625, %v1463
    %v5883 = vsel %vm5751, %v5626, %v1469
    %v5884 = vsel %vm5751, %v5627, %v1482
    %v5885 = vsel %vm5751, %v5628, %v1488
    %v5886 = vsel %vm5751, %v5629, %v1501
    %v5887 = vsel %vm5751, %v5630, %v1507
    %v5888 = vsel %vm5751, %v5631, %v1520
    %v5889 = vsel %vm5751, %v5632, %v1526
    %v5890 = vsel %vm5751, %v5633, %v1539
    %v5891 = vsel %vm5751, %v5634, %v1545
    %v5892 = vsel %vm5751, %v5635, %v1558
    %v5893 = vsel %vm5751, %v5636, %v1564
    %v5894 = vsel %vm5751, %v5637, %v1577
    %v5895 = vsel %vm5751, %v5638, %v1583
    %v5896 = vsel %vm5751, %v5639, %v1596
    %v5897 = vsel %vm5751, %v5640, %v1602
    %v5898 = vsel %vm5751, %v5641, %v1615
    %v5899 = vsel %vm5751, %v5642, %v1621
    %v5900 = vsel %vm5751, %v5643, %v1634
    %v5901 = vsel %vm5751, %v5644, %v1640
    %v5902 = vsel %vm5751, %v5645, %v1653
    %v5903 = vsel %vm5751, %v5646, %v1659
    %v5904 = vsel %vm5751, %v5647, %v1672
    %v5905 = vsel %vm5751, %v5648, %v1678
    %v5906 = vsel %vm5751, %v5649, %v1691
    %v5907 = vsel %vm5751, %v5650, %v1697
    %v5908 = vsel %vm5751, %v5651, %v1710
    %v5909 = vsel %vm5751, %v5652, %v1716
    %v5910 = vsel %vm5751, %v5653, %v1729
    %v5911 = vsel %vm5751, %v5654, %v1735
    %v5912 = vsel %vm5751, %v5655, %v1786
    %v5913 = vsel %vm5751, %v5656, %v1792
    %v5914 = vsel %vm5751, %v5657, %v1805
    %v5915 = vsel %vm5751, %v5658, %v1811
    %v5916 = vsel %vm5751, %v5659, %v1824
    %v5917 = vsel %vm5751, %v5660, %v1830
    %v5918 = vsel %vm5751, %v5661, %v1843
    %v5919 = vsel %vm5751, %v5662, %v1849
    %v5920 = vsel %vm5751, %v5663, %v1862
    %v5921 = vsel %vm5751, %v5664, %v1868
    %v5922 = vsel %vm5751, %v5665, %v1881
    %v5923 = vsel %vm5751, %v5666, %v1887
    %v5924 = vsel %vm5751, %v5667, %v1900
    %v5925 = vsel %vm5751, %v5668, %v1906
    %v5926 = vsel %vm5751, %v5669, %v1919
    %v5927 = vsel %vm5751, %v5670, %v1925
    %v5928 = vsel %vm5751, %v5671, %v1938
    %v5929 = vsel %vm5751, %v5672, %v1944
    %v5930 = vsel %vm5751, %v5673, %v1957
    %v5931 = vsel %vm5751, %v5674, %v1963
    %v5932 = vsel %vm5751, %v5675, %v1976
    %v5933 = vsel %vm5751, %v5676, %v1982
    %v5934 = vsel %vm5751, %v5677, %v1995
    %v5935 = vsel %vm5751, %v5678, %v2001
    %v5936 = vsel %vm5751, %v5679, %v2014
    %v5937 = vsel %vm5751, %v5680, %v2020
    %v5938 = vsel %vm5751, %v5681, %v2033
    %v5939 = vsel %vm5751, %v5682, %v2039
    %v5940 = vsel %vm5751, %v5683, %v2052
    %v5941 = vsel %vm5751, %v5684, %v2058
    %v5942 = vsel %vm5751, %v5685, %v2071
    %v5943 = vsel %vm5751, %v5686, %v2077
    %v5944 = vsel %vm5751, %v5687, %v2128
    %v5945 = vsel %vm5751, %v5688, %v2134
    %v5946 = vsel %vm5751, %v5689, %v2147
    %v5947 = vsel %vm5751, %v5690, %v2153
    %v5948 = vsel %vm5751, %v5691, %v2166
    %v5949 = vsel %vm5751, %v5692, %v2172
    %v5950 = vsel %vm5751, %v5693, %v2185
    %v5951 = vsel %vm5751, %v5694, %v2191
    %v5952 = vsel %vm5751, %v5695, %v2204
    %v5953 = vsel %vm5751, %v5696, %v2210
    %v5954 = vsel %vm5751, %v5697, %v2223
    %v5955 = vsel %vm5751, %v5698, %v2229
    %v5956 = vsel %vm5751, %v5699, %v2242
    %v5957 = vsel %vm5751, %v5700, %v2248
    %v5958 = vsel %vm5751, %v5701, %v2261
    %v5959 = vsel %vm5751, %v5702, %v2267
    %v5960 = vsel %vm5751, %v5703, %v2280
    %v5961 = vsel %vm5751, %v5704, %v2286
    %v5962 = vsel %vm5751, %v5705, %v2299
    %v5963 = vsel %vm5751, %v5706, %v2305
    %v5964 = vsel %vm5751, %v5707, %v2318
    %v5965 = vsel %vm5751, %v5708, %v2324
    %v5966 = vsel %vm5751, %v5709, %v2337
    %v5967 = vsel %vm5751, %v5710, %v2343
    %v5968 = vsel %vm5751, %v5711, %v2356
    %v5969 = vsel %vm5751, %v5712, %v2362
    %v5970 = vsel %vm5751, %v5713, %v2375
    %v5971 = vsel %vm5751, %v5714, %v2381
    %v5972 = vsel %vm5751, %v5715, %v2394
    %v5973 = vsel %vm5751, %v5716, %v2400
    %v5974 = vsel %vm5751, %v5717, %v2413
    %v5975 = vsel %vm5751, %v5718, %v2419
    %v5976 = vsel %vm5751, %v5719, %v2470
    %v5977 = vsel %vm5751, %v5720, %v2476
    %v5978 = vsel %vm5751, %v5721, %v2489
    %v5979 = vsel %vm5751, %v5722, %v2495
    %v5980 = vsel %vm5751, %v5723, %v2508
    %v5981 = vsel %vm5751, %v5724, %v2514
    %v5982 = vsel %vm5751, %v5725, %v2527
    %v5983 = vsel %vm5751, %v5726, %v2533
    %v5984 = vsel %vm5751, %v5727, %v2546
    %v5985 = vsel %vm5751, %v5728, %v2552
    %v5986 = vsel %vm5751, %v5729, %v2565
    %v5987 = vsel %vm5751, %v5730, %v2571
    %v5988 = vsel %vm5751, %v5731, %v2584
    %v5989 = vsel %vm5751, %v5732, %v2590
    %v5990 = vsel %vm5751, %v5733, %v2603
    %v5991 = vsel %vm5751, %v5734, %v2609
    %v5992 = vsel %vm5751, %v5735, %v2622
    %v5993 = vsel %vm5751, %v5736, %v2628
    %v5994 = vsel %vm5751, %v5737, %v2641
    %v5995 = vsel %vm5751, %v5738, %v2647
    %v5996 = vsel %vm5751, %v5739, %v2660
    %v5997 = vsel %vm5751, %v5740, %v2666
    %v5998 = vsel %vm5751, %v5741, %v2679
    %v5999 = vsel %vm5751, %v5742, %v2685
    %v6000 = vsel %vm5751, %v5743, %v2698
    %v6001 = vsel %vm5751, %v5744, %v2704
    %v6002 = vsel %vm5751, %v5745, %v2717
    %v6003 = vsel %vm5751, %v5746, %v2723
    %v6004 = vsel %vm5751, %v5747, %v2736
    %v6005 = vsel %vm5751, %v5748, %v2742
    %v6006 = vsel %vm5751, %v5749, %v2755
    %v6007 = vsel %vm5751, %v5750, %v2761
    %vm6008 = vcmask 31744
    %v6009 = vsel %vm6008, %v5752, %v3179
    %v6010 = vsel %vm6008, %v5753, %v3181
    %v6011 = vsel %vm6008, %v5754, %v3184
    %v6012 = vsel %vm6008, %v5755, %v3186
    %v6013 = vsel %vm6008, %v5756, %v3189
    %v6014 = vsel %vm6008, %v5757, %v3191
    %v6015 = vsel %vm6008, %v5758, %v3194
    %v6016 = vsel %vm6008, %v5759, %v3196
    %v6017 = vsel %vm6008, %v5760, %v3199
    %v6018 = vsel %vm6008, %v5761, %v3201
    %v6019 = vsel %vm6008, %v5762, %v3204
    %v6020 = vsel %vm6008, %v5763, %v3206
    %v6021 = vsel %vm6008, %v5764, %v3209
    %v6022 = vsel %vm6008, %v5765, %v3211
    %v6023 = vsel %vm6008, %v5766, %v3214
    %v6024 = vsel %vm6008, %v5767, %v3216
    %v6025 = vsel %vm6008, %v5768, %v3219
    %v6026 = vsel %vm6008, %v5769, %v3221
    %v6027 = vsel %vm6008, %v5770, %v3224
    %v6028 = vsel %vm6008, %v5771, %v3226
    %v6029 = vsel %vm6008, %v5772, %v3229
    %v6030 = vsel %vm6008, %v5773, %v3231
    %v6031 = vsel %vm6008, %v5774, %v3234
    %v6032 = vsel %vm6008, %v5775, %v3236
    %v6033 = vsel %vm6008, %v5776, %v3239
    %v6034 = vsel %vm6008, %v5777, %v3241
    %v6035 = vsel %vm6008, %v5778, %v3244
    %v6036 = vsel %vm6008, %v5779, %v3246
    %v6037 = vsel %vm6008, %v5780, %v3249
    %v6038 = vsel %vm6008, %v5781, %v3251
    %v6039 = vsel %vm6008, %v5782, %v4991
    %v6040 = vsel %vm6008, %v5783, %v4993
    %v6041 = vsel %vm6008, %v5784, %v3259
    %v6042 = vsel %vm6008, %v5785, %v3261
    %v6043 = vsel %vm6008, %v5786, %v3264
    %v6044 = vsel %vm6008, %v5787, %v3266
    %v6045 = vsel %vm6008, %v5788, %v3269
    %v6046 = vsel %vm6008, %v5789, %v3271
    %v6047 = vsel %vm6008, %v5790, %v3274
    %v6048 = vsel %vm6008, %v5791, %v3276
    %v6049 = vsel %vm6008, %v5792, %v3279
    %v6050 = vsel %vm6008, %v5793, %v3281
    %v6051 = vsel %vm6008, %v5794, %v3284
    %v6052 = vsel %vm6008, %v5795, %v3286
    %v6053 = vsel %vm6008, %v5796, %v3289
    %v6054 = vsel %vm6008, %v5797, %v3291
    %v6055 = vsel %vm6008, %v5798, %v3294
    %v6056 = vsel %vm6008, %v5799, %v3296
    %v6057 = vsel %vm6008, %v5800, %v3299
    %v6058 = vsel %vm6008, %v5801, %v3301
    %v6059 = vsel %vm6008, %v5802, %v3304
    %v6060 = vsel %vm6008, %v5803, %v3306
    %v6061 = vsel %vm6008, %v5804, %v3309
    %v6062 = vsel %vm6008, %v5805, %v3311
    %v6063 = vsel %vm6008, %v5806, %v3314
    %v6064 = vsel %vm6008, %v5807, %v3316
    %v6065 = vsel %vm6008, %v5808, %v3319
    %v6066 = vsel %vm6008, %v5809, %v3321
    %v6067 = vsel %vm6008, %v5810, %v3324
    %v6068 = vsel %vm6008, %v5811, %v3326
    %v6069 = vsel %vm6008, %v5812, %v3329
    %v6070 = vsel %vm6008, %v5813, %v3331
    %v6071 = vsel %vm6008, %v5814, %v4996
    %v6072 = vsel %vm6008, %v5815, %v4998
    %v6073 = vsel %vm6008, %v5816, %v3339
    %v6074 = vsel %vm6008, %v5817, %v3341
    %v6075 = vsel %vm6008, %v5818, %v3344
    %v6076 = vsel %vm6008, %v5819, %v3346
    %v6077 = vsel %vm6008, %v5820, %v3349
    %v6078 = vsel %vm6008, %v5821, %v3351
    %v6079 = vsel %vm6008, %v5822, %v3354
    %v6080 = vsel %vm6008, %v5823, %v3356
    %v6081 = vsel %vm6008, %v5824, %v3359
    %v6082 = vsel %vm6008, %v5825, %v3361
    %v6083 = vsel %vm6008, %v5826, %v3364
    %v6084 = vsel %vm6008, %v5827, %v3366
    %v6085 = vsel %vm6008, %v5828, %v3369
    %v6086 = vsel %vm6008, %v5829, %v3371
    %v6087 = vsel %vm6008, %v5830, %v3374
    %v6088 = vsel %vm6008, %v5831, %v3376
    %v6089 = vsel %vm6008, %v5832, %v3379
    %v6090 = vsel %vm6008, %v5833, %v3381
    %v6091 = vsel %vm6008, %v5834, %v3384
    %v6092 = vsel %vm6008, %v5835, %v3386
    %v6093 = vsel %vm6008, %v5836, %v3389
    %v6094 = vsel %vm6008, %v5837, %v3391
    %v6095 = vsel %vm6008, %v5838, %v3394
    %v6096 = vsel %vm6008, %v5839, %v3396
    %v6097 = vsel %vm6008, %v5840, %v3399
    %v6098 = vsel %vm6008, %v5841, %v3401
    %v6099 = vsel %vm6008, %v5842, %v3404
    %v6100 = vsel %vm6008, %v5843, %v3406
    %v6101 = vsel %vm6008, %v5844, %v3409
    %v6102 = vsel %vm6008, %v5845, %v3411
    %v6103 = vsel %vm6008, %v5846, %v5001
    %v6104 = vsel %vm6008, %v5847, %v5003
    %v6105 = vsel %vm6008, %v5848, %v3419
    %v6106 = vsel %vm6008, %v5849, %v3421
    %v6107 = vsel %vm6008, %v5850, %v3424
    %v6108 = vsel %vm6008, %v5851, %v3426
    %v6109 = vsel %vm6008, %v5852, %v3429
    %v6110 = vsel %vm6008, %v5853, %v3431
    %v6111 = vsel %vm6008, %v5854, %v3434
    %v6112 = vsel %vm6008, %v5855, %v3436
    %v6113 = vsel %vm6008, %v5856, %v3439
    %v6114 = vsel %vm6008, %v5857, %v3441
    %v6115 = vsel %vm6008, %v5858, %v3444
    %v6116 = vsel %vm6008, %v5859, %v3446
    %v6117 = vsel %vm6008, %v5860, %v3449
    %v6118 = vsel %vm6008, %v5861, %v3451
    %v6119 = vsel %vm6008, %v5862, %v3454
    %v6120 = vsel %vm6008, %v5863, %v3456
    %v6121 = vsel %vm6008, %v5864, %v3459
    %v6122 = vsel %vm6008, %v5865, %v3461
    %v6123 = vsel %vm6008, %v5866, %v3464
    %v6124 = vsel %vm6008, %v5867, %v3466
    %v6125 = vsel %vm6008, %v5868, %v3469
    %v6126 = vsel %vm6008, %v5869, %v3471
    %v6127 = vsel %vm6008, %v5870, %v3474
    %v6128 = vsel %vm6008, %v5871, %v3476
    %v6129 = vsel %vm6008, %v5872, %v3479
    %v6130 = vsel %vm6008, %v5873, %v3481
    %v6131 = vsel %vm6008, %v5874, %v3484
    %v6132 = vsel %vm6008, %v5875, %v3486
    %v6133 = vsel %vm6008, %v5876, %v3489
    %v6134 = vsel %vm6008, %v5877, %v3491
    %v6135 = vsel %vm6008, %v5878, %v5006
    %v6136 = vsel %vm6008, %v5879, %v5008
    %v6137 = vsel %vm6008, %v5880, %v3499
    %v6138 = vsel %vm6008, %v5881, %v3501
    %v6139 = vsel %vm6008, %v5882, %v3504
    %v6140 = vsel %vm6008, %v5883, %v3506
    %v6141 = vsel %vm6008, %v5884, %v3509
    %v6142 = vsel %vm6008, %v5885, %v3511
    %v6143 = vsel %vm6008, %v5886, %v3514
    %v6144 = vsel %vm6008, %v5887, %v3516
    %v6145 = vsel %vm6008, %v5888, %v3519
    %v6146 = vsel %vm6008, %v5889, %v3521
    %v6147 = vsel %vm6008, %v5890, %v3524
    %v6148 = vsel %vm6008, %v5891, %v3526
    %v6149 = vsel %vm6008, %v5892, %v3529
    %v6150 = vsel %vm6008, %v5893, %v3531
    %v6151 = vsel %vm6008, %v5894, %v3534
    %v6152 = vsel %vm6008, %v5895, %v3536
    %v6153 = vsel %vm6008, %v5896, %v3539
    %v6154 = vsel %vm6008, %v5897, %v3541
    %v6155 = vsel %vm6008, %v5898, %v3544
    %v6156 = vsel %vm6008, %v5899, %v3546
    %v6157 = vsel %vm6008, %v5900, %v3549
    %v6158 = vsel %vm6008, %v5901, %v3551
    %v6159 = vsel %vm6008, %v5902, %v3554
    %v6160 = vsel %vm6008, %v5903, %v3556
    %v6161 = vsel %vm6008, %v5904, %v3559
    %v6162 = vsel %vm6008, %v5905, %v3561
    %v6163 = vsel %vm6008, %v5906, %v3564
    %v6164 = vsel %vm6008, %v5907, %v3566
    %v6165 = vsel %vm6008, %v5908, %v3569
    %v6166 = vsel %vm6008, %v5909, %v3571
    %v6167 = vsel %vm6008, %v5910, %v5011
    %v6168 = vsel %vm6008, %v5911, %v5013
    %v6169 = vsel %vm6008, %v5912, %v3579
    %v6170 = vsel %vm6008, %v5913, %v3581
    %v6171 = vsel %vm6008, %v5914, %v3584
    %v6172 = vsel %vm6008, %v5915, %v3586
    %v6173 = vsel %vm6008, %v5916, %v3589
    %v6174 = vsel %vm6008, %v5917, %v3591
    %v6175 = vsel %vm6008, %v5918, %v3594
    %v6176 = vsel %vm6008, %v5919, %v3596
    %v6177 = vsel %vm6008, %v5920, %v3599
    %v6178 = vsel %vm6008, %v5921, %v3601
    %v6179 = vsel %vm6008, %v5922, %v3604
    %v6180 = vsel %vm6008, %v5923, %v3606
    %v6181 = vsel %vm6008, %v5924, %v3609
    %v6182 = vsel %vm6008, %v5925, %v3611
    %v6183 = vsel %vm6008, %v5926, %v3614
    %v6184 = vsel %vm6008, %v5927, %v3616
    %v6185 = vsel %vm6008, %v5928, %v3619
    %v6186 = vsel %vm6008, %v5929, %v3621
    %v6187 = vsel %vm6008, %v5930, %v3624
    %v6188 = vsel %vm6008, %v5931, %v3626
    %v6189 = vsel %vm6008, %v5932, %v3629
    %v6190 = vsel %vm6008, %v5933, %v3631
    %v6191 = vsel %vm6008, %v5934, %v3634
    %v6192 = vsel %vm6008, %v5935, %v3636
    %v6193 = vsel %vm6008, %v5936, %v3639
    %v6194 = vsel %vm6008, %v5937, %v3641
    %v6195 = vsel %vm6008, %v5938, %v3644
    %v6196 = vsel %vm6008, %v5939, %v3646
    %v6197 = vsel %vm6008, %v5940, %v3649
    %v6198 = vsel %vm6008, %v5941, %v3651
    %v6199 = vsel %vm6008, %v5942, %v5016
    %v6200 = vsel %vm6008, %v5943, %v5018
    %v6201 = vsel %vm6008, %v5944, %v3659
    %v6202 = vsel %vm6008, %v5945, %v3661
    %v6203 = vsel %vm6008, %v5946, %v3664
    %v6204 = vsel %vm6008, %v5947, %v3666
    %v6205 = vsel %vm6008, %v5948, %v3669
    %v6206 = vsel %vm6008, %v5949, %v3671
    %v6207 = vsel %vm6008, %v5950, %v3674
    %v6208 = vsel %vm6008, %v5951, %v3676
    %v6209 = vsel %vm6008, %v5952, %v3679
    %v6210 = vsel %vm6008, %v5953, %v3681
    %v6211 = vsel %vm6008, %v5954, %v3684
    %v6212 = vsel %vm6008, %v5955, %v3686
    %v6213 = vsel %vm6008, %v5956, %v3689
    %v6214 = vsel %vm6008, %v5957, %v3691
    %v6215 = vsel %vm6008, %v5958, %v3694
    %v6216 = vsel %vm6008, %v5959, %v3696
    %v6217 = vsel %vm6008, %v5960, %v3699
    %v6218 = vsel %vm6008, %v5961, %v3701
    %v6219 = vsel %vm6008, %v5962, %v3704
    %v6220 = vsel %vm6008, %v5963, %v3706
    %v6221 = vsel %vm6008, %v5964, %v3709
    %v6222 = vsel %vm6008, %v5965, %v3711
    %v6223 = vsel %vm6008, %v5966, %v3714
    %v6224 = vsel %vm6008, %v5967, %v3716
    %v6225 = vsel %vm6008, %v5968, %v3719
    %v6226 = vsel %vm6008, %v5969, %v3721
    %v6227 = vsel %vm6008, %v5970, %v3724
    %v6228 = vsel %vm6008, %v5971, %v3726
    %v6229 = vsel %vm6008, %v5972, %v3729
    %v6230 = vsel %vm6008, %v5973, %v3731
    %v6231 = vsel %vm6008, %v5974, %v5021
    %v6232 = vsel %vm6008, %v5975, %v5023
    %v6233 = vsel %vm6008, %v5976, %v3739
    %v6234 = vsel %vm6008, %v5977, %v3741
    %v6235 = vsel %vm6008, %v5978, %v3744
    %v6236 = vsel %vm6008, %v5979, %v3746
    %v6237 = vsel %vm6008, %v5980, %v3749
    %v6238 = vsel %vm6008, %v5981, %v3751
    %v6239 = vsel %vm6008, %v5982, %v3754
    %v6240 = vsel %vm6008, %v5983, %v3756
    %v6241 = vsel %vm6008, %v5984, %v3759
    %v6242 = vsel %vm6008, %v5985, %v3761
    %v6243 = vsel %vm6008, %v5986, %v3764
    %v6244 = vsel %vm6008, %v5987, %v3766
    %v6245 = vsel %vm6008, %v5988, %v3769
    %v6246 = vsel %vm6008, %v5989, %v3771
    %v6247 = vsel %vm6008, %v5990, %v3774
    %v6248 = vsel %vm6008, %v5991, %v3776
    %v6249 = vsel %vm6008, %v5992, %v3779
    %v6250 = vsel %vm6008, %v5993, %v3781
    %v6251 = vsel %vm6008, %v5994, %v3784
    %v6252 = vsel %vm6008, %v5995, %v3786
    %v6253 = vsel %vm6008, %v5996, %v3789
    %v6254 = vsel %vm6008, %v5997, %v3791
    %v6255 = vsel %vm6008, %v5998, %v3794
    %v6256 = vsel %vm6008, %v5999, %v3796
    %v6257 = vsel %vm6008, %v6000, %v3799
    %v6258 = vsel %vm6008, %v6001, %v3801
    %v6259 = vsel %vm6008, %v6002, %v3804
    %v6260 = vsel %vm6008, %v6003, %v3806
    %v6261 = vsel %vm6008, %v6004, %v3809
    %v6262 = vsel %vm6008, %v6005, %v3811
    %v6263 = vsel %vm6008, %v6006, %v5026
    %v6264 = vsel %vm6008, %v6007, %v5028
    %vm6265 = vcmask 39936
    %v6266 = vsel %vm6265, %v6009, %v4076
    %v6267 = vsel %vm6265, %v6010, %v4078
    %v6268 = vsel %vm6265, %v6011, %v4081
    %v6269 = vsel %vm6265, %v6012, %v4083
    %v6270 = vsel %vm6265, %v6013, %v4086
    %v6271 = vsel %vm6265, %v6014, %v4088
    %v6272 = vsel %vm6265, %v6015, %v4091
    %v6273 = vsel %vm6265, %v6016, %v4093
    %v6274 = vsel %vm6265, %v6017, %v4096
    %v6275 = vsel %vm6265, %v6018, %v4098
    %v6276 = vsel %vm6265, %v6019, %v4101
    %v6277 = vsel %vm6265, %v6020, %v4103
    %v6278 = vsel %vm6265, %v6021, %v4106
    %v6279 = vsel %vm6265, %v6022, %v4108
    %v6280 = vsel %vm6265, %v6023, %v4111
    %v6281 = vsel %vm6265, %v6024, %v4113
    %v6282 = vsel %vm6265, %v6025, %v4116
    %v6283 = vsel %vm6265, %v6026, %v4118
    %v6284 = vsel %vm6265, %v6027, %v4121
    %v6285 = vsel %vm6265, %v6028, %v4123
    %v6286 = vsel %vm6265, %v6029, %v4126
    %v6287 = vsel %vm6265, %v6030, %v4128
    %v6288 = vsel %vm6265, %v6031, %v4131
    %v6289 = vsel %vm6265, %v6032, %v4133
    %v6290 = vsel %vm6265, %v6033, %v4136
    %v6291 = vsel %vm6265, %v6034, %v4138
    %v6292 = vsel %vm6265, %v6035, %v4141
    %v6293 = vsel %vm6265, %v6036, %v4143
    %v6294 = vsel %vm6265, %v6037, %v4146
    %v6295 = vsel %vm6265, %v6038, %v4148
    %v6296 = vsel %vm6265, %v6039, %v5047
    %v6297 = vsel %vm6265, %v6040, %v5049
    %v6298 = vsel %vm6265, %v6041, %v4156
    %v6299 = vsel %vm6265, %v6042, %v4158
    %v6300 = vsel %vm6265, %v6043, %v4161
    %v6301 = vsel %vm6265, %v6044, %v4163
    %v6302 = vsel %vm6265, %v6045, %v4166
    %v6303 = vsel %vm6265, %v6046, %v4168
    %v6304 = vsel %vm6265, %v6047, %v4171
    %v6305 = vsel %vm6265, %v6048, %v4173
    %v6306 = vsel %vm6265, %v6049, %v4176
    %v6307 = vsel %vm6265, %v6050, %v4178
    %v6308 = vsel %vm6265, %v6051, %v4181
    %v6309 = vsel %vm6265, %v6052, %v4183
    %v6310 = vsel %vm6265, %v6053, %v4186
    %v6311 = vsel %vm6265, %v6054, %v4188
    %v6312 = vsel %vm6265, %v6055, %v4191
    %v6313 = vsel %vm6265, %v6056, %v4193
    %v6314 = vsel %vm6265, %v6057, %v4196
    %v6315 = vsel %vm6265, %v6058, %v4198
    %v6316 = vsel %vm6265, %v6059, %v4201
    %v6317 = vsel %vm6265, %v6060, %v4203
    %v6318 = vsel %vm6265, %v6061, %v4206
    %v6319 = vsel %vm6265, %v6062, %v4208
    %v6320 = vsel %vm6265, %v6063, %v4211
    %v6321 = vsel %vm6265, %v6064, %v4213
    %v6322 = vsel %vm6265, %v6065, %v4216
    %v6323 = vsel %vm6265, %v6066, %v4218
    %v6324 = vsel %vm6265, %v6067, %v4221
    %v6325 = vsel %vm6265, %v6068, %v4223
    %v6326 = vsel %vm6265, %v6069, %v4226
    %v6327 = vsel %vm6265, %v6070, %v4228
    %v6328 = vsel %vm6265, %v6071, %v5052
    %v6329 = vsel %vm6265, %v6072, %v5054
    %v6330 = vsel %vm6265, %v6073, %v4236
    %v6331 = vsel %vm6265, %v6074, %v4238
    %v6332 = vsel %vm6265, %v6075, %v4241
    %v6333 = vsel %vm6265, %v6076, %v4243
    %v6334 = vsel %vm6265, %v6077, %v4246
    %v6335 = vsel %vm6265, %v6078, %v4248
    %v6336 = vsel %vm6265, %v6079, %v4251
    %v6337 = vsel %vm6265, %v6080, %v4253
    %v6338 = vsel %vm6265, %v6081, %v4256
    %v6339 = vsel %vm6265, %v6082, %v4258
    %v6340 = vsel %vm6265, %v6083, %v4261
    %v6341 = vsel %vm6265, %v6084, %v4263
    %v6342 = vsel %vm6265, %v6085, %v4266
    %v6343 = vsel %vm6265, %v6086, %v4268
    %v6344 = vsel %vm6265, %v6087, %v4271
    %v6345 = vsel %vm6265, %v6088, %v4273
    %v6346 = vsel %vm6265, %v6089, %v4276
    %v6347 = vsel %vm6265, %v6090, %v4278
    %v6348 = vsel %vm6265, %v6091, %v4281
    %v6349 = vsel %vm6265, %v6092, %v4283
    %v6350 = vsel %vm6265, %v6093, %v4286
    %v6351 = vsel %vm6265, %v6094, %v4288
    %v6352 = vsel %vm6265, %v6095, %v4291
    %v6353 = vsel %vm6265, %v6096, %v4293
    %v6354 = vsel %vm6265, %v6097, %v4296
    %v6355 = vsel %vm6265, %v6098, %v4298
    %v6356 = vsel %vm6265, %v6099, %v4301
    %v6357 = vsel %vm6265, %v6100, %v4303
    %v6358 = vsel %vm6265, %v6101, %v4306
    %v6359 = vsel %vm6265, %v6102, %v4308
    %v6360 = vsel %vm6265, %v6103, %v5057
    %v6361 = vsel %vm6265, %v6104, %v5059
    %v6362 = vsel %vm6265, %v6105, %v4316
    %v6363 = vsel %vm6265, %v6106, %v4318
    %v6364 = vsel %vm6265, %v6107, %v4321
    %v6365 = vsel %vm6265, %v6108, %v4323
    %v6366 = vsel %vm6265, %v6109, %v4326
    %v6367 = vsel %vm6265, %v6110, %v4328
    %v6368 = vsel %vm6265, %v6111, %v4331
    %v6369 = vsel %vm6265, %v6112, %v4333
    %v6370 = vsel %vm6265, %v6113, %v4336
    %v6371 = vsel %vm6265, %v6114, %v4338
    %v6372 = vsel %vm6265, %v6115, %v4341
    %v6373 = vsel %vm6265, %v6116, %v4343
    %v6374 = vsel %vm6265, %v6117, %v4346
    %v6375 = vsel %vm6265, %v6118, %v4348
    %v6376 = vsel %vm6265, %v6119, %v4351
    %v6377 = vsel %vm6265, %v6120, %v4353
    %v6378 = vsel %vm6265, %v6121, %v4356
    %v6379 = vsel %vm6265, %v6122, %v4358
    %v6380 = vsel %vm6265, %v6123, %v4361
    %v6381 = vsel %vm6265, %v6124, %v4363
    %v6382 = vsel %vm6265, %v6125, %v4366
    %v6383 = vsel %vm6265, %v6126, %v4368
    %v6384 = vsel %vm6265, %v6127, %v4371
    %v6385 = vsel %vm6265, %v6128, %v4373
    %v6386 = vsel %vm6265, %v6129, %v4376
    %v6387 = vsel %vm6265, %v6130, %v4378
    %v6388 = vsel %vm6265, %v6131, %v4381
    %v6389 = vsel %vm6265, %v6132, %v4383
    %v6390 = vsel %vm6265, %v6133, %v4386
    %v6391 = vsel %vm6265, %v6134, %v4388
    %v6392 = vsel %vm6265, %v6135, %v5062
    %v6393 = vsel %vm6265, %v6136, %v5064
    %v6394 = vsel %vm6265, %v6137, %v4396
    %v6395 = vsel %vm6265, %v6138, %v4398
    %v6396 = vsel %vm6265, %v6139, %v4401
    %v6397 = vsel %vm6265, %v6140, %v4403
    %v6398 = vsel %vm6265, %v6141, %v4406
    %v6399 = vsel %vm6265, %v6142, %v4408
    %v6400 = vsel %vm6265, %v6143, %v4411
    %v6401 = vsel %vm6265, %v6144, %v4413
    %v6402 = vsel %vm6265, %v6145, %v4416
    %v6403 = vsel %vm6265, %v6146, %v4418
    %v6404 = vsel %vm6265, %v6147, %v4421
    %v6405 = vsel %vm6265, %v6148, %v4423
    %v6406 = vsel %vm6265, %v6149, %v4426
    %v6407 = vsel %vm6265, %v6150, %v4428
    %v6408 = vsel %vm6265, %v6151, %v4431
    %v6409 = vsel %vm6265, %v6152, %v4433
    %v6410 = vsel %vm6265, %v6153, %v4436
    %v6411 = vsel %vm6265, %v6154, %v4438
    %v6412 = vsel %vm6265, %v6155, %v4441
    %v6413 = vsel %vm6265, %v6156, %v4443
    %v6414 = vsel %vm6265, %v6157, %v4446
    %v6415 = vsel %vm6265, %v6158, %v4448
    %v6416 = vsel %vm6265, %v6159, %v4451
    %v6417 = vsel %vm6265, %v6160, %v4453
    %v6418 = vsel %vm6265, %v6161, %v4456
    %v6419 = vsel %vm6265, %v6162, %v4458
    %v6420 = vsel %vm6265, %v6163, %v4461
    %v6421 = vsel %vm6265, %v6164, %v4463
    %v6422 = vsel %vm6265, %v6165, %v4466
    %v6423 = vsel %vm6265, %v6166, %v4468
    %v6424 = vsel %vm6265, %v6167, %v5067
    %v6425 = vsel %vm6265, %v6168, %v5069
    %v6426 = vsel %vm6265, %v6169, %v4476
    %v6427 = vsel %vm6265, %v6170, %v4478
    %v6428 = vsel %vm6265, %v6171, %v4481
    %v6429 = vsel %vm6265, %v6172, %v4483
    %v6430 = vsel %vm6265, %v6173, %v4486
    %v6431 = vsel %vm6265, %v6174, %v4488
    %v6432 = vsel %vm6265, %v6175, %v4491
    %v6433 = vsel %vm6265, %v6176, %v4493
    %v6434 = vsel %vm6265, %v6177, %v4496
    %v6435 = vsel %vm6265, %v6178, %v4498
    %v6436 = vsel %vm6265, %v6179, %v4501
    %v6437 = vsel %vm6265, %v6180, %v4503
    %v6438 = vsel %vm6265, %v6181, %v4506
    %v6439 = vsel %vm6265, %v6182, %v4508
    %v6440 = vsel %vm6265, %v6183, %v4511
    %v6441 = vsel %vm6265, %v6184, %v4513
    %v6442 = vsel %vm6265, %v6185, %v4516
    %v6443 = vsel %vm6265, %v6186, %v4518
    %v6444 = vsel %vm6265, %v6187, %v4521
    %v6445 = vsel %vm6265, %v6188, %v4523
    %v6446 = vsel %vm6265, %v6189, %v4526
    %v6447 = vsel %vm6265, %v6190, %v4528
    %v6448 = vsel %vm6265, %v6191, %v4531
    %v6449 = vsel %vm6265, %v6192, %v4533
    %v6450 = vsel %vm6265, %v6193, %v4536
    %v6451 = vsel %vm6265, %v6194, %v4538
    %v6452 = vsel %vm6265, %v6195, %v4541
    %v6453 = vsel %vm6265, %v6196, %v4543
    %v6454 = vsel %vm6265, %v6197, %v4546
    %v6455 = vsel %vm6265, %v6198, %v4548
    %v6456 = vsel %vm6265, %v6199, %v5072
    %v6457 = vsel %vm6265, %v6200, %v5074
    %v6458 = vsel %vm6265, %v6201, %v4556
    %v6459 = vsel %vm6265, %v6202, %v4558
    %v6460 = vsel %vm6265, %v6203, %v4561
    %v6461 = vsel %vm6265, %v6204, %v4563
    %v6462 = vsel %vm6265, %v6205, %v4566
    %v6463 = vsel %vm6265, %v6206, %v4568
    %v6464 = vsel %vm6265, %v6207, %v4571
    %v6465 = vsel %vm6265, %v6208, %v4573
    %v6466 = vsel %vm6265, %v6209, %v4576
    %v6467 = vsel %vm6265, %v6210, %v4578
    %v6468 = vsel %vm6265, %v6211, %v4581
    %v6469 = vsel %vm6265, %v6212, %v4583
    %v6470 = vsel %vm6265, %v6213, %v4586
    %v6471 = vsel %vm6265, %v6214, %v4588
    %v6472 = vsel %vm6265, %v6215, %v4591
    %v6473 = vsel %vm6265, %v6216, %v4593
    %v6474 = vsel %vm6265, %v6217, %v4596
    %v6475 = vsel %vm6265, %v6218, %v4598
    %v6476 = vsel %vm6265, %v6219, %v4601
    %v6477 = vsel %vm6265, %v6220, %v4603
    %v6478 = vsel %vm6265, %v6221, %v4606
    %v6479 = vsel %vm6265, %v6222, %v4608
    %v6480 = vsel %vm6265, %v6223, %v4611
    %v6481 = vsel %vm6265, %v6224, %v4613
    %v6482 = vsel %vm6265, %v6225, %v4616
    %v6483 = vsel %vm6265, %v6226, %v4618
    %v6484 = vsel %vm6265, %v6227, %v4621
    %v6485 = vsel %vm6265, %v6228, %v4623
    %v6486 = vsel %vm6265, %v6229, %v4626
    %v6487 = vsel %vm6265, %v6230, %v4628
    %v6488 = vsel %vm6265, %v6231, %v5077
    %v6489 = vsel %vm6265, %v6232, %v5079
    %v6490 = vsel %vm6265, %v6233, %v4636
    %v6491 = vsel %vm6265, %v6234, %v4638
    %v6492 = vsel %vm6265, %v6235, %v4641
    %v6493 = vsel %vm6265, %v6236, %v4643
    %v6494 = vsel %vm6265, %v6237, %v4646
    %v6495 = vsel %vm6265, %v6238, %v4648
    %v6496 = vsel %vm6265, %v6239, %v4651
    %v6497 = vsel %vm6265, %v6240, %v4653
    %v6498 = vsel %vm6265, %v6241, %v4656
    %v6499 = vsel %vm6265, %v6242, %v4658
    %v6500 = vsel %vm6265, %v6243, %v4661
    %v6501 = vsel %vm6265, %v6244, %v4663
    %v6502 = vsel %vm6265, %v6245, %v4666
    %v6503 = vsel %vm6265, %v6246, %v4668
    %v6504 = vsel %vm6265, %v6247, %v4671
    %v6505 = vsel %vm6265, %v6248, %v4673
    %v6506 = vsel %vm6265, %v6249, %v4676
    %v6507 = vsel %vm6265, %v6250, %v4678
    %v6508 = vsel %vm6265, %v6251, %v4681
    %v6509 = vsel %vm6265, %v6252, %v4683
    %v6510 = vsel %vm6265, %v6253, %v4686
    %v6511 = vsel %vm6265, %v6254, %v4688
    %v6512 = vsel %vm6265, %v6255, %v4691
    %v6513 = vsel %vm6265, %v6256, %v4693
    %v6514 = vsel %vm6265, %v6257, %v4696
    %v6515 = vsel %vm6265, %v6258, %v4698
    %v6516 = vsel %vm6265, %v6259, %v4701
    %v6517 = vsel %vm6265, %v6260, %v4703
    %v6518 = vsel %vm6265, %v6261, %v4706
    %v6519 = vsel %vm6265, %v6262, %v4708
    %v6520 = vsel %vm6265, %v6263, %v5082
    %v6521 = vsel %vm6265, %v6264, %v5084
    %vm6522 = vcmask 48128
    %v6523 = vsel %vm6522, %v6266, %v95
    %v6524 = vsel %vm6522, %v6267, %v101
    %v6525 = vsel %vm6522, %v6268, %v114
    %v6526 = vsel %vm6522, %v6269, %v120
    %v6527 = vsel %vm6522, %v6270, %v133
    %v6528 = vsel %vm6522, %v6271, %v139
    %v6529 = vsel %vm6522, %v6272, %v152
    %v6530 = vsel %vm6522, %v6273, %v158
    %v6531 = vsel %vm6522, %v6274, %v171
    %v6532 = vsel %vm6522, %v6275, %v177
    %v6533 = vsel %vm6522, %v6276, %v190
    %v6534 = vsel %vm6522, %v6277, %v196
    %v6535 = vsel %vm6522, %v6278, %v209
    %v6536 = vsel %vm6522, %v6279, %v215
    %v6537 = vsel %vm6522, %v6280, %v228
    %v6538 = vsel %vm6522, %v6281, %v234
    %v6539 = vsel %vm6522, %v6282, %v247
    %v6540 = vsel %vm6522, %v6283, %v253
    %v6541 = vsel %vm6522, %v6284, %v266
    %v6542 = vsel %vm6522, %v6285, %v272
    %v6543 = vsel %vm6522, %v6286, %v285
    %v6544 = vsel %vm6522, %v6287, %v291
    %v6545 = vsel %vm6522, %v6288, %v304
    %v6546 = vsel %vm6522, %v6289, %v310
    %v6547 = vsel %vm6522, %v6290, %v323
    %v6548 = vsel %vm6522, %v6291, %v329
    %v6549 = vsel %vm6522, %v6292, %v342
    %v6550 = vsel %vm6522, %v6293, %v348
    %v6551 = vsel %vm6522, %v6294, %v361
    %v6552 = vsel %vm6522, %v6295, %v367
    %v6553 = vsel %vm6522, %v6296, %v380
    %v6554 = vsel %vm6522, %v6297, %v386
    %v6555 = vsel %vm6522, %v6298, %v437
    %v6556 = vsel %vm6522, %v6299, %v443
    %v6557 = vsel %vm6522, %v6300, %v456
    %v6558 = vsel %vm6522, %v6301, %v462
    %v6559 = vsel %vm6522, %v6302, %v475
    %v6560 = vsel %vm6522, %v6303, %v481
    %v6561 = vsel %vm6522, %v6304, %v494
    %v6562 = vsel %vm6522, %v6305, %v500
    %v6563 = vsel %vm6522, %v6306, %v513
    %v6564 = vsel %vm6522, %v6307, %v519
    %v6565 = vsel %vm6522, %v6308, %v532
    %v6566 = vsel %vm6522, %v6309, %v538
    %v6567 = vsel %vm6522, %v6310, %v551
    %v6568 = vsel %vm6522, %v6311, %v557
    %v6569 = vsel %vm6522, %v6312, %v570
    %v6570 = vsel %vm6522, %v6313, %v576
    %v6571 = vsel %vm6522, %v6314, %v589
    %v6572 = vsel %vm6522, %v6315, %v595
    %v6573 = vsel %vm6522, %v6316, %v608
    %v6574 = vsel %vm6522, %v6317, %v614
    %v6575 = vsel %vm6522, %v6318, %v627
    %v6576 = vsel %vm6522, %v6319, %v633
    %v6577 = vsel %vm6522, %v6320, %v646
    %v6578 = vsel %vm6522, %v6321, %v652
    %v6579 = vsel %vm6522, %v6322, %v665
    %v6580 = vsel %vm6522, %v6323, %v671
    %v6581 = vsel %vm6522, %v6324, %v684
    %v6582 = vsel %vm6522, %v6325, %v690
    %v6583 = vsel %vm6522, %v6326, %v703
    %v6584 = vsel %vm6522, %v6327, %v709
    %v6585 = vsel %vm6522, %v6328, %v722
    %v6586 = vsel %vm6522, %v6329, %v728
    %v6587 = vsel %vm6522, %v6330, %v779
    %v6588 = vsel %vm6522, %v6331, %v785
    %v6589 = vsel %vm6522, %v6332, %v798
    %v6590 = vsel %vm6522, %v6333, %v804
    %v6591 = vsel %vm6522, %v6334, %v817
    %v6592 = vsel %vm6522, %v6335, %v823
    %v6593 = vsel %vm6522, %v6336, %v836
    %v6594 = vsel %vm6522, %v6337, %v842
    %v6595 = vsel %vm6522, %v6338, %v855
    %v6596 = vsel %vm6522, %v6339, %v861
    %v6597 = vsel %vm6522, %v6340, %v874
    %v6598 = vsel %vm6522, %v6341, %v880
    %v6599 = vsel %vm6522, %v6342, %v893
    %v6600 = vsel %vm6522, %v6343, %v899
    %v6601 = vsel %vm6522, %v6344, %v912
    %v6602 = vsel %vm6522, %v6345, %v918
    %v6603 = vsel %vm6522, %v6346, %v931
    %v6604 = vsel %vm6522, %v6347, %v937
    %v6605 = vsel %vm6522, %v6348, %v950
    %v6606 = vsel %vm6522, %v6349, %v956
    %v6607 = vsel %vm6522, %v6350, %v969
    %v6608 = vsel %vm6522, %v6351, %v975
    %v6609 = vsel %vm6522, %v6352, %v988
    %v6610 = vsel %vm6522, %v6353, %v994
    %v6611 = vsel %vm6522, %v6354, %v1007
    %v6612 = vsel %vm6522, %v6355, %v1013
    %v6613 = vsel %vm6522, %v6356, %v1026
    %v6614 = vsel %vm6522, %v6357, %v1032
    %v6615 = vsel %vm6522, %v6358, %v1045
    %v6616 = vsel %vm6522, %v6359, %v1051
    %v6617 = vsel %vm6522, %v6360, %v1064
    %v6618 = vsel %vm6522, %v6361, %v1070
    %v6619 = vsel %vm6522, %v6362, %v1121
    %v6620 = vsel %vm6522, %v6363, %v1127
    %v6621 = vsel %vm6522, %v6364, %v1140
    %v6622 = vsel %vm6522, %v6365, %v1146
    %v6623 = vsel %vm6522, %v6366, %v1159
    %v6624 = vsel %vm6522, %v6367, %v1165
    %v6625 = vsel %vm6522, %v6368, %v1178
    %v6626 = vsel %vm6522, %v6369, %v1184
    %v6627 = vsel %vm6522, %v6370, %v1197
    %v6628 = vsel %vm6522, %v6371, %v1203
    %v6629 = vsel %vm6522, %v6372, %v1216
    %v6630 = vsel %vm6522, %v6373, %v1222
    %v6631 = vsel %vm6522, %v6374, %v1235
    %v6632 = vsel %vm6522, %v6375, %v1241
    %v6633 = vsel %vm6522, %v6376, %v1254
    %v6634 = vsel %vm6522, %v6377, %v1260
    %v6635 = vsel %vm6522, %v6378, %v1273
    %v6636 = vsel %vm6522, %v6379, %v1279
    %v6637 = vsel %vm6522, %v6380, %v1292
    %v6638 = vsel %vm6522, %v6381, %v1298
    %v6639 = vsel %vm6522, %v6382, %v1311
    %v6640 = vsel %vm6522, %v6383, %v1317
    %v6641 = vsel %vm6522, %v6384, %v1330
    %v6642 = vsel %vm6522, %v6385, %v1336
    %v6643 = vsel %vm6522, %v6386, %v1349
    %v6644 = vsel %vm6522, %v6387, %v1355
    %v6645 = vsel %vm6522, %v6388, %v1368
    %v6646 = vsel %vm6522, %v6389, %v1374
    %v6647 = vsel %vm6522, %v6390, %v1387
    %v6648 = vsel %vm6522, %v6391, %v1393
    %v6649 = vsel %vm6522, %v6392, %v1406
    %v6650 = vsel %vm6522, %v6393, %v1412
    %v6651 = vsel %vm6522, %v6394, %v1463
    %v6652 = vsel %vm6522, %v6395, %v1469
    %v6653 = vsel %vm6522, %v6396, %v1482
    %v6654 = vsel %vm6522, %v6397, %v1488
    %v6655 = vsel %vm6522, %v6398, %v1501
    %v6656 = vsel %vm6522, %v6399, %v1507
    %v6657 = vsel %vm6522, %v6400, %v1520
    %v6658 = vsel %vm6522, %v6401, %v1526
    %v6659 = vsel %vm6522, %v6402, %v1539
    %v6660 = vsel %vm6522, %v6403, %v1545
    %v6661 = vsel %vm6522, %v6404, %v1558
    %v6662 = vsel %vm6522, %v6405, %v1564
    %v6663 = vsel %vm6522, %v6406, %v1577
    %v6664 = vsel %vm6522, %v6407, %v1583
    %v6665 = vsel %vm6522, %v6408, %v1596
    %v6666 = vsel %vm6522, %v6409, %v1602
    %v6667 = vsel %vm6522, %v6410, %v1615
    %v6668 = vsel %vm6522, %v6411, %v1621
    %v6669 = vsel %vm6522, %v6412, %v1634
    %v6670 = vsel %vm6522, %v6413, %v1640
    %v6671 = vsel %vm6522, %v6414, %v1653
    %v6672 = vsel %vm6522, %v6415, %v1659
    %v6673 = vsel %vm6522, %v6416, %v1672
    %v6674 = vsel %vm6522, %v6417, %v1678
    %v6675 = vsel %vm6522, %v6418, %v1691
    %v6676 = vsel %vm6522, %v6419, %v1697
    %v6677 = vsel %vm6522, %v6420, %v1710
    %v6678 = vsel %vm6522, %v6421, %v1716
    %v6679 = vsel %vm6522, %v6422, %v1729
    %v6680 = vsel %vm6522, %v6423, %v1735
    %v6681 = vsel %vm6522, %v6424, %v1748
    %v6682 = vsel %vm6522, %v6425, %v1754
    %v6683 = vsel %vm6522, %v6426, %v1805
    %v6684 = vsel %vm6522, %v6427, %v1811
    %v6685 = vsel %vm6522, %v6428, %v1824
    %v6686 = vsel %vm6522, %v6429, %v1830
    %v6687 = vsel %vm6522, %v6430, %v1843
    %v6688 = vsel %vm6522, %v6431, %v1849
    %v6689 = vsel %vm6522, %v6432, %v1862
    %v6690 = vsel %vm6522, %v6433, %v1868
    %v6691 = vsel %vm6522, %v6434, %v1881
    %v6692 = vsel %vm6522, %v6435, %v1887
    %v6693 = vsel %vm6522, %v6436, %v1900
    %v6694 = vsel %vm6522, %v6437, %v1906
    %v6695 = vsel %vm6522, %v6438, %v1919
    %v6696 = vsel %vm6522, %v6439, %v1925
    %v6697 = vsel %vm6522, %v6440, %v1938
    %v6698 = vsel %vm6522, %v6441, %v1944
    %v6699 = vsel %vm6522, %v6442, %v1957
    %v6700 = vsel %vm6522, %v6443, %v1963
    %v6701 = vsel %vm6522, %v6444, %v1976
    %v6702 = vsel %vm6522, %v6445, %v1982
    %v6703 = vsel %vm6522, %v6446, %v1995
    %v6704 = vsel %vm6522, %v6447, %v2001
    %v6705 = vsel %vm6522, %v6448, %v2014
    %v6706 = vsel %vm6522, %v6449, %v2020
    %v6707 = vsel %vm6522, %v6450, %v2033
    %v6708 = vsel %vm6522, %v6451, %v2039
    %v6709 = vsel %vm6522, %v6452, %v2052
    %v6710 = vsel %vm6522, %v6453, %v2058
    %v6711 = vsel %vm6522, %v6454, %v2071
    %v6712 = vsel %vm6522, %v6455, %v2077
    %v6713 = vsel %vm6522, %v6456, %v2090
    %v6714 = vsel %vm6522, %v6457, %v2096
    %v6715 = vsel %vm6522, %v6458, %v2147
    %v6716 = vsel %vm6522, %v6459, %v2153
    %v6717 = vsel %vm6522, %v6460, %v2166
    %v6718 = vsel %vm6522, %v6461, %v2172
    %v6719 = vsel %vm6522, %v6462, %v2185
    %v6720 = vsel %vm6522, %v6463, %v2191
    %v6721 = vsel %vm6522, %v6464, %v2204
    %v6722 = vsel %vm6522, %v6465, %v2210
    %v6723 = vsel %vm6522, %v6466, %v2223
    %v6724 = vsel %vm6522, %v6467, %v2229
    %v6725 = vsel %vm6522, %v6468, %v2242
    %v6726 = vsel %vm6522, %v6469, %v2248
    %v6727 = vsel %vm6522, %v6470, %v2261
    %v6728 = vsel %vm6522, %v6471, %v2267
    %v6729 = vsel %vm6522, %v6472, %v2280
    %v6730 = vsel %vm6522, %v6473, %v2286
    %v6731 = vsel %vm6522, %v6474, %v2299
    %v6732 = vsel %vm6522, %v6475, %v2305
    %v6733 = vsel %vm6522, %v6476, %v2318
    %v6734 = vsel %vm6522, %v6477, %v2324
    %v6735 = vsel %vm6522, %v6478, %v2337
    %v6736 = vsel %vm6522, %v6479, %v2343
    %v6737 = vsel %vm6522, %v6480, %v2356
    %v6738 = vsel %vm6522, %v6481, %v2362
    %v6739 = vsel %vm6522, %v6482, %v2375
    %v6740 = vsel %vm6522, %v6483, %v2381
    %v6741 = vsel %vm6522, %v6484, %v2394
    %v6742 = vsel %vm6522, %v6485, %v2400
    %v6743 = vsel %vm6522, %v6486, %v2413
    %v6744 = vsel %vm6522, %v6487, %v2419
    %v6745 = vsel %vm6522, %v6488, %v2432
    %v6746 = vsel %vm6522, %v6489, %v2438
    %v6747 = vsel %vm6522, %v6490, %v2489
    %v6748 = vsel %vm6522, %v6491, %v2495
    %v6749 = vsel %vm6522, %v6492, %v2508
    %v6750 = vsel %vm6522, %v6493, %v2514
    %v6751 = vsel %vm6522, %v6494, %v2527
    %v6752 = vsel %vm6522, %v6495, %v2533
    %v6753 = vsel %vm6522, %v6496, %v2546
    %v6754 = vsel %vm6522, %v6497, %v2552
    %v6755 = vsel %vm6522, %v6498, %v2565
    %v6756 = vsel %vm6522, %v6499, %v2571
    %v6757 = vsel %vm6522, %v6500, %v2584
    %v6758 = vsel %vm6522, %v6501, %v2590
    %v6759 = vsel %vm6522, %v6502, %v2603
    %v6760 = vsel %vm6522, %v6503, %v2609
    %v6761 = vsel %vm6522, %v6504, %v2622
    %v6762 = vsel %vm6522, %v6505, %v2628
    %v6763 = vsel %vm6522, %v6506, %v2641
    %v6764 = vsel %vm6522, %v6507, %v2647
    %v6765 = vsel %vm6522, %v6508, %v2660
    %v6766 = vsel %vm6522, %v6509, %v2666
    %v6767 = vsel %vm6522, %v6510, %v2679
    %v6768 = vsel %vm6522, %v6511, %v2685
    %v6769 = vsel %vm6522, %v6512, %v2698
    %v6770 = vsel %vm6522, %v6513, %v2704
    %v6771 = vsel %vm6522, %v6514, %v2717
    %v6772 = vsel %vm6522, %v6515, %v2723
    %v6773 = vsel %vm6522, %v6516, %v2736
    %v6774 = vsel %vm6522, %v6517, %v2742
    %v6775 = vsel %vm6522, %v6518, %v2755
    %v6776 = vsel %vm6522, %v6519, %v2761
    %v6777 = vsel %vm6522, %v6520, %v2774
    %v6778 = vsel %vm6522, %v6521, %v2780
    %vm6779 = vcmask 56320
    %v6780 = vsel %vm6779, %v6523, %v3184
    %v6781 = vsel %vm6779, %v6524, %v3186
    %v6782 = vsel %vm6779, %v6525, %v3189
    %v6783 = vsel %vm6779, %v6526, %v3191
    %v6784 = vsel %vm6779, %v6527, %v3194
    %v6785 = vsel %vm6779, %v6528, %v3196
    %v6786 = vsel %vm6779, %v6529, %v3199
    %v6787 = vsel %vm6779, %v6530, %v3201
    %v6788 = vsel %vm6779, %v6531, %v3204
    %v6789 = vsel %vm6779, %v6532, %v3206
    %v6790 = vsel %vm6779, %v6533, %v3209
    %v6791 = vsel %vm6779, %v6534, %v3211
    %v6792 = vsel %vm6779, %v6535, %v3214
    %v6793 = vsel %vm6779, %v6536, %v3216
    %v6794 = vsel %vm6779, %v6537, %v3219
    %v6795 = vsel %vm6779, %v6538, %v3221
    %v6796 = vsel %vm6779, %v6539, %v3224
    %v6797 = vsel %vm6779, %v6540, %v3226
    %v6798 = vsel %vm6779, %v6541, %v3229
    %v6799 = vsel %vm6779, %v6542, %v3231
    %v6800 = vsel %vm6779, %v6543, %v3234
    %v6801 = vsel %vm6779, %v6544, %v3236
    %v6802 = vsel %vm6779, %v6545, %v3239
    %v6803 = vsel %vm6779, %v6546, %v3241
    %v6804 = vsel %vm6779, %v6547, %v3244
    %v6805 = vsel %vm6779, %v6548, %v3246
    %v6806 = vsel %vm6779, %v6549, %v3249
    %v6807 = vsel %vm6779, %v6550, %v3251
    %v6808 = vsel %vm6779, %v6551, %v4991
    %v6809 = vsel %vm6779, %v6552, %v4993
    %v6810 = vsel %vm6779, %v6553, %v5127
    %v6811 = vsel %vm6779, %v6554, %v5129
    %v6812 = vsel %vm6779, %v6555, %v3264
    %v6813 = vsel %vm6779, %v6556, %v3266
    %v6814 = vsel %vm6779, %v6557, %v3269
    %v6815 = vsel %vm6779, %v6558, %v3271
    %v6816 = vsel %vm6779, %v6559, %v3274
    %v6817 = vsel %vm6779, %v6560, %v3276
    %v6818 = vsel %vm6779, %v6561, %v3279
    %v6819 = vsel %vm6779, %v6562, %v3281
    %v6820 = vsel %vm6779, %v6563, %v3284
    %v6821 = vsel %vm6779, %v6564, %v3286
    %v6822 = vsel %vm6779, %v6565, %v3289
    %v6823 = vsel %vm6779, %v6566, %v3291
    %v6824 = vsel %vm6779, %v6567, %v3294
    %v6825 = vsel %vm6779, %v6568, %v3296
    %v6826 = vsel %vm6779, %v6569, %v3299
    %v6827 = vsel %vm6779, %v6570, %v3301
    %v6828 = vsel %vm6779, %v6571, %v3304
    %v6829 = vsel %vm6779, %v6572, %v3306
    %v6830 = vsel %vm6779, %v6573, %v3309
    %v6831 = vsel %vm6779, %v6574, %v3311
    %v6832 = vsel %vm6779, %v6575, %v3314
    %v6833 = vsel %vm6779, %v6576, %v3316
    %v6834 = vsel %vm6779, %v6577, %v3319
    %v6835 = vsel %vm6779, %v6578, %v3321
    %v6836 = vsel %vm6779, %v6579, %v3324
    %v6837 = vsel %vm6779, %v6580, %v3326
    %v6838 = vsel %vm6779, %v6581, %v3329
    %v6839 = vsel %vm6779, %v6582, %v3331
    %v6840 = vsel %vm6779, %v6583, %v4996
    %v6841 = vsel %vm6779, %v6584, %v4998
    %v6842 = vsel %vm6779, %v6585, %v5132
    %v6843 = vsel %vm6779, %v6586, %v5134
    %v6844 = vsel %vm6779, %v6587, %v3344
    %v6845 = vsel %vm6779, %v6588, %v3346
    %v6846 = vsel %vm6779, %v6589, %v3349
    %v6847 = vsel %vm6779, %v6590, %v3351
    %v6848 = vsel %vm6779, %v6591, %v3354
    %v6849 = vsel %vm6779, %v6592, %v3356
    %v6850 = vsel %vm6779, %v6593, %v3359
    %v6851 = vsel %vm6779, %v6594, %v3361
    %v6852 = vsel %vm6779, %v6595, %v3364
    %v6853 = vsel %vm6779, %v6596, %v3366
    %v6854 = vsel %vm6779, %v6597, %v3369
    %v6855 = vsel %vm6779, %v6598, %v3371
    %v6856 = vsel %vm6779, %v6599, %v3374
    %v6857 = vsel %vm6779, %v6600, %v3376
    %v6858 = vsel %vm6779, %v6601, %v3379
    %v6859 = vsel %vm6779, %v6602, %v3381
    %v6860 = vsel %vm6779, %v6603, %v3384
    %v6861 = vsel %vm6779, %v6604, %v3386
    %v6862 = vsel %vm6779, %v6605, %v3389
    %v6863 = vsel %vm6779, %v6606, %v3391
    %v6864 = vsel %vm6779, %v6607, %v3394
    %v6865 = vsel %vm6779, %v6608, %v3396
    %v6866 = vsel %vm6779, %v6609, %v3399
    %v6867 = vsel %vm6779, %v6610, %v3401
    %v6868 = vsel %vm6779, %v6611, %v3404
    %v6869 = vsel %vm6779, %v6612, %v3406
    %v6870 = vsel %vm6779, %v6613, %v3409
    %v6871 = vsel %vm6779, %v6614, %v3411
    %v6872 = vsel %vm6779, %v6615, %v5001
    %v6873 = vsel %vm6779, %v6616, %v5003
    %v6874 = vsel %vm6779, %v6617, %v5137
    %v6875 = vsel %vm6779, %v6618, %v5139
    %v6876 = vsel %vm6779, %v6619, %v3424
    %v6877 = vsel %vm6779, %v6620, %v3426
    %v6878 = vsel %vm6779, %v6621, %v3429
    %v6879 = vsel %vm6779, %v6622, %v3431
    %v6880 = vsel %vm6779, %v6623, %v3434
    %v6881 = vsel %vm6779, %v6624, %v3436
    %v6882 = vsel %vm6779, %v6625, %v3439
    %v6883 = vsel %vm6779, %v6626, %v3441
    %v6884 = vsel %vm6779, %v6627, %v3444
    %v6885 = vsel %vm6779, %v6628, %v3446
    %v6886 = vsel %vm6779, %v6629, %v3449
    %v6887 = vsel %vm6779, %v6630, %v3451
    %v6888 = vsel %vm6779, %v6631, %v3454
    %v6889 = vsel %vm6779, %v6632, %v3456
    %v6890 = vsel %vm6779, %v6633, %v3459
    %v6891 = vsel %vm6779, %v6634, %v3461
    %v6892 = vsel %vm6779, %v6635, %v3464
    %v6893 = vsel %vm6779, %v6636, %v3466
    %v6894 = vsel %vm6779, %v6637, %v3469
    %v6895 = vsel %vm6779, %v6638, %v3471
    %v6896 = vsel %vm6779, %v6639, %v3474
    %v6897 = vsel %vm6779, %v6640, %v3476
    %v6898 = vsel %vm6779, %v6641, %v3479
    %v6899 = vsel %vm6779, %v6642, %v3481
    %v6900 = vsel %vm6779, %v6643, %v3484
    %v6901 = vsel %vm6779, %v6644, %v3486
    %v6902 = vsel %vm6779, %v6645, %v3489
    %v6903 = vsel %vm6779, %v6646, %v3491
    %v6904 = vsel %vm6779, %v6647, %v5006
    %v6905 = vsel %vm6779, %v6648, %v5008
    %v6906 = vsel %vm6779, %v6649, %v5142
    %v6907 = vsel %vm6779, %v6650, %v5144
    %v6908 = vsel %vm6779, %v6651, %v3504
    %v6909 = vsel %vm6779, %v6652, %v3506
    %v6910 = vsel %vm6779, %v6653, %v3509
    %v6911 = vsel %vm6779, %v6654, %v3511
    %v6912 = vsel %vm6779, %v6655, %v3514
    %v6913 = vsel %vm6779, %v6656, %v3516
    %v6914 = vsel %vm6779, %v6657, %v3519
    %v6915 = vsel %vm6779, %v6658, %v3521
    %v6916 = vsel %vm6779, %v6659, %v3524
    %v6917 = vsel %vm6779, %v6660, %v3526
    %v6918 = vsel %vm6779, %v6661, %v3529
    %v6919 = vsel %vm6779, %v6662, %v3531
    %v6920 = vsel %vm6779, %v6663, %v3534
    %v6921 = vsel %vm6779, %v6664, %v3536
    %v6922 = vsel %vm6779, %v6665, %v3539
    %v6923 = vsel %vm6779, %v6666, %v3541
    %v6924 = vsel %vm6779, %v6667, %v3544
    %v6925 = vsel %vm6779, %v6668, %v3546
    %v6926 = vsel %vm6779, %v6669, %v3549
    %v6927 = vsel %vm6779, %v6670, %v3551
    %v6928 = vsel %vm6779, %v6671, %v3554
    %v6929 = vsel %vm6779, %v6672, %v3556
    %v6930 = vsel %vm6779, %v6673, %v3559
    %v6931 = vsel %vm6779, %v6674, %v3561
    %v6932 = vsel %vm6779, %v6675, %v3564
    %v6933 = vsel %vm6779, %v6676, %v3566
    %v6934 = vsel %vm6779, %v6677, %v3569
    %v6935 = vsel %vm6779, %v6678, %v3571
    %v6936 = vsel %vm6779, %v6679, %v5011
    %v6937 = vsel %vm6779, %v6680, %v5013
    %v6938 = vsel %vm6779, %v6681, %v5147
    %v6939 = vsel %vm6779, %v6682, %v5149
    %v6940 = vsel %vm6779, %v6683, %v3584
    %v6941 = vsel %vm6779, %v6684, %v3586
    %v6942 = vsel %vm6779, %v6685, %v3589
    %v6943 = vsel %vm6779, %v6686, %v3591
    %v6944 = vsel %vm6779, %v6687, %v3594
    %v6945 = vsel %vm6779, %v6688, %v3596
    %v6946 = vsel %vm6779, %v6689, %v3599
    %v6947 = vsel %vm6779, %v6690, %v3601
    %v6948 = vsel %vm6779, %v6691, %v3604
    %v6949 = vsel %vm6779, %v6692, %v3606
    %v6950 = vsel %vm6779, %v6693, %v3609
    %v6951 = vsel %vm6779, %v6694, %v3611
    %v6952 = vsel %vm6779, %v6695, %v3614
    %v6953 = vsel %vm6779, %v6696, %v3616
    %v6954 = vsel %vm6779, %v6697, %v3619
    %v6955 = vsel %vm6779, %v6698, %v3621
    %v6956 = vsel %vm6779, %v6699, %v3624
    %v6957 = vsel %vm6779, %v6700, %v3626
    %v6958 = vsel %vm6779, %v6701, %v3629
    %v6959 = vsel %vm6779, %v6702, %v3631
    %v6960 = vsel %vm6779, %v6703, %v3634
    %v6961 = vsel %vm6779, %v6704, %v3636
    %v6962 = vsel %vm6779, %v6705, %v3639
    %v6963 = vsel %vm6779, %v6706, %v3641
    %v6964 = vsel %vm6779, %v6707, %v3644
    %v6965 = vsel %vm6779, %v6708, %v3646
    %v6966 = vsel %vm6779, %v6709, %v3649
    %v6967 = vsel %vm6779, %v6710, %v3651
    %v6968 = vsel %vm6779, %v6711, %v5016
    %v6969 = vsel %vm6779, %v6712, %v5018
    %v6970 = vsel %vm6779, %v6713, %v5152
    %v6971 = vsel %vm6779, %v6714, %v5154
    %v6972 = vsel %vm6779, %v6715, %v3664
    %v6973 = vsel %vm6779, %v6716, %v3666
    %v6974 = vsel %vm6779, %v6717, %v3669
    %v6975 = vsel %vm6779, %v6718, %v3671
    %v6976 = vsel %vm6779, %v6719, %v3674
    %v6977 = vsel %vm6779, %v6720, %v3676
    %v6978 = vsel %vm6779, %v6721, %v3679
    %v6979 = vsel %vm6779, %v6722, %v3681
    %v6980 = vsel %vm6779, %v6723, %v3684
    %v6981 = vsel %vm6779, %v6724, %v3686
    %v6982 = vsel %vm6779, %v6725, %v3689
    %v6983 = vsel %vm6779, %v6726, %v3691
    %v6984 = vsel %vm6779, %v6727, %v3694
    %v6985 = vsel %vm6779, %v6728, %v3696
    %v6986 = vsel %vm6779, %v6729, %v3699
    %v6987 = vsel %vm6779, %v6730, %v3701
    %v6988 = vsel %vm6779, %v6731, %v3704
    %v6989 = vsel %vm6779, %v6732, %v3706
    %v6990 = vsel %vm6779, %v6733, %v3709
    %v6991 = vsel %vm6779, %v6734, %v3711
    %v6992 = vsel %vm6779, %v6735, %v3714
    %v6993 = vsel %vm6779, %v6736, %v3716
    %v6994 = vsel %vm6779, %v6737, %v3719
    %v6995 = vsel %vm6779, %v6738, %v3721
    %v6996 = vsel %vm6779, %v6739, %v3724
    %v6997 = vsel %vm6779, %v6740, %v3726
    %v6998 = vsel %vm6779, %v6741, %v3729
    %v6999 = vsel %vm6779, %v6742, %v3731
    %v7000 = vsel %vm6779, %v6743, %v5021
    %v7001 = vsel %vm6779, %v6744, %v5023
    %v7002 = vsel %vm6779, %v6745, %v5157
    %v7003 = vsel %vm6779, %v6746, %v5159
    %v7004 = vsel %vm6779, %v6747, %v3744
    %v7005 = vsel %vm6779, %v6748, %v3746
    %v7006 = vsel %vm6779, %v6749, %v3749
    %v7007 = vsel %vm6779, %v6750, %v3751
    %v7008 = vsel %vm6779, %v6751, %v3754
    %v7009 = vsel %vm6779, %v6752, %v3756
    %v7010 = vsel %vm6779, %v6753, %v3759
    %v7011 = vsel %vm6779, %v6754, %v3761
    %v7012 = vsel %vm6779, %v6755, %v3764
    %v7013 = vsel %vm6779, %v6756, %v3766
    %v7014 = vsel %vm6779, %v6757, %v3769
    %v7015 = vsel %vm6779, %v6758, %v3771
    %v7016 = vsel %vm6779, %v6759, %v3774
    %v7017 = vsel %vm6779, %v6760, %v3776
    %v7018 = vsel %vm6779, %v6761, %v3779
    %v7019 = vsel %vm6779, %v6762, %v3781
    %v7020 = vsel %vm6779, %v6763, %v3784
    %v7021 = vsel %vm6779, %v6764, %v3786
    %v7022 = vsel %vm6779, %v6765, %v3789
    %v7023 = vsel %vm6779, %v6766, %v3791
    %v7024 = vsel %vm6779, %v6767, %v3794
    %v7025 = vsel %vm6779, %v6768, %v3796
    %v7026 = vsel %vm6779, %v6769, %v3799
    %v7027 = vsel %vm6779, %v6770, %v3801
    %v7028 = vsel %vm6779, %v6771, %v3804
    %v7029 = vsel %vm6779, %v6772, %v3806
    %v7030 = vsel %vm6779, %v6773, %v3809
    %v7031 = vsel %vm6779, %v6774, %v3811
    %v7032 = vsel %vm6779, %v6775, %v5026
    %v7033 = vsel %vm6779, %v6776, %v5028
    %v7034 = vsel %vm6779, %v6777, %v5162
    %v7035 = vsel %vm6779, %v6778, %v5164
    %vm7036 = vcmask 64512
    %v7037 = vsel %vm7036, %v6780, %v4081
    %v7038 = vsel %vm7036, %v6781, %v4083
    %v7039 = vsel %vm7036, %v6782, %v4086
    %v7040 = vsel %vm7036, %v6783, %v4088
    %v7041 = vsel %vm7036, %v6784, %v4091
    %v7042 = vsel %vm7036, %v6785, %v4093
    %v7043 = vsel %vm7036, %v6786, %v4096
    %v7044 = vsel %vm7036, %v6787, %v4098
    %v7045 = vsel %vm7036, %v6788, %v4101
    %v7046 = vsel %vm7036, %v6789, %v4103
    %v7047 = vsel %vm7036, %v6790, %v4106
    %v7048 = vsel %vm7036, %v6791, %v4108
    %v7049 = vsel %vm7036, %v6792, %v4111
    %v7050 = vsel %vm7036, %v6793, %v4113
    %v7051 = vsel %vm7036, %v6794, %v4116
    %v7052 = vsel %vm7036, %v6795, %v4118
    %v7053 = vsel %vm7036, %v6796, %v4121
    %v7054 = vsel %vm7036, %v6797, %v4123
    %v7055 = vsel %vm7036, %v6798, %v4126
    %v7056 = vsel %vm7036, %v6799, %v4128
    %v7057 = vsel %vm7036, %v6800, %v4131
    %v7058 = vsel %vm7036, %v6801, %v4133
    %v7059 = vsel %vm7036, %v6802, %v4136
    %v7060 = vsel %vm7036, %v6803, %v4138
    %v7061 = vsel %vm7036, %v6804, %v4141
    %v7062 = vsel %vm7036, %v6805, %v4143
    %v7063 = vsel %vm7036, %v6806, %v4146
    %v7064 = vsel %vm7036, %v6807, %v4148
    %v7065 = vsel %vm7036, %v6808, %v5047
    %v7066 = vsel %vm7036, %v6809, %v5049
    %v7067 = vsel %vm7036, %v6810, %v5183
    %v7068 = vsel %vm7036, %v6811, %v5185
    %v7069 = vsel %vm7036, %v6812, %v4161
    %v7070 = vsel %vm7036, %v6813, %v4163
    %v7071 = vsel %vm7036, %v6814, %v4166
    %v7072 = vsel %vm7036, %v6815, %v4168
    %v7073 = vsel %vm7036, %v6816, %v4171
    %v7074 = vsel %vm7036, %v6817, %v4173
    %v7075 = vsel %vm7036, %v6818, %v4176
    %v7076 = vsel %vm7036, %v6819, %v4178
    %v7077 = vsel %vm7036, %v6820, %v4181
    %v7078 = vsel %vm7036, %v6821, %v4183
    %v7079 = vsel %vm7036, %v6822, %v4186
    %v7080 = vsel %vm7036, %v6823, %v4188
    %v7081 = vsel %vm7036, %v6824, %v4191
    %v7082 = vsel %vm7036, %v6825, %v4193
    %v7083 = vsel %vm7036, %v6826, %v4196
    %v7084 = vsel %vm7036, %v6827, %v4198
    %v7085 = vsel %vm7036, %v6828, %v4201
    %v7086 = vsel %vm7036, %v6829, %v4203
    %v7087 = vsel %vm7036, %v6830, %v4206
    %v7088 = vsel %vm7036, %v6831, %v4208
    %v7089 = vsel %vm7036, %v6832, %v4211
    %v7090 = vsel %vm7036, %v6833, %v4213
    %v7091 = vsel %vm7036, %v6834, %v4216
    %v7092 = vsel %vm7036, %v6835, %v4218
    %v7093 = vsel %vm7036, %v6836, %v4221
    %v7094 = vsel %vm7036, %v6837, %v4223
    %v7095 = vsel %vm7036, %v6838, %v4226
    %v7096 = vsel %vm7036, %v6839, %v4228
    %v7097 = vsel %vm7036, %v6840, %v5052
    %v7098 = vsel %vm7036, %v6841, %v5054
    %v7099 = vsel %vm7036, %v6842, %v5188
    %v7100 = vsel %vm7036, %v6843, %v5190
    %v7101 = vsel %vm7036, %v6844, %v4241
    %v7102 = vsel %vm7036, %v6845, %v4243
    %v7103 = vsel %vm7036, %v6846, %v4246
    %v7104 = vsel %vm7036, %v6847, %v4248
    %v7105 = vsel %vm7036, %v6848, %v4251
    %v7106 = vsel %vm7036, %v6849, %v4253
    %v7107 = vsel %vm7036, %v6850, %v4256
    %v7108 = vsel %vm7036, %v6851, %v4258
    %v7109 = vsel %vm7036, %v6852, %v4261
    %v7110 = vsel %vm7036, %v6853, %v4263
    %v7111 = vsel %vm7036, %v6854, %v4266
    %v7112 = vsel %vm7036, %v6855, %v4268
    %v7113 = vsel %vm7036, %v6856, %v4271
    %v7114 = vsel %vm7036, %v6857, %v4273
    %v7115 = vsel %vm7036, %v6858, %v4276
    %v7116 = vsel %vm7036, %v6859, %v4278
    %v7117 = vsel %vm7036, %v6860, %v4281
    %v7118 = vsel %vm7036, %v6861, %v4283
    %v7119 = vsel %vm7036, %v6862, %v4286
    %v7120 = vsel %vm7036, %v6863, %v4288
    %v7121 = vsel %vm7036, %v6864, %v4291
    %v7122 = vsel %vm7036, %v6865, %v4293
    %v7123 = vsel %vm7036, %v6866, %v4296
    %v7124 = vsel %vm7036, %v6867, %v4298
    %v7125 = vsel %vm7036, %v6868, %v4301
    %v7126 = vsel %vm7036, %v6869, %v4303
    %v7127 = vsel %vm7036, %v6870, %v4306
    %v7128 = vsel %vm7036, %v6871, %v4308
    %v7129 = vsel %vm7036, %v6872, %v5057
    %v7130 = vsel %vm7036, %v6873, %v5059
    %v7131 = vsel %vm7036, %v6874, %v5193
    %v7132 = vsel %vm7036, %v6875, %v5195
    %v7133 = vsel %vm7036, %v6876, %v4321
    %v7134 = vsel %vm7036, %v6877, %v4323
    %v7135 = vsel %vm7036, %v6878, %v4326
    %v7136 = vsel %vm7036, %v6879, %v4328
    %v7137 = vsel %vm7036, %v6880, %v4331
    %v7138 = vsel %vm7036, %v6881, %v4333
    %v7139 = vsel %vm7036, %v6882, %v4336
    %v7140 = vsel %vm7036, %v6883, %v4338
    %v7141 = vsel %vm7036, %v6884, %v4341
    %v7142 = vsel %vm7036, %v6885, %v4343
    %v7143 = vsel %vm7036, %v6886, %v4346
    %v7144 = vsel %vm7036, %v6887, %v4348
    %v7145 = vsel %vm7036, %v6888, %v4351
    %v7146 = vsel %vm7036, %v6889, %v4353
    %v7147 = vsel %vm7036, %v6890, %v4356
    %v7148 = vsel %vm7036, %v6891, %v4358
    %v7149 = vsel %vm7036, %v6892, %v4361
    %v7150 = vsel %vm7036, %v6893, %v4363
    %v7151 = vsel %vm7036, %v6894, %v4366
    %v7152 = vsel %vm7036, %v6895, %v4368
    %v7153 = vsel %vm7036, %v6896, %v4371
    %v7154 = vsel %vm7036, %v6897, %v4373
    %v7155 = vsel %vm7036, %v6898, %v4376
    %v7156 = vsel %vm7036, %v6899, %v4378
    %v7157 = vsel %vm7036, %v6900, %v4381
    %v7158 = vsel %vm7036, %v6901, %v4383
    %v7159 = vsel %vm7036, %v6902, %v4386
    %v7160 = vsel %vm7036, %v6903, %v4388
    %v7161 = vsel %vm7036, %v6904, %v5062
    %v7162 = vsel %vm7036, %v6905, %v5064
    %v7163 = vsel %vm7036, %v6906, %v5198
    %v7164 = vsel %vm7036, %v6907, %v5200
    %v7165 = vsel %vm7036, %v6908, %v4401
    %v7166 = vsel %vm7036, %v6909, %v4403
    %v7167 = vsel %vm7036, %v6910, %v4406
    %v7168 = vsel %vm7036, %v6911, %v4408
    %v7169 = vsel %vm7036, %v6912, %v4411
    %v7170 = vsel %vm7036, %v6913, %v4413
    %v7171 = vsel %vm7036, %v6914, %v4416
    %v7172 = vsel %vm7036, %v6915, %v4418
    %v7173 = vsel %vm7036, %v6916, %v4421
    %v7174 = vsel %vm7036, %v6917, %v4423
    %v7175 = vsel %vm7036, %v6918, %v4426
    %v7176 = vsel %vm7036, %v6919, %v4428
    %v7177 = vsel %vm7036, %v6920, %v4431
    %v7178 = vsel %vm7036, %v6921, %v4433
    %v7179 = vsel %vm7036, %v6922, %v4436
    %v7180 = vsel %vm7036, %v6923, %v4438
    %v7181 = vsel %vm7036, %v6924, %v4441
    %v7182 = vsel %vm7036, %v6925, %v4443
    %v7183 = vsel %vm7036, %v6926, %v4446
    %v7184 = vsel %vm7036, %v6927, %v4448
    %v7185 = vsel %vm7036, %v6928, %v4451
    %v7186 = vsel %vm7036, %v6929, %v4453
    %v7187 = vsel %vm7036, %v6930, %v4456
    %v7188 = vsel %vm7036, %v6931, %v4458
    %v7189 = vsel %vm7036, %v6932, %v4461
    %v7190 = vsel %vm7036, %v6933, %v4463
    %v7191 = vsel %vm7036, %v6934, %v4466
    %v7192 = vsel %vm7036, %v6935, %v4468
    %v7193 = vsel %vm7036, %v6936, %v5067
    %v7194 = vsel %vm7036, %v6937, %v5069
    %v7195 = vsel %vm7036, %v6938, %v5203
    %v7196 = vsel %vm7036, %v6939, %v5205
    %v7197 = vsel %vm7036, %v6940, %v4481
    %v7198 = vsel %vm7036, %v6941, %v4483
    %v7199 = vsel %vm7036, %v6942, %v4486
    %v7200 = vsel %vm7036, %v6943, %v4488
    %v7201 = vsel %vm7036, %v6944, %v4491
    %v7202 = vsel %vm7036, %v6945, %v4493
    %v7203 = vsel %vm7036, %v6946, %v4496
    %v7204 = vsel %vm7036, %v6947, %v4498
    %v7205 = vsel %vm7036, %v6948, %v4501
    %v7206 = vsel %vm7036, %v6949, %v4503
    %v7207 = vsel %vm7036, %v6950, %v4506
    %v7208 = vsel %vm7036, %v6951, %v4508
    %v7209 = vsel %vm7036, %v6952, %v4511
    %v7210 = vsel %vm7036, %v6953, %v4513
    %v7211 = vsel %vm7036, %v6954, %v4516
    %v7212 = vsel %vm7036, %v6955, %v4518
    %v7213 = vsel %vm7036, %v6956, %v4521
    %v7214 = vsel %vm7036, %v6957, %v4523
    %v7215 = vsel %vm7036, %v6958, %v4526
    %v7216 = vsel %vm7036, %v6959, %v4528
    %v7217 = vsel %vm7036, %v6960, %v4531
    %v7218 = vsel %vm7036, %v6961, %v4533
    %v7219 = vsel %vm7036, %v6962, %v4536
    %v7220 = vsel %vm7036, %v6963, %v4538
    %v7221 = vsel %vm7036, %v6964, %v4541
    %v7222 = vsel %vm7036, %v6965, %v4543
    %v7223 = vsel %vm7036, %v6966, %v4546
    %v7224 = vsel %vm7036, %v6967, %v4548
    %v7225 = vsel %vm7036, %v6968, %v5072
    %v7226 = vsel %vm7036, %v6969, %v5074
    %v7227 = vsel %vm7036, %v6970, %v5208
    %v7228 = vsel %vm7036, %v6971, %v5210
    %v7229 = vsel %vm7036, %v6972, %v4561
    %v7230 = vsel %vm7036, %v6973, %v4563
    %v7231 = vsel %vm7036, %v6974, %v4566
    %v7232 = vsel %vm7036, %v6975, %v4568
    %v7233 = vsel %vm7036, %v6976, %v4571
    %v7234 = vsel %vm7036, %v6977, %v4573
    %v7235 = vsel %vm7036, %v6978, %v4576
    %v7236 = vsel %vm7036, %v6979, %v4578
    %v7237 = vsel %vm7036, %v6980, %v4581
    %v7238 = vsel %vm7036, %v6981, %v4583
    %v7239 = vsel %vm7036, %v6982, %v4586
    %v7240 = vsel %vm7036, %v6983, %v4588
    %v7241 = vsel %vm7036, %v6984, %v4591
    %v7242 = vsel %vm7036, %v6985, %v4593
    %v7243 = vsel %vm7036, %v6986, %v4596
    %v7244 = vsel %vm7036, %v6987, %v4598
    %v7245 = vsel %vm7036, %v6988, %v4601
    %v7246 = vsel %vm7036, %v6989, %v4603
    %v7247 = vsel %vm7036, %v6990, %v4606
    %v7248 = vsel %vm7036, %v6991, %v4608
    %v7249 = vsel %vm7036, %v6992, %v4611
    %v7250 = vsel %vm7036, %v6993, %v4613
    %v7251 = vsel %vm7036, %v6994, %v4616
    %v7252 = vsel %vm7036, %v6995, %v4618
    %v7253 = vsel %vm7036, %v6996, %v4621
    %v7254 = vsel %vm7036, %v6997, %v4623
    %v7255 = vsel %vm7036, %v6998, %v4626
    %v7256 = vsel %vm7036, %v6999, %v4628
    %v7257 = vsel %vm7036, %v7000, %v5077
    %v7258 = vsel %vm7036, %v7001, %v5079
    %v7259 = vsel %vm7036, %v7002, %v5213
    %v7260 = vsel %vm7036, %v7003, %v5215
    %v7261 = vsel %vm7036, %v7004, %v4641
    %v7262 = vsel %vm7036, %v7005, %v4643
    %v7263 = vsel %vm7036, %v7006, %v4646
    %v7264 = vsel %vm7036, %v7007, %v4648
    %v7265 = vsel %vm7036, %v7008, %v4651
    %v7266 = vsel %vm7036, %v7009, %v4653
    %v7267 = vsel %vm7036, %v7010, %v4656
    %v7268 = vsel %vm7036, %v7011, %v4658
    %v7269 = vsel %vm7036, %v7012, %v4661
    %v7270 = vsel %vm7036, %v7013, %v4663
    %v7271 = vsel %vm7036, %v7014, %v4666
    %v7272 = vsel %vm7036, %v7015, %v4668
    %v7273 = vsel %vm7036, %v7016, %v4671
    %v7274 = vsel %vm7036, %v7017, %v4673
    %v7275 = vsel %vm7036, %v7018, %v4676
    %v7276 = vsel %vm7036, %v7019, %v4678
    %v7277 = vsel %vm7036, %v7020, %v4681
    %v7278 = vsel %vm7036, %v7021, %v4683
    %v7279 = vsel %vm7036, %v7022, %v4686
    %v7280 = vsel %vm7036, %v7023, %v4688
    %v7281 = vsel %vm7036, %v7024, %v4691
    %v7282 = vsel %vm7036, %v7025, %v4693
    %v7283 = vsel %vm7036, %v7026, %v4696
    %v7284 = vsel %vm7036, %v7027, %v4698
    %v7285 = vsel %vm7036, %v7028, %v4701
    %v7286 = vsel %vm7036, %v7029, %v4703
    %v7287 = vsel %vm7036, %v7030, %v4706
    %v7288 = vsel %vm7036, %v7031, %v4708
    %v7289 = vsel %vm7036, %v7032, %v5082
    %v7290 = vsel %vm7036, %v7033, %v5084
    %v7291 = vsel %vm7036, %v7034, %v5218
    %v7292 = vsel %vm7036, %v7035, %v5220
    %v7293 = vld [vmem:[%s1] sm:$0xff]
    %v7294 = vld [vmem:[%s1 + $0x8] sm:$0x1]
    %v7295 = vld [vmem:[%s2] sm:$0x1]
    %v7297 = vperm.slane %v7295, 0
    %vm7299 = vcmask 72704
    %v7301 = vsel %vm7299, %v7037, 0
    %v7304 = vsel %vm7299, %v7038, 0
    %v7307 = vsel %vm7299, %v7039, 0
    %v7310 = vsel %vm7299, %v7040, 0
    %v7313 = vsel %vm7299, %v7041, 0
    %v7316 = vsel %vm7299, %v7042, 0
    %v7319 = vsel %vm7299, %v7043, 0
    %v7322 = vsel %vm7299, %v7044, 0
    %v7325 = vsel %vm7299, %v7045, 0
    %v7328 = vsel %vm7299, %v7046, 0
    %v7331 = vsel %vm7299, %v7047, 0
    %v7334 = vsel %vm7299, %v7048, 0
    %v7337 = vsel %vm7299, %v7049, 0
    %v7340 = vsel %vm7299, %v7050, 0
    %v7343 = vsel %vm7299, %v7051, 0
    %v7346 = vsel %vm7299, %v7052, 0
    %v7349 = vsel %vm7299, %v7053, 0
    %v7352 = vsel %vm7299, %v7054, 0
    %v7355 = vsel %vm7299, %v7055, 0
    %v7358 = vsel %vm7299, %v7056, 0
    %v7361 = vsel %vm7299, %v7057, 0
    %v7364 = vsel %vm7299, %v7058, 0
    %v7367 = vsel %vm7299, %v7059, 0
    %v7370 = vsel %vm7299, %v7060, 0
    %v7373 = vsel %vm7299, %v7061, 0
    %v7376 = vsel %vm7299, %v7062, 0
    %v7379 = vsel %vm7299, %v7063, 0
    %v7382 = vsel %vm7299, %v7064, 0
    %v7385 = vsel %vm7299, %v7065, 0
    %v7388 = vsel %vm7299, %v7066, 0
    %v7391 = vsel %vm7299, %v7067, 0
    %v7394 = vsel %vm7299, %v7068, 0
    %v7397 = vsel %vm7299, %v7069, 0
    %v7400 = vsel %vm7299, %v7070, 0
    %v7403 = vsel %vm7299, %v7071, 0
    %v7406 = vsel %vm7299, %v7072, 0
    %v7409 = vsel %vm7299, %v7073, 0
    %v7412 = vsel %vm7299, %v7074, 0
    %v7415 = vsel %vm7299, %v7075, 0
    %v7418 = vsel %vm7299, %v7076, 0
    %v7421 = vsel %vm7299, %v7077, 0
    %v7424 = vsel %vm7299, %v7078, 0
    %v7427 = vsel %vm7299, %v7079, 0
    %v7430 = vsel %vm7299, %v7080, 0
    %v7433 = vsel %vm7299, %v7081, 0
    %v7436 = vsel %vm7299, %v7082, 0
    %v7439 = vsel %vm7299, %v7083, 0
    %v7442 = vsel %vm7299, %v7084, 0
    %v7445 = vsel %vm7299, %v7085, 0
    %v7448 = vsel %vm7299, %v7086, 0
    %v7451 = vsel %vm7299, %v7087, 0
    %v7454 = vsel %vm7299, %v7088, 0
    %v7457 = vsel %vm7299, %v7089, 0
    %v7460 = vsel %vm7299, %v7090, 0
    %v7463 = vsel %vm7299, %v7091, 0
    %v7466 = vsel %vm7299, %v7092, 0
    %v7469 = vsel %vm7299, %v7093, 0
    %v7472 = vsel %vm7299, %v7094, 0
    %v7475 = vsel %vm7299, %v7095, 0
    %v7478 = vsel %vm7299, %v7096, 0
    %v7481 = vsel %vm7299, %v7097, 0
    %v7484 = vsel %vm7299, %v7098, 0
    %v7487 = vsel %vm7299, %v7099, 0
    %v7490 = vsel %vm7299, %v7100, 0
    %v7493 = vsel %vm7299, %v7101, 0
    %v7496 = vsel %vm7299, %v7102, 0
    %v7499 = vsel %vm7299, %v7103, 0
    %v7502 = vsel %vm7299, %v7104, 0
    %v7505 = vsel %vm7299, %v7105, 0
    %v7508 = vsel %vm7299, %v7106, 0
    %v7511 = vsel %vm7299, %v7107, 0
    %v7514 = vsel %vm7299, %v7108, 0
    %v7517 = vsel %vm7299, %v7109, 0
    %v7520 = vsel %vm7299, %v7110, 0
    %v7523 = vsel %vm7299, %v7111, 0
    %v7526 = vsel %vm7299, %v7112, 0
    %v7529 = vsel %vm7299, %v7113, 0
    %v7532 = vsel %vm7299, %v7114, 0
    %v7535 = vsel %vm7299, %v7115, 0
    %v7538 = vsel %vm7299, %v7116, 0
    %v7541 = vsel %vm7299, %v7117, 0
    %v7544 = vsel %vm7299, %v7118, 0
    %v7547 = vsel %vm7299, %v7119, 0
    %v7550 = vsel %vm7299, %v7120, 0
    %v7553 = vsel %vm7299, %v7121, 0
    %v7556 = vsel %vm7299, %v7122, 0
    %v7559 = vsel %vm7299, %v7123, 0
    %v7562 = vsel %vm7299, %v7124, 0
    %v7565 = vsel %vm7299, %v7125, 0
    %v7568 = vsel %vm7299, %v7126, 0
    %v7571 = vsel %vm7299, %v7127, 0
    %v7574 = vsel %vm7299, %v7128, 0
    %v7577 = vsel %vm7299, %v7129, 0
    %v7580 = vsel %vm7299, %v7130, 0
    %v7583 = vsel %vm7299, %v7131, 0
    %v7586 = vsel %vm7299, %v7132, 0
    %v7589 = vsel %vm7299, %v7133, 0
    %v7592 = vsel %vm7299, %v7134, 0
    %v7595 = vsel %vm7299, %v7135, 0
    %v7598 = vsel %vm7299, %v7136, 0
    %v7601 = vsel %vm7299, %v7137, 0
    %v7604 = vsel %vm7299, %v7138, 0
    %v7607 = vsel %vm7299, %v7139, 0
    %v7610 = vsel %vm7299, %v7140, 0
    %v7613 = vsel %vm7299, %v7141, 0
    %v7616 = vsel %vm7299, %v7142, 0
    %v7619 = vsel %vm7299, %v7143, 0
    %v7622 = vsel %vm7299, %v7144, 0
    %v7625 = vsel %vm7299, %v7145, 0
    %v7628 = vsel %vm7299, %v7146, 0
    %v7631 = vsel %vm7299, %v7147, 0
    %v7634 = vsel %vm7299, %v7148, 0
    %v7637 = vsel %vm7299, %v7149, 0
    %v7640 = vsel %vm7299, %v7150, 0
    %v7643 = vsel %vm7299, %v7151, 0
    %v7646 = vsel %vm7299, %v7152, 0
    %v7649 = vsel %vm7299, %v7153, 0
    %v7652 = vsel %vm7299, %v7154, 0
    %v7655 = vsel %vm7299, %v7155, 0
    %v7658 = vsel %vm7299, %v7156, 0
    %v7661 = vsel %vm7299, %v7157, 0
    %v7664 = vsel %vm7299, %v7158, 0
    %v7667 = vsel %vm7299, %v7159, 0
    %v7670 = vsel %vm7299, %v7160, 0
    %v7673 = vsel %vm7299, %v7161, 0
    %v7676 = vsel %vm7299, %v7162, 0
    %v7679 = vsel %vm7299, %v7163, 0
    %v7682 = vsel %vm7299, %v7164, 0
    %v7685 = vsel %vm7299, %v7165, 0
    %v7688 = vsel %vm7299, %v7166, 0
    %v7691 = vsel %vm7299, %v7167, 0
    %v7694 = vsel %vm7299, %v7168, 0
    %v7697 = vsel %vm7299, %v7169, 0
    %v7700 = vsel %vm7299, %v7170, 0
    %v7703 = vsel %vm7299, %v7171, 0
    %v7706 = vsel %vm7299, %v7172, 0
    %v7709 = vsel %vm7299, %v7173, 0
    %v7712 = vsel %vm7299, %v7174, 0
    %v7715 = vsel %vm7299, %v7175, 0
    %v7718 = vsel %vm7299, %v7176, 0
    %v7721 = vsel %vm7299, %v7177, 0
    %v7724 = vsel %vm7299, %v7178, 0
    %v7727 = vsel %vm7299, %v7179, 0
    %v7730 = vsel %vm7299, %v7180, 0
    %v7733 = vsel %vm7299, %v7181, 0
    %v7736 = vsel %vm7299, %v7182, 0
    %v7739 = vsel %vm7299, %v7183, 0
    %v7742 = vsel %vm7299, %v7184, 0
    %v7745 = vsel %vm7299, %v7185, 0
    %v7748 = vsel %vm7299, %v7186, 0
    %v7751 = vsel %vm7299, %v7187, 0
    %v7754 = vsel %vm7299, %v7188, 0
    %v7757 = vsel %vm7299, %v7189, 0
    %v7760 = vsel %vm7299, %v7190, 0
    %v7763 = vsel %vm7299, %v7191, 0
    %v7766 = vsel %vm7299, %v7192, 0
    %v7769 = vsel %vm7299, %v7193, 0
    %v7772 = vsel %vm7299, %v7194, 0
    %v7775 = vsel %vm7299, %v7195, 0
    %v7778 = vsel %vm7299, %v7196, 0
    %v7781 = vsel %vm7299, %v7197, 0
    %v7784 = vsel %vm7299, %v7198, 0
    %v7787 = vsel %vm7299, %v7199, 0
    %v7790 = vsel %vm7299, %v7200, 0
    %v7793 = vsel %vm7299, %v7201, 0
    %v7796 = vsel %vm7299, %v7202, 0
    %v7799 = vsel %vm7299, %v7203, 0
    %v7802 = vsel %vm7299, %v7204, 0
    %v7805 = vsel %vm7299, %v7205, 0
    %v7808 = vsel %vm7299, %v7206, 0
    %v7811 = vsel %vm7299, %v7207, 0
    %v7814 = vsel %vm7299, %v7208, 0
    %v7817 = vsel %vm7299, %v7209, 0
    %v7820 = vsel %vm7299, %v7210, 0
    %v7823 = vsel %vm7299, %v7211, 0
    %v7826 = vsel %vm7299, %v7212, 0
    %v7829 = vsel %vm7299, %v7213, 0
    %v7832 = vsel %vm7299, %v7214, 0
    %v7835 = vsel %vm7299, %v7215, 0
    %v7838 = vsel %vm7299, %v7216, 0
    %v7841 = vsel %vm7299, %v7217, 0
    %v7844 = vsel %vm7299, %v7218, 0
    %v7847 = vsel %vm7299, %v7219, 0
    %v7850 = vsel %vm7299, %v7220, 0
    %v7853 = vsel %vm7299, %v7221, 0
    %v7856 = vsel %vm7299, %v7222, 0
    %v7859 = vsel %vm7299, %v7223, 0
    %v7862 = vsel %vm7299, %v7224, 0
    %v7865 = vsel %vm7299, %v7225, 0
    %v7868 = vsel %vm7299, %v7226, 0
    %v7871 = vsel %vm7299, %v7227, 0
    %v7874 = vsel %vm7299, %v7228, 0
    %v7877 = vsel %vm7299, %v7229, 0
    %v7880 = vsel %vm7299, %v7230, 0
    %v7883 = vsel %vm7299, %v7231, 0
    %v7886 = vsel %vm7299, %v7232, 0
    %v7889 = vsel %vm7299, %v7233, 0
    %v7892 = vsel %vm7299, %v7234, 0
    %v7895 = vsel %vm7299, %v7235, 0
    %v7898 = vsel %vm7299, %v7236, 0
    %v7901 = vsel %vm7299, %v7237, 0
    %v7904 = vsel %vm7299, %v7238, 0
    %v7907 = vsel %vm7299, %v7239, 0
    %v7910 = vsel %vm7299, %v7240, 0
    %v7913 = vsel %vm7299, %v7241, 0
    %v7916 = vsel %vm7299, %v7242, 0
    %v7919 = vsel %vm7299, %v7243, 0
    %v7922 = vsel %vm7299, %v7244, 0
    %v7925 = vsel %vm7299, %v7245, 0
    %v7928 = vsel %vm7299, %v7246, 0
    %v7931 = vsel %vm7299, %v7247, 0
    %v7934 = vsel %vm7299, %v7248, 0
    %v7937 = vsel %vm7299, %v7249, 0
    %v7940 = vsel %vm7299, %v7250, 0
    %v7943 = vsel %vm7299, %v7251, 0
    %v7946 = vsel %vm7299, %v7252, 0
    %v7949 = vsel %vm7299, %v7253, 0
    %v7952 = vsel %vm7299, %v7254, 0
    %v7955 = vsel %vm7299, %v7255, 0
    %v7958 = vsel %vm7299, %v7256, 0
    %v7961 = vsel %vm7299, %v7257, 0
    %v7964 = vsel %vm7299, %v7258, 0
    %v7967 = vsel %vm7299, %v7259, 0
    %v7970 = vsel %vm7299, %v7260, 0
    %v7973 = vsel %vm7299, %v7261, 0
    %v7976 = vsel %vm7299, %v7262, 0
    %v7979 = vsel %vm7299, %v7263, 0
    %v7982 = vsel %vm7299, %v7264, 0
    %v7985 = vsel %vm7299, %v7265, 0
    %v7988 = vsel %vm7299, %v7266, 0
    %v7991 = vsel %vm7299, %v7267, 0
    %v7994 = vsel %vm7299, %v7268, 0
    %v7997 = vsel %vm7299, %v7269, 0
    %v8000 = vsel %vm7299, %v7270, 0
    %v8003 = vsel %vm7299, %v7271, 0
    %v8006 = vsel %vm7299, %v7272, 0
    %v8009 = vsel %vm7299, %v7273, 0
    %v8012 = vsel %vm7299, %v7274, 0
    %v8015 = vsel %vm7299, %v7275, 0
    %v8018 = vsel %vm7299, %v7276, 0
    %v8021 = vsel %vm7299, %v7277, 0
    %v8024 = vsel %vm7299, %v7278, 0
    %v8027 = vsel %vm7299, %v7279, 0
    %v8030 = vsel %vm7299, %v7280, 0
    %v8033 = vsel %vm7299, %v7281, 0
    %v8036 = vsel %vm7299, %v7282, 0
    %v8039 = vsel %vm7299, %v7283, 0
    %v8042 = vsel %vm7299, %v7284, 0
    %v8045 = vsel %vm7299, %v7285, 0
    %v8048 = vsel %vm7299, %v7286, 0
    %v8051 = vsel %vm7299, %v7287, 0
    %v8054 = vsel %vm7299, %v7288, 0
    %v8057 = vsel %vm7299, %v7289, 0
    %v8060 = vsel %vm7299, %v7290, 0
    %v8063 = vsel %vm7299, %v7291, 0
    %v8066 = vsel %vm7299, %v7292, 0
    %vm8068 = vcmask 1040384
    %v8070 = vsel %vm8068, %v7294, 0
    %8072 = vmatpush.msra.mxu0 0.0
    %8073 = vmatpush.msra.mxu0 0.0
    %8074 = vmatpush.msra.mxu0 0.0
    %8075 = vmatpush.msra.mxu0 0.0
    %8076 = vmatpush.msra.mxu0 0.0
    %8077 = vmatpush.msra.mxu0 0.0
    %8078 = vmatpush.msra.mxu0 0.0
    %8079 = vmatpush.msra.mxu0 0.0
    %8080 = vmatpush.msra.mxu0 0.0
    %8081 = vmatpush.msra.mxu0 0.0
    %8082 = vmatpush.msra.mxu0 0.0
    %8083 = vmatpush.msra.mxu0 0.0
    %8084 = vmatpush.msra.mxu0 0.0
    %8085 = vmatpush.msra.mxu0 0.0
    %8086 = vmatpush.msra.mxu0 %v8070
    %8087 = vmatpush.msra.mxu0 %v7293
    %8088 = vmatmul.f32.gmra.mxu0 %v7301
    %v8089 = vpop.f32.mrf.mxu0
    %v8090 = vadd.f32 %v7297, %v8089
    %8091 = vmatmul.f32.gmra.mxu0 %v7304
    %v8092 = vpop.f32.mrf.mxu0
    %v8093 = vadd.f32 %v7297, %v8092
    %8094 = vmatmul.f32.gmra.mxu0 %v7307
    %v8095 = vpop.f32.mrf.mxu0
    %v8096 = vadd.f32 %v7297, %v8095
    %8097 = vmatmul.f32.gmra.mxu0 %v7310
    %v8098 = vpop.f32.mrf.mxu0
    %v8099 = vadd.f32 %v7297, %v8098
    %8100 = vmatmul.f32.gmra.mxu0 %v7313
    %v8101 = vpop.f32.mrf.mxu0
    %v8102 = vadd.f32 %v7297, %v8101
    %8103 = vmatmul.f32.gmra.mxu0 %v7316
    %v8104 = vpop.f32.mrf.mxu0
    %v8105 = vadd.f32 %v7297, %v8104
    %8106 = vmatmul.f32.gmra.mxu0 %v7319
    %v8107 = vpop.f32.mrf.mxu0
    %v8108 = vadd.f32 %v7297, %v8107
    %8109 = vmatmul.f32.gmra.mxu0 %v7322
    %v8110 = vpop.f32.mrf.mxu0
    %v8111 = vadd.f32 %v7297, %v8110
    %8112 = vmatmul.f32.gmra.mxu0 %v7325
    %v8113 = vpop.f32.mrf.mxu0
    %v8114 = vadd.f32 %v7297, %v8113
    %8115 = vmatmul.f32.gmra.mxu0 %v7328
    %v8116 = vpop.f32.mrf.mxu0
    %v8117 = vadd.f32 %v7297, %v8116
    %8118 = vmatmul.f32.gmra.mxu0 %v7331
    %v8119 = vpop.f32.mrf.mxu0
    %v8120 = vadd.f32 %v7297, %v8119
    %8121 = vmatmul.f32.gmra.mxu0 %v7334
    %v8122 = vpop.f32.mrf.mxu0
    %v8123 = vadd.f32 %v7297, %v8122
    %8124 = vmatmul.f32.gmra.mxu0 %v7337
    %v8125 = vpop.f32.mrf.mxu0
    %v8126 = vadd.f32 %v7297, %v8125
    %8127 = vmatmul.f32.gmra.mxu0 %v7340
    %v8128 = vpop.f32.mrf.mxu0
    %v8129 = vadd.f32 %v7297, %v8128
    %8130 = vmatmul.f32.gmra.mxu0 %v7343
    %v8131 = vpop.f32.mrf.mxu0
    %v8132 = vadd.f32 %v7297, %v8131
    %8133 = vmatmul.f32.gmra.mxu0 %v7346
    %v8134 = vpop.f32.mrf.mxu0
    %v8135 = vadd.f32 %v7297, %v8134
    %8136 = vmatmul.f32.gmra.mxu0 %v7349
    %v8137 = vpop.f32.mrf.mxu0
    %v8138 = vadd.f32 %v7297, %v8137
    %8139 = vmatmul.f32.gmra.mxu0 %v7352
    %v8140 = vpop.f32.mrf.mxu0
    %v8141 = vadd.f32 %v7297, %v8140
    %8142 = vmatmul.f32.gmra.mxu0 %v7355
    %v8143 = vpop.f32.mrf.mxu0
    %v8144 = vadd.f32 %v7297, %v8143
    %8145 = vmatmul.f32.gmra.mxu0 %v7358
    %v8146 = vpop.f32.mrf.mxu0
    %v8147 = vadd.f32 %v7297, %v8146
    %8148 = vmatmul.f32.gmra.mxu0 %v7361
    %v8149 = vpop.f32.mrf.mxu0
    %v8150 = vadd.f32 %v7297, %v8149
    %8151 = vmatmul.f32.gmra.mxu0 %v7364
    %v8152 = vpop.f32.mrf.mxu0
    %v8153 = vadd.f32 %v7297, %v8152
    %8154 = vmatmul.f32.gmra.mxu0 %v7367
    %v8155 = vpop.f32.mrf.mxu0
    %v8156 = vadd.f32 %v7297, %v8155
    %8157 = vmatmul.f32.gmra.mxu0 %v7370
    %v8158 = vpop.f32.mrf.mxu0
    %v8159 = vadd.f32 %v7297, %v8158
    %8160 = vmatmul.f32.gmra.mxu0 %v7373
    %v8161 = vpop.f32.mrf.mxu0
    %v8162 = vadd.f32 %v7297, %v8161
    %8163 = vmatmul.f32.gmra.mxu0 %v7376
    %v8164 = vpop.f32.mrf.mxu0
    %v8165 = vadd.f32 %v7297, %v8164
    %8166 = vmatmul.f32.gmra.mxu0 %v7379
    %v8167 = vpop.f32.mrf.mxu0
    %v8168 = vadd.f32 %v7297, %v8167
    %8169 = vmatmul.f32.gmra.mxu0 %v7382
    %v8170 = vpop.f32.mrf.mxu0
    %v8171 = vadd.f32 %v7297, %v8170
    %8172 = vmatmul.f32.gmra.mxu0 %v7385
    %v8173 = vpop.f32.mrf.mxu0
    %v8174 = vadd.f32 %v7297, %v8173
    %8175 = vmatmul.f32.gmra.mxu0 %v7388
    %v8176 = vpop.f32.mrf.mxu0
    %v8177 = vadd.f32 %v7297, %v8176
    %8178 = vmatmul.f32.gmra.mxu0 %v7391
    %v8179 = vpop.f32.mrf.mxu0
    %v8180 = vadd.f32 %v7297, %v8179
    %8181 = vmatmul.f32.gmra.mxu0 %v7394
    %v8182 = vpop.f32.mrf.mxu0
    %v8183 = vadd.f32 %v7297, %v8182
    %8184 = vmatmul.f32.gmra.mxu0 %v7397
    %v8185 = vpop.f32.mrf.mxu0
    %v8186 = vadd.f32 %v7297, %v8185
    %8187 = vmatmul.f32.gmra.mxu0 %v7400
    %v8188 = vpop.f32.mrf.mxu0
    %v8189 = vadd.f32 %v7297, %v8188
    %8190 = vmatmul.f32.gmra.mxu0 %v7403
    %v8191 = vpop.f32.mrf.mxu0
    %v8192 = vadd.f32 %v7297, %v8191
    %8193 = vmatmul.f32.gmra.mxu0 %v7406
    %v8194 = vpop.f32.mrf.mxu0
    %v8195 = vadd.f32 %v7297, %v8194
    %8196 = vmatmul.f32.gmra.mxu0 %v7409
    %v8197 = vpop.f32.mrf.mxu0
    %v8198 = vadd.f32 %v7297, %v8197
    %8199 = vmatmul.f32.gmra.mxu0 %v7412
    %v8200 = vpop.f32.mrf.mxu0
    %v8201 = vadd.f32 %v7297, %v8200
    %8202 = vmatmul.f32.gmra.mxu0 %v7415
    %v8203 = vpop.f32.mrf.mxu0
    %v8204 = vadd.f32 %v7297, %v8203
    %8205 = vmatmul.f32.gmra.mxu0 %v7418
    %v8206 = vpop.f32.mrf.mxu0
    %v8207 = vadd.f32 %v7297, %v8206
    %8208 = vmatmul.f32.gmra.mxu0 %v7421
    %v8209 = vpop.f32.mrf.mxu0
    %v8210 = vadd.f32 %v7297, %v8209
    %8211 = vmatmul.f32.gmra.mxu0 %v7424
    %v8212 = vpop.f32.mrf.mxu0
    %v8213 = vadd.f32 %v7297, %v8212
    %8214 = vmatmul.f32.gmra.mxu0 %v7427
    %v8215 = vpop.f32.mrf.mxu0
    %v8216 = vadd.f32 %v7297, %v8215
    %8217 = vmatmul.f32.gmra.mxu0 %v7430
    %v8218 = vpop.f32.mrf.mxu0
    %v8219 = vadd.f32 %v7297, %v8218
    %8220 = vmatmul.f32.gmra.mxu0 %v7433
    %v8221 = vpop.f32.mrf.mxu0
    %v8222 = vadd.f32 %v7297, %v8221
    %8223 = vmatmul.f32.gmra.mxu0 %v7436
    %v8224 = vpop.f32.mrf.mxu0
    %v8225 = vadd.f32 %v7297, %v8224
    %8226 = vmatmul.f32.gmra.mxu0 %v7439
    %v8227 = vpop.f32.mrf.mxu0
    %v8228 = vadd.f32 %v7297, %v8227
    %8229 = vmatmul.f32.gmra.mxu0 %v7442
    %v8230 = vpop.f32.mrf.mxu0
    %v8231 = vadd.f32 %v7297, %v8230
    %8232 = vmatmul.f32.gmra.mxu0 %v7445
    %v8233 = vpop.f32.mrf.mxu0
    %v8234 = vadd.f32 %v7297, %v8233
    %8235 = vmatmul.f32.gmra.mxu0 %v7448
    %v8236 = vpop.f32.mrf.mxu0
    %v8237 = vadd.f32 %v7297, %v8236
    %8238 = vmatmul.f32.gmra.mxu0 %v7451
    %v8239 = vpop.f32.mrf.mxu0
    %v8240 = vadd.f32 %v7297, %v8239
    %8241 = vmatmul.f32.gmra.mxu0 %v7454
    %v8242 = vpop.f32.mrf.mxu0
    %v8243 = vadd.f32 %v7297, %v8242
    %8244 = vmatmul.f32.gmra.mxu0 %v7457
    %v8245 = vpop.f32.mrf.mxu0
    %v8246 = vadd.f32 %v7297, %v8245
    %8247 = vmatmul.f32.gmra.mxu0 %v7460
    %v8248 = vpop.f32.mrf.mxu0
    %v8249 = vadd.f32 %v7297, %v8248
    %8250 = vmatmul.f32.gmra.mxu0 %v7463
    %v8251 = vpop.f32.mrf.mxu0
    %v8252 = vadd.f32 %v7297, %v8251
    %8253 = vmatmul.f32.gmra.mxu0 %v7466
    %v8254 = vpop.f32.mrf.mxu0
    %v8255 = vadd.f32 %v7297, %v8254
    %8256 = vmatmul.f32.gmra.mxu0 %v7469
    %v8257 = vpop.f32.mrf.mxu0
    %v8258 = vadd.f32 %v7297, %v8257
    %8259 = vmatmul.f32.gmra.mxu0 %v7472
    %v8260 = vpop.f32.mrf.mxu0
    %v8261 = vadd.f32 %v7297, %v8260
    %8262 = vmatmul.f32.gmra.mxu0 %v7475
    %v8263 = vpop.f32.mrf.mxu0
    %v8264 = vadd.f32 %v7297, %v8263
    %8265 = vmatmul.f32.gmra.mxu0 %v7478
    %v8266 = vpop.f32.mrf.mxu0
    %v8267 = vadd.f32 %v7297, %v8266
    %8268 = vmatmul.f32.gmra.mxu0 %v7481
    %v8269 = vpop.f32.mrf.mxu0
    %v8270 = vadd.f32 %v7297, %v8269
    %8271 = vmatmul.f32.gmra.mxu0 %v7484
    %v8272 = vpop.f32.mrf.mxu0
    %v8273 = vadd.f32 %v7297, %v8272
    %8274 = vmatmul.f32.gmra.mxu0 %v7487
    %v8275 = vpop.f32.mrf.mxu0
    %v8276 = vadd.f32 %v7297, %v8275
    %8277 = vmatmul.f32.gmra.mxu0 %v7490
    %v8278 = vpop.f32.mrf.mxu0
    %v8279 = vadd.f32 %v7297, %v8278
    %8280 = vmatmul.f32.gmra.mxu0 %v7493
    %v8281 = vpop.f32.mrf.mxu0
    %v8282 = vadd.f32 %v7297, %v8281
    %8283 = vmatmul.f32.gmra.mxu0 %v7496
    %v8284 = vpop.f32.mrf.mxu0
    %v8285 = vadd.f32 %v7297, %v8284
    %8286 = vmatmul.f32.gmra.mxu0 %v7499
    %v8287 = vpop.f32.mrf.mxu0
    %v8288 = vadd.f32 %v7297, %v8287
    %8289 = vmatmul.f32.gmra.mxu0 %v7502
    %v8290 = vpop.f32.mrf.mxu0
    %v8291 = vadd.f32 %v7297, %v8290
    %8292 = vmatmul.f32.gmra.mxu0 %v7505
    %v8293 = vpop.f32.mrf.mxu0
    %v8294 = vadd.f32 %v7297, %v8293
    %8295 = vmatmul.f32.gmra.mxu0 %v7508
    %v8296 = vpop.f32.mrf.mxu0
    %v8297 = vadd.f32 %v7297, %v8296
    %8298 = vmatmul.f32.gmra.mxu0 %v7511
    %v8299 = vpop.f32.mrf.mxu0
    %v8300 = vadd.f32 %v7297, %v8299
    %8301 = vmatmul.f32.gmra.mxu0 %v7514
    %v8302 = vpop.f32.mrf.mxu0
    %v8303 = vadd.f32 %v7297, %v8302
    %8304 = vmatmul.f32.gmra.mxu0 %v7517
    %v8305 = vpop.f32.mrf.mxu0
    %v8306 = vadd.f32 %v7297, %v8305
    %8307 = vmatmul.f32.gmra.mxu0 %v7520
    %v8308 = vpop.f32.mrf.mxu0
    %v8309 = vadd.f32 %v7297, %v8308
    %8310 = vmatmul.f32.gmra.mxu0 %v7523
    %v8311 = vpop.f32.mrf.mxu0
    %v8312 = vadd.f32 %v7297, %v8311
    %8313 = vmatmul.f32.gmra.mxu0 %v7526
    %v8314 = vpop.f32.mrf.mxu0
    %v8315 = vadd.f32 %v7297, %v8314
    %8316 = vmatmul.f32.gmra.mxu0 %v7529
    %v8317 = vpop.f32.mrf.mxu0
    %v8318 = vadd.f32 %v7297, %v8317
    %8319 = vmatmul.f32.gmra.mxu0 %v7532
    %v8320 = vpop.f32.mrf.mxu0
    %v8321 = vadd.f32 %v7297, %v8320
    %8322 = vmatmul.f32.gmra.mxu0 %v7535
    %v8323 = vpop.f32.mrf.mxu0
    %v8324 = vadd.f32 %v7297, %v8323
    %8325 = vmatmul.f32.gmra.mxu0 %v7538
    %v8326 = vpop.f32.mrf.mxu0
    %v8327 = vadd.f32 %v7297, %v8326
    %8328 = vmatmul.f32.gmra.mxu0 %v7541
    %v8329 = vpop.f32.mrf.mxu0
    %v8330 = vadd.f32 %v7297, %v8329
    %8331 = vmatmul.f32.gmra.mxu0 %v7544
    %v8332 = vpop.f32.mrf.mxu0
    %v8333 = vadd.f32 %v7297, %v8332
    %8334 = vmatmul.f32.gmra.mxu0 %v7547
    %v8335 = vpop.f32.mrf.mxu0
    %v8336 = vadd.f32 %v7297, %v8335
    %8337 = vmatmul.f32.gmra.mxu0 %v7550
    %v8338 = vpop.f32.mrf.mxu0
    %v8339 = vadd.f32 %v7297, %v8338
    %8340 = vmatmul.f32.gmra.mxu0 %v7553
    %v8341 = vpop.f32.mrf.mxu0
    %v8342 = vadd.f32 %v7297, %v8341
    %8343 = vmatmul.f32.gmra.mxu0 %v7556
    %v8344 = vpop.f32.mrf.mxu0
    %v8345 = vadd.f32 %v7297, %v8344
    %8346 = vmatmul.f32.gmra.mxu0 %v7559
    %v8347 = vpop.f32.mrf.mxu0
    %v8348 = vadd.f32 %v7297, %v8347
    %8349 = vmatmul.f32.gmra.mxu0 %v7562
    %v8350 = vpop.f32.mrf.mxu0
    %v8351 = vadd.f32 %v7297, %v8350
    %8352 = vmatmul.f32.gmra.mxu0 %v7565
    %v8353 = vpop.f32.mrf.mxu0
    %v8354 = vadd.f32 %v7297, %v8353
    %8355 = vmatmul.f32.gmra.mxu0 %v7568
    %v8356 = vpop.f32.mrf.mxu0
    %v8357 = vadd.f32 %v7297, %v8356
    %8358 = vmatmul.f32.gmra.mxu0 %v7571
    %v8359 = vpop.f32.mrf.mxu0
    %v8360 = vadd.f32 %v7297, %v8359
    %8361 = vmatmul.f32.gmra.mxu0 %v7574
    %v8362 = vpop.f32.mrf.mxu0
    %v8363 = vadd.f32 %v7297, %v8362
    %8364 = vmatmul.f32.gmra.mxu0 %v7577
    %v8365 = vpop.f32.mrf.mxu0
    %v8366 = vadd.f32 %v7297, %v8365
    %8367 = vmatmul.f32.gmra.mxu0 %v7580
    %v8368 = vpop.f32.mrf.mxu0
    %v8369 = vadd.f32 %v7297, %v8368
    %8370 = vmatmul.f32.gmra.mxu0 %v7583
    %v8371 = vpop.f32.mrf.mxu0
    %v8372 = vadd.f32 %v7297, %v8371
    %8373 = vmatmul.f32.gmra.mxu0 %v7586
    %v8374 = vpop.f32.mrf.mxu0
    %v8375 = vadd.f32 %v7297, %v8374
    %8376 = vmatmul.f32.gmra.mxu0 %v7589
    %v8377 = vpop.f32.mrf.mxu0
    %v8378 = vadd.f32 %v7297, %v8377
    %8379 = vmatmul.f32.gmra.mxu0 %v7592
    %v8380 = vpop.f32.mrf.mxu0
    %v8381 = vadd.f32 %v7297, %v8380
    %8382 = vmatmul.f32.gmra.mxu0 %v7595
    %v8383 = vpop.f32.mrf.mxu0
    %v8384 = vadd.f32 %v7297, %v8383
    %8385 = vmatmul.f32.gmra.mxu0 %v7598
    %v8386 = vpop.f32.mrf.mxu0
    %v8387 = vadd.f32 %v7297, %v8386
    %8388 = vmatmul.f32.gmra.mxu0 %v7601
    %v8389 = vpop.f32.mrf.mxu0
    %v8390 = vadd.f32 %v7297, %v8389
    %8391 = vmatmul.f32.gmra.mxu0 %v7604
    %v8392 = vpop.f32.mrf.mxu0
    %v8393 = vadd.f32 %v7297, %v8392
    %8394 = vmatmul.f32.gmra.mxu0 %v7607
    %v8395 = vpop.f32.mrf.mxu0
    %v8396 = vadd.f32 %v7297, %v8395
    %8397 = vmatmul.f32.gmra.mxu0 %v7610
    %v8398 = vpop.f32.mrf.mxu0
    %v8399 = vadd.f32 %v7297, %v8398
    %8400 = vmatmul.f32.gmra.mxu0 %v7613
    %v8401 = vpop.f32.mrf.mxu0
    %v8402 = vadd.f32 %v7297, %v8401
    %8403 = vmatmul.f32.gmra.mxu0 %v7616
    %v8404 = vpop.f32.mrf.mxu0
    %v8405 = vadd.f32 %v7297, %v8404
    %8406 = vmatmul.f32.gmra.mxu0 %v7619
    %v8407 = vpop.f32.mrf.mxu0
    %v8408 = vadd.f32 %v7297, %v8407
    %8409 = vmatmul.f32.gmra.mxu0 %v7622
    %v8410 = vpop.f32.mrf.mxu0
    %v8411 = vadd.f32 %v7297, %v8410
    %8412 = vmatmul.f32.gmra.mxu0 %v7625
    %v8413 = vpop.f32.mrf.mxu0
    %v8414 = vadd.f32 %v7297, %v8413
    %8415 = vmatmul.f32.gmra.mxu0 %v7628
    %v8416 = vpop.f32.mrf.mxu0
    %v8417 = vadd.f32 %v7297, %v8416
    %8418 = vmatmul.f32.gmra.mxu0 %v7631
    %v8419 = vpop.f32.mrf.mxu0
    %v8420 = vadd.f32 %v7297, %v8419
    %8421 = vmatmul.f32.gmra.mxu0 %v7634
    %v8422 = vpop.f32.mrf.mxu0
    %v8423 = vadd.f32 %v7297, %v8422
    %8424 = vmatmul.f32.gmra.mxu0 %v7637
    %v8425 = vpop.f32.mrf.mxu0
    %v8426 = vadd.f32 %v7297, %v8425
    %8427 = vmatmul.f32.gmra.mxu0 %v7640
    %v8428 = vpop.f32.mrf.mxu0
    %v8429 = vadd.f32 %v7297, %v8428
    %8430 = vmatmul.f32.gmra.mxu0 %v7643
    %v8431 = vpop.f32.mrf.mxu0
    %v8432 = vadd.f32 %v7297, %v8431
    %8433 = vmatmul.f32.gmra.mxu0 %v7646
    %v8434 = vpop.f32.mrf.mxu0
    %v8435 = vadd.f32 %v7297, %v8434
    %8436 = vmatmul.f32.gmra.mxu0 %v7649
    %v8437 = vpop.f32.mrf.mxu0
    %v8438 = vadd.f32 %v7297, %v8437
    %8439 = vmatmul.f32.gmra.mxu0 %v7652
    %v8440 = vpop.f32.mrf.mxu0
    %v8441 = vadd.f32 %v7297, %v8440
    %8442 = vmatmul.f32.gmra.mxu0 %v7655
    %v8443 = vpop.f32.mrf.mxu0
    %v8444 = vadd.f32 %v7297, %v8443
    %8445 = vmatmul.f32.gmra.mxu0 %v7658
    %v8446 = vpop.f32.mrf.mxu0
    %v8447 = vadd.f32 %v7297, %v8446
    %8448 = vmatmul.f32.gmra.mxu0 %v7661
    %v8449 = vpop.f32.mrf.mxu0
    %v8450 = vadd.f32 %v7297, %v8449
    %8451 = vmatmul.f32.gmra.mxu0 %v7664
    %v8452 = vpop.f32.mrf.mxu0
    %v8453 = vadd.f32 %v7297, %v8452
    %8454 = vmatmul.f32.gmra.mxu0 %v7667
    %v8455 = vpop.f32.mrf.mxu0
    %v8456 = vadd.f32 %v7297, %v8455
    %8457 = vmatmul.f32.gmra.mxu0 %v7670
    %v8458 = vpop.f32.mrf.mxu0
    %v8459 = vadd.f32 %v7297, %v8458
    %8460 = vmatmul.f32.gmra.mxu0 %v7673
    %v8461 = vpop.f32.mrf.mxu0
    %v8462 = vadd.f32 %v7297, %v8461
    %8463 = vmatmul.f32.gmra.mxu0 %v7676
    %v8464 = vpop.f32.mrf.mxu0
    %v8465 = vadd.f32 %v7297, %v8464
    %8466 = vmatmul.f32.gmra.mxu0 %v7679
    %v8467 = vpop.f32.mrf.mxu0
    %v8468 = vadd.f32 %v7297, %v8467
    %8469 = vmatmul.f32.gmra.mxu0 %v7682
    %v8470 = vpop.f32.mrf.mxu0
    %v8471 = vadd.f32 %v7297, %v8470
    %8472 = vmatmul.f32.gmra.mxu0 %v7685
    %v8473 = vpop.f32.mrf.mxu0
    %v8474 = vadd.f32 %v7297, %v8473
    %8475 = vmatmul.f32.gmra.mxu0 %v7688
    %v8476 = vpop.f32.mrf.mxu0
    %v8477 = vadd.f32 %v7297, %v8476
    %8478 = vmatmul.f32.gmra.mxu0 %v7691
    %v8479 = vpop.f32.mrf.mxu0
    %v8480 = vadd.f32 %v7297, %v8479
    %8481 = vmatmul.f32.gmra.mxu0 %v7694
    %v8482 = vpop.f32.mrf.mxu0
    %v8483 = vadd.f32 %v7297, %v8482
    %8484 = vmatmul.f32.gmra.mxu0 %v7697
    %v8485 = vpop.f32.mrf.mxu0
    %v8486 = vadd.f32 %v7297, %v8485
    %8487 = vmatmul.f32.gmra.mxu0 %v7700
    %v8488 = vpop.f32.mrf.mxu0
    %v8489 = vadd.f32 %v7297, %v8488
    %8490 = vmatmul.f32.gmra.mxu0 %v7703
    %v8491 = vpop.f32.mrf.mxu0
    %v8492 = vadd.f32 %v7297, %v8491
    %8493 = vmatmul.f32.gmra.mxu0 %v7706
    %v8494 = vpop.f32.mrf.mxu0
    %v8495 = vadd.f32 %v7297, %v8494
    %8496 = vmatmul.f32.gmra.mxu0 %v7709
    %v8497 = vpop.f32.mrf.mxu0
    %v8498 = vadd.f32 %v7297, %v8497
    %8499 = vmatmul.f32.gmra.mxu0 %v7712
    %v8500 = vpop.f32.mrf.mxu0
    %v8501 = vadd.f32 %v7297, %v8500
    %8502 = vmatmul.f32.gmra.mxu0 %v7715
    %v8503 = vpop.f32.mrf.mxu0
    %v8504 = vadd.f32 %v7297, %v8503
    %8505 = vmatmul.f32.gmra.mxu0 %v7718
    %v8506 = vpop.f32.mrf.mxu0
    %v8507 = vadd.f32 %v7297, %v8506
    %8508 = vmatmul.f32.gmra.mxu0 %v7721
    %v8509 = vpop.f32.mrf.mxu0
    %v8510 = vadd.f32 %v7297, %v8509
    %8511 = vmatmul.f32.gmra.mxu0 %v7724
    %v8512 = vpop.f32.mrf.mxu0
    %v8513 = vadd.f32 %v7297, %v8512
    %8514 = vmatmul.f32.gmra.mxu0 %v7727
    %v8515 = vpop.f32.mrf.mxu0
    %v8516 = vadd.f32 %v7297, %v8515
    %8517 = vmatmul.f32.gmra.mxu0 %v7730
    %v8518 = vpop.f32.mrf.mxu0
    %v8519 = vadd.f32 %v7297, %v8518
    %8520 = vmatmul.f32.gmra.mxu0 %v7733
    %v8521 = vpop.f32.mrf.mxu0
    %v8522 = vadd.f32 %v7297, %v8521
    %8523 = vmatmul.f32.gmra.mxu0 %v7736
    %v8524 = vpop.f32.mrf.mxu0
    %v8525 = vadd.f32 %v7297, %v8524
    %8526 = vmatmul.f32.gmra.mxu0 %v7739
    %v8527 = vpop.f32.mrf.mxu0
    %v8528 = vadd.f32 %v7297, %v8527
    %8529 = vmatmul.f32.gmra.mxu0 %v7742
    %v8530 = vpop.f32.mrf.mxu0
    %v8531 = vadd.f32 %v7297, %v8530
    %8532 = vmatmul.f32.gmra.mxu0 %v7745
    %v8533 = vpop.f32.mrf.mxu0
    %v8534 = vadd.f32 %v7297, %v8533
    %8535 = vmatmul.f32.gmra.mxu0 %v7748
    %v8536 = vpop.f32.mrf.mxu0
    %v8537 = vadd.f32 %v7297, %v8536
    %8538 = vmatmul.f32.gmra.mxu0 %v7751
    %v8539 = vpop.f32.mrf.mxu0
    %v8540 = vadd.f32 %v7297, %v8539
    %8541 = vmatmul.f32.gmra.mxu0 %v7754
    %v8542 = vpop.f32.mrf.mxu0
    %v8543 = vadd.f32 %v7297, %v8542
    %8544 = vmatmul.f32.gmra.mxu0 %v7757
    %v8545 = vpop.f32.mrf.mxu0
    %v8546 = vadd.f32 %v7297, %v8545
    %8547 = vmatmul.f32.gmra.mxu0 %v7760
    %v8548 = vpop.f32.mrf.mxu0
    %v8549 = vadd.f32 %v7297, %v8548
    %8550 = vmatmul.f32.gmra.mxu0 %v7763
    %v8551 = vpop.f32.mrf.mxu0
    %v8552 = vadd.f32 %v7297, %v8551
    %8553 = vmatmul.f32.gmra.mxu0 %v7766
    %v8554 = vpop.f32.mrf.mxu0
    %v8555 = vadd.f32 %v7297, %v8554
    %8556 = vmatmul.f32.gmra.mxu0 %v7769
    %v8557 = vpop.f32.mrf.mxu0
    %v8558 = vadd.f32 %v7297, %v8557
    %8559 = vmatmul.f32.gmra.mxu0 %v7772
    %v8560 = vpop.f32.mrf.mxu0
    %v8561 = vadd.f32 %v7297, %v8560
    %8562 = vmatmul.f32.gmra.mxu0 %v7775
    %v8563 = vpop.f32.mrf.mxu0
    %v8564 = vadd.f32 %v7297, %v8563
    %8565 = vmatmul.f32.gmra.mxu0 %v7778
    %v8566 = vpop.f32.mrf.mxu0
    %v8567 = vadd.f32 %v7297, %v8566
    %8568 = vmatmul.f32.gmra.mxu0 %v7781
    %v8569 = vpop.f32.mrf.mxu0
    %v8570 = vadd.f32 %v7297, %v8569
    %8571 = vmatmul.f32.gmra.mxu0 %v7784
    %v8572 = vpop.f32.mrf.mxu0
    %v8573 = vadd.f32 %v7297, %v8572
    %8574 = vmatmul.f32.gmra.mxu0 %v7787
    %v8575 = vpop.f32.mrf.mxu0
    %v8576 = vadd.f32 %v7297, %v8575
    %8577 = vmatmul.f32.gmra.mxu0 %v7790
    %v8578 = vpop.f32.mrf.mxu0
    %v8579 = vadd.f32 %v7297, %v8578
    %8580 = vmatmul.f32.gmra.mxu0 %v7793
    %v8581 = vpop.f32.mrf.mxu0
    %v8582 = vadd.f32 %v7297, %v8581
    %8583 = vmatmul.f32.gmra.mxu0 %v7796
    %v8584 = vpop.f32.mrf.mxu0
    %v8585 = vadd.f32 %v7297, %v8584
    %8586 = vmatmul.f32.gmra.mxu0 %v7799
    %v8587 = vpop.f32.mrf.mxu0
    %v8588 = vadd.f32 %v7297, %v8587
    %8589 = vmatmul.f32.gmra.mxu0 %v7802
    %v8590 = vpop.f32.mrf.mxu0
    %v8591 = vadd.f32 %v7297, %v8590
    %8592 = vmatmul.f32.gmra.mxu0 %v7805
    %v8593 = vpop.f32.mrf.mxu0
    %v8594 = vadd.f32 %v7297, %v8593
    %8595 = vmatmul.f32.gmra.mxu0 %v7808
    %v8596 = vpop.f32.mrf.mxu0
    %v8597 = vadd.f32 %v7297, %v8596
    %8598 = vmatmul.f32.gmra.mxu0 %v7811
    %v8599 = vpop.f32.mrf.mxu0
    %v8600 = vadd.f32 %v7297, %v8599
    %8601 = vmatmul.f32.gmra.mxu0 %v7814
    %v8602 = vpop.f32.mrf.mxu0
    %v8603 = vadd.f32 %v7297, %v8602
    %8604 = vmatmul.f32.gmra.mxu0 %v7817
    %v8605 = vpop.f32.mrf.mxu0
    %v8606 = vadd.f32 %v7297, %v8605
    %8607 = vmatmul.f32.gmra.mxu0 %v7820
    %v8608 = vpop.f32.mrf.mxu0
    %v8609 = vadd.f32 %v7297, %v8608
    %8610 = vmatmul.f32.gmra.mxu0 %v7823
    %v8611 = vpop.f32.mrf.mxu0
    %v8612 = vadd.f32 %v7297, %v8611
    %8613 = vmatmul.f32.gmra.mxu0 %v7826
    %v8614 = vpop.f32.mrf.mxu0
    %v8615 = vadd.f32 %v7297, %v8614
    %8616 = vmatmul.f32.gmra.mxu0 %v7829
    %v8617 = vpop.f32.mrf.mxu0
    %v8618 = vadd.f32 %v7297, %v8617
    %8619 = vmatmul.f32.gmra.mxu0 %v7832
    %v8620 = vpop.f32.mrf.mxu0
    %v8621 = vadd.f32 %v7297, %v8620
    %8622 = vmatmul.f32.gmra.mxu0 %v7835
    %v8623 = vpop.f32.mrf.mxu0
    %v8624 = vadd.f32 %v7297, %v8623
    %8625 = vmatmul.f32.gmra.mxu0 %v7838
    %v8626 = vpop.f32.mrf.mxu0
    %v8627 = vadd.f32 %v7297, %v8626
    %8628 = vmatmul.f32.gmra.mxu0 %v7841
    %v8629 = vpop.f32.mrf.mxu0
    %v8630 = vadd.f32 %v7297, %v8629
    %8631 = vmatmul.f32.gmra.mxu0 %v7844
    %v8632 = vpop.f32.mrf.mxu0
    %v8633 = vadd.f32 %v7297, %v8632
    %8634 = vmatmul.f32.gmra.mxu0 %v7847
    %v8635 = vpop.f32.mrf.mxu0
    %v8636 = vadd.f32 %v7297, %v8635
    %8637 = vmatmul.f32.gmra.mxu0 %v7850
    %v8638 = vpop.f32.mrf.mxu0
    %v8639 = vadd.f32 %v7297, %v8638
    %8640 = vmatmul.f32.gmra.mxu0 %v7853
    %v8641 = vpop.f32.mrf.mxu0
    %v8642 = vadd.f32 %v7297, %v8641
    %8643 = vmatmul.f32.gmra.mxu0 %v7856
    %v8644 = vpop.f32.mrf.mxu0
    %v8645 = vadd.f32 %v7297, %v8644
    %8646 = vmatmul.f32.gmra.mxu0 %v7859
    %v8647 = vpop.f32.mrf.mxu0
    %v8648 = vadd.f32 %v7297, %v8647
    %8649 = vmatmul.f32.gmra.mxu0 %v7862
    %v8650 = vpop.f32.mrf.mxu0
    %v8651 = vadd.f32 %v7297, %v8650
    %8652 = vmatmul.f32.gmra.mxu0 %v7865
    %v8653 = vpop.f32.mrf.mxu0
    %v8654 = vadd.f32 %v7297, %v8653
    %8655 = vmatmul.f32.gmra.mxu0 %v7868
    %v8656 = vpop.f32.mrf.mxu0
    %v8657 = vadd.f32 %v7297, %v8656
    %8658 = vmatmul.f32.gmra.mxu0 %v7871
    %v8659 = vpop.f32.mrf.mxu0
    %v8660 = vadd.f32 %v7297, %v8659
    %8661 = vmatmul.f32.gmra.mxu0 %v7874
    %v8662 = vpop.f32.mrf.mxu0
    %v8663 = vadd.f32 %v7297, %v8662
    %8664 = vmatmul.f32.gmra.mxu0 %v7877
    %v8665 = vpop.f32.mrf.mxu0
    %v8666 = vadd.f32 %v7297, %v8665
    %8667 = vmatmul.f32.gmra.mxu0 %v7880
    %v8668 = vpop.f32.mrf.mxu0
    %v8669 = vadd.f32 %v7297, %v8668
    %8670 = vmatmul.f32.gmra.mxu0 %v7883
    %v8671 = vpop.f32.mrf.mxu0
    %v8672 = vadd.f32 %v7297, %v8671
    %8673 = vmatmul.f32.gmra.mxu0 %v7886
    %v8674 = vpop.f32.mrf.mxu0
    %v8675 = vadd.f32 %v7297, %v8674
    %8676 = vmatmul.f32.gmra.mxu0 %v7889
    %v8677 = vpop.f32.mrf.mxu0
    %v8678 = vadd.f32 %v7297, %v8677
    %8679 = vmatmul.f32.gmra.mxu0 %v7892
    %v8680 = vpop.f32.mrf.mxu0
    %v8681 = vadd.f32 %v7297, %v8680
    %8682 = vmatmul.f32.gmra.mxu0 %v7895
    %v8683 = vpop.f32.mrf.mxu0
    %v8684 = vadd.f32 %v7297, %v8683
    %8685 = vmatmul.f32.gmra.mxu0 %v7898
    %v8686 = vpop.f32.mrf.mxu0
    %v8687 = vadd.f32 %v7297, %v8686
    %8688 = vmatmul.f32.gmra.mxu0 %v7901
    %v8689 = vpop.f32.mrf.mxu0
    %v8690 = vadd.f32 %v7297, %v8689
    %8691 = vmatmul.f32.gmra.mxu0 %v7904
    %v8692 = vpop.f32.mrf.mxu0
    %v8693 = vadd.f32 %v7297, %v8692
    %8694 = vmatmul.f32.gmra.mxu0 %v7907
    %v8695 = vpop.f32.mrf.mxu0
    %v8696 = vadd.f32 %v7297, %v8695
    %8697 = vmatmul.f32.gmra.mxu0 %v7910
    %v8698 = vpop.f32.mrf.mxu0
    %v8699 = vadd.f32 %v7297, %v8698
    %8700 = vmatmul.f32.gmra.mxu0 %v7913
    %v8701 = vpop.f32.mrf.mxu0
    %v8702 = vadd.f32 %v7297, %v8701
    %8703 = vmatmul.f32.gmra.mxu0 %v7916
    %v8704 = vpop.f32.mrf.mxu0
    %v8705 = vadd.f32 %v7297, %v8704
    %8706 = vmatmul.f32.gmra.mxu0 %v7919
    %v8707 = vpop.f32.mrf.mxu0
    %v8708 = vadd.f32 %v7297, %v8707
    %8709 = vmatmul.f32.gmra.mxu0 %v7922
    %v8710 = vpop.f32.mrf.mxu0
    %v8711 = vadd.f32 %v7297, %v8710
    %8712 = vmatmul.f32.gmra.mxu0 %v7925
    %v8713 = vpop.f32.mrf.mxu0
    %v8714 = vadd.f32 %v7297, %v8713
    %8715 = vmatmul.f32.gmra.mxu0 %v7928
    %v8716 = vpop.f32.mrf.mxu0
    %v8717 = vadd.f32 %v7297, %v8716
    %8718 = vmatmul.f32.gmra.mxu0 %v7931
    %v8719 = vpop.f32.mrf.mxu0
    %v8720 = vadd.f32 %v7297, %v8719
    %8721 = vmatmul.f32.gmra.mxu0 %v7934
    %v8722 = vpop.f32.mrf.mxu0
    %v8723 = vadd.f32 %v7297, %v8722
    %8724 = vmatmul.f32.gmra.mxu0 %v7937
    %v8725 = vpop.f32.mrf.mxu0
    %v8726 = vadd.f32 %v7297, %v8725
    %8727 = vmatmul.f32.gmra.mxu0 %v7940
    %v8728 = vpop.f32.mrf.mxu0
    %v8729 = vadd.f32 %v7297, %v8728
    %8730 = vmatmul.f32.gmra.mxu0 %v7943
    %v8731 = vpop.f32.mrf.mxu0
    %v8732 = vadd.f32 %v7297, %v8731
    %8733 = vmatmul.f32.gmra.mxu0 %v7946
    %v8734 = vpop.f32.mrf.mxu0
    %v8735 = vadd.f32 %v7297, %v8734
    %8736 = vmatmul.f32.gmra.mxu0 %v7949
    %v8737 = vpop.f32.mrf.mxu0
    %v8738 = vadd.f32 %v7297, %v8737
    %8739 = vmatmul.f32.gmra.mxu0 %v7952
    %v8740 = vpop.f32.mrf.mxu0
    %v8741 = vadd.f32 %v7297, %v8740
    %8742 = vmatmul.f32.gmra.mxu0 %v7955
    %v8743 = vpop.f32.mrf.mxu0
    %v8744 = vadd.f32 %v7297, %v8743
    %8745 = vmatmul.f32.gmra.mxu0 %v7958
    %v8746 = vpop.f32.mrf.mxu0
    %v8747 = vadd.f32 %v7297, %v8746
    %8748 = vmatmul.f32.gmra.mxu0 %v7961
    %v8749 = vpop.f32.mrf.mxu0
    %v8750 = vadd.f32 %v7297, %v8749
    %8751 = vmatmul.f32.gmra.mxu0 %v7964
    %v8752 = vpop.f32.mrf.mxu0
    %v8753 = vadd.f32 %v7297, %v8752
    %8754 = vmatmul.f32.gmra.mxu0 %v7967
    %v8755 = vpop.f32.mrf.mxu0
    %v8756 = vadd.f32 %v7297, %v8755
    %8757 = vmatmul.f32.gmra.mxu0 %v7970
    %v8758 = vpop.f32.mrf.mxu0
    %v8759 = vadd.f32 %v7297, %v8758
    %8760 = vmatmul.f32.gmra.mxu0 %v7973
    %v8761 = vpop.f32.mrf.mxu0
    %v8762 = vadd.f32 %v7297, %v8761
    %8763 = vmatmul.f32.gmra.mxu0 %v7976
    %v8764 = vpop.f32.mrf.mxu0
    %v8765 = vadd.f32 %v7297, %v8764
    %8766 = vmatmul.f32.gmra.mxu0 %v7979
    %v8767 = vpop.f32.mrf.mxu0
    %v8768 = vadd.f32 %v7297, %v8767
    %8769 = vmatmul.f32.gmra.mxu0 %v7982
    %v8770 = vpop.f32.mrf.mxu0
    %v8771 = vadd.f32 %v7297, %v8770
    %8772 = vmatmul.f32.gmra.mxu0 %v7985
    %v8773 = vpop.f32.mrf.mxu0
    %v8774 = vadd.f32 %v7297, %v8773
    %8775 = vmatmul.f32.gmra.mxu0 %v7988
    %v8776 = vpop.f32.mrf.mxu0
    %v8777 = vadd.f32 %v7297, %v8776
    %8778 = vmatmul.f32.gmra.mxu0 %v7991
    %v8779 = vpop.f32.mrf.mxu0
    %v8780 = vadd.f32 %v7297, %v8779
    %8781 = vmatmul.f32.gmra.mxu0 %v7994
    %v8782 = vpop.f32.mrf.mxu0
    %v8783 = vadd.f32 %v7297, %v8782
    %8784 = vmatmul.f32.gmra.mxu0 %v7997
    %v8785 = vpop.f32.mrf.mxu0
    %v8786 = vadd.f32 %v7297, %v8785
    %8787 = vmatmul.f32.gmra.mxu0 %v8000
    %v8788 = vpop.f32.mrf.mxu0
    %v8789 = vadd.f32 %v7297, %v8788
    %8790 = vmatmul.f32.gmra.mxu0 %v8003
    %v8791 = vpop.f32.mrf.mxu0
    %v8792 = vadd.f32 %v7297, %v8791
    %8793 = vmatmul.f32.gmra.mxu0 %v8006
    %v8794 = vpop.f32.mrf.mxu0
    %v8795 = vadd.f32 %v7297, %v8794
    %8796 = vmatmul.f32.gmra.mxu0 %v8009
    %v8797 = vpop.f32.mrf.mxu0
    %v8798 = vadd.f32 %v7297, %v8797
    %8799 = vmatmul.f32.gmra.mxu0 %v8012
    %v8800 = vpop.f32.mrf.mxu0
    %v8801 = vadd.f32 %v7297, %v8800
    %8802 = vmatmul.f32.gmra.mxu0 %v8015
    %v8803 = vpop.f32.mrf.mxu0
    %v8804 = vadd.f32 %v7297, %v8803
    %8805 = vmatmul.f32.gmra.mxu0 %v8018
    %v8806 = vpop.f32.mrf.mxu0
    %v8807 = vadd.f32 %v7297, %v8806
    %8808 = vmatmul.f32.gmra.mxu0 %v8021
    %v8809 = vpop.f32.mrf.mxu0
    %v8810 = vadd.f32 %v7297, %v8809
    %8811 = vmatmul.f32.gmra.mxu0 %v8024
    %v8812 = vpop.f32.mrf.mxu0
    %v8813 = vadd.f32 %v7297, %v8812
    %8814 = vmatmul.f32.gmra.mxu0 %v8027
    %v8815 = vpop.f32.mrf.mxu0
    %v8816 = vadd.f32 %v7297, %v8815
    %8817 = vmatmul.f32.gmra.mxu0 %v8030
    %v8818 = vpop.f32.mrf.mxu0
    %v8819 = vadd.f32 %v7297, %v8818
    %8820 = vmatmul.f32.gmra.mxu0 %v8033
    %v8821 = vpop.f32.mrf.mxu0
    %v8822 = vadd.f32 %v7297, %v8821
    %8823 = vmatmul.f32.gmra.mxu0 %v8036
    %v8824 = vpop.f32.mrf.mxu0
    %v8825 = vadd.f32 %v7297, %v8824
    %8826 = vmatmul.f32.gmra.mxu0 %v8039
    %v8827 = vpop.f32.mrf.mxu0
    %v8828 = vadd.f32 %v7297, %v8827
    %8829 = vmatmul.f32.gmra.mxu0 %v8042
    %v8830 = vpop.f32.mrf.mxu0
    %v8831 = vadd.f32 %v7297, %v8830
    %8832 = vmatmul.f32.gmra.mxu0 %v8045
    %v8833 = vpop.f32.mrf.mxu0
    %v8834 = vadd.f32 %v7297, %v8833
    %8835 = vmatmul.f32.gmra.mxu0 %v8048
    %v8836 = vpop.f32.mrf.mxu0
    %v8837 = vadd.f32 %v7297, %v8836
    %8838 = vmatmul.f32.gmra.mxu0 %v8051
    %v8839 = vpop.f32.mrf.mxu0
    %v8840 = vadd.f32 %v7297, %v8839
    %8841 = vmatmul.f32.gmra.mxu0 %v8054
    %v8842 = vpop.f32.mrf.mxu0
    %v8843 = vadd.f32 %v7297, %v8842
    %8844 = vmatmul.f32.gmra.mxu0 %v8057
    %v8845 = vpop.f32.mrf.mxu0
    %v8846 = vadd.f32 %v7297, %v8845
    %8847 = vmatmul.f32.gmra.mxu0 %v8060
    %v8848 = vpop.f32.mrf.mxu0
    %v8849 = vadd.f32 %v7297, %v8848
    %8850 = vmatmul.f32.gmra.mxu0 %v8063
    %v8851 = vpop.f32.mrf.mxu0
    %v8852 = vadd.f32 %v7297, %v8851
    %8853 = vmatmul.f32.gmra.mxu0 %v8066
    %v8854 = vpop.f32.mrf.mxu0
    %v8855 = vadd.f32 %v7297, %v8854
    %8856 = vdwg.mxu0
    %vm8857 = vcmask 326656
    %v8858 = vsel %vm8857, %v8090, -inf
    %v8859 = vsel %vm8857, %v8096, -inf
    %v8860 = vmax.f32 %v8858, %v8859
    %v8861 = vsel %vm8857, %v8093, -inf
    %v8862 = vsel %vm8857, %v8099, -inf
    %v8863 = vmax.f32 %v8861, %v8862
    %v8864 = vsel %vm8857, %v8102, -inf
    %v8865 = vsel %vm8857, %v8108, -inf
    %v8866 = vmax.f32 %v8864, %v8865
    %v8867 = vsel %vm8857, %v8105, -inf
    %v8868 = vsel %vm8857, %v8111, -inf
    %v8869 = vmax.f32 %v8867, %v8868
    %v8870 = vsel %vm8857, %v8114, -inf
    %v8871 = vsel %vm8857, %v8120, -inf
    %v8872 = vmax.f32 %v8870, %v8871
    %v8873 = vsel %vm8857, %v8117, -inf
    %v8874 = vsel %vm8857, %v8123, -inf
    %v8875 = vmax.f32 %v8873, %v8874
    %v8876 = vsel %vm8857, %v8126, -inf
    %v8877 = vsel %vm8857, %v8132, -inf
    %v8878 = vmax.f32 %v8876, %v8877
    %v8879 = vsel %vm8857, %v8129, -inf
    %v8880 = vsel %vm8857, %v8135, -inf
    %v8881 = vmax.f32 %v8879, %v8880
    %v8882 = vsel %vm8857, %v8138, -inf
    %v8883 = vsel %vm8857, %v8144, -inf
    %v8884 = vmax.f32 %v8882, %v8883
    %v8885 = vsel %vm8857, %v8141, -inf
    %v8886 = vsel %vm8857, %v8147, -inf
    %v8887 = vmax.f32 %v8885, %v8886
    %v8888 = vsel %vm8857, %v8150, -inf
    %v8889 = vsel %vm8857, %v8156, -inf
    %v8890 = vmax.f32 %v8888, %v8889
    %v8891 = vsel %vm8857, %v8153, -inf
    %v8892 = vsel %vm8857, %v8159, -inf
    %v8893 = vmax.f32 %v8891, %v8892
    %v8894 = vsel %vm8857, %v8162, -inf
    %v8895 = vsel %vm8857, %v8168, -inf
    %v8896 = vmax.f32 %v8894, %v8895
    %v8897 = vsel %vm8857, %v8165, -inf
    %v8898 = vsel %vm8857, %v8171, -inf
    %v8899 = vmax.f32 %v8897, %v8898
    %v8900 = vsel %vm8857, %v8174, -inf
    %v8901 = vsel %vm8857, %v8180, -inf
    %v8902 = vmax.f32 %v8900, %v8901
    %v8903 = vsel %vm8857, %v8177, -inf
    %v8904 = vsel %vm8857, %v8183, -inf
    %v8905 = vmax.f32 %v8903, %v8904
    %v8906 = vsel %vm8857, %v8186, -inf
    %v8907 = vsel %vm8857, %v8192, -inf
    %v8908 = vmax.f32 %v8906, %v8907
    %v8909 = vsel %vm8857, %v8189, -inf
    %v8910 = vsel %vm8857, %v8195, -inf
    %v8911 = vmax.f32 %v8909, %v8910
    %v8912 = vsel %vm8857, %v8198, -inf
    %v8913 = vsel %vm8857, %v8204, -inf
    %v8914 = vmax.f32 %v8912, %v8913
    %v8915 = vsel %vm8857, %v8201, -inf
    %v8916 = vsel %vm8857, %v8207, -inf
    %v8917 = vmax.f32 %v8915, %v8916
    %v8918 = vsel %vm8857, %v8210, -inf
    %v8919 = vsel %vm8857, %v8216, -inf
    %v8920 = vmax.f32 %v8918, %v8919
    %v8921 = vsel %vm8857, %v8213, -inf
    %v8922 = vsel %vm8857, %v8219, -inf
    %v8923 = vmax.f32 %v8921, %v8922
    %v8924 = vsel %vm8857, %v8222, -inf
    %v8925 = vsel %vm8857, %v8228, -inf
    %v8926 = vmax.f32 %v8924, %v8925
    %v8927 = vsel %vm8857, %v8225, -inf
    %v8928 = vsel %vm8857, %v8231, -inf
    %v8929 = vmax.f32 %v8927, %v8928
    %v8930 = vsel %vm8857, %v8234, -inf
    %v8931 = vsel %vm8857, %v8240, -inf
    %v8932 = vmax.f32 %v8930, %v8931
    %v8933 = vsel %vm8857, %v8237, -inf
    %v8934 = vsel %vm8857, %v8243, -inf
    %v8935 = vmax.f32 %v8933, %v8934
    %v8936 = vsel %vm8857, %v8246, -inf
    %v8937 = vsel %vm8857, %v8252, -inf
    %v8938 = vmax.f32 %v8936, %v8937
    %v8939 = vsel %vm8857, %v8249, -inf
    %v8940 = vsel %vm8857, %v8255, -inf
    %v8941 = vmax.f32 %v8939, %v8940
    %v8942 = vsel %vm8857, %v8258, -inf
    %v8943 = vsel %vm8857, %v8264, -inf
    %v8944 = vmax.f32 %v8942, %v8943
    %v8945 = vsel %vm8857, %v8261, -inf
    %v8946 = vsel %vm8857, %v8267, -inf
    %v8947 = vmax.f32 %v8945, %v8946
    %v8948 = vsel %vm8857, %v8270, -inf
    %v8949 = vsel %vm8857, %v8276, -inf
    %v8950 = vmax.f32 %v8948, %v8949
    %v8951 = vsel %vm8857, %v8273, -inf
    %v8952 = vsel %vm8857, %v8279, -inf
    %v8953 = vmax.f32 %v8951, %v8952
    %v8954 = vsel %vm8857, %v8282, -inf
    %v8955 = vsel %vm8857, %v8288, -inf
    %v8956 = vmax.f32 %v8954, %v8955
    %v8957 = vsel %vm8857, %v8285, -inf
    %v8958 = vsel %vm8857, %v8291, -inf
    %v8959 = vmax.f32 %v8957, %v8958
    %v8960 = vsel %vm8857, %v8294, -inf
    %v8961 = vsel %vm8857, %v8300, -inf
    %v8962 = vmax.f32 %v8960, %v8961
    %v8963 = vsel %vm8857, %v8297, -inf
    %v8964 = vsel %vm8857, %v8303, -inf
    %v8965 = vmax.f32 %v8963, %v8964
    %v8966 = vsel %vm8857, %v8306, -inf
    %v8967 = vsel %vm8857, %v8312, -inf
    %v8968 = vmax.f32 %v8966, %v8967
    %v8969 = vsel %vm8857, %v8309, -inf
    %v8970 = vsel %vm8857, %v8315, -inf
    %v8971 = vmax.f32 %v8969, %v8970
    %v8972 = vsel %vm8857, %v8318, -inf
    %v8973 = vsel %vm8857, %v8324, -inf
    %v8974 = vmax.f32 %v8972, %v8973
    %v8975 = vsel %vm8857, %v8321, -inf
    %v8976 = vsel %vm8857, %v8327, -inf
    %v8977 = vmax.f32 %v8975, %v8976
    %v8978 = vsel %vm8857, %v8330, -inf
    %v8979 = vsel %vm8857, %v8336, -inf
    %v8980 = vmax.f32 %v8978, %v8979
    %v8981 = vsel %vm8857, %v8333, -inf
    %v8982 = vsel %vm8857, %v8339, -inf
    %v8983 = vmax.f32 %v8981, %v8982
    %v8984 = vsel %vm8857, %v8342, -inf
    %v8985 = vsel %vm8857, %v8348, -inf
    %v8986 = vmax.f32 %v8984, %v8985
    %v8987 = vsel %vm8857, %v8345, -inf
    %v8988 = vsel %vm8857, %v8351, -inf
    %v8989 = vmax.f32 %v8987, %v8988
    %v8990 = vsel %vm8857, %v8354, -inf
    %v8991 = vsel %vm8857, %v8360, -inf
    %v8992 = vmax.f32 %v8990, %v8991
    %v8993 = vsel %vm8857, %v8357, -inf
    %v8994 = vsel %vm8857, %v8363, -inf
    %v8995 = vmax.f32 %v8993, %v8994
    %v8996 = vsel %vm8857, %v8366, -inf
    %v8997 = vsel %vm8857, %v8372, -inf
    %v8998 = vmax.f32 %v8996, %v8997
    %v8999 = vsel %vm8857, %v8369, -inf
    %v9000 = vsel %vm8857, %v8375, -inf
    %v9001 = vmax.f32 %v8999, %v9000
    %v9002 = vsel %vm8857, %v8378, -inf
    %v9003 = vsel %vm8857, %v8384, -inf
    %v9004 = vmax.f32 %v9002, %v9003
    %v9005 = vsel %vm8857, %v8381, -inf
    %v9006 = vsel %vm8857, %v8387, -inf
    %v9007 = vmax.f32 %v9005, %v9006
    %v9008 = vsel %vm8857, %v8390, -inf
    %v9009 = vsel %vm8857, %v8396, -inf
    %v9010 = vmax.f32 %v9008, %v9009
    %v9011 = vsel %vm8857, %v8393, -inf
    %v9012 = vsel %vm8857, %v8399, -inf
    %v9013 = vmax.f32 %v9011, %v9012
    %v9014 = vsel %vm8857, %v8402, -inf
    %v9015 = vsel %vm8857, %v8408, -inf
    %v9016 = vmax.f32 %v9014, %v9015
    %v9017 = vsel %vm8857, %v8405, -inf
    %v9018 = vsel %vm8857, %v8411, -inf
    %v9019 = vmax.f32 %v9017, %v9018
    %v9020 = vsel %vm8857, %v8414, -inf
    %v9021 = vsel %vm8857, %v8420, -inf
    %v9022 = vmax.f32 %v9020, %v9021
    %v9023 = vsel %vm8857, %v8417, -inf
    %v9024 = vsel %vm8857, %v8423, -inf
    %v9025 = vmax.f32 %v9023, %v9024
    %v9026 = vsel %vm8857, %v8426, -inf
    %v9027 = vsel %vm8857, %v8432, -inf
    %v9028 = vmax.f32 %v9026, %v9027
    %v9029 = vsel %vm8857, %v8429, -inf
    %v9030 = vsel %vm8857, %v8435, -inf
    %v9031 = vmax.f32 %v9029, %v9030
    %v9032 = vsel %vm8857, %v8438, -inf
    %v9033 = vsel %vm8857, %v8444, -inf
    %v9034 = vmax.f32 %v9032, %v9033
    %v9035 = vsel %vm8857, %v8441, -inf
    %v9036 = vsel %vm8857, %v8447, -inf
    %v9037 = vmax.f32 %v9035, %v9036
    %v9038 = vsel %vm8857, %v8450, -inf
    %v9039 = vsel %vm8857, %v8456, -inf
    %v9040 = vmax.f32 %v9038, %v9039
    %v9041 = vsel %vm8857, %v8453, -inf
    %v9042 = vsel %vm8857, %v8459, -inf
    %v9043 = vmax.f32 %v9041, %v9042
    %v9044 = vsel %vm8857, %v8462, -inf
    %v9045 = vsel %vm8857, %v8468, -inf
    %v9046 = vmax.f32 %v9044, %v9045
    %v9047 = vsel %vm8857, %v8465, -inf
    %v9048 = vsel %vm8857, %v8471, -inf
    %v9049 = vmax.f32 %v9047, %v9048
    %v9050 = vsel %vm8857, %v8474, -inf
    %v9051 = vsel %vm8857, %v8480, -inf
    %v9052 = vmax.f32 %v9050, %v9051
    %v9053 = vsel %vm8857, %v8477, -inf
    %v9054 = vsel %vm8857, %v8483, -inf
    %v9055 = vmax.f32 %v9053, %v9054
    %v9056 = vsel %vm8857, %v8486, -inf
    %v9057 = vsel %vm8857, %v8492, -inf
    %v9058 = vmax.f32 %v9056, %v9057
    %v9059 = vsel %vm8857, %v8489, -inf
    %v9060 = vsel %vm8857, %v8495, -inf
    %v9061 = vmax.f32 %v9059, %v9060
    %v9062 = vsel %vm8857, %v8498, -inf
    %v9063 = vsel %vm8857, %v8504, -inf
    %v9064 = vmax.f32 %v9062, %v9063
    %v9065 = vsel %vm8857, %v8501, -inf
    %v9066 = vsel %vm8857, %v8507, -inf
    %v9067 = vmax.f32 %v9065, %v9066
    %v9068 = vsel %vm8857, %v8510, -inf
    %v9069 = vsel %vm8857, %v8516, -inf
    %v9070 = vmax.f32 %v9068, %v9069
    %v9071 = vsel %vm8857, %v8513, -inf
    %v9072 = vsel %vm8857, %v8519, -inf
    %v9073 = vmax.f32 %v9071, %v9072
    %v9074 = vsel %vm8857, %v8522, -inf
    %v9075 = vsel %vm8857, %v8528, -inf
    %v9076 = vmax.f32 %v9074, %v9075
    %v9077 = vsel %vm8857, %v8525, -inf
    %v9078 = vsel %vm8857, %v8531, -inf
    %v9079 = vmax.f32 %v9077, %v9078
    %v9080 = vsel %vm8857, %v8534, -inf
    %v9081 = vsel %vm8857, %v8540, -inf
    %v9082 = vmax.f32 %v9080, %v9081
    %v9083 = vsel %vm8857, %v8537, -inf
    %v9084 = vsel %vm8857, %v8543, -inf
    %v9085 = vmax.f32 %v9083, %v9084
    %v9086 = vsel %vm8857, %v8546, -inf
    %v9087 = vsel %vm8857, %v8552, -inf
    %v9088 = vmax.f32 %v9086, %v9087
    %v9089 = vsel %vm8857, %v8549, -inf
    %v9090 = vsel %vm8857, %v8555, -inf
    %v9091 = vmax.f32 %v9089, %v9090
    %v9092 = vsel %vm8857, %v8558, -inf
    %v9093 = vsel %vm8857, %v8564, -inf
    %v9094 = vmax.f32 %v9092, %v9093
    %v9095 = vsel %vm8857, %v8561, -inf
    %v9096 = vsel %vm8857, %v8567, -inf
    %v9097 = vmax.f32 %v9095, %v9096
    %v9098 = vsel %vm8857, %v8570, -inf
    %v9099 = vsel %vm8857, %v8576, -inf
    %v9100 = vmax.f32 %v9098, %v9099
    %v9101 = vsel %vm8857, %v8573, -inf
    %v9102 = vsel %vm8857, %v8579, -inf
    %v9103 = vmax.f32 %v9101, %v9102
    %v9104 = vsel %vm8857, %v8582, -inf
    %v9105 = vsel %vm8857, %v8588, -inf
    %v9106 = vmax.f32 %v9104, %v9105
    %v9107 = vsel %vm8857, %v8585, -inf
    %v9108 = vsel %vm8857, %v8591, -inf
    %v9109 = vmax.f32 %v9107, %v9108
    %v9110 = vsel %vm8857, %v8594, -inf
    %v9111 = vsel %vm8857, %v8600, -inf
    %v9112 = vmax.f32 %v9110, %v9111
    %v9113 = vsel %vm8857, %v8597, -inf
    %v9114 = vsel %vm8857, %v8603, -inf
    %v9115 = vmax.f32 %v9113, %v9114
    %v9116 = vsel %vm8857, %v8606, -inf
    %v9117 = vsel %vm8857, %v8612, -inf
    %v9118 = vmax.f32 %v9116, %v9117
    %v9119 = vsel %vm8857, %v8609, -inf
    %v9120 = vsel %vm8857, %v8615, -inf
    %v9121 = vmax.f32 %v9119, %v9120
    %v9122 = vsel %vm8857, %v8618, -inf
    %v9123 = vsel %vm8857, %v8624, -inf
    %v9124 = vmax.f32 %v9122, %v9123
    %v9125 = vsel %vm8857, %v8621, -inf
    %v9126 = vsel %vm8857, %v8627, -inf
    %v9127 = vmax.f32 %v9125, %v9126
    %v9128 = vsel %vm8857, %v8630, -inf
    %v9129 = vsel %vm8857, %v8636, -inf
    %v9130 = vmax.f32 %v9128, %v9129
    %v9131 = vsel %vm8857, %v8633, -inf
    %v9132 = vsel %vm8857, %v8639, -inf
    %v9133 = vmax.f32 %v9131, %v9132
    %v9134 = vsel %vm8857, %v8642, -inf
    %v9135 = vsel %vm8857, %v8648, -inf
    %v9136 = vmax.f32 %v9134, %v9135
    %v9137 = vsel %vm8857, %v8645, -inf
    %v9138 = vsel %vm8857, %v8651, -inf
    %v9139 = vmax.f32 %v9137, %v9138
    %v9140 = vsel %vm8857, %v8654, -inf
    %v9141 = vsel %vm8857, %v8660, -inf
    %v9142 = vmax.f32 %v9140, %v9141
    %v9143 = vsel %vm8857, %v8657, -inf
    %v9144 = vsel %vm8857, %v8663, -inf
    %v9145 = vmax.f32 %v9143, %v9144
    %v9146 = vsel %vm8857, %v8666, -inf
    %v9147 = vsel %vm8857, %v8672, -inf
    %v9148 = vmax.f32 %v9146, %v9147
    %v9149 = vsel %vm8857, %v8669, -inf
    %v9150 = vsel %vm8857, %v8675, -inf
    %v9151 = vmax.f32 %v9149, %v9150
    %v9152 = vsel %vm8857, %v8678, -inf
    %v9153 = vsel %vm8857, %v8684, -inf
    %v9154 = vmax.f32 %v9152, %v9153
    %v9155 = vsel %vm8857, %v8681, -inf
    %v9156 = vsel %vm8857, %v8687, -inf
    %v9157 = vmax.f32 %v9155, %v9156
    %v9158 = vsel %vm8857, %v8690, -inf
    %v9159 = vsel %vm8857, %v8696, -inf
    %v9160 = vmax.f32 %v9158, %v9159
    %v9161 = vsel %vm8857, %v8693, -inf
    %v9162 = vsel %vm8857, %v8699, -inf
    %v9163 = vmax.f32 %v9161, %v9162
    %v9164 = vsel %vm8857, %v8702, -inf
    %v9165 = vsel %vm8857, %v8708, -inf
    %v9166 = vmax.f32 %v9164, %v9165
    %v9167 = vsel %vm8857, %v8705, -inf
    %v9168 = vsel %vm8857, %v8711, -inf
    %v9169 = vmax.f32 %v9167, %v9168
    %v9170 = vsel %vm8857, %v8714, -inf
    %v9171 = vsel %vm8857, %v8720, -inf
    %v9172 = vmax.f32 %v9170, %v9171
    %v9173 = vsel %vm8857, %v8717, -inf
    %v9174 = vsel %vm8857, %v8723, -inf
    %v9175 = vmax.f32 %v9173, %v9174
    %v9176 = vsel %vm8857, %v8726, -inf
    %v9177 = vsel %vm8857, %v8732, -inf
    %v9178 = vmax.f32 %v9176, %v9177
    %v9179 = vsel %vm8857, %v8729, -inf
    %v9180 = vsel %vm8857, %v8735, -inf
    %v9181 = vmax.f32 %v9179, %v9180
    %v9182 = vsel %vm8857, %v8738, -inf
    %v9183 = vsel %vm8857, %v8744, -inf
    %v9184 = vmax.f32 %v9182, %v9183
    %v9185 = vsel %vm8857, %v8741, -inf
    %v9186 = vsel %vm8857, %v8747, -inf
    %v9187 = vmax.f32 %v9185, %v9186
    %v9188 = vsel %vm8857, %v8750, -inf
    %v9189 = vsel %vm8857, %v8756, -inf
    %v9190 = vmax.f32 %v9188, %v9189
    %v9191 = vsel %vm8857, %v8753, -inf
    %v9192 = vsel %vm8857, %v8759, -inf
    %v9193 = vmax.f32 %v9191, %v9192
    %v9194 = vsel %vm8857, %v8762, -inf
    %v9195 = vsel %vm8857, %v8768, -inf
    %v9196 = vmax.f32 %v9194, %v9195
    %v9197 = vsel %vm8857, %v8765, -inf
    %v9198 = vsel %vm8857, %v8771, -inf
    %v9199 = vmax.f32 %v9197, %v9198
    %v9200 = vsel %vm8857, %v8774, -inf
    %v9201 = vsel %vm8857, %v8780, -inf
    %v9202 = vmax.f32 %v9200, %v9201
    %v9203 = vsel %vm8857, %v8777, -inf
    %v9204 = vsel %vm8857, %v8783, -inf
    %v9205 = vmax.f32 %v9203, %v9204
    %v9206 = vsel %vm8857, %v8786, -inf
    %v9207 = vsel %vm8857, %v8792, -inf
    %v9208 = vmax.f32 %v9206, %v9207
    %v9209 = vsel %vm8857, %v8789, -inf
    %v9210 = vsel %vm8857, %v8795, -inf
    %v9211 = vmax.f32 %v9209, %v9210
    %v9212 = vsel %vm8857, %v8798, -inf
    %v9213 = vsel %vm8857, %v8804, -inf
    %v9214 = vmax.f32 %v9212, %v9213
    %v9215 = vsel %vm8857, %v8801, -inf
    %v9216 = vsel %vm8857, %v8807, -inf
    %v9217 = vmax.f32 %v9215, %v9216
    %v9218 = vsel %vm8857, %v8810, -inf
    %v9219 = vsel %vm8857, %v8816, -inf
    %v9220 = vmax.f32 %v9218, %v9219
    %v9221 = vsel %vm8857, %v8813, -inf
    %v9222 = vsel %vm8857, %v8819, -inf
    %v9223 = vmax.f32 %v9221, %v9222
    %v9224 = vsel %vm8857, %v8822, -inf
    %v9225 = vsel %vm8857, %v8828, -inf
    %v9226 = vmax.f32 %v9224, %v9225
    %v9227 = vsel %vm8857, %v8825, -inf
    %v9228 = vsel %vm8857, %v8831, -inf
    %v9229 = vmax.f32 %v9227, %v9228
    %v9230 = vsel %vm8857, %v8834, -inf
    %v9231 = vsel %vm8857, %v8840, -inf
    %v9232 = vmax.f32 %v9230, %v9231
    %v9233 = vsel %vm8857, %v8837, -inf
    %v9234 = vsel %vm8857, %v8843, -inf
    %v9235 = vmax.f32 %v9233, %v9234
    %v9236 = vsel %vm8857, %v8846, -inf
    %v9237 = vsel %vm8857, %v8852, -inf
    %v9238 = vmax.f32 %v9236, %v9237
    %v9239 = vsel %vm8857, %v8849, -inf
    %v9240 = vsel %vm8857, %v8855, -inf
    %v9241 = vmax.f32 %v9239, %v9240
    %9242 = vst.msk [vmem:[#allocation2] sm:$0xff] %vm8857, %v8860
    %9243 = vst.msk [vmem:[#allocation2 + $0x8] sm:$0xff] %vm8857, %v8863
    %9244 = vst.msk [vmem:[#allocation2 + $0x10] sm:$0xff] %vm8857, %v8866
    %9245 = vst.msk [vmem:[#allocation2 + $0x18] sm:$0xff] %vm8857, %v8869
    %9246 = vst.msk [vmem:[#allocation2 + $0x20] sm:$0xff] %vm8857, %v8872
    %9247 = vst.msk [vmem:[#allocation2 + $0x28] sm:$0xff] %vm8857, %v8875
    %9248 = vst.msk [vmem:[#allocation2 + $0x30] sm:$0xff] %vm8857, %v8878
    %9249 = vst.msk [vmem:[#allocation2 + $0x38] sm:$0xff] %vm8857, %v8881
    %9250 = vst.msk [vmem:[#allocation2 + $0x40] sm:$0xff] %vm8857, %v8884
    %9251 = vst.msk [vmem:[#allocation2 + $0x48] sm:$0xff] %vm8857, %v8887
    %9252 = vst.msk [vmem:[#allocation2 + $0x50] sm:$0xff] %vm8857, %v8890
    %9253 = vst.msk [vmem:[#allocation2 + $0x58] sm:$0xff] %vm8857, %v8893
    %9254 = vst.msk [vmem:[#allocation2 + $0x60] sm:$0xff] %vm8857, %v8896
    %9255 = vst.msk [vmem:[#allocation2 + $0x68] sm:$0xff] %vm8857, %v8899
    %9256 = vst.msk [vmem:[#allocation2 + $0x70] sm:$0xff] %vm8857, %v8902
    %9257 = vst.msk [vmem:[#allocation2 + $0x78] sm:$0xff] %vm8857, %v8905
    %9258 = vst.msk [vmem:[#allocation2 + $0x80] sm:$0xff] %vm8857, %v8908
    %9259 = vst.msk [vmem:[#allocation2 + $0x88] sm:$0xff] %vm8857, %v8911
    %9260 = vst.msk [vmem:[#allocation2 + $0x90] sm:$0xff] %vm8857, %v8914
    %9261 = vst.msk [vmem:[#allocation2 + $0x98] sm:$0xff] %vm8857, %v8917
    %9262 = vst.msk [vmem:[#allocation2 + $0xa0] sm:$0xff] %vm8857, %v8920
    %9263 = vst.msk [vmem:[#allocation2 + $0xa8] sm:$0xff] %vm8857, %v8923
    %9264 = vst.msk [vmem:[#allocation2 + $0xb0] sm:$0xff] %vm8857, %v8926
    %9265 = vst.msk [vmem:[#allocation2 + $0xb8] sm:$0xff] %vm8857, %v8929
    %9266 = vst.msk [vmem:[#allocation2 + $0xc0] sm:$0xff] %vm8857, %v8932
    %9267 = vst.msk [vmem:[#allocation2 + $0xc8] sm:$0xff] %vm8857, %v8935
    %9268 = vst.msk [vmem:[#allocation2 + $0xd0] sm:$0xff] %vm8857, %v8938
    %9269 = vst.msk [vmem:[#allocation2 + $0xd8] sm:$0xff] %vm8857, %v8941
    %9270 = vst.msk [vmem:[#allocation2 + $0xe0] sm:$0xff] %vm8857, %v8944
    %9271 = vst.msk [vmem:[#allocation2 + $0xe8] sm:$0xff] %vm8857, %v8947
    %9272 = vst.msk [vmem:[#allocation2 + $0xf0] sm:$0xff] %vm8857, %v8950
    %9273 = vst.msk [vmem:[#allocation2 + $0xf8] sm:$0xff] %vm8857, %v8953
    %9274 = vst.msk [vmem:[#allocation2 + $0x100] sm:$0xff] %vm8857, %v8956
    %9275 = vst.msk [vmem:[#allocation2 + $0x108] sm:$0xff] %vm8857, %v8959
    %9276 = vst.msk [vmem:[#allocation2 + $0x110] sm:$0xff] %vm8857, %v8962
    %9277 = vst.msk [vmem:[#allocation2 + $0x118] sm:$0xff] %vm8857, %v8965
    %9278 = vst.msk [vmem:[#allocation2 + $0x120] sm:$0xff] %vm8857, %v8968
    %9279 = vst.msk [vmem:[#allocation2 + $0x128] sm:$0xff] %vm8857, %v8971
    %9280 = vst.msk [vmem:[#allocation2 + $0x130] sm:$0xff] %vm8857, %v8974
    %9281 = vst.msk [vmem:[#allocation2 + $0x138] sm:$0xff] %vm8857, %v8977
    %9282 = vst.msk [vmem:[#allocation2 + $0x140] sm:$0xff] %vm8857, %v8980
    %9283 = vst.msk [vmem:[#allocation2 + $0x148] sm:$0xff] %vm8857, %v8983
    %9284 = vst.msk [vmem:[#allocation2 + $0x150] sm:$0xff] %vm8857, %v8986
    %9285 = vst.msk [vmem:[#allocation2 + $0x158] sm:$0xff] %vm8857, %v8989
    %9286 = vst.msk [vmem:[#allocation2 + $0x160] sm:$0xff] %vm8857, %v8992
    %9287 = vst.msk [vmem:[#allocation2 + $0x168] sm:$0xff] %vm8857, %v8995
    %9288 = vst.msk [vmem:[#allocation2 + $0x170] sm:$0xff] %vm8857, %v8998
    %9289 = vst.msk [vmem:[#allocation2 + $0x178] sm:$0xff] %vm8857, %v9001
    %9290 = vst.msk [vmem:[#allocation2 + $0x180] sm:$0xff] %vm8857, %v9004
    %9291 = vst.msk [vmem:[#allocation2 + $0x188] sm:$0xff] %vm8857, %v9007
    %9292 = vst.msk [vmem:[#allocation2 + $0x190] sm:$0xff] %vm8857, %v9010
    %9293 = vst.msk [vmem:[#allocation2 + $0x198] sm:$0xff] %vm8857, %v9013
    %9294 = vst.msk [vmem:[#allocation2 + $0x1a0] sm:$0xff] %vm8857, %v9016
    %9295 = vst.msk [vmem:[#allocation2 + $0x1a8] sm:$0xff] %vm8857, %v9019
    %9296 = vst.msk [vmem:[#allocation2 + $0x1b0] sm:$0xff] %vm8857, %v9022
    %9297 = vst.msk [vmem:[#allocation2 + $0x1b8] sm:$0xff] %vm8857, %v9025
    %9298 = vst.msk [vmem:[#allocation2 + $0x1c0] sm:$0xff] %vm8857, %v9028
    %9299 = vst.msk [vmem:[#allocation2 + $0x1c8] sm:$0xff] %vm8857, %v9031
    %9300 = vst.msk [vmem:[#allocation2 + $0x1d0] sm:$0xff] %vm8857, %v9034
    %9301 = vst.msk [vmem:[#allocation2 + $0x1d8] sm:$0xff] %vm8857, %v9037
    %9302 = vst.msk [vmem:[#allocation2 + $0x1e0] sm:$0xff] %vm8857, %v9040
    %9303 = vst.msk [vmem:[#allocation2 + $0x1e8] sm:$0xff] %vm8857, %v9043
    %9304 = vst.msk [vmem:[#allocation2 + $0x1f0] sm:$0xff] %vm8857, %v9046
    %9305 = vst.msk [vmem:[#allocation2 + $0x1f8] sm:$0xff] %vm8857, %v9049
    %9306 = vst.msk [vmem:[#allocation2 + $0x200] sm:$0xff] %vm8857, %v9052
    %9307 = vst.msk [vmem:[#allocation2 + $0x208] sm:$0xff] %vm8857, %v9055
    %9308 = vst.msk [vmem:[#allocation2 + $0x210] sm:$0xff] %vm8857, %v9058
    %9309 = vst.msk [vmem:[#allocation2 + $0x218] sm:$0xff] %vm8857, %v9061
    %9310 = vst.msk [vmem:[#allocation2 + $0x220] sm:$0xff] %vm8857, %v9064
    %9311 = vst.msk [vmem:[#allocation2 + $0x228] sm:$0xff] %vm8857, %v9067
    %9312 = vst.msk [vmem:[#allocation2 + $0x230] sm:$0xff] %vm8857, %v9070
    %9313 = vst.msk [vmem:[#allocation2 + $0x238] sm:$0xff] %vm8857, %v9073
    %9314 = vst.msk [vmem:[#allocation2 + $0x240] sm:$0xff] %vm8857, %v9076
    %9315 = vst.msk [vmem:[#allocation2 + $0x248] sm:$0xff] %vm8857, %v9079
    %9316 = vst.msk [vmem:[#allocation2 + $0x250] sm:$0xff] %vm8857, %v9082
    %9317 = vst.msk [vmem:[#allocation2 + $0x258] sm:$0xff] %vm8857, %v9085
    %9318 = vst.msk [vmem:[#allocation2 + $0x260] sm:$0xff] %vm8857, %v9088
    %9319 = vst.msk [vmem:[#allocation2 + $0x268] sm:$0xff] %vm8857, %v9091
    %9320 = vst.msk [vmem:[#allocation2 + $0x270] sm:$0xff] %vm8857, %v9094
    %9321 = vst.msk [vmem:[#allocation2 + $0x278] sm:$0xff] %vm8857, %v9097
    %9322 = vst.msk [vmem:[#allocation2 + $0x280] sm:$0xff] %vm8857, %v9100
    %9323 = vst.msk [vmem:[#allocation2 + $0x288] sm:$0xff] %vm8857, %v9103
    %9324 = vst.msk [vmem:[#allocation2 + $0x290] sm:$0xff] %vm8857, %v9106
    %9325 = vst.msk [vmem:[#allocation2 + $0x298] sm:$0xff] %vm8857, %v9109
    %9326 = vst.msk [vmem:[#allocation2 + $0x2a0] sm:$0xff] %vm8857, %v9112
    %9327 = vst.msk [vmem:[#allocation2 + $0x2a8] sm:$0xff] %vm8857, %v9115
    %9328 = vst.msk [vmem:[#allocation2 + $0x2b0] sm:$0xff] %vm8857, %v9118
    %9329 = vst.msk [vmem:[#allocation2 + $0x2b8] sm:$0xff] %vm8857, %v9121
    %9330 = vst.msk [vmem:[#allocation2 + $0x2c0] sm:$0xff] %vm8857, %v9124
    %9331 = vst.msk [vmem:[#allocation2 + $0x2c8] sm:$0xff] %vm8857, %v9127
    %9332 = vst.msk [vmem:[#allocation2 + $0x2d0] sm:$0xff] %vm8857, %v9130
    %9333 = vst.msk [vmem:[#allocation2 + $0x2d8] sm:$0xff] %vm8857, %v9133
    %9334 = vst.msk [vmem:[#allocation2 + $0x2e0] sm:$0xff] %vm8857, %v9136
    %9335 = vst.msk [vmem:[#allocation2 + $0x2e8] sm:$0xff] %vm8857, %v9139
    %9336 = vst.msk [vmem:[#allocation2 + $0x2f0] sm:$0xff] %vm8857, %v9142
    %9337 = vst.msk [vmem:[#allocation2 + $0x2f8] sm:$0xff] %vm8857, %v9145
    %9338 = vst.msk [vmem:[#allocation2 + $0x300] sm:$0xff] %vm8857, %v9148
    %9339 = vst.msk [vmem:[#allocation2 + $0x308] sm:$0xff] %vm8857, %v9151
    %9340 = vst.msk [vmem:[#allocation2 + $0x310] sm:$0xff] %vm8857, %v9154
    %9341 = vst.msk [vmem:[#allocation2 + $0x318] sm:$0xff] %vm8857, %v9157
    %9342 = vst.msk [vmem:[#allocation2 + $0x320] sm:$0xff] %vm8857, %v9160
    %9343 = vst.msk [vmem:[#allocation2 + $0x328] sm:$0xff] %vm8857, %v9163
    %9344 = vst.msk [vmem:[#allocation2 + $0x330] sm:$0xff] %vm8857, %v9166
    %9345 = vst.msk [vmem:[#allocation2 + $0x338] sm:$0xff] %vm8857, %v9169
    %9346 = vst.msk [vmem:[#allocation2 + $0x340] sm:$0xff] %vm8857, %v9172
    %9347 = vst.msk [vmem:[#allocation2 + $0x348] sm:$0xff] %vm8857, %v9175
    %9348 = vst.msk [vmem:[#allocation2 + $0x350] sm:$0xff] %vm8857, %v9178
    %9349 = vst.msk [vmem:[#allocation2 + $0x358] sm:$0xff] %vm8857, %v9181
    %9350 = vst.msk [vmem:[#allocation2 + $0x360] sm:$0xff] %vm8857, %v9184
    %9351 = vst.msk [vmem:[#allocation2 + $0x368] sm:$0xff] %vm8857, %v9187
    %9352 = vst.msk [vmem:[#allocation2 + $0x370] sm:$0xff] %vm8857, %v9190
    %9353 = vst.msk [vmem:[#allocation2 + $0x378] sm:$0xff] %vm8857, %v9193
    %9354 = vst.msk [vmem:[#allocation2 + $0x380] sm:$0xff] %vm8857, %v9196
    %9355 = vst.msk [vmem:[#allocation2 + $0x388] sm:$0xff] %vm8857, %v9199
    %9356 = vst.msk [vmem:[#allocation2 + $0x390] sm:$0xff] %vm8857, %v9202
    %9357 = vst.msk [vmem:[#allocation2 + $0x398] sm:$0xff] %vm8857, %v9205
    %9358 = vst.msk [vmem:[#allocation2 + $0x3a0] sm:$0xff] %vm8857, %v9208
    %9359 = vst.msk [vmem:[#allocation2 + $0x3a8] sm:$0xff] %vm8857, %v9211
    %9360 = vst.msk [vmem:[#allocation2 + $0x3b0] sm:$0xff] %vm8857, %v9214
    %9361 = vst.msk [vmem:[#allocation2 + $0x3b8] sm:$0xff] %vm8857, %v9217
    %9362 = vst.msk [vmem:[#allocation2 + $0x3c0] sm:$0xff] %vm8857, %v9220
    %9363 = vst.msk [vmem:[#allocation2 + $0x3c8] sm:$0xff] %vm8857, %v9223
    %9364 = vst.msk [vmem:[#allocation2 + $0x3d0] sm:$0xff] %vm8857, %v9226
    %9365 = vst.msk [vmem:[#allocation2 + $0x3d8] sm:$0xff] %vm8857, %v9229
    %9366 = vst.msk [vmem:[#allocation2 + $0x3e0] sm:$0xff] %vm8857, %v9232
    %9367 = vst.msk [vmem:[#allocation2 + $0x3e8] sm:$0xff] %vm8857, %v9235
    %9368 = vst.msk [vmem:[#allocation2 + $0x3f0] sm:$0xff] %vm8857, %v9238
    %9369 = vst.msk [vmem:[#allocation2 + $0x3f8] sm:$0xff] %vm8857, %v9241
    %v9370 = vld [vmem:[#allocation2] ss:$2 sm:$0xff]
    %s9371 = scalar_lea.vmem [#allocation2], 16
    %v9372 = vld [vmem:[%s9371] ss:$2 sm:$0xff]
    %s9373 = scalar_lea.vmem [#allocation2], 32
    %v9374 = vld [vmem:[%s9373] ss:$2 sm:$0xff]
    %s9375 = scalar_lea.vmem [#allocation2], 48
    %v9376 = vld [vmem:[%s9375] ss:$2 sm:$0xff]
    %s9377 = scalar_lea.vmem [#allocation2], 64
    %v9378 = vld [vmem:[%s9377] ss:$2 sm:$0xff]
    %s9379 = scalar_lea.vmem [#allocation2], 80
    %v9380 = vld [vmem:[%s9379] ss:$2 sm:$0xff]
    %s9381 = scalar_lea.vmem [#allocation2], 96
    %v9382 = vld [vmem:[%s9381] ss:$2 sm:$0xff]
    %s9383 = scalar_lea.vmem [#allocation2], 112
    %v9384 = vld [vmem:[%s9383] ss:$2 sm:$0xff]
    %s9385 = scalar_lea.vmem [#allocation2], 128
    %v9386 = vld [vmem:[%s9385] ss:$2 sm:$0xff]
    %s9387 = scalar_lea.vmem [#allocation2], 144
    %v9388 = vld [vmem:[%s9387] ss:$2 sm:$0xff]
    %s9389 = scalar_lea.vmem [#allocation2], 160
    %v9390 = vld [vmem:[%s9389] ss:$2 sm:$0xff]
    %s9391 = scalar_lea.vmem [#allocation2], 176
    %v9392 = vld [vmem:[%s9391] ss:$2 sm:$0xff]
    %s9393 = scalar_lea.vmem [#allocation2], 192
    %v9394 = vld [vmem:[%s9393] ss:$2 sm:$0xff]
    %s9395 = scalar_lea.vmem [#allocation2], 208
    %v9396 = vld [vmem:[%s9395] ss:$2 sm:$0xff]
    %s9397 = scalar_lea.vmem [#allocation2], 224
    %v9398 = vld [vmem:[%s9397] ss:$2 sm:$0xff]
    %s9399 = scalar_lea.vmem [#allocation2], 240
    %v9400 = vld [vmem:[%s9399] ss:$2 sm:$0xff]
    %s9401 = scalar_lea.vmem [#allocation2], 256
    %v9402 = vld [vmem:[%s9401] ss:$2 sm:$0xff]
    %s9403 = scalar_lea.vmem [#allocation2], 272
    %v9404 = vld [vmem:[%s9403] ss:$2 sm:$0xff]
    %s9405 = scalar_lea.vmem [#allocation2], 288
    %v9406 = vld [vmem:[%s9405] ss:$2 sm:$0xff]
    %s9407 = scalar_lea.vmem [#allocation2], 304
    %v9408 = vld [vmem:[%s9407] ss:$2 sm:$0xff]
    %s9409 = scalar_lea.vmem [#allocation2], 320
    %v9410 = vld [vmem:[%s9409] ss:$2 sm:$0xff]
    %s9411 = scalar_lea.vmem [#allocation2], 336
    %v9412 = vld [vmem:[%s9411] ss:$2 sm:$0xff]
    %s9413 = scalar_lea.vmem [#allocation2], 352
    %v9414 = vld [vmem:[%s9413] ss:$2 sm:$0xff]
    %s9415 = scalar_lea.vmem [#allocation2], 368
    %v9416 = vld [vmem:[%s9415] ss:$2 sm:$0xff]
    %s9417 = scalar_lea.vmem [#allocation2], 384
    %v9418 = vld [vmem:[%s9417] ss:$2 sm:$0xff]
    %s9419 = scalar_lea.vmem [#allocation2], 400
    %v9420 = vld [vmem:[%s9419] ss:$2 sm:$0xff]
    %s9421 = scalar_lea.vmem [#allocation2], 416
    %v9422 = vld [vmem:[%s9421] ss:$2 sm:$0xff]
    %s9423 = scalar_lea.vmem [#allocation2], 432
    %v9424 = vld [vmem:[%s9423] ss:$2 sm:$0xff]
    %s9425 = scalar_lea.vmem [#allocation2], 448
    %v9426 = vld [vmem:[%s9425] ss:$2 sm:$0xff]
    %s9427 = scalar_lea.vmem [#allocation2], 464
    %v9428 = vld [vmem:[%s9427] ss:$2 sm:$0xff]
    %s9429 = scalar_lea.vmem [#allocation2], 480
    %v9430 = vld [vmem:[%s9429] ss:$2 sm:$0xff]
    %s9431 = scalar_lea.vmem [#allocation2], 496
    %v9432 = vld [vmem:[%s9431] ss:$2 sm:$0xff]
    %s9433 = scalar_lea.vmem [#allocation2], 512
    %v9434 = vld [vmem:[%s9433] ss:$2 sm:$0xff]
    %s9435 = scalar_lea.vmem [#allocation2], 528
    %v9436 = vld [vmem:[%s9435] ss:$2 sm:$0xff]
    %s9437 = scalar_lea.vmem [#allocation2], 544
    %v9438 = vld [vmem:[%s9437] ss:$2 sm:$0xff]
    %s9439 = scalar_lea.vmem [#allocation2], 560
    %v9440 = vld [vmem:[%s9439] ss:$2 sm:$0xff]
    %s9441 = scalar_lea.vmem [#allocation2], 576
    %v9442 = vld [vmem:[%s9441] ss:$2 sm:$0xff]
    %s9443 = scalar_lea.vmem [#allocation2], 592
    %v9444 = vld [vmem:[%s9443] ss:$2 sm:$0xff]
    %s9445 = scalar_lea.vmem [#allocation2], 608
    %v9446 = vld [vmem:[%s9445] ss:$2 sm:$0xff]
    %s9447 = scalar_lea.vmem [#allocation2], 624
    %v9448 = vld [vmem:[%s9447] ss:$2 sm:$0xff]
    %s9449 = scalar_lea.vmem [#allocation2], 640
    %v9450 = vld [vmem:[%s9449] ss:$2 sm:$0xff]
    %s9451 = scalar_lea.vmem [#allocation2], 656
    %v9452 = vld [vmem:[%s9451] ss:$2 sm:$0xff]
    %s9453 = scalar_lea.vmem [#allocation2], 672
    %v9454 = vld [vmem:[%s9453] ss:$2 sm:$0xff]
    %s9455 = scalar_lea.vmem [#allocation2], 688
    %v9456 = vld [vmem:[%s9455] ss:$2 sm:$0xff]
    %s9457 = scalar_lea.vmem [#allocation2], 704
    %v9458 = vld [vmem:[%s9457] ss:$2 sm:$0xff]
    %s9459 = scalar_lea.vmem [#allocation2], 720
    %v9460 = vld [vmem:[%s9459] ss:$2 sm:$0xff]
    %s9461 = scalar_lea.vmem [#allocation2], 736
    %v9462 = vld [vmem:[%s9461] ss:$2 sm:$0xff]
    %s9463 = scalar_lea.vmem [#allocation2], 752
    %v9464 = vld [vmem:[%s9463] ss:$2 sm:$0xff]
    %s9465 = scalar_lea.vmem [#allocation2], 768
    %v9466 = vld [vmem:[%s9465] ss:$2 sm:$0xff]
    %s9467 = scalar_lea.vmem [#allocation2], 784
    %v9468 = vld [vmem:[%s9467] ss:$2 sm:$0xff]
    %s9469 = scalar_lea.vmem [#allocation2], 800
    %v9470 = vld [vmem:[%s9469] ss:$2 sm:$0xff]
    %s9471 = scalar_lea.vmem [#allocation2], 816
    %v9472 = vld [vmem:[%s9471] ss:$2 sm:$0xff]
    %s9473 = scalar_lea.vmem [#allocation2], 832
    %v9474 = vld [vmem:[%s9473] ss:$2 sm:$0xff]
    %s9475 = scalar_lea.vmem [#allocation2], 848
    %v9476 = vld [vmem:[%s9475] ss:$2 sm:$0xff]
    %s9477 = scalar_lea.vmem [#allocation2], 864
    %v9478 = vld [vmem:[%s9477] ss:$2 sm:$0xff]
    %s9479 = scalar_lea.vmem [#allocation2], 880
    %v9480 = vld [vmem:[%s9479] ss:$2 sm:$0xff]
    %s9481 = scalar_lea.vmem [#allocation2], 896
    %v9482 = vld [vmem:[%s9481] ss:$2 sm:$0xff]
    %s9483 = scalar_lea.vmem [#allocation2], 912
    %v9484 = vld [vmem:[%s9483] ss:$2 sm:$0xff]
    %s9485 = scalar_lea.vmem [#allocation2], 928
    %v9486 = vld [vmem:[%s9485] ss:$2 sm:$0xff]
    %s9487 = scalar_lea.vmem [#allocation2], 944
    %v9488 = vld [vmem:[%s9487] ss:$2 sm:$0xff]
    %s9489 = scalar_lea.vmem [#allocation2], 960
    %v9490 = vld [vmem:[%s9489] ss:$2 sm:$0xff]
    %s9491 = scalar_lea.vmem [#allocation2], 976
    %v9492 = vld [vmem:[%s9491] ss:$2 sm:$0xff]
    %s9493 = scalar_lea.vmem [#allocation2], 992
    %v9494 = vld [vmem:[%s9493] ss:$2 sm:$0xff]
    %s9495 = scalar_lea.vmem [#allocation2], 1008
    %v9496 = vld [vmem:[%s9495] ss:$2 sm:$0xff]
    %s9497 = scalar_lea.vmem [#allocation2], 1
    %v9498 = vld [vmem:[%s9497] ss:$2 sm:$0xff]
    %s9499 = scalar_lea.vmem [#allocation2], 17
    %v9500 = vld [vmem:[%s9499] ss:$2 sm:$0xff]
    %s9501 = scalar_lea.vmem [#allocation2], 33
    %v9502 = vld [vmem:[%s9501] ss:$2 sm:$0xff]
    %s9503 = scalar_lea.vmem [#allocation2], 49
    %v9504 = vld [vmem:[%s9503] ss:$2 sm:$0xff]
    %s9505 = scalar_lea.vmem [#allocation2], 65
    %v9506 = vld [vmem:[%s9505] ss:$2 sm:$0xff]
    %s9507 = scalar_lea.vmem [#allocation2], 81
    %v9508 = vld [vmem:[%s9507] ss:$2 sm:$0xff]
    %s9509 = scalar_lea.vmem [#allocation2], 97
    %v9510 = vld [vmem:[%s9509] ss:$2 sm:$0xff]
    %s9511 = scalar_lea.vmem [#allocation2], 113
    %v9512 = vld [vmem:[%s9511] ss:$2 sm:$0xff]
    %s9513 = scalar_lea.vmem [#allocation2], 129
    %v9514 = vld [vmem:[%s9513] ss:$2 sm:$0xff]
    %s9515 = scalar_lea.vmem [#allocation2], 145
    %v9516 = vld [vmem:[%s9515] ss:$2 sm:$0xff]
    %s9517 = scalar_lea.vmem [#allocation2], 161
    %v9518 = vld [vmem:[%s9517] ss:$2 sm:$0xff]
    %s9519 = scalar_lea.vmem [#allocation2], 177
    %v9520 = vld [vmem:[%s9519] ss:$2 sm:$0xff]
    %s9521 = scalar_lea.vmem [#allocation2], 193
    %v9522 = vld [vmem:[%s9521] ss:$2 sm:$0xff]
    %s9523 = scalar_lea.vmem [#allocation2], 209
    %v9524 = vld [vmem:[%s9523] ss:$2 sm:$0xff]
    %s9525 = scalar_lea.vmem [#allocation2], 225
    %v9526 = vld [vmem:[%s9525] ss:$2 sm:$0xff]
    %s9527 = scalar_lea.vmem [#allocation2], 241
    %v9528 = vld [vmem:[%s9527] ss:$2 sm:$0xff]
    %s9529 = scalar_lea.vmem [#allocation2], 257
    %v9530 = vld [vmem:[%s9529] ss:$2 sm:$0xff]
    %s9531 = scalar_lea.vmem [#allocation2], 273
    %v9532 = vld [vmem:[%s9531] ss:$2 sm:$0xff]
    %s9533 = scalar_lea.vmem [#allocation2], 289
    %v9534 = vld [vmem:[%s9533] ss:$2 sm:$0xff]
    %s9535 = scalar_lea.vmem [#allocation2], 305
    %v9536 = vld [vmem:[%s9535] ss:$2 sm:$0xff]
    %s9537 = scalar_lea.vmem [#allocation2], 321
    %v9538 = vld [vmem:[%s9537] ss:$2 sm:$0xff]
    %s9539 = scalar_lea.vmem [#allocation2], 337
    %v9540 = vld [vmem:[%s9539] ss:$2 sm:$0xff]
    %s9541 = scalar_lea.vmem [#allocation2], 353
    %v9542 = vld [vmem:[%s9541] ss:$2 sm:$0xff]
    %s9543 = scalar_lea.vmem [#allocation2], 369
    %v9544 = vld [vmem:[%s9543] ss:$2 sm:$0xff]
    %s9545 = scalar_lea.vmem [#allocation2], 385
    %v9546 = vld [vmem:[%s9545] ss:$2 sm:$0xff]
    %s9547 = scalar_lea.vmem [#allocation2], 401
    %v9548 = vld [vmem:[%s9547] ss:$2 sm:$0xff]
    %s9549 = scalar_lea.vmem [#allocation2], 417
    %v9550 = vld [vmem:[%s9549] ss:$2 sm:$0xff]
    %s9551 = scalar_lea.vmem [#allocation2], 433
    %v9552 = vld [vmem:[%s9551] ss:$2 sm:$0xff]
    %s9553 = scalar_lea.vmem [#allocation2], 449
    %v9554 = vld [vmem:[%s9553] ss:$2 sm:$0xff]
    %s9555 = scalar_lea.vmem [#allocation2], 465
    %v9556 = vld [vmem:[%s9555] ss:$2 sm:$0xff]
    %s9557 = scalar_lea.vmem [#allocation2], 481
    %v9558 = vld [vmem:[%s9557] ss:$2 sm:$0xff]
    %s9559 = scalar_lea.vmem [#allocation2], 497
    %v9560 = vld [vmem:[%s9559] ss:$2 sm:$0xff]
    %s9561 = scalar_lea.vmem [#allocation2], 513
    %v9562 = vld [vmem:[%s9561] ss:$2 sm:$0xff]
    %s9563 = scalar_lea.vmem [#allocation2], 529
    %v9564 = vld [vmem:[%s9563] ss:$2 sm:$0xff]
    %s9565 = scalar_lea.vmem [#allocation2], 545
    %v9566 = vld [vmem:[%s9565] ss:$2 sm:$0xff]
    %s9567 = scalar_lea.vmem [#allocation2], 561
    %v9568 = vld [vmem:[%s9567] ss:$2 sm:$0xff]
    %s9569 = scalar_lea.vmem [#allocation2], 577
    %v9570 = vld [vmem:[%s9569] ss:$2 sm:$0xff]
    %s9571 = scalar_lea.vmem [#allocation2], 593
    %v9572 = vld [vmem:[%s9571] ss:$2 sm:$0xff]
    %s9573 = scalar_lea.vmem [#allocation2], 609
    %v9574 = vld [vmem:[%s9573] ss:$2 sm:$0xff]
    %s9575 = scalar_lea.vmem [#allocation2], 625
    %v9576 = vld [vmem:[%s9575] ss:$2 sm:$0xff]
    %s9577 = scalar_lea.vmem [#allocation2], 641
    %v9578 = vld [vmem:[%s9577] ss:$2 sm:$0xff]
    %s9579 = scalar_lea.vmem [#allocation2], 657
    %v9580 = vld [vmem:[%s9579] ss:$2 sm:$0xff]
    %s9581 = scalar_lea.vmem [#allocation2], 673
    %v9582 = vld [vmem:[%s9581] ss:$2 sm:$0xff]
    %s9583 = scalar_lea.vmem [#allocation2], 689
    %v9584 = vld [vmem:[%s9583] ss:$2 sm:$0xff]
    %s9585 = scalar_lea.vmem [#allocation2], 705
    %v9586 = vld [vmem:[%s9585] ss:$2 sm:$0xff]
    %s9587 = scalar_lea.vmem [#allocation2], 721
    %v9588 = vld [vmem:[%s9587] ss:$2 sm:$0xff]
    %s9589 = scalar_lea.vmem [#allocation2], 737
    %v9590 = vld [vmem:[%s9589] ss:$2 sm:$0xff]
    %s9591 = scalar_lea.vmem [#allocation2], 753
    %v9592 = vld [vmem:[%s9591] ss:$2 sm:$0xff]
    %s9593 = scalar_lea.vmem [#allocation2], 769
    %v9594 = vld [vmem:[%s9593] ss:$2 sm:$0xff]
    %s9595 = scalar_lea.vmem [#allocation2], 785
    %v9596 = vld [vmem:[%s9595] ss:$2 sm:$0xff]
    %s9597 = scalar_lea.vmem [#allocation2], 801
    %v9598 = vld [vmem:[%s9597] ss:$2 sm:$0xff]
    %s9599 = scalar_lea.vmem [#allocation2], 817
    %v9600 = vld [vmem:[%s9599] ss:$2 sm:$0xff]
    %s9601 = scalar_lea.vmem [#allocation2], 833
    %v9602 = vld [vmem:[%s9601] ss:$2 sm:$0xff]
    %s9603 = scalar_lea.vmem [#allocation2], 849
    %v9604 = vld [vmem:[%s9603] ss:$2 sm:$0xff]
    %s9605 = scalar_lea.vmem [#allocation2], 865
    %v9606 = vld [vmem:[%s9605] ss:$2 sm:$0xff]
    %s9607 = scalar_lea.vmem [#allocation2], 881
    %v9608 = vld [vmem:[%s9607] ss:$2 sm:$0xff]
    %s9609 = scalar_lea.vmem [#allocation2], 897
    %v9610 = vld [vmem:[%s9609] ss:$2 sm:$0xff]
    %s9611 = scalar_lea.vmem [#allocation2], 913
    %v9612 = vld [vmem:[%s9611] ss:$2 sm:$0xff]
    %s9613 = scalar_lea.vmem [#allocation2], 929
    %v9614 = vld [vmem:[%s9613] ss:$2 sm:$0xff]
    %s9615 = scalar_lea.vmem [#allocation2], 945
    %v9616 = vld [vmem:[%s9615] ss:$2 sm:$0xff]
    %s9617 = scalar_lea.vmem [#allocation2], 961
    %v9618 = vld [vmem:[%s9617] ss:$2 sm:$0xff]
    %s9619 = scalar_lea.vmem [#allocation2], 977
    %v9620 = vld [vmem:[%s9619] ss:$2 sm:$0xff]
    %s9621 = scalar_lea.vmem [#allocation2], 993
    %v9622 = vld [vmem:[%s9621] ss:$2 sm:$0xff]
    %s9623 = scalar_lea.vmem [#allocation2], 1009
    %v9624 = vld [vmem:[%s9623] ss:$2 sm:$0xff]
    %v9625 = vmax.f32 %v9370, %v9498
    %v9626 = vmax.f32 %v9372, %v9500
    %v9627 = vmax.f32 %v9374, %v9502
    %v9628 = vmax.f32 %v9376, %v9504
    %v9629 = vmax.f32 %v9378, %v9506
    %v9630 = vmax.f32 %v9380, %v9508
    %v9631 = vmax.f32 %v9382, %v9510
    %v9632 = vmax.f32 %v9384, %v9512
    %v9633 = vmax.f32 %v9386, %v9514
    %v9634 = vmax.f32 %v9388, %v9516
    %v9635 = vmax.f32 %v9390, %v9518
    %v9636 = vmax.f32 %v9392, %v9520
    %v9637 = vmax.f32 %v9394, %v9522
    %v9638 = vmax.f32 %v9396, %v9524
    %v9639 = vmax.f32 %v9398, %v9526
    %v9640 = vmax.f32 %v9400, %v9528
    %v9641 = vmax.f32 %v9402, %v9530
    %v9642 = vmax.f32 %v9404, %v9532
    %v9643 = vmax.f32 %v9406, %v9534
    %v9644 = vmax.f32 %v9408, %v9536
    %v9645 = vmax.f32 %v9410, %v9538
    %v9646 = vmax.f32 %v9412, %v9540
    %v9647 = vmax.f32 %v9414, %v9542
    %v9648 = vmax.f32 %v9416, %v9544
    %v9649 = vmax.f32 %v9418, %v9546
    %v9650 = vmax.f32 %v9420, %v9548
    %v9651 = vmax.f32 %v9422, %v9550
    %v9652 = vmax.f32 %v9424, %v9552
    %v9653 = vmax.f32 %v9426, %v9554
    %v9654 = vmax.f32 %v9428, %v9556
    %v9655 = vmax.f32 %v9430, %v9558
    %v9656 = vmax.f32 %v9432, %v9560
    %v9657 = vmax.f32 %v9434, %v9562
    %v9658 = vmax.f32 %v9436, %v9564
    %v9659 = vmax.f32 %v9438, %v9566
    %v9660 = vmax.f32 %v9440, %v9568
    %v9661 = vmax.f32 %v9442, %v9570
    %v9662 = vmax.f32 %v9444, %v9572
    %v9663 = vmax.f32 %v9446, %v9574
    %v9664 = vmax.f32 %v9448, %v9576
    %v9665 = vmax.f32 %v9450, %v9578
    %v9666 = vmax.f32 %v9452, %v9580
    %v9667 = vmax.f32 %v9454, %v9582
    %v9668 = vmax.f32 %v9456, %v9584
    %v9669 = vmax.f32 %v9458, %v9586
    %v9670 = vmax.f32 %v9460, %v9588
    %v9671 = vmax.f32 %v9462, %v9590
    %v9672 = vmax.f32 %v9464, %v9592
    %v9673 = vmax.f32 %v9466, %v9594
    %v9674 = vmax.f32 %v9468, %v9596
    %v9675 = vmax.f32 %v9470, %v9598
    %v9676 = vmax.f32 %v9472, %v9600
    %v9677 = vmax.f32 %v9474, %v9602
    %v9678 = vmax.f32 %v9476, %v9604
    %v9679 = vmax.f32 %v9478, %v9606
    %v9680 = vmax.f32 %v9480, %v9608
    %v9681 = vmax.f32 %v9482, %v9610
    %v9682 = vmax.f32 %v9484, %v9612
    %v9683 = vmax.f32 %v9486, %v9614
    %v9684 = vmax.f32 %v9488, %v9616
    %v9685 = vmax.f32 %v9490, %v9618
    %v9686 = vmax.f32 %v9492, %v9620
    %v9687 = vmax.f32 %v9494, %v9622
    %v9688 = vmax.f32 %v9496, %v9624
    %v9689 = vmax.f32 %v9625, 0.0
    %v9690 = vmax.f32 %v9626, 0.0
    %v9691 = vmax.f32 %v9627, 0.0
    %v9692 = vmax.f32 %v9628, 0.0
    %v9693 = vmax.f32 %v9629, 0.0
    %v9694 = vmax.f32 %v9630, 0.0
    %v9695 = vmax.f32 %v9631, 0.0
    %v9696 = vmax.f32 %v9632, 0.0
    %v9697 = vmax.f32 %v9633, 0.0
    %v9698 = vmax.f32 %v9634, 0.0
    %v9699 = vmax.f32 %v9635, 0.0
    %v9700 = vmax.f32 %v9636, 0.0
    %v9701 = vmax.f32 %v9637, 0.0
    %v9702 = vmax.f32 %v9638, 0.0
    %v9703 = vmax.f32 %v9639, 0.0
    %v9704 = vmax.f32 %v9640, 0.0
    %v9705 = vmax.f32 %v9641, 0.0
    %v9706 = vmax.f32 %v9642, 0.0
    %v9707 = vmax.f32 %v9643, 0.0
    %v9708 = vmax.f32 %v9644, 0.0
    %v9709 = vmax.f32 %v9645, 0.0
    %v9710 = vmax.f32 %v9646, 0.0
    %v9711 = vmax.f32 %v9647, 0.0
    %v9712 = vmax.f32 %v9648, 0.0
    %v9713 = vmax.f32 %v9649, 0.0
    %v9714 = vmax.f32 %v9650, 0.0
    %v9715 = vmax.f32 %v9651, 0.0
    %v9716 = vmax.f32 %v9652, 0.0
    %v9717 = vmax.f32 %v9653, 0.0
    %v9718 = vmax.f32 %v9654, 0.0
    %v9719 = vmax.f32 %v9655, 0.0
    %v9720 = vmax.f32 %v9656, 0.0
    %v9721 = vmax.f32 %v9657, 0.0
    %v9722 = vmax.f32 %v9658, 0.0
    %v9723 = vmax.f32 %v9659, 0.0
    %v9724 = vmax.f32 %v9660, 0.0
    %v9725 = vmax.f32 %v9661, 0.0
    %v9726 = vmax.f32 %v9662, 0.0
    %v9727 = vmax.f32 %v9663, 0.0
    %v9728 = vmax.f32 %v9664, 0.0
    %v9729 = vmax.f32 %v9665, 0.0
    %v9730 = vmax.f32 %v9666, 0.0
    %v9731 = vmax.f32 %v9667, 0.0
    %v9732 = vmax.f32 %v9668, 0.0
    %v9733 = vmax.f32 %v9669, 0.0
    %v9734 = vmax.f32 %v9670, 0.0
    %v9735 = vmax.f32 %v9671, 0.0
    %v9736 = vmax.f32 %v9672, 0.0
    %v9737 = vmax.f32 %v9673, 0.0
    %v9738 = vmax.f32 %v9674, 0.0
    %v9739 = vmax.f32 %v9675, 0.0
    %v9740 = vmax.f32 %v9676, 0.0
    %v9741 = vmax.f32 %v9677, 0.0
    %v9742 = vmax.f32 %v9678, 0.0
    %v9743 = vmax.f32 %v9679, 0.0
    %v9744 = vmax.f32 %v9680, 0.0
    %v9745 = vmax.f32 %v9681, 0.0
    %v9746 = vmax.f32 %v9682, 0.0
    %v9747 = vmax.f32 %v9683, 0.0
    %v9748 = vmax.f32 %v9684, 0.0
    %v9749 = vmax.f32 %v9685, 0.0
    %v9750 = vmax.f32 %v9686, 0.0
    %v9751 = vmax.f32 %v9687, 0.0
    %v9752 = vmax.f32 %v9688, 0.0
    %v9818 = vrot.slane 0.0, 7
    %v9819 = vrot.slane %v9689, 7
    %v9820 = vrot.slane %v9690, 7
    %v9821 = vrot.slane %v9691, 7
    %v9822 = vrot.slane %v9692, 7
    %v9823 = vrot.slane %v9693, 7
    %v9824 = vrot.slane %v9694, 7
    %v9825 = vrot.slane %v9695, 7
    %v9826 = vrot.slane %v9696, 7
    %v9827 = vrot.slane %v9697, 7
    %v9828 = vrot.slane %v9698, 7
    %v9829 = vrot.slane %v9699, 7
    %v9830 = vrot.slane %v9700, 7
    %v9831 = vrot.slane %v9701, 7
    %v9832 = vrot.slane %v9702, 7
    %v9833 = vrot.slane %v9703, 7
    %v9834 = vrot.slane %v9704, 7
    %v9835 = vrot.slane %v9705, 7
    %v9836 = vrot.slane %v9706, 7
    %v9837 = vrot.slane %v9707, 7
    %v9838 = vrot.slane %v9708, 7
    %v9839 = vrot.slane %v9709, 7
    %v9840 = vrot.slane %v9710, 7
    %v9841 = vrot.slane %v9711, 7
    %v9842 = vrot.slane %v9712, 7
    %v9843 = vrot.slane %v9713, 7
    %v9844 = vrot.slane %v9714, 7
    %v9845 = vrot.slane %v9715, 7
    %v9846 = vrot.slane %v9716, 7
    %v9847 = vrot.slane %v9717, 7
    %v9848 = vrot.slane %v9718, 7
    %v9849 = vrot.slane %v9719, 7
    %v9850 = vrot.slane %v9720, 7
    %v9851 = vrot.slane %v9721, 7
    %v9852 = vrot.slane %v9722, 7
    %v9853 = vrot.slane %v9723, 7
    %v9854 = vrot.slane %v9724, 7
    %v9855 = vrot.slane %v9725, 7
    %v9856 = vrot.slane %v9726, 7
    %v9857 = vrot.slane %v9727, 7
    %v9858 = vrot.slane %v9728, 7
    %v9859 = vrot.slane %v9729, 7
    %v9860 = vrot.slane %v9730, 7
    %v9861 = vrot.slane %v9731, 7
    %v9862 = vrot.slane %v9732, 7
    %v9863 = vrot.slane %v9733, 7
    %v9864 = vrot.slane %v9734, 7
    %v9865 = vrot.slane %v9735, 7
    %v9866 = vrot.slane %v9736, 7
    %v9867 = vrot.slane %v9737, 7
    %v9868 = vrot.slane %v9738, 7
    %v9869 = vrot.slane %v9739, 7
    %v9870 = vrot.slane %v9740, 7
    %v9871 = vrot.slane %v9741, 7
    %v9872 = vrot.slane %v9742, 7
    %v9873 = vrot.slane %v9743, 7
    %v9874 = vrot.slane %v9744, 7
    %v9875 = vrot.slane %v9745, 7
    %v9876 = vrot.slane %v9746, 7
    %v9877 = vrot.slane %v9747, 7
    %v9878 = vrot.slane %v9748, 7
    %v9879 = vrot.slane %v9749, 7
    %v9880 = vrot.slane %v9750, 7
    %v9881 = vrot.slane %v9751, 7
    %v9882 = vrot.slane %v9752, 7
    %v9948 = vsel %vm8068, 0.0, %v9818
    %v9949 = vsel %vm8068, 0.0, %v9819
    %v9950 = vsel %vm8068, 0.0, %v9820
    %v9951 = vsel %vm8068, 0.0, %v9821
    %v9952 = vsel %vm8068, 0.0, %v9822
    %v9953 = vsel %vm8068, 0.0, %v9823
    %v9954 = vsel %vm8068, 0.0, %v9824
    %v9955 = vsel %vm8068, 0.0, %v9825
    %v9956 = vsel %vm8068, 0.0, %v9826
    %v9957 = vsel %vm8068, 0.0, %v9827
    %v9958 = vsel %vm8068, 0.0, %v9828
    %v9959 = vsel %vm8068, 0.0, %v9829
    %v9960 = vsel %vm8068, 0.0, %v9830
    %v9961 = vsel %vm8068, 0.0, %v9831
    %v9962 = vsel %vm8068, 0.0, %v9832
    %v9963 = vsel %vm8068, 0.0, %v9833
    %v9964 = vsel %vm8068, 0.0, %v9834
    %v9965 = vsel %vm8068, 0.0, %v9835
    %v9966 = vsel %vm8068, 0.0, %v9836
    %v9967 = vsel %vm8068, 0.0, %v9837
    %v9968 = vsel %vm8068, 0.0, %v9838
    %v9969 = vsel %vm8068, 0.0, %v9839
    %v9970 = vsel %vm8068, 0.0, %v9840
    %v9971 = vsel %vm8068, 0.0, %v9841
    %v9972 = vsel %vm8068, 0.0, %v9842
    %v9973 = vsel %vm8068, 0.0, %v9843
    %v9974 = vsel %vm8068, 0.0, %v9844
    %v9975 = vsel %vm8068, 0.0, %v9845
    %v9976 = vsel %vm8068, 0.0, %v9846
    %v9977 = vsel %vm8068, 0.0, %v9847
    %v9978 = vsel %vm8068, 0.0, %v9848
    %v9979 = vsel %vm8068, 0.0, %v9849
    %v9980 = vsel %vm8068, 0.0, %v9850
    %v9981 = vsel %vm8068, 0.0, %v9851
    %v9982 = vsel %vm8068, 0.0, %v9852
    %v9983 = vsel %vm8068, 0.0, %v9853
    %v9984 = vsel %vm8068, 0.0, %v9854
    %v9985 = vsel %vm8068, 0.0, %v9855
    %v9986 = vsel %vm8068, 0.0, %v9856
    %v9987 = vsel %vm8068, 0.0, %v9857
    %v9988 = vsel %vm8068, 0.0, %v9858
    %v9989 = vsel %vm8068, 0.0, %v9859
    %v9990 = vsel %vm8068, 0.0, %v9860
    %v9991 = vsel %vm8068, 0.0, %v9861
    %v9992 = vsel %vm8068, 0.0, %v9862
    %v9993 = vsel %vm8068, 0.0, %v9863
    %v9994 = vsel %vm8068, 0.0, %v9864
    %v9995 = vsel %vm8068, 0.0, %v9865
    %v9996 = vsel %vm8068, 0.0, %v9866
    %v9997 = vsel %vm8068, 0.0, %v9867
    %v9998 = vsel %vm8068, 0.0, %v9868
    %v9999 = vsel %vm8068, 0.0, %v9869
    %v10000 = vsel %vm8068, 0.0, %v9870
    %v10001 = vsel %vm8068, 0.0, %v9871
    %v10002 = vsel %vm8068, 0.0, %v9872
    %v10003 = vsel %vm8068, 0.0, %v9873
    %v10004 = vsel %vm8068, 0.0, %v9874
    %v10005 = vsel %vm8068, 0.0, %v9875
    %v10006 = vsel %vm8068, 0.0, %v9876
    %v10007 = vsel %vm8068, 0.0, %v9877
    %v10008 = vsel %vm8068, 0.0, %v9878
    %v10009 = vsel %vm8068, 0.0, %v9879
    %v10010 = vsel %vm8068, 0.0, %v9880
    %v10011 = vsel %vm8068, 0.0, %v9881
    %v10012 = vsel %vm8068, 0.0, %v9882
    %v10013 = vsel %vm8068, %v9818, 0.0
    %v10014 = vsel %vm8068, %v9819, 0.0
    %v10015 = vsel %vm8068, %v9820, 0.0
    %v10016 = vsel %vm8068, %v9821, 0.0
    %v10017 = vsel %vm8068, %v9822, 0.0
    %v10018 = vsel %vm8068, %v9823, 0.0
    %v10019 = vsel %vm8068, %v9824, 0.0
    %v10020 = vsel %vm8068, %v9825, 0.0
    %v10021 = vsel %vm8068, %v9826, 0.0
    %v10022 = vsel %vm8068, %v9827, 0.0
    %v10023 = vsel %vm8068, %v9828, 0.0
    %v10024 = vsel %vm8068, %v9829, 0.0
    %v10025 = vsel %vm8068, %v9830, 0.0
    %v10026 = vsel %vm8068, %v9831, 0.0
    %v10027 = vsel %vm8068, %v9832, 0.0
    %v10028 = vsel %vm8068, %v9833, 0.0
    %v10029 = vsel %vm8068, %v9834, 0.0
    %v10030 = vsel %vm8068, %v9835, 0.0
    %v10031 = vsel %vm8068, %v9836, 0.0
    %v10032 = vsel %vm8068, %v9837, 0.0
    %v10033 = vsel %vm8068, %v9838, 0.0
    %v10034 = vsel %vm8068, %v9839, 0.0
    %v10035 = vsel %vm8068, %v9840, 0.0
    %v10036 = vsel %vm8068, %v9841, 0.0
    %v10037 = vsel %vm8068, %v9842, 0.0
    %v10038 = vsel %vm8068, %v9843, 0.0
    %v10039 = vsel %vm8068, %v9844, 0.0
    %v10040 = vsel %vm8068, %v9845, 0.0
    %v10041 = vsel %vm8068, %v9846, 0.0
    %v10042 = vsel %vm8068, %v9847, 0.0
    %v10043 = vsel %vm8068, %v9848, 0.0
    %v10044 = vsel %vm8068, %v9849, 0.0
    %v10045 = vsel %vm8068, %v9850, 0.0
    %v10046 = vsel %vm8068, %v9851, 0.0
    %v10047 = vsel %vm8068, %v9852, 0.0
    %v10048 = vsel %vm8068, %v9853, 0.0
    %v10049 = vsel %vm8068, %v9854, 0.0
    %v10050 = vsel %vm8068, %v9855, 0.0
    %v10051 = vsel %vm8068, %v9856, 0.0
    %v10052 = vsel %vm8068, %v9857, 0.0
    %v10053 = vsel %vm8068, %v9858, 0.0
    %v10054 = vsel %vm8068, %v9859, 0.0
    %v10055 = vsel %vm8068, %v9860, 0.0
    %v10056 = vsel %vm8068, %v9861, 0.0
    %v10057 = vsel %vm8068, %v9862, 0.0
    %v10058 = vsel %vm8068, %v9863, 0.0
    %v10059 = vsel %vm8068, %v9864, 0.0
    %v10060 = vsel %vm8068, %v9865, 0.0
    %v10061 = vsel %vm8068, %v9866, 0.0
    %v10062 = vsel %vm8068, %v9867, 0.0
    %v10063 = vsel %vm8068, %v9868, 0.0
    %v10064 = vsel %vm8068, %v9869, 0.0
    %v10065 = vsel %vm8068, %v9870, 0.0
    %v10066 = vsel %vm8068, %v9871, 0.0
    %v10067 = vsel %vm8068, %v9872, 0.0
    %v10068 = vsel %vm8068, %v9873, 0.0
    %v10069 = vsel %vm8068, %v9874, 0.0
    %v10070 = vsel %vm8068, %v9875, 0.0
    %v10071 = vsel %vm8068, %v9876, 0.0
    %v10072 = vsel %vm8068, %v9877, 0.0
    %v10073 = vsel %vm8068, %v9878, 0.0
    %v10074 = vsel %vm8068, %v9879, 0.0
    %v10075 = vsel %vm8068, %v9880, 0.0
    %v10076 = vsel %vm8068, %v9881, 0.0
    %v10077 = vsel %vm8068, %v9882, 0.0
    %v10078 = vld [vmem:[%s3] sm:$0xff]
    %v10079 = vld [vmem:[%s3 + $0x8] sm:$0xff]
    %v10080 = vld [vmem:[%s3 + $0x10] sm:$0xff]
    %v10081 = vld [vmem:[%s3 + $0x18] sm:$0xff]
    %v10082 = vld [vmem:[%s3 + $0x20] sm:$0xff]
    %v10197 = vrot.slane %v9948, 1
    %v10198 = vrot.slane %v10013, 1
    %v10199 = vsel %vm3171, %v10197, %v10198
    %v10200 = vrot.slane %v9949, 1
    %v10201 = vrot.slane %v10014, 1
    %v10202 = vsel %vm3171, %v10200, %v10201
    %v10203 = vrot.slane %v9950, 1
    %v10204 = vrot.slane %v10015, 1
    %v10205 = vsel %vm3171, %v10203, %v10204
    %v10206 = vrot.slane %v9951, 1
    %v10207 = vrot.slane %v10016, 1
    %v10208 = vsel %vm3171, %v10206, %v10207
    %v10209 = vrot.slane %v9952, 1
    %v10210 = vrot.slane %v10017, 1
    %v10211 = vsel %vm3171, %v10209, %v10210
    %v10212 = vrot.slane %v9953, 1
    %v10213 = vrot.slane %v10018, 1
    %v10214 = vsel %vm3171, %v10212, %v10213
    %v10215 = vrot.slane %v9954, 1
    %v10216 = vrot.slane %v10019, 1
    %v10217 = vsel %vm3171, %v10215, %v10216
    %v10218 = vrot.slane %v9955, 1
    %v10219 = vrot.slane %v10020, 1
    %v10220 = vsel %vm3171, %v10218, %v10219
    %v10221 = vrot.slane %v9957, 1
    %v10222 = vrot.slane %v10022, 1
    %v10223 = vsel %vm3171, %v10221, %v10222
    %v10224 = vrot.slane %v9958, 1
    %v10225 = vrot.slane %v10023, 1
    %v10226 = vsel %vm3171, %v10224, %v10225
    %v10227 = vrot.slane %v9959, 1
    %v10228 = vrot.slane %v10024, 1
    %v10229 = vsel %vm3171, %v10227, %v10228
    %v10230 = vrot.slane %v9960, 1
    %v10231 = vrot.slane %v10025, 1
    %v10232 = vsel %vm3171, %v10230, %v10231
    %v10233 = vrot.slane %v9961, 1
    %v10234 = vrot.slane %v10026, 1
    %v10235 = vsel %vm3171, %v10233, %v10234
    %v10236 = vrot.slane %v9962, 1
    %v10237 = vrot.slane %v10027, 1
    %v10238 = vsel %vm3171, %v10236, %v10237
    %v10239 = vrot.slane %v9963, 1
    %v10240 = vrot.slane %v10028, 1
    %v10241 = vsel %vm3171, %v10239, %v10240
    %v10242 = vrot.slane %v9965, 1
    %v10243 = vrot.slane %v10030, 1
    %v10244 = vsel %vm3171, %v10242, %v10243
    %v10245 = vrot.slane %v9966, 1
    %v10246 = vrot.slane %v10031, 1
    %v10247 = vsel %vm3171, %v10245, %v10246
    %v10248 = vrot.slane %v9967, 1
    %v10249 = vrot.slane %v10032, 1
    %v10250 = vsel %vm3171, %v10248, %v10249
    %v10251 = vrot.slane %v9968, 1
    %v10252 = vrot.slane %v10033, 1
    %v10253 = vsel %vm3171, %v10251, %v10252
    %v10254 = vrot.slane %v9969, 1
    %v10255 = vrot.slane %v10034, 1
    %v10256 = vsel %vm3171, %v10254, %v10255
    %v10257 = vrot.slane %v9970, 1
    %v10258 = vrot.slane %v10035, 1
    %v10259 = vsel %vm3171, %v10257, %v10258
    %v10260 = vrot.slane %v9971, 1
    %v10261 = vrot.slane %v10036, 1
    %v10262 = vsel %vm3171, %v10260, %v10261
    %v10263 = vrot.slane %v9973, 1
    %v10264 = vrot.slane %v10038, 1
    %v10265 = vsel %vm3171, %v10263, %v10264
    %v10266 = vrot.slane %v9974, 1
    %v10267 = vrot.slane %v10039, 1
    %v10268 = vsel %vm3171, %v10266, %v10267
    %v10269 = vrot.slane %v9975, 1
    %v10270 = vrot.slane %v10040, 1
    %v10271 = vsel %vm3171, %v10269, %v10270
    %v10272 = vrot.slane %v9976, 1
    %v10273 = vrot.slane %v10041, 1
    %v10274 = vsel %vm3171, %v10272, %v10273
    %v10275 = vrot.slane %v9977, 1
    %v10276 = vrot.slane %v10042, 1
    %v10277 = vsel %vm3171, %v10275, %v10276
    %v10278 = vrot.slane %v9978, 1
    %v10279 = vrot.slane %v10043, 1
    %v10280 = vsel %vm3171, %v10278, %v10279
    %v10281 = vrot.slane %v9979, 1
    %v10282 = vrot.slane %v10044, 1
    %v10283 = vsel %vm3171, %v10281, %v10282
    %v10284 = vrot.slane %v9981, 1
    %v10285 = vrot.slane %v10046, 1
    %v10286 = vsel %vm3171, %v10284, %v10285
    %v10287 = vrot.slane %v9982, 1
    %v10288 = vrot.slane %v10047, 1
    %v10289 = vsel %vm3171, %v10287, %v10288
    %v10290 = vrot.slane %v9983, 1
    %v10291 = vrot.slane %v10048, 1
    %v10292 = vsel %vm3171, %v10290, %v10291
    %v10293 = vrot.slane %v9984, 1
    %v10294 = vrot.slane %v10049, 1
    %v10295 = vsel %vm3171, %v10293, %v10294
    %v10296 = vrot.slane %v9985, 1
    %v10297 = vrot.slane %v10050, 1
    %v10298 = vsel %vm3171, %v10296, %v10297
    %v10299 = vrot.slane %v9986, 1
    %v10300 = vrot.slane %v10051, 1
    %v10301 = vsel %vm3171, %v10299, %v10300
    %v10302 = vrot.slane %v9987, 1
    %v10303 = vrot.slane %v10052, 1
    %v10304 = vsel %vm3171, %v10302, %v10303
    %v10305 = vrot.slane %v9989, 1
    %v10306 = vrot.slane %v10054, 1
    %v10307 = vsel %vm3171, %v10305, %v10306
    %v10308 = vrot.slane %v9990, 1
    %v10309 = vrot.slane %v10055, 1
    %v10310 = vsel %vm3171, %v10308, %v10309
    %v10311 = vrot.slane %v9991, 1
    %v10312 = vrot.slane %v10056, 1
    %v10313 = vsel %vm3171, %v10311, %v10312
    %v10314 = vrot.slane %v9992, 1
    %v10315 = vrot.slane %v10057, 1
    %v10316 = vsel %vm3171, %v10314, %v10315
    %v10317 = vrot.slane %v9993, 1
    %v10318 = vrot.slane %v10058, 1
    %v10319 = vsel %vm3171, %v10317, %v10318
    %v10320 = vrot.slane %v9994, 1
    %v10321 = vrot.slane %v10059, 1
    %v10322 = vsel %vm3171, %v10320, %v10321
    %v10323 = vrot.slane %v9995, 1
    %v10324 = vrot.slane %v10060, 1
    %v10325 = vsel %vm3171, %v10323, %v10324
    %v10326 = vrot.slane %v9997, 1
    %v10327 = vrot.slane %v10062, 1
    %v10328 = vsel %vm3171, %v10326, %v10327
    %v10329 = vrot.slane %v9998, 1
    %v10330 = vrot.slane %v10063, 1
    %v10331 = vsel %vm3171, %v10329, %v10330
    %v10332 = vrot.slane %v9999, 1
    %v10333 = vrot.slane %v10064, 1
    %v10334 = vsel %vm3171, %v10332, %v10333
    %v10335 = vrot.slane %v10000, 1
    %v10336 = vrot.slane %v10065, 1
    %v10337 = vsel %vm3171, %v10335, %v10336
    %v10338 = vrot.slane %v10001, 1
    %v10339 = vrot.slane %v10066, 1
    %v10340 = vsel %vm3171, %v10338, %v10339
    %v10341 = vrot.slane %v10002, 1
    %v10342 = vrot.slane %v10067, 1
    %v10343 = vsel %vm3171, %v10341, %v10342
    %v10344 = vrot.slane %v10003, 1
    %v10345 = vrot.slane %v10068, 1
    %v10346 = vsel %vm3171, %v10344, %v10345
    %v10347 = vrot.slane %v10005, 1
    %v10348 = vrot.slane %v10070, 1
    %v10349 = vsel %vm3171, %v10347, %v10348
    %v10350 = vrot.slane %v10006, 1
    %v10351 = vrot.slane %v10071, 1
    %v10352 = vsel %vm3171, %v10350, %v10351
    %v10353 = vrot.slane %v10007, 1
    %v10354 = vrot.slane %v10072, 1
    %v10355 = vsel %vm3171, %v10353, %v10354
    %v10356 = vrot.slane %v10008, 1
    %v10357 = vrot.slane %v10073, 1
    %v10358 = vsel %vm3171, %v10356, %v10357
    %v10359 = vrot.slane %v10009, 1
    %v10360 = vrot.slane %v10074, 1
    %v10361 = vsel %vm3171, %v10359, %v10360
    %v10362 = vrot.slane %v10010, 1
    %v10363 = vrot.slane %v10075, 1
    %v10364 = vsel %vm3171, %v10362, %v10363
    %v10365 = vrot.slane %v10011, 1
    %v10366 = vrot.slane %v10076, 1
    %v10367 = vsel %vm3171, %v10365, %v10366
    %v10368 = vld [vmem:[%s3 + $0x28] sm:$0xff]
    %v10369 = vld [vmem:[%s3 + $0x30] sm:$0xff]
    %v10370 = vld [vmem:[%s3 + $0x38] sm:$0xff]
    %v10371 = vld [vmem:[%s3 + $0x40] sm:$0xff]
    %v10372 = vld [vmem:[%s3 + $0x48] sm:$0xff]
    %v10373 = vsel %vm8857, %v10199, 0
    %v10375 = vsel %vm8857, %v10202, 0
    %v10377 = vsel %vm8857, %v10205, 0
    %v10379 = vsel %vm8857, %v10208, 0
    %v10381 = vsel %vm8857, %v10211, 0
    %v10383 = vsel %vm8857, %v10214, 0
    %v10385 = vsel %vm8857, %v10217, 0
    %v10387 = vsel %vm8857, %v10220, 0
    %v10389 = vsel %vm8857, %v10223, 0
    %v10391 = vsel %vm8857, %v10226, 0
    %v10393 = vsel %vm8857, %v10229, 0
    %v10395 = vsel %vm8857, %v10232, 0
    %v10397 = vsel %vm8857, %v10235, 0
    %v10399 = vsel %vm8857, %v10238, 0
    %v10401 = vsel %vm8857, %v10241, 0
    %v10403 = vsel %vm8857, %v10244, 0
    %v10405 = vsel %vm8857, %v10247, 0
    %v10407 = vsel %vm8857, %v10250, 0
    %v10409 = vsel %vm8857, %v10253, 0
    %v10411 = vsel %vm8857, %v10256, 0
    %v10413 = vsel %vm8857, %v10259, 0
    %v10415 = vsel %vm8857, %v10262, 0
    %v10417 = vsel %vm8857, %v10265, 0
    %v10419 = vsel %vm8857, %v10268, 0
    %v10421 = vsel %vm8857, %v10271, 0
    %v10423 = vsel %vm8857, %v10274, 0
    %v10425 = vsel %vm8857, %v10277, 0
    %v10427 = vsel %vm8857, %v10280, 0
    %v10429 = vsel %vm8857, %v10283, 0
    %v10431 = vsel %vm8857, %v10286, 0
    %v10433 = vsel %vm8857, %v10289, 0
    %v10435 = vsel %vm8857, %v10292, 0
    %v10437 = vsel %vm8857, %v10295, 0
    %v10439 = vsel %vm8857, %v10298, 0
    %v10441 = vsel %vm8857, %v10301, 0
    %v10443 = vsel %vm8857, %v10304, 0
    %v10445 = vsel %vm8857, %v10307, 0
    %v10447 = vsel %vm8857, %v10310, 0
    %v10449 = vsel %vm8857, %v10313, 0
    %v10451 = vsel %vm8857, %v10316, 0
    %v10453 = vsel %vm8857, %v10319, 0
    %v10455 = vsel %vm8857, %v10322, 0
    %v10457 = vsel %vm8857, %v10325, 0
    %v10459 = vsel %vm8857, %v10328, 0
    %v10461 = vsel %vm8857, %v10331, 0
    %v10463 = vsel %vm8857, %v10334, 0
    %v10465 = vsel %vm8857, %v10337, 0
    %v10467 = vsel %vm8857, %v10340, 0
    %v10469 = vsel %vm8857, %v10343, 0
    %v10471 = vsel %vm8857, %v10346, 0
    %v10473 = vsel %vm8857, %v10349, 0
    %v10475 = vsel %vm8857, %v10352, 0
    %v10477 = vsel %vm8857, %v10355, 0
    %v10479 = vsel %vm8857, %v10358, 0
    %v10481 = vsel %vm8857, %v10361, 0
    %v10483 = vsel %vm8857, %v10364, 0
    %v10485 = vsel %vm8857, %v10367, 0
    %10487 = vmatpush.msra.mxu0 0.0
    %10488 = vmatpush.msra.mxu0 0.0
    %10489 = vmatpush.msra.mxu0 0.0
    %10490 = vmatpush.msra.mxu0 0.0
    %10491 = vmatpush.msra.mxu0 0.0
    %10492 = vmatpush.msra.mxu0 0.0
    %10493 = vmatpush.msra.mxu0 0.0
    %10494 = vmatpush.msra.mxu0 0.0
    %10495 = vmatpush.msra.mxu0 0.0
    %10496 = vmatpush.msra.mxu0 0.0
    %10497 = vmatpush.msra.mxu0 0.0
    %10498 = vmatpush.msra.mxu0 %v10372
    %10499 = vmatpush.msra.mxu0 %v10371
    %10500 = vmatpush.msra.mxu0 %v10370
    %10501 = vmatpush.msra.mxu0 %v10369
    %10502 = vmatpush.msra.mxu0 %v10368
    %10503 = vmatmul.f32.gmra.mxu0 %v10373
    %v10504 = vpop.f32.mrf.mxu0
    %v10505 = vadd.f32 0.0, %v10504
    %10506 = vmatmul.f32.gmra.mxu0 %v10375
    %v10507 = vpop.f32.mrf.mxu0
    %v10508 = vadd.f32 0.0, %v10507
    %10509 = vmatmul.f32.gmra.mxu0 %v10377
    %v10510 = vpop.f32.mrf.mxu0
    %v10511 = vadd.f32 0.0, %v10510
    %10512 = vmatmul.f32.gmra.mxu0 %v10379
    %v10513 = vpop.f32.mrf.mxu0
    %v10514 = vadd.f32 0.0, %v10513
    %10515 = vmatmul.f32.gmra.mxu0 %v10381
    %v10516 = vpop.f32.mrf.mxu0
    %v10517 = vadd.f32 0.0, %v10516
    %10518 = vmatmul.f32.gmra.mxu0 %v10383
    %v10519 = vpop.f32.mrf.mxu0
    %v10520 = vadd.f32 0.0, %v10519
    %10521 = vmatmul.f32.gmra.mxu0 %v10385
    %v10522 = vpop.f32.mrf.mxu0
    %v10523 = vadd.f32 0.0, %v10522
    %10524 = vmatmul.f32.gmra.mxu0 %v10387
    %v10525 = vpop.f32.mrf.mxu0
    %v10526 = vadd.f32 0.0, %v10525
    %10527 = vmatmul.f32.gmra.mxu0 %v10373
    %v10528 = vpop.f32.mrf.mxu0
    %v10529 = vadd.f32 0.0, %v10528
    %10530 = vmatmul.f32.gmra.mxu0 %v10389
    %v10531 = vpop.f32.mrf.mxu0
    %v10532 = vadd.f32 0.0, %v10531
    %10533 = vmatmul.f32.gmra.mxu0 %v10391
    %v10534 = vpop.f32.mrf.mxu0
    %v10535 = vadd.f32 0.0, %v10534
    %10536 = vmatmul.f32.gmra.mxu0 %v10393
    %v10537 = vpop.f32.mrf.mxu0
    %v10538 = vadd.f32 0.0, %v10537
    %10539 = vmatmul.f32.gmra.mxu0 %v10395
    %v10540 = vpop.f32.mrf.mxu0
    %v10541 = vadd.f32 0.0, %v10540
    %10542 = vmatmul.f32.gmra.mxu0 %v10397
    %v10543 = vpop.f32.mrf.mxu0
    %v10544 = vadd.f32 0.0, %v10543
    %10545 = vmatmul.f32.gmra.mxu0 %v10399
    %v10546 = vpop.f32.mrf.mxu0
    %v10547 = vadd.f32 0.0, %v10546
    %10548 = vmatmul.f32.gmra.mxu0 %v10401
    %v10549 = vpop.f32.mrf.mxu0
    %v10550 = vadd.f32 0.0, %v10549
    %10551 = vmatmul.f32.gmra.mxu0 %v10373
    %v10552 = vpop.f32.mrf.mxu0
    %v10553 = vadd.f32 0.0, %v10552
    %10554 = vmatmul.f32.gmra.mxu0 %v10403
    %v10555 = vpop.f32.mrf.mxu0
    %v10556 = vadd.f32 0.0, %v10555
    %10557 = vmatmul.f32.gmra.mxu0 %v10405
    %v10558 = vpop.f32.mrf.mxu0
    %v10559 = vadd.f32 0.0, %v10558
    %10560 = vmatmul.f32.gmra.mxu0 %v10407
    %v10561 = vpop.f32.mrf.mxu0
    %v10562 = vadd.f32 0.0, %v10561
    %10563 = vmatmul.f32.gmra.mxu0 %v10409
    %v10564 = vpop.f32.mrf.mxu0
    %v10565 = vadd.f32 0.0, %v10564
    %10566 = vmatmul.f32.gmra.mxu0 %v10411
    %v10567 = vpop.f32.mrf.mxu0
    %v10568 = vadd.f32 0.0, %v10567
    %10569 = vmatmul.f32.gmra.mxu0 %v10413
    %v10570 = vpop.f32.mrf.mxu0
    %v10571 = vadd.f32 0.0, %v10570
    %10572 = vmatmul.f32.gmra.mxu0 %v10415
    %v10573 = vpop.f32.mrf.mxu0
    %v10574 = vadd.f32 0.0, %v10573
    %10575 = vmatmul.f32.gmra.mxu0 %v10373
    %v10576 = vpop.f32.mrf.mxu0
    %v10577 = vadd.f32 0.0, %v10576
    %10578 = vmatmul.f32.gmra.mxu0 %v10417
    %v10579 = vpop.f32.mrf.mxu0
    %v10580 = vadd.f32 0.0, %v10579
    %10581 = vmatmul.f32.gmra.mxu0 %v10419
    %v10582 = vpop.f32.mrf.mxu0
    %v10583 = vadd.f32 0.0, %v10582
    %10584 = vmatmul.f32.gmra.mxu0 %v10421
    %v10585 = vpop.f32.mrf.mxu0
    %v10586 = vadd.f32 0.0, %v10585
    %10587 = vmatmul.f32.gmra.mxu0 %v10423
    %v10588 = vpop.f32.mrf.mxu0
    %v10589 = vadd.f32 0.0, %v10588
    %10590 = vmatmul.f32.gmra.mxu0 %v10425
    %v10591 = vpop.f32.mrf.mxu0
    %v10592 = vadd.f32 0.0, %v10591
    %10593 = vmatmul.f32.gmra.mxu0 %v10427
    %v10594 = vpop.f32.mrf.mxu0
    %v10595 = vadd.f32 0.0, %v10594
    %10596 = vmatmul.f32.gmra.mxu0 %v10429
    %v10597 = vpop.f32.mrf.mxu0
    %v10598 = vadd.f32 0.0, %v10597
    %10599 = vmatmul.f32.gmra.mxu0 %v10373
    %v10600 = vpop.f32.mrf.mxu0
    %v10601 = vadd.f32 0.0, %v10600
    %10602 = vmatmul.f32.gmra.mxu0 %v10431
    %v10603 = vpop.f32.mrf.mxu0
    %v10604 = vadd.f32 0.0, %v10603
    %10605 = vmatmul.f32.gmra.mxu0 %v10433
    %v10606 = vpop.f32.mrf.mxu0
    %v10607 = vadd.f32 0.0, %v10606
    %10608 = vmatmul.f32.gmra.mxu0 %v10435
    %v10609 = vpop.f32.mrf.mxu0
    %v10610 = vadd.f32 0.0, %v10609
    %10611 = vmatmul.f32.gmra.mxu0 %v10437
    %v10612 = vpop.f32.mrf.mxu0
    %v10613 = vadd.f32 0.0, %v10612
    %10614 = vmatmul.f32.gmra.mxu0 %v10439
    %v10615 = vpop.f32.mrf.mxu0
    %v10616 = vadd.f32 0.0, %v10615
    %10617 = vmatmul.f32.gmra.mxu0 %v10441
    %v10618 = vpop.f32.mrf.mxu0
    %v10619 = vadd.f32 0.0, %v10618
    %10620 = vmatmul.f32.gmra.mxu0 %v10443
    %v10621 = vpop.f32.mrf.mxu0
    %v10622 = vadd.f32 0.0, %v10621
    %10623 = vmatmul.f32.gmra.mxu0 %v10373
    %v10624 = vpop.f32.mrf.mxu0
    %v10625 = vadd.f32 0.0, %v10624
    %10626 = vmatmul.f32.gmra.mxu0 %v10445
    %v10627 = vpop.f32.mrf.mxu0
    %v10628 = vadd.f32 0.0, %v10627
    %10629 = vmatmul.f32.gmra.mxu0 %v10447
    %v10630 = vpop.f32.mrf.mxu0
    %v10631 = vadd.f32 0.0, %v10630
    %10632 = vmatmul.f32.gmra.mxu0 %v10449
    %v10633 = vpop.f32.mrf.mxu0
    %v10634 = vadd.f32 0.0, %v10633
    %10635 = vmatmul.f32.gmra.mxu0 %v10451
    %v10636 = vpop.f32.mrf.mxu0
    %v10637 = vadd.f32 0.0, %v10636
    %10638 = vmatmul.f32.gmra.mxu0 %v10453
    %v10639 = vpop.f32.mrf.mxu0
    %v10640 = vadd.f32 0.0, %v10639
    %10641 = vmatmul.f32.gmra.mxu0 %v10455
    %v10642 = vpop.f32.mrf.mxu0
    %v10643 = vadd.f32 0.0, %v10642
    %10644 = vmatmul.f32.gmra.mxu0 %v10457
    %v10645 = vpop.f32.mrf.mxu0
    %v10646 = vadd.f32 0.0, %v10645
    %10647 = vmatmul.f32.gmra.mxu0 %v10373
    %v10648 = vpop.f32.mrf.mxu0
    %v10649 = vadd.f32 0.0, %v10648
    %10650 = vmatmul.f32.gmra.mxu0 %v10459
    %v10651 = vpop.f32.mrf.mxu0
    %v10652 = vadd.f32 0.0, %v10651
    %10653 = vmatmul.f32.gmra.mxu0 %v10461
    %v10654 = vpop.f32.mrf.mxu0
    %v10655 = vadd.f32 0.0, %v10654
    %10656 = vmatmul.f32.gmra.mxu0 %v10463
    %v10657 = vpop.f32.mrf.mxu0
    %v10658 = vadd.f32 0.0, %v10657
    %10659 = vmatmul.f32.gmra.mxu0 %v10465
    %v10660 = vpop.f32.mrf.mxu0
    %v10661 = vadd.f32 0.0, %v10660
    %10662 = vmatmul.f32.gmra.mxu0 %v10467
    %v10663 = vpop.f32.mrf.mxu0
    %v10664 = vadd.f32 0.0, %v10663
    %10665 = vmatmul.f32.gmra.mxu0 %v10469
    %v10666 = vpop.f32.mrf.mxu0
    %v10667 = vadd.f32 0.0, %v10666
    %10668 = vmatmul.f32.gmra.mxu0 %v10471
    %v10669 = vpop.f32.mrf.mxu0
    %v10670 = vadd.f32 0.0, %v10669
    %10671 = vmatmul.f32.gmra.mxu0 %v10373
    %v10672 = vpop.f32.mrf.mxu0
    %v10673 = vadd.f32 0.0, %v10672
    %10674 = vmatmul.f32.gmra.mxu0 %v10473
    %v10675 = vpop.f32.mrf.mxu0
    %v10676 = vadd.f32 0.0, %v10675
    %10677 = vmatmul.f32.gmra.mxu0 %v10475
    %v10678 = vpop.f32.mrf.mxu0
    %v10679 = vadd.f32 0.0, %v10678
    %10680 = vmatmul.f32.gmra.mxu0 %v10477
    %v10681 = vpop.f32.mrf.mxu0
    %v10682 = vadd.f32 0.0, %v10681
    %10683 = vmatmul.f32.gmra.mxu0 %v10479
    %v10684 = vpop.f32.mrf.mxu0
    %v10685 = vadd.f32 0.0, %v10684
    %10686 = vmatmul.f32.gmra.mxu0 %v10481
    %v10687 = vpop.f32.mrf.mxu0
    %v10688 = vadd.f32 0.0, %v10687
    %10689 = vmatmul.f32.gmra.mxu0 %v10483
    %v10690 = vpop.f32.mrf.mxu0
    %v10691 = vadd.f32 0.0, %v10690
    %10692 = vmatmul.f32.gmra.mxu0 %v10485
    %v10693 = vpop.f32.mrf.mxu0
    %v10694 = vadd.f32 0.0, %v10693
    %10695 = vdwg.mxu0
    %v10696 = vsel %vm8857, %v9948, 0
    %v10698 = vsel %vm8857, %v9949, 0
    %v10700 = vsel %vm8857, %v9950, 0
    %v10702 = vsel %vm8857, %v9951, 0
    %v10704 = vsel %vm8857, %v9952, 0
    %v10706 = vsel %vm8857, %v9953, 0
    %v10708 = vsel %vm8857, %v9954, 0
    %v10710 = vsel %vm8857, %v9955, 0
    %v10712 = vsel %vm8857, %v9957, 0
    %v10714 = vsel %vm8857, %v9958, 0
    %v10716 = vsel %vm8857, %v9959, 0
    %v10718 = vsel %vm8857, %v9960, 0
    %v10720 = vsel %vm8857, %v9961, 0
    %v10722 = vsel %vm8857, %v9962, 0
    %v10724 = vsel %vm8857, %v9963, 0
    %v10726 = vsel %vm8857, %v9965, 0
    %v10728 = vsel %vm8857, %v9966, 0
    %v10730 = vsel %vm8857, %v9967, 0
    %v10732 = vsel %vm8857, %v9968, 0
    %v10734 = vsel %vm8857, %v9969, 0
    %v10736 = vsel %vm8857, %v9970, 0
    %v10738 = vsel %vm8857, %v9971, 0
    %v10740 = vsel %vm8857, %v9973, 0
    %v10742 = vsel %vm8857, %v9974, 0
    %v10744 = vsel %vm8857, %v9975, 0
    %v10746 = vsel %vm8857, %v9976, 0
    %v10748 = vsel %vm8857, %v9977, 0
    %v10750 = vsel %vm8857, %v9978, 0
    %v10752 = vsel %vm8857, %v9979, 0
    %v10754 = vsel %vm8857, %v9981, 0
    %v10756 = vsel %vm8857, %v9982, 0
    %v10758 = vsel %vm8857, %v9983, 0
    %v10760 = vsel %vm8857, %v9984, 0
    %v10762 = vsel %vm8857, %v9985, 0
    %v10764 = vsel %vm8857, %v9986, 0
    %v10766 = vsel %vm8857, %v9987, 0
    %v10768 = vsel %vm8857, %v9989, 0
    %v10770 = vsel %vm8857, %v9990, 0
    %v10772 = vsel %vm8857, %v9991, 0
    %v10774 = vsel %vm8857, %v9992, 0
    %v10776 = vsel %vm8857, %v9993, 0
    %v10778 = vsel %vm8857, %v9994, 0
    %v10780 = vsel %vm8857, %v9995, 0
    %v10782 = vsel %vm8857, %v9997, 0
    %v10784 = vsel %vm8857, %v9998, 0
    %v10786 = vsel %vm8857, %v9999, 0
    %v10788 = vsel %vm8857, %v10000, 0
    %v10790 = vsel %vm8857, %v10001, 0
    %v10792 = vsel %vm8857, %v10002, 0
    %v10794 = vsel %vm8857, %v10003, 0
    %v10796 = vsel %vm8857, %v10005, 0
    %v10798 = vsel %vm8857, %v10006, 0
    %v10800 = vsel %vm8857, %v10007, 0
    %v10802 = vsel %vm8857, %v10008, 0
    %v10804 = vsel %vm8857, %v10009, 0
    %v10806 = vsel %vm8857, %v10010, 0
    %v10808 = vsel %vm8857, %v10011, 0
    %10810 = vmatpush.msra.mxu0 0.0
    %10811 = vmatpush.msra.mxu0 0.0
    %10812 = vmatpush.msra.mxu0 0.0
    %10813 = vmatpush.msra.mxu0 0.0
    %10814 = vmatpush.msra.mxu0 0.0
    %10815 = vmatpush.msra.mxu0 0.0
    %10816 = vmatpush.msra.mxu0 0.0
    %10817 = vmatpush.msra.mxu0 0.0
    %10818 = vmatpush.msra.mxu0 0.0
    %10819 = vmatpush.msra.mxu0 0.0
    %10820 = vmatpush.msra.mxu0 0.0
    %10821 = vmatpush.msra.mxu0 %v10082
    %10822 = vmatpush.msra.mxu0 %v10081
    %10823 = vmatpush.msra.mxu0 %v10080
    %10824 = vmatpush.msra.mxu0 %v10079
    %10825 = vmatpush.msra.mxu0 %v10078
    %10826 = vmatmul.f32.gmra.mxu0 %v10696
    %v10827 = vpop.f32.mrf.mxu0
    %v10828 = vadd.f32 %v10505, %v10827
    %10829 = vmatmul.f32.gmra.mxu0 %v10698
    %v10830 = vpop.f32.mrf.mxu0
    %v10831 = vadd.f32 %v10508, %v10830
    %10832 = vmatmul.f32.gmra.mxu0 %v10700
    %v10833 = vpop.f32.mrf.mxu0
    %v10834 = vadd.f32 %v10511, %v10833
    %10835 = vmatmul.f32.gmra.mxu0 %v10702
    %v10836 = vpop.f32.mrf.mxu0
    %v10837 = vadd.f32 %v10514, %v10836
    %10838 = vmatmul.f32.gmra.mxu0 %v10704
    %v10839 = vpop.f32.mrf.mxu0
    %v10840 = vadd.f32 %v10517, %v10839
    %10841 = vmatmul.f32.gmra.mxu0 %v10706
    %v10842 = vpop.f32.mrf.mxu0
    %v10843 = vadd.f32 %v10520, %v10842
    %10844 = vmatmul.f32.gmra.mxu0 %v10708
    %v10845 = vpop.f32.mrf.mxu0
    %v10846 = vadd.f32 %v10523, %v10845
    %10847 = vmatmul.f32.gmra.mxu0 %v10710
    %v10848 = vpop.f32.mrf.mxu0
    %v10849 = vadd.f32 %v10526, %v10848
    %10850 = vmatmul.f32.gmra.mxu0 %v10696
    %v10851 = vpop.f32.mrf.mxu0
    %v10852 = vadd.f32 %v10529, %v10851
    %10853 = vmatmul.f32.gmra.mxu0 %v10712
    %v10854 = vpop.f32.mrf.mxu0
    %v10855 = vadd.f32 %v10532, %v10854
    %10856 = vmatmul.f32.gmra.mxu0 %v10714
    %v10857 = vpop.f32.mrf.mxu0
    %v10858 = vadd.f32 %v10535, %v10857
    %10859 = vmatmul.f32.gmra.mxu0 %v10716
    %v10860 = vpop.f32.mrf.mxu0
    %v10861 = vadd.f32 %v10538, %v10860
    %10862 = vmatmul.f32.gmra.mxu0 %v10718
    %v10863 = vpop.f32.mrf.mxu0
    %v10864 = vadd.f32 %v10541, %v10863
    %10865 = vmatmul.f32.gmra.mxu0 %v10720
    %v10866 = vpop.f32.mrf.mxu0
    %v10867 = vadd.f32 %v10544, %v10866
    %10868 = vmatmul.f32.gmra.mxu0 %v10722
    %v10869 = vpop.f32.mrf.mxu0
    %v10870 = vadd.f32 %v10547, %v10869
    %10871 = vmatmul.f32.gmra.mxu0 %v10724
    %v10872 = vpop.f32.mrf.mxu0
    %v10873 = vadd.f32 %v10550, %v10872
    %10874 = vmatmul.f32.gmra.mxu0 %v10696
    %v10875 = vpop.f32.mrf.mxu0
    %v10876 = vadd.f32 %v10553, %v10875
    %10877 = vmatmul.f32.gmra.mxu0 %v10726
    %v10878 = vpop.f32.mrf.mxu0
    %v10879 = vadd.f32 %v10556, %v10878
    %10880 = vmatmul.f32.gmra.mxu0 %v10728
    %v10881 = vpop.f32.mrf.mxu0
    %v10882 = vadd.f32 %v10559, %v10881
    %10883 = vmatmul.f32.gmra.mxu0 %v10730
    %v10884 = vpop.f32.mrf.mxu0
    %v10885 = vadd.f32 %v10562, %v10884
    %10886 = vmatmul.f32.gmra.mxu0 %v10732
    %v10887 = vpop.f32.mrf.mxu0
    %v10888 = vadd.f32 %v10565, %v10887
    %10889 = vmatmul.f32.gmra.mxu0 %v10734
    %v10890 = vpop.f32.mrf.mxu0
    %v10891 = vadd.f32 %v10568, %v10890
    %10892 = vmatmul.f32.gmra.mxu0 %v10736
    %v10893 = vpop.f32.mrf.mxu0
    %v10894 = vadd.f32 %v10571, %v10893
    %10895 = vmatmul.f32.gmra.mxu0 %v10738
    %v10896 = vpop.f32.mrf.mxu0
    %v10897 = vadd.f32 %v10574, %v10896
    %10898 = vmatmul.f32.gmra.mxu0 %v10696
    %v10899 = vpop.f32.mrf.mxu0
    %v10900 = vadd.f32 %v10577, %v10899
    %10901 = vmatmul.f32.gmra.mxu0 %v10740
    %v10902 = vpop.f32.mrf.mxu0
    %v10903 = vadd.f32 %v10580, %v10902
    %10904 = vmatmul.f32.gmra.mxu0 %v10742
    %v10905 = vpop.f32.mrf.mxu0
    %v10906 = vadd.f32 %v10583, %v10905
    %10907 = vmatmul.f32.gmra.mxu0 %v10744
    %v10908 = vpop.f32.mrf.mxu0
    %v10909 = vadd.f32 %v10586, %v10908
    %10910 = vmatmul.f32.gmra.mxu0 %v10746
    %v10911 = vpop.f32.mrf.mxu0
    %v10912 = vadd.f32 %v10589, %v10911
    %10913 = vmatmul.f32.gmra.mxu0 %v10748
    %v10914 = vpop.f32.mrf.mxu0
    %v10915 = vadd.f32 %v10592, %v10914
    %10916 = vmatmul.f32.gmra.mxu0 %v10750
    %v10917 = vpop.f32.mrf.mxu0
    %v10918 = vadd.f32 %v10595, %v10917
    %10919 = vmatmul.f32.gmra.mxu0 %v10752
    %v10920 = vpop.f32.mrf.mxu0
    %v10921 = vadd.f32 %v10598, %v10920
    %10922 = vmatmul.f32.gmra.mxu0 %v10696
    %v10923 = vpop.f32.mrf.mxu0
    %v10924 = vadd.f32 %v10601, %v10923
    %10925 = vmatmul.f32.gmra.mxu0 %v10754
    %v10926 = vpop.f32.mrf.mxu0
    %v10927 = vadd.f32 %v10604, %v10926
    %10928 = vmatmul.f32.gmra.mxu0 %v10756
    %v10929 = vpop.f32.mrf.mxu0
    %v10930 = vadd.f32 %v10607, %v10929
    %10931 = vmatmul.f32.gmra.mxu0 %v10758
    %v10932 = vpop.f32.mrf.mxu0
    %v10933 = vadd.f32 %v10610, %v10932
    %10934 = vmatmul.f32.gmra.mxu0 %v10760
    %v10935 = vpop.f32.mrf.mxu0
    %v10936 = vadd.f32 %v10613, %v10935
    %10937 = vmatmul.f32.gmra.mxu0 %v10762
    %v10938 = vpop.f32.mrf.mxu0
    %v10939 = vadd.f32 %v10616, %v10938
    %10940 = vmatmul.f32.gmra.mxu0 %v10764
    %v10941 = vpop.f32.mrf.mxu0
    %v10942 = vadd.f32 %v10619, %v10941
    %10943 = vmatmul.f32.gmra.mxu0 %v10766
    %v10944 = vpop.f32.mrf.mxu0
    %v10945 = vadd.f32 %v10622, %v10944
    %10946 = vmatmul.f32.gmra.mxu0 %v10696
    %v10947 = vpop.f32.mrf.mxu0
    %v10948 = vadd.f32 %v10625, %v10947
    %10949 = vmatmul.f32.gmra.mxu0 %v10768
    %v10950 = vpop.f32.mrf.mxu0
    %v10951 = vadd.f32 %v10628, %v10950
    %10952 = vmatmul.f32.gmra.mxu0 %v10770
    %v10953 = vpop.f32.mrf.mxu0
    %v10954 = vadd.f32 %v10631, %v10953
    %10955 = vmatmul.f32.gmra.mxu0 %v10772
    %v10956 = vpop.f32.mrf.mxu0
    %v10957 = vadd.f32 %v10634, %v10956
    %10958 = vmatmul.f32.gmra.mxu0 %v10774
    %v10959 = vpop.f32.mrf.mxu0
    %v10960 = vadd.f32 %v10637, %v10959
    %10961 = vmatmul.f32.gmra.mxu0 %v10776
    %v10962 = vpop.f32.mrf.mxu0
    %v10963 = vadd.f32 %v10640, %v10962
    %10964 = vmatmul.f32.gmra.mxu0 %v10778
    %v10965 = vpop.f32.mrf.mxu0
    %v10966 = vadd.f32 %v10643, %v10965
    %10967 = vmatmul.f32.gmra.mxu0 %v10780
    %v10968 = vpop.f32.mrf.mxu0
    %v10969 = vadd.f32 %v10646, %v10968
    %10970 = vmatmul.f32.gmra.mxu0 %v10696
    %v10971 = vpop.f32.mrf.mxu0
    %v10972 = vadd.f32 %v10649, %v10971
    %10973 = vmatmul.f32.gmra.mxu0 %v10782
    %v10974 = vpop.f32.mrf.mxu0
    %v10975 = vadd.f32 %v10652, %v10974
    %10976 = vmatmul.f32.gmra.mxu0 %v10784
    %v10977 = vpop.f32.mrf.mxu0
    %v10978 = vadd.f32 %v10655, %v10977
    %10979 = vmatmul.f32.gmra.mxu0 %v10786
    %v10980 = vpop.f32.mrf.mxu0
    %v10981 = vadd.f32 %v10658, %v10980
    %10982 = vmatmul.f32.gmra.mxu0 %v10788
    %v10983 = vpop.f32.mrf.mxu0
    %v10984 = vadd.f32 %v10661, %v10983
    %10985 = vmatmul.f32.gmra.mxu0 %v10790
    %v10986 = vpop.f32.mrf.mxu0
    %v10987 = vadd.f32 %v10664, %v10986
    %10988 = vmatmul.f32.gmra.mxu0 %v10792
    %v10989 = vpop.f32.mrf.mxu0
    %v10990 = vadd.f32 %v10667, %v10989
    %10991 = vmatmul.f32.gmra.mxu0 %v10794
    %v10992 = vpop.f32.mrf.mxu0
    %v10993 = vadd.f32 %v10670, %v10992
    %10994 = vmatmul.f32.gmra.mxu0 %v10696
    %v10995 = vpop.f32.mrf.mxu0
    %v10996 = vadd.f32 %v10673, %v10995
    %10997 = vmatmul.f32.gmra.mxu0 %v10796
    %v10998 = vpop.f32.mrf.mxu0
    %v10999 = vadd.f32 %v10676, %v10998
    %11000 = vmatmul.f32.gmra.mxu0 %v10798
    %v11001 = vpop.f32.mrf.mxu0
    %v11002 = vadd.f32 %v10679, %v11001
    %11003 = vmatmul.f32.gmra.mxu0 %v10800
    %v11004 = vpop.f32.mrf.mxu0
    %v11005 = vadd.f32 %v10682, %v11004
    %11006 = vmatmul.f32.gmra.mxu0 %v10802
    %v11007 = vpop.f32.mrf.mxu0
    %v11008 = vadd.f32 %v10685, %v11007
    %11009 = vmatmul.f32.gmra.mxu0 %v10804
    %v11010 = vpop.f32.mrf.mxu0
    %v11011 = vadd.f32 %v10688, %v11010
    %11012 = vmatmul.f32.gmra.mxu0 %v10806
    %v11013 = vpop.f32.mrf.mxu0
    %v11014 = vadd.f32 %v10691, %v11013
    %11015 = vmatmul.f32.gmra.mxu0 %v10808
    %v11016 = vpop.f32.mrf.mxu0
    %v11017 = vadd.f32 %v10694, %v11016
    %11018 = vdwg.mxu0
    %v11019 = vrot.slane %v9948, 2
    %v11020 = vrot.slane %v10013, 2
    %v11021 = vsel %vm4068, %v11019, %v11020
    %v11022 = vrot.slane %v9949, 2
    %v11023 = vrot.slane %v10014, 2
    %v11024 = vsel %vm4068, %v11022, %v11023
    %v11025 = vrot.slane %v9950, 2
    %v11026 = vrot.slane %v10015, 2
    %v11027 = vsel %vm4068, %v11025, %v11026
    %v11028 = vrot.slane %v9951, 2
    %v11029 = vrot.slane %v10016, 2
    %v11030 = vsel %vm4068, %v11028, %v11029
    %v11031 = vrot.slane %v9952, 2
    %v11032 = vrot.slane %v10017, 2
    %v11033 = vsel %vm4068, %v11031, %v11032
    %v11034 = vrot.slane %v9953, 2
    %v11035 = vrot.slane %v10018, 2
    %v11036 = vsel %vm4068, %v11034, %v11035
    %v11037 = vrot.slane %v9954, 2
    %v11038 = vrot.slane %v10019, 2
    %v11039 = vsel %vm4068, %v11037, %v11038
    %v11040 = vrot.slane %v9955, 2
    %v11041 = vrot.slane %v10020, 2
    %v11042 = vsel %vm4068, %v11040, %v11041
    %v11043 = vrot.slane %v9957, 2
    %v11044 = vrot.slane %v10022, 2
    %v11045 = vsel %vm4068, %v11043, %v11044
    %v11046 = vrot.slane %v9958, 2
    %v11047 = vrot.slane %v10023, 2
    %v11048 = vsel %vm4068, %v11046, %v11047
    %v11049 = vrot.slane %v9959, 2
    %v11050 = vrot.slane %v10024, 2
    %v11051 = vsel %vm4068, %v11049, %v11050
    %v11052 = vrot.slane %v9960, 2
    %v11053 = vrot.slane %v10025, 2
    %v11054 = vsel %vm4068, %v11052, %v11053
    %v11055 = vrot.slane %v9961, 2
    %v11056 = vrot.slane %v10026, 2
    %v11057 = vsel %vm4068, %v11055, %v11056
    %v11058 = vrot.slane %v9962, 2
    %v11059 = vrot.slane %v10027, 2
    %v11060 = vsel %vm4068, %v11058, %v11059
    %v11061 = vrot.slane %v9963, 2
    %v11062 = vrot.slane %v10028, 2
    %v11063 = vsel %vm4068, %v11061, %v11062
    %v11064 = vrot.slane %v9965, 2
    %v11065 = vrot.slane %v10030, 2
    %v11066 = vsel %vm4068, %v11064, %v11065
    %v11067 = vrot.slane %v9966, 2
    %v11068 = vrot.slane %v10031, 2
    %v11069 = vsel %vm4068, %v11067, %v11068
    %v11070 = vrot.slane %v9967, 2
    %v11071 = vrot.slane %v10032, 2
    %v11072 = vsel %vm4068, %v11070, %v11071
    %v11073 = vrot.slane %v9968, 2
    %v11074 = vrot.slane %v10033, 2
    %v11075 = vsel %vm4068, %v11073, %v11074
    %v11076 = vrot.slane %v9969, 2
    %v11077 = vrot.slane %v10034, 2
    %v11078 = vsel %vm4068, %v11076, %v11077
    %v11079 = vrot.slane %v9970, 2
    %v11080 = vrot.slane %v10035, 2
    %v11081 = vsel %vm4068, %v11079, %v11080
    %v11082 = vrot.slane %v9971, 2
    %v11083 = vrot.slane %v10036, 2
    %v11084 = vsel %vm4068, %v11082, %v11083
    %v11085 = vrot.slane %v9973, 2
    %v11086 = vrot.slane %v10038, 2
    %v11087 = vsel %vm4068, %v11085, %v11086
    %v11088 = vrot.slane %v9974, 2
    %v11089 = vrot.slane %v10039, 2
    %v11090 = vsel %vm4068, %v11088, %v11089
    %v11091 = vrot.slane %v9975, 2
    %v11092 = vrot.slane %v10040, 2
    %v11093 = vsel %vm4068, %v11091, %v11092
    %v11094 = vrot.slane %v9976, 2
    %v11095 = vrot.slane %v10041, 2
    %v11096 = vsel %vm4068, %v11094, %v11095
    %v11097 = vrot.slane %v9977, 2
    %v11098 = vrot.slane %v10042, 2
    %v11099 = vsel %vm4068, %v11097, %v11098
    %v11100 = vrot.slane %v9978, 2
    %v11101 = vrot.slane %v10043, 2
    %v11102 = vsel %vm4068, %v11100, %v11101
    %v11103 = vrot.slane %v9979, 2
    %v11104 = vrot.slane %v10044, 2
    %v11105 = vsel %vm4068, %v11103, %v11104
    %v11106 = vrot.slane %v9981, 2
    %v11107 = vrot.slane %v10046, 2
    %v11108 = vsel %vm4068, %v11106, %v11107
    %v11109 = vrot.slane %v9982, 2
    %v11110 = vrot.slane %v10047, 2
    %v11111 = vsel %vm4068, %v11109, %v11110
    %v11112 = vrot.slane %v9983, 2
    %v11113 = vrot.slane %v10048, 2
    %v11114 = vsel %vm4068, %v11112, %v11113
    %v11115 = vrot.slane %v9984, 2
    %v11116 = vrot.slane %v10049, 2
    %v11117 = vsel %vm4068, %v11115, %v11116
    %v11118 = vrot.slane %v9985, 2
    %v11119 = vrot.slane %v10050, 2
    %v11120 = vsel %vm4068, %v11118, %v11119
    %v11121 = vrot.slane %v9986, 2
    %v11122 = vrot.slane %v10051, 2
    %v11123 = vsel %vm4068, %v11121, %v11122
    %v11124 = vrot.slane %v9987, 2
    %v11125 = vrot.slane %v10052, 2
    %v11126 = vsel %vm4068, %v11124, %v11125
    %v11127 = vrot.slane %v9989, 2
    %v11128 = vrot.slane %v10054, 2
    %v11129 = vsel %vm4068, %v11127, %v11128
    %v11130 = vrot.slane %v9990, 2
    %v11131 = vrot.slane %v10055, 2
    %v11132 = vsel %vm4068, %v11130, %v11131
    %v11133 = vrot.slane %v9991, 2
    %v11134 = vrot.slane %v10056, 2
    %v11135 = vsel %vm4068, %v11133, %v11134
    %v11136 = vrot.slane %v9992, 2
    %v11137 = vrot.slane %v10057, 2
    %v11138 = vsel %vm4068, %v11136, %v11137
    %v11139 = vrot.slane %v9993, 2
    %v11140 = vrot.slane %v10058, 2
    %v11141 = vsel %vm4068, %v11139, %v11140
    %v11142 = vrot.slane %v9994, 2
    %v11143 = vrot.slane %v10059, 2
    %v11144 = vsel %vm4068, %v11142, %v11143
    %v11145 = vrot.slane %v9995, 2
    %v11146 = vrot.slane %v10060, 2
    %v11147 = vsel %vm4068, %v11145, %v11146
    %v11148 = vrot.slane %v9997, 2
    %v11149 = vrot.slane %v10062, 2
    %v11150 = vsel %vm4068, %v11148, %v11149
    %v11151 = vrot.slane %v9998, 2
    %v11152 = vrot.slane %v10063, 2
    %v11153 = vsel %vm4068, %v11151, %v11152
    %v11154 = vrot.slane %v9999, 2
    %v11155 = vrot.slane %v10064, 2
    %v11156 = vsel %vm4068, %v11154, %v11155
    %v11157 = vrot.slane %v10000, 2
    %v11158 = vrot.slane %v10065, 2
    %v11159 = vsel %vm4068, %v11157, %v11158
    %v11160 = vrot.slane %v10001, 2
    %v11161 = vrot.slane %v10066, 2
    %v11162 = vsel %vm4068, %v11160, %v11161
    %v11163 = vrot.slane %v10002, 2
    %v11164 = vrot.slane %v10067, 2
    %v11165 = vsel %vm4068, %v11163, %v11164
    %v11166 = vrot.slane %v10003, 2
    %v11167 = vrot.slane %v10068, 2
    %v11168 = vsel %vm4068, %v11166, %v11167
    %v11169 = vrot.slane %v10005, 2
    %v11170 = vrot.slane %v10070, 2
    %v11171 = vsel %vm4068, %v11169, %v11170
    %v11172 = vrot.slane %v10006, 2
    %v11173 = vrot.slane %v10071, 2
    %v11174 = vsel %vm4068, %v11172, %v11173
    %v11175 = vrot.slane %v10007, 2
    %v11176 = vrot.slane %v10072, 2
    %v11177 = vsel %vm4068, %v11175, %v11176
    %v11178 = vrot.slane %v10008, 2
    %v11179 = vrot.slane %v10073, 2
    %v11180 = vsel %vm4068, %v11178, %v11179
    %v11181 = vrot.slane %v10009, 2
    %v11182 = vrot.slane %v10074, 2
    %v11183 = vsel %vm4068, %v11181, %v11182
    %v11184 = vrot.slane %v10010, 2
    %v11185 = vrot.slane %v10075, 2
    %v11186 = vsel %vm4068, %v11184, %v11185
    %v11187 = vrot.slane %v10011, 2
    %v11188 = vrot.slane %v10076, 2
    %v11189 = vsel %vm4068, %v11187, %v11188
    %v11190 = vld [vmem:[%s3 + $0x50] sm:$0xff]
    %v11191 = vld [vmem:[%s3 + $0x58] sm:$0xff]
    %v11192 = vld [vmem:[%s3 + $0x60] sm:$0xff]
    %v11193 = vld [vmem:[%s3 + $0x68] sm:$0xff]
    %v11194 = vld [vmem:[%s3 + $0x70] sm:$0xff]
    %v11195 = vsel %vm8857, %v11021, 0
    %v11197 = vsel %vm8857, %v11024, 0
    %v11199 = vsel %vm8857, %v11027, 0
    %v11201 = vsel %vm8857, %v11030, 0
    %v11203 = vsel %vm8857, %v11033, 0
    %v11205 = vsel %vm8857, %v11036, 0
    %v11207 = vsel %vm8857, %v11039, 0
    %v11209 = vsel %vm8857, %v11042, 0
    %v11211 = vsel %vm8857, %v11045, 0
    %v11213 = vsel %vm8857, %v11048, 0
    %v11215 = vsel %vm8857, %v11051, 0
    %v11217 = vsel %vm8857, %v11054, 0
    %v11219 = vsel %vm8857, %v11057, 0
    %v11221 = vsel %vm8857, %v11060, 0
    %v11223 = vsel %vm8857, %v11063, 0
    %v11225 = vsel %vm8857, %v11066, 0
    %v11227 = vsel %vm8857, %v11069, 0
    %v11229 = vsel %vm8857, %v11072, 0
    %v11231 = vsel %vm8857, %v11075, 0
    %v11233 = vsel %vm8857, %v11078, 0
    %v11235 = vsel %vm8857, %v11081, 0
    %v11237 = vsel %vm8857, %v11084, 0
    %v11239 = vsel %vm8857, %v11087, 0
    %v11241 = vsel %vm8857, %v11090, 0
    %v11243 = vsel %vm8857, %v11093, 0
    %v11245 = vsel %vm8857, %v11096, 0
    %v11247 = vsel %vm8857, %v11099, 0
    %v11249 = vsel %vm8857, %v11102, 0
    %v11251 = vsel %vm8857, %v11105, 0
    %v11253 = vsel %vm8857, %v11108, 0
    %v11255 = vsel %vm8857, %v11111, 0
    %v11257 = vsel %vm8857, %v11114, 0
    %v11259 = vsel %vm8857, %v11117, 0
    %v11261 = vsel %vm8857, %v11120, 0
    %v11263 = vsel %vm8857, %v11123, 0
    %v11265 = vsel %vm8857, %v11126, 0
    %v11267 = vsel %vm8857, %v11129, 0
    %v11269 = vsel %vm8857, %v11132, 0
    %v11271 = vsel %vm8857, %v11135, 0
    %v11273 = vsel %vm8857, %v11138, 0
    %v11275 = vsel %vm8857, %v11141, 0
    %v11277 = vsel %vm8857, %v11144, 0
    %v11279 = vsel %vm8857, %v11147, 0
    %v11281 = vsel %vm8857, %v11150, 0
    %v11283 = vsel %vm8857, %v11153, 0
    %v11285 = vsel %vm8857, %v11156, 0
    %v11287 = vsel %vm8857, %v11159, 0
    %v11289 = vsel %vm8857, %v11162, 0
    %v11291 = vsel %vm8857, %v11165, 0
    %v11293 = vsel %vm8857, %v11168, 0
    %v11295 = vsel %vm8857, %v11171, 0
    %v11297 = vsel %vm8857, %v11174, 0
    %v11299 = vsel %vm8857, %v11177, 0
    %v11301 = vsel %vm8857, %v11180, 0
    %v11303 = vsel %vm8857, %v11183, 0
    %v11305 = vsel %vm8857, %v11186, 0
    %v11307 = vsel %vm8857, %v11189, 0
    %11309 = vmatpush.msra.mxu0 0.0
    %11310 = vmatpush.msra.mxu0 0.0
    %11311 = vmatpush.msra.mxu0 0.0
    %11312 = vmatpush.msra.mxu0 0.0
    %11313 = vmatpush.msra.mxu0 0.0
    %11314 = vmatpush.msra.mxu0 0.0
    %11315 = vmatpush.msra.mxu0 0.0
    %11316 = vmatpush.msra.mxu0 0.0
    %11317 = vmatpush.msra.mxu0 0.0
    %11318 = vmatpush.msra.mxu0 0.0
    %11319 = vmatpush.msra.mxu0 0.0
    %11320 = vmatpush.msra.mxu0 %v11194
    %11321 = vmatpush.msra.mxu0 %v11193
    %11322 = vmatpush.msra.mxu0 %v11192
    %11323 = vmatpush.msra.mxu0 %v11191
    %11324 = vmatpush.msra.mxu0 %v11190
    %11325 = vmatmul.f32.gmra.mxu0 %v11195
    %v11326 = vpop.f32.mrf.mxu0
    %v11327 = vadd.f32 0.0, %v11326
    %11328 = vmatmul.f32.gmra.mxu0 %v11197
    %v11329 = vpop.f32.mrf.mxu0
    %v11330 = vadd.f32 0.0, %v11329
    %11331 = vmatmul.f32.gmra.mxu0 %v11199
    %v11332 = vpop.f32.mrf.mxu0
    %v11333 = vadd.f32 0.0, %v11332
    %11334 = vmatmul.f32.gmra.mxu0 %v11201
    %v11335 = vpop.f32.mrf.mxu0
    %v11336 = vadd.f32 0.0, %v11335
    %11337 = vmatmul.f32.gmra.mxu0 %v11203
    %v11338 = vpop.f32.mrf.mxu0
    %v11339 = vadd.f32 0.0, %v11338
    %11340 = vmatmul.f32.gmra.mxu0 %v11205
    %v11341 = vpop.f32.mrf.mxu0
    %v11342 = vadd.f32 0.0, %v11341
    %11343 = vmatmul.f32.gmra.mxu0 %v11207
    %v11344 = vpop.f32.mrf.mxu0
    %v11345 = vadd.f32 0.0, %v11344
    %11346 = vmatmul.f32.gmra.mxu0 %v11209
    %v11347 = vpop.f32.mrf.mxu0
    %v11348 = vadd.f32 0.0, %v11347
    %11349 = vmatmul.f32.gmra.mxu0 %v11195
    %v11350 = vpop.f32.mrf.mxu0
    %v11351 = vadd.f32 0.0, %v11350
    %11352 = vmatmul.f32.gmra.mxu0 %v11211
    %v11353 = vpop.f32.mrf.mxu0
    %v11354 = vadd.f32 0.0, %v11353
    %11355 = vmatmul.f32.gmra.mxu0 %v11213
    %v11356 = vpop.f32.mrf.mxu0
    %v11357 = vadd.f32 0.0, %v11356
    %11358 = vmatmul.f32.gmra.mxu0 %v11215
    %v11359 = vpop.f32.mrf.mxu0
    %v11360 = vadd.f32 0.0, %v11359
    %11361 = vmatmul.f32.gmra.mxu0 %v11217
    %v11362 = vpop.f32.mrf.mxu0
    %v11363 = vadd.f32 0.0, %v11362
    %11364 = vmatmul.f32.gmra.mxu0 %v11219
    %v11365 = vpop.f32.mrf.mxu0
    %v11366 = vadd.f32 0.0, %v11365
    %11367 = vmatmul.f32.gmra.mxu0 %v11221
    %v11368 = vpop.f32.mrf.mxu0
    %v11369 = vadd.f32 0.0, %v11368
    %11370 = vmatmul.f32.gmra.mxu0 %v11223
    %v11371 = vpop.f32.mrf.mxu0
    %v11372 = vadd.f32 0.0, %v11371
    %11373 = vmatmul.f32.gmra.mxu0 %v11195
    %v11374 = vpop.f32.mrf.mxu0
    %v11375 = vadd.f32 0.0, %v11374
    %11376 = vmatmul.f32.gmra.mxu0 %v11225
    %v11377 = vpop.f32.mrf.mxu0
    %v11378 = vadd.f32 0.0, %v11377
    %11379 = vmatmul.f32.gmra.mxu0 %v11227
    %v11380 = vpop.f32.mrf.mxu0
    %v11381 = vadd.f32 0.0, %v11380
    %11382 = vmatmul.f32.gmra.mxu0 %v11229
    %v11383 = vpop.f32.mrf.mxu0
    %v11384 = vadd.f32 0.0, %v11383
    %11385 = vmatmul.f32.gmra.mxu0 %v11231
    %v11386 = vpop.f32.mrf.mxu0
    %v11387 = vadd.f32 0.0, %v11386
    %11388 = vmatmul.f32.gmra.mxu0 %v11233
    %v11389 = vpop.f32.mrf.mxu0
    %v11390 = vadd.f32 0.0, %v11389
    %11391 = vmatmul.f32.gmra.mxu0 %v11235
    %v11392 = vpop.f32.mrf.mxu0
    %v11393 = vadd.f32 0.0, %v11392
    %11394 = vmatmul.f32.gmra.mxu0 %v11237
    %v11395 = vpop.f32.mrf.mxu0
    %v11396 = vadd.f32 0.0, %v11395
    %11397 = vmatmul.f32.gmra.mxu0 %v11195
    %v11398 = vpop.f32.mrf.mxu0
    %v11399 = vadd.f32 0.0, %v11398
    %11400 = vmatmul.f32.gmra.mxu0 %v11239
    %v11401 = vpop.f32.mrf.mxu0
    %v11402 = vadd.f32 0.0, %v11401
    %11403 = vmatmul.f32.gmra.mxu0 %v11241
    %v11404 = vpop.f32.mrf.mxu0
    %v11405 = vadd.f32 0.0, %v11404
    %11406 = vmatmul.f32.gmra.mxu0 %v11243
    %v11407 = vpop.f32.mrf.mxu0
    %v11408 = vadd.f32 0.0, %v11407
    %11409 = vmatmul.f32.gmra.mxu0 %v11245
    %v11410 = vpop.f32.mrf.mxu0
    %v11411 = vadd.f32 0.0, %v11410
    %11412 = vmatmul.f32.gmra.mxu0 %v11247
    %v11413 = vpop.f32.mrf.mxu0
    %v11414 = vadd.f32 0.0, %v11413
    %11415 = vmatmul.f32.gmra.mxu0 %v11249
    %v11416 = vpop.f32.mrf.mxu0
    %v11417 = vadd.f32 0.0, %v11416
    %11418 = vmatmul.f32.gmra.mxu0 %v11251
    %v11419 = vpop.f32.mrf.mxu0
    %v11420 = vadd.f32 0.0, %v11419
    %11421 = vmatmul.f32.gmra.mxu0 %v11195
    %v11422 = vpop.f32.mrf.mxu0
    %v11423 = vadd.f32 0.0, %v11422
    %11424 = vmatmul.f32.gmra.mxu0 %v11253
    %v11425 = vpop.f32.mrf.mxu0
    %v11426 = vadd.f32 0.0, %v11425
    %11427 = vmatmul.f32.gmra.mxu0 %v11255
    %v11428 = vpop.f32.mrf.mxu0
    %v11429 = vadd.f32 0.0, %v11428
    %11430 = vmatmul.f32.gmra.mxu0 %v11257
    %v11431 = vpop.f32.mrf.mxu0
    %v11432 = vadd.f32 0.0, %v11431
    %11433 = vmatmul.f32.gmra.mxu0 %v11259
    %v11434 = vpop.f32.mrf.mxu0
    %v11435 = vadd.f32 0.0, %v11434
    %11436 = vmatmul.f32.gmra.mxu0 %v11261
    %v11437 = vpop.f32.mrf.mxu0
    %v11438 = vadd.f32 0.0, %v11437
    %11439 = vmatmul.f32.gmra.mxu0 %v11263
    %v11440 = vpop.f32.mrf.mxu0
    %v11441 = vadd.f32 0.0, %v11440
    %11442 = vmatmul.f32.gmra.mxu0 %v11265
    %v11443 = vpop.f32.mrf.mxu0
    %v11444 = vadd.f32 0.0, %v11443
    %11445 = vmatmul.f32.gmra.mxu0 %v11195
    %v11446 = vpop.f32.mrf.mxu0
    %v11447 = vadd.f32 0.0, %v11446
    %11448 = vmatmul.f32.gmra.mxu0 %v11267
    %v11449 = vpop.f32.mrf.mxu0
    %v11450 = vadd.f32 0.0, %v11449
    %11451 = vmatmul.f32.gmra.mxu0 %v11269
    %v11452 = vpop.f32.mrf.mxu0
    %v11453 = vadd.f32 0.0, %v11452
    %11454 = vmatmul.f32.gmra.mxu0 %v11271
    %v11455 = vpop.f32.mrf.mxu0
    %v11456 = vadd.f32 0.0, %v11455
    %11457 = vmatmul.f32.gmra.mxu0 %v11273
    %v11458 = vpop.f32.mrf.mxu0
    %v11459 = vadd.f32 0.0, %v11458
    %11460 = vmatmul.f32.gmra.mxu0 %v11275
    %v11461 = vpop.f32.mrf.mxu0
    %v11462 = vadd.f32 0.0, %v11461
    %11463 = vmatmul.f32.gmra.mxu0 %v11277
    %v11464 = vpop.f32.mrf.mxu0
    %v11465 = vadd.f32 0.0, %v11464
    %11466 = vmatmul.f32.gmra.mxu0 %v11279
    %v11467 = vpop.f32.mrf.mxu0
    %v11468 = vadd.f32 0.0, %v11467
    %11469 = vmatmul.f32.gmra.mxu0 %v11195
    %v11470 = vpop.f32.mrf.mxu0
    %v11471 = vadd.f32 0.0, %v11470
    %11472 = vmatmul.f32.gmra.mxu0 %v11281
    %v11473 = vpop.f32.mrf.mxu0
    %v11474 = vadd.f32 0.0, %v11473
    %11475 = vmatmul.f32.gmra.mxu0 %v11283
    %v11476 = vpop.f32.mrf.mxu0
    %v11477 = vadd.f32 0.0, %v11476
    %11478 = vmatmul.f32.gmra.mxu0 %v11285
    %v11479 = vpop.f32.mrf.mxu0
    %v11480 = vadd.f32 0.0, %v11479
    %11481 = vmatmul.f32.gmra.mxu0 %v11287
    %v11482 = vpop.f32.mrf.mxu0
    %v11483 = vadd.f32 0.0, %v11482
    %11484 = vmatmul.f32.gmra.mxu0 %v11289
    %v11485 = vpop.f32.mrf.mxu0
    %v11486 = vadd.f32 0.0, %v11485
    %11487 = vmatmul.f32.gmra.mxu0 %v11291
    %v11488 = vpop.f32.mrf.mxu0
    %v11489 = vadd.f32 0.0, %v11488
    %11490 = vmatmul.f32.gmra.mxu0 %v11293
    %v11491 = vpop.f32.mrf.mxu0
    %v11492 = vadd.f32 0.0, %v11491
    %11493 = vmatmul.f32.gmra.mxu0 %v11195
    %v11494 = vpop.f32.mrf.mxu0
    %v11495 = vadd.f32 0.0, %v11494
    %11496 = vmatmul.f32.gmra.mxu0 %v11295
    %v11497 = vpop.f32.mrf.mxu0
    %v11498 = vadd.f32 0.0, %v11497
    %11499 = vmatmul.f32.gmra.mxu0 %v11297
    %v11500 = vpop.f32.mrf.mxu0
    %v11501 = vadd.f32 0.0, %v11500
    %11502 = vmatmul.f32.gmra.mxu0 %v11299
    %v11503 = vpop.f32.mrf.mxu0
    %v11504 = vadd.f32 0.0, %v11503
    %11505 = vmatmul.f32.gmra.mxu0 %v11301
    %v11506 = vpop.f32.mrf.mxu0
    %v11507 = vadd.f32 0.0, %v11506
    %11508 = vmatmul.f32.gmra.mxu0 %v11303
    %v11509 = vpop.f32.mrf.mxu0
    %v11510 = vadd.f32 0.0, %v11509
    %11511 = vmatmul.f32.gmra.mxu0 %v11305
    %v11512 = vpop.f32.mrf.mxu0
    %v11513 = vadd.f32 0.0, %v11512
    %11514 = vmatmul.f32.gmra.mxu0 %v11307
    %v11515 = vpop.f32.mrf.mxu0
    %v11516 = vadd.f32 0.0, %v11515
    %11517 = vdwg.mxu0
    %v11518 = vadd.f32 %v10828, %v11327
    %v11519 = vadd.f32 %v10831, %v11330
    %v11520 = vadd.f32 %v10834, %v11333
    %v11521 = vadd.f32 %v10837, %v11336
    %v11522 = vadd.f32 %v10840, %v11339
    %v11523 = vadd.f32 %v10843, %v11342
    %v11524 = vadd.f32 %v10846, %v11345
    %v11525 = vadd.f32 %v10849, %v11348
    %v11526 = vadd.f32 %v10852, %v11351
    %v11527 = vadd.f32 %v10855, %v11354
    %v11528 = vadd.f32 %v10858, %v11357
    %v11529 = vadd.f32 %v10861, %v11360
    %v11530 = vadd.f32 %v10864, %v11363
    %v11531 = vadd.f32 %v10867, %v11366
    %v11532 = vadd.f32 %v10870, %v11369
    %v11533 = vadd.f32 %v10873, %v11372
    %v11534 = vadd.f32 %v10876, %v11375
    %v11535 = vadd.f32 %v10879, %v11378
    %v11536 = vadd.f32 %v10882, %v11381
    %v11537 = vadd.f32 %v10885, %v11384
    %v11538 = vadd.f32 %v10888, %v11387
    %v11539 = vadd.f32 %v10891, %v11390
    %v11540 = vadd.f32 %v10894, %v11393
    %v11541 = vadd.f32 %v10897, %v11396
    %v11542 = vadd.f32 %v10900, %v11399
    %v11543 = vadd.f32 %v10903, %v11402
    %v11544 = vadd.f32 %v10906, %v11405
    %v11545 = vadd.f32 %v10909, %v11408
    %v11546 = vadd.f32 %v10912, %v11411
    %v11547 = vadd.f32 %v10915, %v11414
    %v11548 = vadd.f32 %v10918, %v11417
    %v11549 = vadd.f32 %v10921, %v11420
    %v11550 = vadd.f32 %v10924, %v11423
    %v11551 = vadd.f32 %v10927, %v11426
    %v11552 = vadd.f32 %v10930, %v11429
    %v11553 = vadd.f32 %v10933, %v11432
    %v11554 = vadd.f32 %v10936, %v11435
    %v11555 = vadd.f32 %v10939, %v11438
    %v11556 = vadd.f32 %v10942, %v11441
    %v11557 = vadd.f32 %v10945, %v11444
    %v11558 = vadd.f32 %v10948, %v11447
    %v11559 = vadd.f32 %v10951, %v11450
    %v11560 = vadd.f32 %v10954, %v11453
    %v11561 = vadd.f32 %v10957, %v11456
    %v11562 = vadd.f32 %v10960, %v11459
    %v11563 = vadd.f32 %v10963, %v11462
    %v11564 = vadd.f32 %v10966, %v11465
    %v11565 = vadd.f32 %v10969, %v11468
    %v11566 = vadd.f32 %v10972, %v11471
    %v11567 = vadd.f32 %v10975, %v11474
    %v11568 = vadd.f32 %v10978, %v11477
    %v11569 = vadd.f32 %v10981, %v11480
    %v11570 = vadd.f32 %v10984, %v11483
    %v11571 = vadd.f32 %v10987, %v11486
    %v11572 = vadd.f32 %v10990, %v11489
    %v11573 = vadd.f32 %v10993, %v11492
    %v11574 = vadd.f32 %v10996, %v11495
    %v11575 = vadd.f32 %v10999, %v11498
    %v11576 = vadd.f32 %v11002, %v11501
    %v11577 = vadd.f32 %v11005, %v11504
    %v11578 = vadd.f32 %v11008, %v11507
    %v11579 = vadd.f32 %v11011, %v11510
    %v11580 = vadd.f32 %v11014, %v11513
    %v11581 = vadd.f32 %v11017, %v11516
    %v11582 = vld [vmem:[%s3 + $0x78] sm:$0xff]
    %v11583 = vld [vmem:[%s3 + $0x80] sm:$0xff]
    %v11584 = vld [vmem:[%s3 + $0x88] sm:$0xff]
    %v11585 = vld [vmem:[%s3 + $0x90] sm:$0xff]
    %v11586 = vld [vmem:[%s3 + $0x98] sm:$0xff]
    %v11588 = vsel %vm8857, %v9956, 0
    %v11591 = vsel %vm8857, %v9964, 0
    %v11594 = vsel %vm8857, %v9972, 0
    %v11597 = vsel %vm8857, %v9980, 0
    %v11600 = vsel %vm8857, %v9988, 0
    %v11603 = vsel %vm8857, %v9996, 0
    %v11606 = vsel %vm8857, %v10004, 0
    %v11609 = vsel %vm8857, %v10012, 0
    %11611 = vmatpush.msra.mxu0 0.0
    %11612 = vmatpush.msra.mxu0 0.0
    %11613 = vmatpush.msra.mxu0 0.0
    %11614 = vmatpush.msra.mxu0 0.0
    %11615 = vmatpush.msra.mxu0 0.0
    %11616 = vmatpush.msra.mxu0 0.0
    %11617 = vmatpush.msra.mxu0 0.0
    %11618 = vmatpush.msra.mxu0 0.0
    %11619 = vmatpush.msra.mxu0 0.0
    %11620 = vmatpush.msra.mxu0 0.0
    %11621 = vmatpush.msra.mxu0 0.0
    %11622 = vmatpush.msra.mxu0 %v11586
    %11623 = vmatpush.msra.mxu0 %v11585
    %11624 = vmatpush.msra.mxu0 %v11584
    %11625 = vmatpush.msra.mxu0 %v11583
    %11626 = vmatpush.msra.mxu0 %v11582
    %11627 = vmatmul.f32.gmra.mxu0 %v10698
    %v11628 = vpop.f32.mrf.mxu0
    %v11629 = vadd.f32 0.0, %v11628
    %11630 = vmatmul.f32.gmra.mxu0 %v10700
    %v11631 = vpop.f32.mrf.mxu0
    %v11632 = vadd.f32 0.0, %v11631
    %11633 = vmatmul.f32.gmra.mxu0 %v10702
    %v11634 = vpop.f32.mrf.mxu0
    %v11635 = vadd.f32 0.0, %v11634
    %11636 = vmatmul.f32.gmra.mxu0 %v10704
    %v11637 = vpop.f32.mrf.mxu0
    %v11638 = vadd.f32 0.0, %v11637
    %11639 = vmatmul.f32.gmra.mxu0 %v10706
    %v11640 = vpop.f32.mrf.mxu0
    %v11641 = vadd.f32 0.0, %v11640
    %11642 = vmatmul.f32.gmra.mxu0 %v10708
    %v11643 = vpop.f32.mrf.mxu0
    %v11644 = vadd.f32 0.0, %v11643
    %11645 = vmatmul.f32.gmra.mxu0 %v10710
    %v11646 = vpop.f32.mrf.mxu0
    %v11647 = vadd.f32 0.0, %v11646
    %11648 = vmatmul.f32.gmra.mxu0 %v11588
    %v11649 = vpop.f32.mrf.mxu0
    %v11650 = vadd.f32 0.0, %v11649
    %11651 = vmatmul.f32.gmra.mxu0 %v10712
    %v11652 = vpop.f32.mrf.mxu0
    %v11653 = vadd.f32 0.0, %v11652
    %11654 = vmatmul.f32.gmra.mxu0 %v10714
    %v11655 = vpop.f32.mrf.mxu0
    %v11656 = vadd.f32 0.0, %v11655
    %11657 = vmatmul.f32.gmra.mxu0 %v10716
    %v11658 = vpop.f32.mrf.mxu0
    %v11659 = vadd.f32 0.0, %v11658
    %11660 = vmatmul.f32.gmra.mxu0 %v10718
    %v11661 = vpop.f32.mrf.mxu0
    %v11662 = vadd.f32 0.0, %v11661
    %11663 = vmatmul.f32.gmra.mxu0 %v10720
    %v11664 = vpop.f32.mrf.mxu0
    %v11665 = vadd.f32 0.0, %v11664
    %11666 = vmatmul.f32.gmra.mxu0 %v10722
    %v11667 = vpop.f32.mrf.mxu0
    %v11668 = vadd.f32 0.0, %v11667
    %11669 = vmatmul.f32.gmra.mxu0 %v10724
    %v11670 = vpop.f32.mrf.mxu0
    %v11671 = vadd.f32 0.0, %v11670
    %11672 = vmatmul.f32.gmra.mxu0 %v11591
    %v11673 = vpop.f32.mrf.mxu0
    %v11674 = vadd.f32 0.0, %v11673
    %11675 = vmatmul.f32.gmra.mxu0 %v10726
    %v11676 = vpop.f32.mrf.mxu0
    %v11677 = vadd.f32 0.0, %v11676
    %11678 = vmatmul.f32.gmra.mxu0 %v10728
    %v11679 = vpop.f32.mrf.mxu0
    %v11680 = vadd.f32 0.0, %v11679
    %11681 = vmatmul.f32.gmra.mxu0 %v10730
    %v11682 = vpop.f32.mrf.mxu0
    %v11683 = vadd.f32 0.0, %v11682
    %11684 = vmatmul.f32.gmra.mxu0 %v10732
    %v11685 = vpop.f32.mrf.mxu0
    %v11686 = vadd.f32 0.0, %v11685
    %11687 = vmatmul.f32.gmra.mxu0 %v10734
    %v11688 = vpop.f32.mrf.mxu0
    %v11689 = vadd.f32 0.0, %v11688
    %11690 = vmatmul.f32.gmra.mxu0 %v10736
    %v11691 = vpop.f32.mrf.mxu0
    %v11692 = vadd.f32 0.0, %v11691
    %11693 = vmatmul.f32.gmra.mxu0 %v10738
    %v11694 = vpop.f32.mrf.mxu0
    %v11695 = vadd.f32 0.0, %v11694
    %11696 = vmatmul.f32.gmra.mxu0 %v11594
    %v11697 = vpop.f32.mrf.mxu0
    %v11698 = vadd.f32 0.0, %v11697
    %11699 = vmatmul.f32.gmra.mxu0 %v10740
    %v11700 = vpop.f32.mrf.mxu0
    %v11701 = vadd.f32 0.0, %v11700
    %11702 = vmatmul.f32.gmra.mxu0 %v10742
    %v11703 = vpop.f32.mrf.mxu0
    %v11704 = vadd.f32 0.0, %v11703
    %11705 = vmatmul.f32.gmra.mxu0 %v10744
    %v11706 = vpop.f32.mrf.mxu0
    %v11707 = vadd.f32 0.0, %v11706
    %11708 = vmatmul.f32.gmra.mxu0 %v10746
    %v11709 = vpop.f32.mrf.mxu0
    %v11710 = vadd.f32 0.0, %v11709
    %11711 = vmatmul.f32.gmra.mxu0 %v10748
    %v11712 = vpop.f32.mrf.mxu0
    %v11713 = vadd.f32 0.0, %v11712
    %11714 = vmatmul.f32.gmra.mxu0 %v10750
    %v11715 = vpop.f32.mrf.mxu0
    %v11716 = vadd.f32 0.0, %v11715
    %11717 = vmatmul.f32.gmra.mxu0 %v10752
    %v11718 = vpop.f32.mrf.mxu0
    %v11719 = vadd.f32 0.0, %v11718
    %11720 = vmatmul.f32.gmra.mxu0 %v11597
    %v11721 = vpop.f32.mrf.mxu0
    %v11722 = vadd.f32 0.0, %v11721
    %11723 = vmatmul.f32.gmra.mxu0 %v10754
    %v11724 = vpop.f32.mrf.mxu0
    %v11725 = vadd.f32 0.0, %v11724
    %11726 = vmatmul.f32.gmra.mxu0 %v10756
    %v11727 = vpop.f32.mrf.mxu0
    %v11728 = vadd.f32 0.0, %v11727
    %11729 = vmatmul.f32.gmra.mxu0 %v10758
    %v11730 = vpop.f32.mrf.mxu0
    %v11731 = vadd.f32 0.0, %v11730
    %11732 = vmatmul.f32.gmra.mxu0 %v10760
    %v11733 = vpop.f32.mrf.mxu0
    %v11734 = vadd.f32 0.0, %v11733
    %11735 = vmatmul.f32.gmra.mxu0 %v10762
    %v11736 = vpop.f32.mrf.mxu0
    %v11737 = vadd.f32 0.0, %v11736
    %11738 = vmatmul.f32.gmra.mxu0 %v10764
    %v11739 = vpop.f32.mrf.mxu0
    %v11740 = vadd.f32 0.0, %v11739
    %11741 = vmatmul.f32.gmra.mxu0 %v10766
    %v11742 = vpop.f32.mrf.mxu0
    %v11743 = vadd.f32 0.0, %v11742
    %11744 = vmatmul.f32.gmra.mxu0 %v11600
    %v11745 = vpop.f32.mrf.mxu0
    %v11746 = vadd.f32 0.0, %v11745
    %11747 = vmatmul.f32.gmra.mxu0 %v10768
    %v11748 = vpop.f32.mrf.mxu0
    %v11749 = vadd.f32 0.0, %v11748
    %11750 = vmatmul.f32.gmra.mxu0 %v10770
    %v11751 = vpop.f32.mrf.mxu0
    %v11752 = vadd.f32 0.0, %v11751
    %11753 = vmatmul.f32.gmra.mxu0 %v10772
    %v11754 = vpop.f32.mrf.mxu0
    %v11755 = vadd.f32 0.0, %v11754
    %11756 = vmatmul.f32.gmra.mxu0 %v10774
    %v11757 = vpop.f32.mrf.mxu0
    %v11758 = vadd.f32 0.0, %v11757
    %11759 = vmatmul.f32.gmra.mxu0 %v10776
    %v11760 = vpop.f32.mrf.mxu0
    %v11761 = vadd.f32 0.0, %v11760
    %11762 = vmatmul.f32.gmra.mxu0 %v10778
    %v11763 = vpop.f32.mrf.mxu0
    %v11764 = vadd.f32 0.0, %v11763
    %11765 = vmatmul.f32.gmra.mxu0 %v10780
    %v11766 = vpop.f32.mrf.mxu0
    %v11767 = vadd.f32 0.0, %v11766
    %11768 = vmatmul.f32.gmra.mxu0 %v11603
    %v11769 = vpop.f32.mrf.mxu0
    %v11770 = vadd.f32 0.0, %v11769
    %11771 = vmatmul.f32.gmra.mxu0 %v10782
    %v11772 = vpop.f32.mrf.mxu0
    %v11773 = vadd.f32 0.0, %v11772
    %11774 = vmatmul.f32.gmra.mxu0 %v10784
    %v11775 = vpop.f32.mrf.mxu0
    %v11776 = vadd.f32 0.0, %v11775
    %11777 = vmatmul.f32.gmra.mxu0 %v10786
    %v11778 = vpop.f32.mrf.mxu0
    %v11779 = vadd.f32 0.0, %v11778
    %11780 = vmatmul.f32.gmra.mxu0 %v10788
    %v11781 = vpop.f32.mrf.mxu0
    %v11782 = vadd.f32 0.0, %v11781
    %11783 = vmatmul.f32.gmra.mxu0 %v10790
    %v11784 = vpop.f32.mrf.mxu0
    %v11785 = vadd.f32 0.0, %v11784
    %11786 = vmatmul.f32.gmra.mxu0 %v10792
    %v11787 = vpop.f32.mrf.mxu0
    %v11788 = vadd.f32 0.0, %v11787
    %11789 = vmatmul.f32.gmra.mxu0 %v10794
    %v11790 = vpop.f32.mrf.mxu0
    %v11791 = vadd.f32 0.0, %v11790
    %11792 = vmatmul.f32.gmra.mxu0 %v11606
    %v11793 = vpop.f32.mrf.mxu0
    %v11794 = vadd.f32 0.0, %v11793
    %11795 = vmatmul.f32.gmra.mxu0 %v10796
    %v11796 = vpop.f32.mrf.mxu0
    %v11797 = vadd.f32 0.0, %v11796
    %11798 = vmatmul.f32.gmra.mxu0 %v10798
    %v11799 = vpop.f32.mrf.mxu0
    %v11800 = vadd.f32 0.0, %v11799
    %11801 = vmatmul.f32.gmra.mxu0 %v10800
    %v11802 = vpop.f32.mrf.mxu0
    %v11803 = vadd.f32 0.0, %v11802
    %11804 = vmatmul.f32.gmra.mxu0 %v10802
    %v11805 = vpop.f32.mrf.mxu0
    %v11806 = vadd.f32 0.0, %v11805
    %11807 = vmatmul.f32.gmra.mxu0 %v10804
    %v11808 = vpop.f32.mrf.mxu0
    %v11809 = vadd.f32 0.0, %v11808
    %11810 = vmatmul.f32.gmra.mxu0 %v10806
    %v11811 = vpop.f32.mrf.mxu0
    %v11812 = vadd.f32 0.0, %v11811
    %11813 = vmatmul.f32.gmra.mxu0 %v10808
    %v11814 = vpop.f32.mrf.mxu0
    %v11815 = vadd.f32 0.0, %v11814
    %11816 = vmatmul.f32.gmra.mxu0 %v11609
    %v11817 = vpop.f32.mrf.mxu0
    %v11818 = vadd.f32 0.0, %v11817
    %11819 = vdwg.mxu0
    %v11820 = vadd.f32 %v11518, %v11629
    %v11821 = vadd.f32 %v11519, %v11632
    %v11822 = vadd.f32 %v11520, %v11635
    %v11823 = vadd.f32 %v11521, %v11638
    %v11824 = vadd.f32 %v11522, %v11641
    %v11825 = vadd.f32 %v11523, %v11644
    %v11826 = vadd.f32 %v11524, %v11647
    %v11827 = vadd.f32 %v11525, %v11650
    %v11828 = vadd.f32 %v11526, %v11653
    %v11829 = vadd.f32 %v11527, %v11656
    %v11830 = vadd.f32 %v11528, %v11659
    %v11831 = vadd.f32 %v11529, %v11662
    %v11832 = vadd.f32 %v11530, %v11665
    %v11833 = vadd.f32 %v11531, %v11668
    %v11834 = vadd.f32 %v11532, %v11671
    %v11835 = vadd.f32 %v11533, %v11674
    %v11836 = vadd.f32 %v11534, %v11677
    %v11837 = vadd.f32 %v11535, %v11680
    %v11838 = vadd.f32 %v11536, %v11683
    %v11839 = vadd.f32 %v11537, %v11686
    %v11840 = vadd.f32 %v11538, %v11689
    %v11841 = vadd.f32 %v11539, %v11692
    %v11842 = vadd.f32 %v11540, %v11695
    %v11843 = vadd.f32 %v11541, %v11698
    %v11844 = vadd.f32 %v11542, %v11701
    %v11845 = vadd.f32 %v11543, %v11704
    %v11846 = vadd.f32 %v11544, %v11707
    %v11847 = vadd.f32 %v11545, %v11710
    %v11848 = vadd.f32 %v11546, %v11713
    %v11849 = vadd.f32 %v11547, %v11716
    %v11850 = vadd.f32 %v11548, %v11719
    %v11851 = vadd.f32 %v11549, %v11722
    %v11852 = vadd.f32 %v11550, %v11725
    %v11853 = vadd.f32 %v11551, %v11728
    %v11854 = vadd.f32 %v11552, %v11731
    %v11855 = vadd.f32 %v11553, %v11734
    %v11856 = vadd.f32 %v11554, %v11737
    %v11857 = vadd.f32 %v11555, %v11740
    %v11858 = vadd.f32 %v11556, %v11743
    %v11859 = vadd.f32 %v11557, %v11746
    %v11860 = vadd.f32 %v11558, %v11749
    %v11861 = vadd.f32 %v11559, %v11752
    %v11862 = vadd.f32 %v11560, %v11755
    %v11863 = vadd.f32 %v11561, %v11758
    %v11864 = vadd.f32 %v11562, %v11761
    %v11865 = vadd.f32 %v11563, %v11764
    %v11866 = vadd.f32 %v11564, %v11767
    %v11867 = vadd.f32 %v11565, %v11770
    %v11868 = vadd.f32 %v11566, %v11773
    %v11869 = vadd.f32 %v11567, %v11776
    %v11870 = vadd.f32 %v11568, %v11779
    %v11871 = vadd.f32 %v11569, %v11782
    %v11872 = vadd.f32 %v11570, %v11785
    %v11873 = vadd.f32 %v11571, %v11788
    %v11874 = vadd.f32 %v11572, %v11791
    %v11875 = vadd.f32 %v11573, %v11794
    %v11876 = vadd.f32 %v11574, %v11797
    %v11877 = vadd.f32 %v11575, %v11800
    %v11878 = vadd.f32 %v11576, %v11803
    %v11879 = vadd.f32 %v11577, %v11806
    %v11880 = vadd.f32 %v11578, %v11809
    %v11881 = vadd.f32 %v11579, %v11812
    %v11882 = vadd.f32 %v11580, %v11815
    %v11883 = vadd.f32 %v11581, %v11818
    %v11892 = vrot.slane %v9956, 1
    %v11893 = vrot.slane %v10021, 1
    %v11894 = vsel %vm3171, %v11892, %v11893
    %v11895 = vrot.slane %v9964, 1
    %v11896 = vrot.slane %v10029, 1
    %v11897 = vsel %vm3171, %v11895, %v11896
    %v11898 = vrot.slane %v9972, 1
    %v11899 = vrot.slane %v10037, 1
    %v11900 = vsel %vm3171, %v11898, %v11899
    %v11901 = vrot.slane %v9980, 1
    %v11902 = vrot.slane %v10045, 1
    %v11903 = vsel %vm3171, %v11901, %v11902
    %v11904 = vrot.slane %v9988, 1
    %v11905 = vrot.slane %v10053, 1
    %v11906 = vsel %vm3171, %v11904, %v11905
    %v11907 = vrot.slane %v9996, 1
    %v11908 = vrot.slane %v10061, 1
    %v11909 = vsel %vm3171, %v11907, %v11908
    %v11910 = vrot.slane %v10004, 1
    %v11911 = vrot.slane %v10069, 1
    %v11912 = vsel %vm3171, %v11910, %v11911
    %v11913 = vrot.slane %v10012, 1
    %v11914 = vrot.slane %v10077, 1
    %v11915 = vsel %vm3171, %v11913, %v11914
    %v11916 = vld [vmem:[%s3 + $0xa0] sm:$0xff]
    %v11917 = vld [vmem:[%s3 + $0xa8] sm:$0xff]
    %v11918 = vld [vmem:[%s3 + $0xb0] sm:$0xff]
    %v11919 = vld [vmem:[%s3 + $0xb8] sm:$0xff]
    %v11920 = vld [vmem:[%s3 + $0xc0] sm:$0xff]
    %v11921 = vsel %vm8857, %v11894, 0
    %v11923 = vsel %vm8857, %v11897, 0
    %v11925 = vsel %vm8857, %v11900, 0
    %v11927 = vsel %vm8857, %v11903, 0
    %v11929 = vsel %vm8857, %v11906, 0
    %v11931 = vsel %vm8857, %v11909, 0
    %v11933 = vsel %vm8857, %v11912, 0
    %v11935 = vsel %vm8857, %v11915, 0
    %11937 = vmatpush.msra.mxu0 0.0
    %11938 = vmatpush.msra.mxu0 0.0
    %11939 = vmatpush.msra.mxu0 0.0
    %11940 = vmatpush.msra.mxu0 0.0
    %11941 = vmatpush.msra.mxu0 0.0
    %11942 = vmatpush.msra.mxu0 0.0
    %11943 = vmatpush.msra.mxu0 0.0
    %11944 = vmatpush.msra.mxu0 0.0
    %11945 = vmatpush.msra.mxu0 0.0
    %11946 = vmatpush.msra.mxu0 0.0
    %11947 = vmatpush.msra.mxu0 0.0
    %11948 = vmatpush.msra.mxu0 %v11920
    %11949 = vmatpush.msra.mxu0 %v11919
    %11950 = vmatpush.msra.mxu0 %v11918
    %11951 = vmatpush.msra.mxu0 %v11917
    %11952 = vmatpush.msra.mxu0 %v11916
    %11953 = vmatmul.f32.gmra.mxu0 %v10375
    %v11954 = vpop.f32.mrf.mxu0
    %v11955 = vadd.f32 0.0, %v11954
    %11956 = vmatmul.f32.gmra.mxu0 %v10377
    %v11957 = vpop.f32.mrf.mxu0
    %v11958 = vadd.f32 0.0, %v11957
    %11959 = vmatmul.f32.gmra.mxu0 %v10379
    %v11960 = vpop.f32.mrf.mxu0
    %v11961 = vadd.f32 0.0, %v11960
    %11962 = vmatmul.f32.gmra.mxu0 %v10381
    %v11963 = vpop.f32.mrf.mxu0
    %v11964 = vadd.f32 0.0, %v11963
    %11965 = vmatmul.f32.gmra.mxu0 %v10383
    %v11966 = vpop.f32.mrf.mxu0
    %v11967 = vadd.f32 0.0, %v11966
    %11968 = vmatmul.f32.gmra.mxu0 %v10385
    %v11969 = vpop.f32.mrf.mxu0
    %v11970 = vadd.f32 0.0, %v11969
    %11971 = vmatmul.f32.gmra.mxu0 %v10387
    %v11972 = vpop.f32.mrf.mxu0
    %v11973 = vadd.f32 0.0, %v11972
    %11974 = vmatmul.f32.gmra.mxu0 %v11921
    %v11975 = vpop.f32.mrf.mxu0
    %v11976 = vadd.f32 0.0, %v11975
    %11977 = vmatmul.f32.gmra.mxu0 %v10389
    %v11978 = vpop.f32.mrf.mxu0
    %v11979 = vadd.f32 0.0, %v11978
    %11980 = vmatmul.f32.gmra.mxu0 %v10391
    %v11981 = vpop.f32.mrf.mxu0
    %v11982 = vadd.f32 0.0, %v11981
    %11983 = vmatmul.f32.gmra.mxu0 %v10393
    %v11984 = vpop.f32.mrf.mxu0
    %v11985 = vadd.f32 0.0, %v11984
    %11986 = vmatmul.f32.gmra.mxu0 %v10395
    %v11987 = vpop.f32.mrf.mxu0
    %v11988 = vadd.f32 0.0, %v11987
    %11989 = vmatmul.f32.gmra.mxu0 %v10397
    %v11990 = vpop.f32.mrf.mxu0
    %v11991 = vadd.f32 0.0, %v11990
    %11992 = vmatmul.f32.gmra.mxu0 %v10399
    %v11993 = vpop.f32.mrf.mxu0
    %v11994 = vadd.f32 0.0, %v11993
    %11995 = vmatmul.f32.gmra.mxu0 %v10401
    %v11996 = vpop.f32.mrf.mxu0
    %v11997 = vadd.f32 0.0, %v11996
    %11998 = vmatmul.f32.gmra.mxu0 %v11923
    %v11999 = vpop.f32.mrf.mxu0
    %v12000 = vadd.f32 0.0, %v11999
    %12001 = vmatmul.f32.gmra.mxu0 %v10403
    %v12002 = vpop.f32.mrf.mxu0
    %v12003 = vadd.f32 0.0, %v12002
    %12004 = vmatmul.f32.gmra.mxu0 %v10405
    %v12005 = vpop.f32.mrf.mxu0
    %v12006 = vadd.f32 0.0, %v12005
    %12007 = vmatmul.f32.gmra.mxu0 %v10407
    %v12008 = vpop.f32.mrf.mxu0
    %v12009 = vadd.f32 0.0, %v12008
    %12010 = vmatmul.f32.gmra.mxu0 %v10409
    %v12011 = vpop.f32.mrf.mxu0
    %v12012 = vadd.f32 0.0, %v12011
    %12013 = vmatmul.f32.gmra.mxu0 %v10411
    %v12014 = vpop.f32.mrf.mxu0
    %v12015 = vadd.f32 0.0, %v12014
    %12016 = vmatmul.f32.gmra.mxu0 %v10413
    %v12017 = vpop.f32.mrf.mxu0
    %v12018 = vadd.f32 0.0, %v12017
    %12019 = vmatmul.f32.gmra.mxu0 %v10415
    %v12020 = vpop.f32.mrf.mxu0
    %v12021 = vadd.f32 0.0, %v12020
    %12022 = vmatmul.f32.gmra.mxu0 %v11925
    %v12023 = vpop.f32.mrf.mxu0
    %v12024 = vadd.f32 0.0, %v12023
    %12025 = vmatmul.f32.gmra.mxu0 %v10417
    %v12026 = vpop.f32.mrf.mxu0
    %v12027 = vadd.f32 0.0, %v12026
    %12028 = vmatmul.f32.gmra.mxu0 %v10419
    %v12029 = vpop.f32.mrf.mxu0
    %v12030 = vadd.f32 0.0, %v12029
    %12031 = vmatmul.f32.gmra.mxu0 %v10421
    %v12032 = vpop.f32.mrf.mxu0
    %v12033 = vadd.f32 0.0, %v12032
    %12034 = vmatmul.f32.gmra.mxu0 %v10423
    %v12035 = vpop.f32.mrf.mxu0
    %v12036 = vadd.f32 0.0, %v12035
    %12037 = vmatmul.f32.gmra.mxu0 %v10425
    %v12038 = vpop.f32.mrf.mxu0
    %v12039 = vadd.f32 0.0, %v12038
    %12040 = vmatmul.f32.gmra.mxu0 %v10427
    %v12041 = vpop.f32.mrf.mxu0
    %v12042 = vadd.f32 0.0, %v12041
    %12043 = vmatmul.f32.gmra.mxu0 %v10429
    %v12044 = vpop.f32.mrf.mxu0
    %v12045 = vadd.f32 0.0, %v12044
    %12046 = vmatmul.f32.gmra.mxu0 %v11927
    %v12047 = vpop.f32.mrf.mxu0
    %v12048 = vadd.f32 0.0, %v12047
    %12049 = vmatmul.f32.gmra.mxu0 %v10431
    %v12050 = vpop.f32.mrf.mxu0
    %v12051 = vadd.f32 0.0, %v12050
    %12052 = vmatmul.f32.gmra.mxu0 %v10433
    %v12053 = vpop.f32.mrf.mxu0
    %v12054 = vadd.f32 0.0, %v12053
    %12055 = vmatmul.f32.gmra.mxu0 %v10435
    %v12056 = vpop.f32.mrf.mxu0
    %v12057 = vadd.f32 0.0, %v12056
    %12058 = vmatmul.f32.gmra.mxu0 %v10437
    %v12059 = vpop.f32.mrf.mxu0
    %v12060 = vadd.f32 0.0, %v12059
    %12061 = vmatmul.f32.gmra.mxu0 %v10439
    %v12062 = vpop.f32.mrf.mxu0
    %v12063 = vadd.f32 0.0, %v12062
    %12064 = vmatmul.f32.gmra.mxu0 %v10441
    %v12065 = vpop.f32.mrf.mxu0
    %v12066 = vadd.f32 0.0, %v12065
    %12067 = vmatmul.f32.gmra.mxu0 %v10443
    %v12068 = vpop.f32.mrf.mxu0
    %v12069 = vadd.f32 0.0, %v12068
    %12070 = vmatmul.f32.gmra.mxu0 %v11929
    %v12071 = vpop.f32.mrf.mxu0
    %v12072 = vadd.f32 0.0, %v12071
    %12073 = vmatmul.f32.gmra.mxu0 %v10445
    %v12074 = vpop.f32.mrf.mxu0
    %v12075 = vadd.f32 0.0, %v12074
    %12076 = vmatmul.f32.gmra.mxu0 %v10447
    %v12077 = vpop.f32.mrf.mxu0
    %v12078 = vadd.f32 0.0, %v12077
    %12079 = vmatmul.f32.gmra.mxu0 %v10449
    %v12080 = vpop.f32.mrf.mxu0
    %v12081 = vadd.f32 0.0, %v12080
    %12082 = vmatmul.f32.gmra.mxu0 %v10451
    %v12083 = vpop.f32.mrf.mxu0
    %v12084 = vadd.f32 0.0, %v12083
    %12085 = vmatmul.f32.gmra.mxu0 %v10453
    %v12086 = vpop.f32.mrf.mxu0
    %v12087 = vadd.f32 0.0, %v12086
    %12088 = vmatmul.f32.gmra.mxu0 %v10455
    %v12089 = vpop.f32.mrf.mxu0
    %v12090 = vadd.f32 0.0, %v12089
    %12091 = vmatmul.f32.gmra.mxu0 %v10457
    %v12092 = vpop.f32.mrf.mxu0
    %v12093 = vadd.f32 0.0, %v12092
    %12094 = vmatmul.f32.gmra.mxu0 %v11931
    %v12095 = vpop.f32.mrf.mxu0
    %v12096 = vadd.f32 0.0, %v12095
    %12097 = vmatmul.f32.gmra.mxu0 %v10459
    %v12098 = vpop.f32.mrf.mxu0
    %v12099 = vadd.f32 0.0, %v12098
    %12100 = vmatmul.f32.gmra.mxu0 %v10461
    %v12101 = vpop.f32.mrf.mxu0
    %v12102 = vadd.f32 0.0, %v12101
    %12103 = vmatmul.f32.gmra.mxu0 %v10463
    %v12104 = vpop.f32.mrf.mxu0
    %v12105 = vadd.f32 0.0, %v12104
    %12106 = vmatmul.f32.gmra.mxu0 %v10465
    %v12107 = vpop.f32.mrf.mxu0
    %v12108 = vadd.f32 0.0, %v12107
    %12109 = vmatmul.f32.gmra.mxu0 %v10467
    %v12110 = vpop.f32.mrf.mxu0
    %v12111 = vadd.f32 0.0, %v12110
    %12112 = vmatmul.f32.gmra.mxu0 %v10469
    %v12113 = vpop.f32.mrf.mxu0
    %v12114 = vadd.f32 0.0, %v12113
    %12115 = vmatmul.f32.gmra.mxu0 %v10471
    %v12116 = vpop.f32.mrf.mxu0
    %v12117 = vadd.f32 0.0, %v12116
    %12118 = vmatmul.f32.gmra.mxu0 %v11933
    %v12119 = vpop.f32.mrf.mxu0
    %v12120 = vadd.f32 0.0, %v12119
    %12121 = vmatmul.f32.gmra.mxu0 %v10473
    %v12122 = vpop.f32.mrf.mxu0
    %v12123 = vadd.f32 0.0, %v12122
    %12124 = vmatmul.f32.gmra.mxu0 %v10475
    %v12125 = vpop.f32.mrf.mxu0
    %v12126 = vadd.f32 0.0, %v12125
    %12127 = vmatmul.f32.gmra.mxu0 %v10477
    %v12128 = vpop.f32.mrf.mxu0
    %v12129 = vadd.f32 0.0, %v12128
    %12130 = vmatmul.f32.gmra.mxu0 %v10479
    %v12131 = vpop.f32.mrf.mxu0
    %v12132 = vadd.f32 0.0, %v12131
    %12133 = vmatmul.f32.gmra.mxu0 %v10481
    %v12134 = vpop.f32.mrf.mxu0
    %v12135 = vadd.f32 0.0, %v12134
    %12136 = vmatmul.f32.gmra.mxu0 %v10483
    %v12137 = vpop.f32.mrf.mxu0
    %v12138 = vadd.f32 0.0, %v12137
    %12139 = vmatmul.f32.gmra.mxu0 %v10485
    %v12140 = vpop.f32.mrf.mxu0
    %v12141 = vadd.f32 0.0, %v12140
    %12142 = vmatmul.f32.gmra.mxu0 %v11935
    %v12143 = vpop.f32.mrf.mxu0
    %v12144 = vadd.f32 0.0, %v12143
    %12145 = vdwg.mxu0
    %v12146 = vadd.f32 %v11820, %v11955
    %v12147 = vadd.f32 %v11821, %v11958
    %v12148 = vadd.f32 %v11822, %v11961
    %v12149 = vadd.f32 %v11823, %v11964
    %v12150 = vadd.f32 %v11824, %v11967
    %v12151 = vadd.f32 %v11825, %v11970
    %v12152 = vadd.f32 %v11826, %v11973
    %v12153 = vadd.f32 %v11827, %v11976
    %v12154 = vadd.f32 %v11828, %v11979
    %v12155 = vadd.f32 %v11829, %v11982
    %v12156 = vadd.f32 %v11830, %v11985
    %v12157 = vadd.f32 %v11831, %v11988
    %v12158 = vadd.f32 %v11832, %v11991
    %v12159 = vadd.f32 %v11833, %v11994
    %v12160 = vadd.f32 %v11834, %v11997
    %v12161 = vadd.f32 %v11835, %v12000
    %v12162 = vadd.f32 %v11836, %v12003
    %v12163 = vadd.f32 %v11837, %v12006
    %v12164 = vadd.f32 %v11838, %v12009
    %v12165 = vadd.f32 %v11839, %v12012
    %v12166 = vadd.f32 %v11840, %v12015
    %v12167 = vadd.f32 %v11841, %v12018
    %v12168 = vadd.f32 %v11842, %v12021
    %v12169 = vadd.f32 %v11843, %v12024
    %v12170 = vadd.f32 %v11844, %v12027
    %v12171 = vadd.f32 %v11845, %v12030
    %v12172 = vadd.f32 %v11846, %v12033
    %v12173 = vadd.f32 %v11847, %v12036
    %v12174 = vadd.f32 %v11848, %v12039
    %v12175 = vadd.f32 %v11849, %v12042
    %v12176 = vadd.f32 %v11850, %v12045
    %v12177 = vadd.f32 %v11851, %v12048
    %v12178 = vadd.f32 %v11852, %v12051
    %v12179 = vadd.f32 %v11853, %v12054
    %v12180 = vadd.f32 %v11854, %v12057
    %v12181 = vadd.f32 %v11855, %v12060
    %v12182 = vadd.f32 %v11856, %v12063
    %v12183 = vadd.f32 %v11857, %v12066
    %v12184 = vadd.f32 %v11858, %v12069
    %v12185 = vadd.f32 %v11859, %v12072
    %v12186 = vadd.f32 %v11860, %v12075
    %v12187 = vadd.f32 %v11861, %v12078
    %v12188 = vadd.f32 %v11862, %v12081
    %v12189 = vadd.f32 %v11863, %v12084
    %v12190 = vadd.f32 %v11864, %v12087
    %v12191 = vadd.f32 %v11865, %v12090
    %v12192 = vadd.f32 %v11866, %v12093
    %v12193 = vadd.f32 %v11867, %v12096
    %v12194 = vadd.f32 %v11868, %v12099
    %v12195 = vadd.f32 %v11869, %v12102
    %v12196 = vadd.f32 %v11870, %v12105
    %v12197 = vadd.f32 %v11871, %v12108
    %v12198 = vadd.f32 %v11872, %v12111
    %v12199 = vadd.f32 %v11873, %v12114
    %v12200 = vadd.f32 %v11874, %v12117
    %v12201 = vadd.f32 %v11875, %v12120
    %v12202 = vadd.f32 %v11876, %v12123
    %v12203 = vadd.f32 %v11877, %v12126
    %v12204 = vadd.f32 %v11878, %v12129
    %v12205 = vadd.f32 %v11879, %v12132
    %v12206 = vadd.f32 %v11880, %v12135
    %v12207 = vadd.f32 %v11881, %v12138
    %v12208 = vadd.f32 %v11882, %v12141
    %v12209 = vadd.f32 %v11883, %v12144
    %v12210 = vrot.slane %v9956, 2
    %v12211 = vrot.slane %v10021, 2
    %v12212 = vsel %vm4068, %v12210, %v12211
    %v12213 = vrot.slane %v9964, 2
    %v12214 = vrot.slane %v10029, 2
    %v12215 = vsel %vm4068, %v12213, %v12214
    %v12216 = vrot.slane %v9972, 2
    %v12217 = vrot.slane %v10037, 2
    %v12218 = vsel %vm4068, %v12216, %v12217
    %v12219 = vrot.slane %v9980, 2
    %v12220 = vrot.slane %v10045, 2
    %v12221 = vsel %vm4068, %v12219, %v12220
    %v12222 = vrot.slane %v9988, 2
    %v12223 = vrot.slane %v10053, 2
    %v12224 = vsel %vm4068, %v12222, %v12223
    %v12225 = vrot.slane %v9996, 2
    %v12226 = vrot.slane %v10061, 2
    %v12227 = vsel %vm4068, %v12225, %v12226
    %v12228 = vrot.slane %v10004, 2
    %v12229 = vrot.slane %v10069, 2
    %v12230 = vsel %vm4068, %v12228, %v12229
    %v12231 = vrot.slane %v10012, 2
    %v12232 = vrot.slane %v10077, 2
    %v12233 = vsel %vm4068, %v12231, %v12232
    %v12234 = vld [vmem:[%s3 + $0xc8] sm:$0xff]
    %v12235 = vld [vmem:[%s3 + $0xd0] sm:$0xff]
    %v12236 = vld [vmem:[%s3 + $0xd8] sm:$0xff]
    %v12237 = vld [vmem:[%s3 + $0xe0] sm:$0xff]
    %v12238 = vld [vmem:[%s3 + $0xe8] sm:$0xff]
    %v12239 = vsel %vm8857, %v12212, 0
    %v12241 = vsel %vm8857, %v12215, 0
    %v12243 = vsel %vm8857, %v12218, 0
    %v12245 = vsel %vm8857, %v12221, 0
    %v12247 = vsel %vm8857, %v12224, 0
    %v12249 = vsel %vm8857, %v12227, 0
    %v12251 = vsel %vm8857, %v12230, 0
    %v12253 = vsel %vm8857, %v12233, 0
    %12255 = vmatpush.msra.mxu0 0.0
    %12256 = vmatpush.msra.mxu0 0.0
    %12257 = vmatpush.msra.mxu0 0.0
    %12258 = vmatpush.msra.mxu0 0.0
    %12259 = vmatpush.msra.mxu0 0.0
    %12260 = vmatpush.msra.mxu0 0.0
    %12261 = vmatpush.msra.mxu0 0.0
    %12262 = vmatpush.msra.mxu0 0.0
    %12263 = vmatpush.msra.mxu0 0.0
    %12264 = vmatpush.msra.mxu0 0.0
    %12265 = vmatpush.msra.mxu0 0.0
    %12266 = vmatpush.msra.mxu0 %v12238
    %12267 = vmatpush.msra.mxu0 %v12237
    %12268 = vmatpush.msra.mxu0 %v12236
    %12269 = vmatpush.msra.mxu0 %v12235
    %12270 = vmatpush.msra.mxu0 %v12234
    %12271 = vmatmul.f32.gmra.mxu0 %v11197
    %v12272 = vpop.f32.mrf.mxu0
    %v12273 = vadd.f32 0.0, %v12272
    %12274 = vmatmul.f32.gmra.mxu0 %v11199
    %v12275 = vpop.f32.mrf.mxu0
    %v12276 = vadd.f32 0.0, %v12275
    %12277 = vmatmul.f32.gmra.mxu0 %v11201
    %v12278 = vpop.f32.mrf.mxu0
    %v12279 = vadd.f32 0.0, %v12278
    %12280 = vmatmul.f32.gmra.mxu0 %v11203
    %v12281 = vpop.f32.mrf.mxu0
    %v12282 = vadd.f32 0.0, %v12281
    %12283 = vmatmul.f32.gmra.mxu0 %v11205
    %v12284 = vpop.f32.mrf.mxu0
    %v12285 = vadd.f32 0.0, %v12284
    %12286 = vmatmul.f32.gmra.mxu0 %v11207
    %v12287 = vpop.f32.mrf.mxu0
    %v12288 = vadd.f32 0.0, %v12287
    %12289 = vmatmul.f32.gmra.mxu0 %v11209
    %v12290 = vpop.f32.mrf.mxu0
    %v12291 = vadd.f32 0.0, %v12290
    %12292 = vmatmul.f32.gmra.mxu0 %v12239
    %v12293 = vpop.f32.mrf.mxu0
    %v12294 = vadd.f32 0.0, %v12293
    %12295 = vmatmul.f32.gmra.mxu0 %v11211
    %v12296 = vpop.f32.mrf.mxu0
    %v12297 = vadd.f32 0.0, %v12296
    %12298 = vmatmul.f32.gmra.mxu0 %v11213
    %v12299 = vpop.f32.mrf.mxu0
    %v12300 = vadd.f32 0.0, %v12299
    %12301 = vmatmul.f32.gmra.mxu0 %v11215
    %v12302 = vpop.f32.mrf.mxu0
    %v12303 = vadd.f32 0.0, %v12302
    %12304 = vmatmul.f32.gmra.mxu0 %v11217
    %v12305 = vpop.f32.mrf.mxu0
    %v12306 = vadd.f32 0.0, %v12305
    %12307 = vmatmul.f32.gmra.mxu0 %v11219
    %v12308 = vpop.f32.mrf.mxu0
    %v12309 = vadd.f32 0.0, %v12308
    %12310 = vmatmul.f32.gmra.mxu0 %v11221
    %v12311 = vpop.f32.mrf.mxu0
    %v12312 = vadd.f32 0.0, %v12311
    %12313 = vmatmul.f32.gmra.mxu0 %v11223
    %v12314 = vpop.f32.mrf.mxu0
    %v12315 = vadd.f32 0.0, %v12314
    %12316 = vmatmul.f32.gmra.mxu0 %v12241
    %v12317 = vpop.f32.mrf.mxu0
    %v12318 = vadd.f32 0.0, %v12317
    %12319 = vmatmul.f32.gmra.mxu0 %v11225
    %v12320 = vpop.f32.mrf.mxu0
    %v12321 = vadd.f32 0.0, %v12320
    %12322 = vmatmul.f32.gmra.mxu0 %v11227
    %v12323 = vpop.f32.mrf.mxu0
    %v12324 = vadd.f32 0.0, %v12323
    %12325 = vmatmul.f32.gmra.mxu0 %v11229
    %v12326 = vpop.f32.mrf.mxu0
    %v12327 = vadd.f32 0.0, %v12326
    %12328 = vmatmul.f32.gmra.mxu0 %v11231
    %v12329 = vpop.f32.mrf.mxu0
    %v12330 = vadd.f32 0.0, %v12329
    %12331 = vmatmul.f32.gmra.mxu0 %v11233
    %v12332 = vpop.f32.mrf.mxu0
    %v12333 = vadd.f32 0.0, %v12332
    %12334 = vmatmul.f32.gmra.mxu0 %v11235
    %v12335 = vpop.f32.mrf.mxu0
    %v12336 = vadd.f32 0.0, %v12335
    %12337 = vmatmul.f32.gmra.mxu0 %v11237
    %v12338 = vpop.f32.mrf.mxu0
    %v12339 = vadd.f32 0.0, %v12338
    %12340 = vmatmul.f32.gmra.mxu0 %v12243
    %v12341 = vpop.f32.mrf.mxu0
    %v12342 = vadd.f32 0.0, %v12341
    %12343 = vmatmul.f32.gmra.mxu0 %v11239
    %v12344 = vpop.f32.mrf.mxu0
    %v12345 = vadd.f32 0.0, %v12344
    %12346 = vmatmul.f32.gmra.mxu0 %v11241
    %v12347 = vpop.f32.mrf.mxu0
    %v12348 = vadd.f32 0.0, %v12347
    %12349 = vmatmul.f32.gmra.mxu0 %v11243
    %v12350 = vpop.f32.mrf.mxu0
    %v12351 = vadd.f32 0.0, %v12350
    %12352 = vmatmul.f32.gmra.mxu0 %v11245
    %v12353 = vpop.f32.mrf.mxu0
    %v12354 = vadd.f32 0.0, %v12353
    %12355 = vmatmul.f32.gmra.mxu0 %v11247
    %v12356 = vpop.f32.mrf.mxu0
    %v12357 = vadd.f32 0.0, %v12356
    %12358 = vmatmul.f32.gmra.mxu0 %v11249
    %v12359 = vpop.f32.mrf.mxu0
    %v12360 = vadd.f32 0.0, %v12359
    %12361 = vmatmul.f32.gmra.mxu0 %v11251
    %v12362 = vpop.f32.mrf.mxu0
    %v12363 = vadd.f32 0.0, %v12362
    %12364 = vmatmul.f32.gmra.mxu0 %v12245
    %v12365 = vpop.f32.mrf.mxu0
    %v12366 = vadd.f32 0.0, %v12365
    %12367 = vmatmul.f32.gmra.mxu0 %v11253
    %v12368 = vpop.f32.mrf.mxu0
    %v12369 = vadd.f32 0.0, %v12368
    %12370 = vmatmul.f32.gmra.mxu0 %v11255
    %v12371 = vpop.f32.mrf.mxu0
    %v12372 = vadd.f32 0.0, %v12371
    %12373 = vmatmul.f32.gmra.mxu0 %v11257
    %v12374 = vpop.f32.mrf.mxu0
    %v12375 = vadd.f32 0.0, %v12374
    %12376 = vmatmul.f32.gmra.mxu0 %v11259
    %v12377 = vpop.f32.mrf.mxu0
    %v12378 = vadd.f32 0.0, %v12377
    %12379 = vmatmul.f32.gmra.mxu0 %v11261
    %v12380 = vpop.f32.mrf.mxu0
    %v12381 = vadd.f32 0.0, %v12380
    %12382 = vmatmul.f32.gmra.mxu0 %v11263
    %v12383 = vpop.f32.mrf.mxu0
    %v12384 = vadd.f32 0.0, %v12383
    %12385 = vmatmul.f32.gmra.mxu0 %v11265
    %v12386 = vpop.f32.mrf.mxu0
    %v12387 = vadd.f32 0.0, %v12386
    %12388 = vmatmul.f32.gmra.mxu0 %v12247
    %v12389 = vpop.f32.mrf.mxu0
    %v12390 = vadd.f32 0.0, %v12389
    %12391 = vmatmul.f32.gmra.mxu0 %v11267
    %v12392 = vpop.f32.mrf.mxu0
    %v12393 = vadd.f32 0.0, %v12392
    %12394 = vmatmul.f32.gmra.mxu0 %v11269
    %v12395 = vpop.f32.mrf.mxu0
    %v12396 = vadd.f32 0.0, %v12395
    %12397 = vmatmul.f32.gmra.mxu0 %v11271
    %v12398 = vpop.f32.mrf.mxu0
    %v12399 = vadd.f32 0.0, %v12398
    %12400 = vmatmul.f32.gmra.mxu0 %v11273
    %v12401 = vpop.f32.mrf.mxu0
    %v12402 = vadd.f32 0.0, %v12401
    %12403 = vmatmul.f32.gmra.mxu0 %v11275
    %v12404 = vpop.f32.mrf.mxu0
    %v12405 = vadd.f32 0.0, %v12404
    %12406 = vmatmul.f32.gmra.mxu0 %v11277
    %v12407 = vpop.f32.mrf.mxu0
    %v12408 = vadd.f32 0.0, %v12407
    %12409 = vmatmul.f32.gmra.mxu0 %v11279
    %v12410 = vpop.f32.mrf.mxu0
    %v12411 = vadd.f32 0.0, %v12410
    %12412 = vmatmul.f32.gmra.mxu0 %v12249
    %v12413 = vpop.f32.mrf.mxu0
    %v12414 = vadd.f32 0.0, %v12413
    %12415 = vmatmul.f32.gmra.mxu0 %v11281
    %v12416 = vpop.f32.mrf.mxu0
    %v12417 = vadd.f32 0.0, %v12416
    %12418 = vmatmul.f32.gmra.mxu0 %v11283
    %v12419 = vpop.f32.mrf.mxu0
    %v12420 = vadd.f32 0.0, %v12419
    %12421 = vmatmul.f32.gmra.mxu0 %v11285
    %v12422 = vpop.f32.mrf.mxu0
    %v12423 = vadd.f32 0.0, %v12422
    %12424 = vmatmul.f32.gmra.mxu0 %v11287
    %v12425 = vpop.f32.mrf.mxu0
    %v12426 = vadd.f32 0.0, %v12425
    %12427 = vmatmul.f32.gmra.mxu0 %v11289
    %v12428 = vpop.f32.mrf.mxu0
    %v12429 = vadd.f32 0.0, %v12428
    %12430 = vmatmul.f32.gmra.mxu0 %v11291
    %v12431 = vpop.f32.mrf.mxu0
    %v12432 = vadd.f32 0.0, %v12431
    %12433 = vmatmul.f32.gmra.mxu0 %v11293
    %v12434 = vpop.f32.mrf.mxu0
    %v12435 = vadd.f32 0.0, %v12434
    %12436 = vmatmul.f32.gmra.mxu0 %v12251
    %v12437 = vpop.f32.mrf.mxu0
    %v12438 = vadd.f32 0.0, %v12437
    %12439 = vmatmul.f32.gmra.mxu0 %v11295
    %v12440 = vpop.f32.mrf.mxu0
    %v12441 = vadd.f32 0.0, %v12440
    %12442 = vmatmul.f32.gmra.mxu0 %v11297
    %v12443 = vpop.f32.mrf.mxu0
    %v12444 = vadd.f32 0.0, %v12443
    %12445 = vmatmul.f32.gmra.mxu0 %v11299
    %v12446 = vpop.f32.mrf.mxu0
    %v12447 = vadd.f32 0.0, %v12446
    %12448 = vmatmul.f32.gmra.mxu0 %v11301
    %v12449 = vpop.f32.mrf.mxu0
    %v12450 = vadd.f32 0.0, %v12449
    %12451 = vmatmul.f32.gmra.mxu0 %v11303
    %v12452 = vpop.f32.mrf.mxu0
    %v12453 = vadd.f32 0.0, %v12452
    %12454 = vmatmul.f32.gmra.mxu0 %v11305
    %v12455 = vpop.f32.mrf.mxu0
    %v12456 = vadd.f32 0.0, %v12455
    %12457 = vmatmul.f32.gmra.mxu0 %v11307
    %v12458 = vpop.f32.mrf.mxu0
    %v12459 = vadd.f32 0.0, %v12458
    %12460 = vmatmul.f32.gmra.mxu0 %v12253
    %v12461 = vpop.f32.mrf.mxu0
    %v12462 = vadd.f32 0.0, %v12461
    %12463 = vdwg.mxu0
    %v12464 = vadd.f32 %v12146, %v12273
    %v12465 = vadd.f32 %v12147, %v12276
    %v12466 = vadd.f32 %v12148, %v12279
    %v12467 = vadd.f32 %v12149, %v12282
    %v12468 = vadd.f32 %v12150, %v12285
    %v12469 = vadd.f32 %v12151, %v12288
    %v12470 = vadd.f32 %v12152, %v12291
    %v12471 = vadd.f32 %v12153, %v12294
    %v12472 = vadd.f32 %v12154, %v12297
    %v12473 = vadd.f32 %v12155, %v12300
    %v12474 = vadd.f32 %v12156, %v12303
    %v12475 = vadd.f32 %v12157, %v12306
    %v12476 = vadd.f32 %v12158, %v12309
    %v12477 = vadd.f32 %v12159, %v12312
    %v12478 = vadd.f32 %v12160, %v12315
    %v12479 = vadd.f32 %v12161, %v12318
    %v12480 = vadd.f32 %v12162, %v12321
    %v12481 = vadd.f32 %v12163, %v12324
    %v12482 = vadd.f32 %v12164, %v12327
    %v12483 = vadd.f32 %v12165, %v12330
    %v12484 = vadd.f32 %v12166, %v12333
    %v12485 = vadd.f32 %v12167, %v12336
    %v12486 = vadd.f32 %v12168, %v12339
    %v12487 = vadd.f32 %v12169, %v12342
    %v12488 = vadd.f32 %v12170, %v12345
    %v12489 = vadd.f32 %v12171, %v12348
    %v12490 = vadd.f32 %v12172, %v12351
    %v12491 = vadd.f32 %v12173, %v12354
    %v12492 = vadd.f32 %v12174, %v12357
    %v12493 = vadd.f32 %v12175, %v12360
    %v12494 = vadd.f32 %v12176, %v12363
    %v12495 = vadd.f32 %v12177, %v12366
    %v12496 = vadd.f32 %v12178, %v12369
    %v12497 = vadd.f32 %v12179, %v12372
    %v12498 = vadd.f32 %v12180, %v12375
    %v12499 = vadd.f32 %v12181, %v12378
    %v12500 = vadd.f32 %v12182, %v12381
    %v12501 = vadd.f32 %v12183, %v12384
    %v12502 = vadd.f32 %v12184, %v12387
    %v12503 = vadd.f32 %v12185, %v12390
    %v12504 = vadd.f32 %v12186, %v12393
    %v12505 = vadd.f32 %v12187, %v12396
    %v12506 = vadd.f32 %v12188, %v12399
    %v12507 = vadd.f32 %v12189, %v12402
    %v12508 = vadd.f32 %v12190, %v12405
    %v12509 = vadd.f32 %v12191, %v12408
    %v12510 = vadd.f32 %v12192, %v12411
    %v12511 = vadd.f32 %v12193, %v12414
    %v12512 = vadd.f32 %v12194, %v12417
    %v12513 = vadd.f32 %v12195, %v12420
    %v12514 = vadd.f32 %v12196, %v12423
    %v12515 = vadd.f32 %v12197, %v12426
    %v12516 = vadd.f32 %v12198, %v12429
    %v12517 = vadd.f32 %v12199, %v12432
    %v12518 = vadd.f32 %v12200, %v12435
    %v12519 = vadd.f32 %v12201, %v12438
    %v12520 = vadd.f32 %v12202, %v12441
    %v12521 = vadd.f32 %v12203, %v12444
    %v12522 = vadd.f32 %v12204, %v12447
    %v12523 = vadd.f32 %v12205, %v12450
    %v12524 = vadd.f32 %v12206, %v12453
    %v12525 = vadd.f32 %v12207, %v12456
    %v12526 = vadd.f32 %v12208, %v12459
    %v12527 = vadd.f32 %v12209, %v12462
    %v12528 = vld [vmem:[%s3 + $0xf0] sm:$0xff]
    %v12529 = vld [vmem:[%s3 + $0xf8] sm:$0xff]
    %v12530 = vld [vmem:[%s3 + $0x100] sm:$0xff]
    %v12531 = vld [vmem:[%s3 + $0x108] sm:$0xff]
    %v12532 = vld [vmem:[%s3 + $0x110] sm:$0xff]
    %12533 = vmatpush.msra.mxu0 0.0
    %12534 = vmatpush.msra.mxu0 0.0
    %12535 = vmatpush.msra.mxu0 0.0
    %12536 = vmatpush.msra.mxu0 0.0
    %12537 = vmatpush.msra.mxu0 0.0
    %12538 = vmatpush.msra.mxu0 0.0
    %12539 = vmatpush.msra.mxu0 0.0
    %12540 = vmatpush.msra.mxu0 0.0
    %12541 = vmatpush.msra.mxu0 0.0
    %12542 = vmatpush.msra.mxu0 0.0
    %12543 = vmatpush.msra.mxu0 0.0
    %12544 = vmatpush.msra.mxu0 %v12532
    %12545 = vmatpush.msra.mxu0 %v12531
    %12546 = vmatpush.msra.mxu0 %v12530
    %12547 = vmatpush.msra.mxu0 %v12529
    %12548 = vmatpush.msra.mxu0 %v12528
    %12549 = vmatmul.f32.gmra.mxu0 %v10700
    %v12550 = vpop.f32.mrf.mxu0
    %v12551 = vadd.f32 0.0, %v12550
    %12552 = vmatmul.f32.gmra.mxu0 %v10702
    %v12553 = vpop.f32.mrf.mxu0
    %v12554 = vadd.f32 0.0, %v12553
    %12555 = vmatmul.f32.gmra.mxu0 %v10704
    %v12556 = vpop.f32.mrf.mxu0
    %v12557 = vadd.f32 0.0, %v12556
    %12558 = vmatmul.f32.gmra.mxu0 %v10706
    %v12559 = vpop.f32.mrf.mxu0
    %v12560 = vadd.f32 0.0, %v12559
    %12561 = vmatmul.f32.gmra.mxu0 %v10708
    %v12562 = vpop.f32.mrf.mxu0
    %v12563 = vadd.f32 0.0, %v12562
    %12564 = vmatmul.f32.gmra.mxu0 %v10710
    %v12565 = vpop.f32.mrf.mxu0
    %v12566 = vadd.f32 0.0, %v12565
    %12567 = vmatmul.f32.gmra.mxu0 %v11588
    %v12568 = vpop.f32.mrf.mxu0
    %v12569 = vadd.f32 0.0, %v12568
    %12570 = vmatmul.f32.gmra.mxu0 %v10696
    %v12571 = vpop.f32.mrf.mxu0
    %v12572 = vadd.f32 0.0, %v12571
    %12573 = vmatmul.f32.gmra.mxu0 %v10714
    %v12574 = vpop.f32.mrf.mxu0
    %v12575 = vadd.f32 0.0, %v12574
    %12576 = vmatmul.f32.gmra.mxu0 %v10716
    %v12577 = vpop.f32.mrf.mxu0
    %v12578 = vadd.f32 0.0, %v12577
    %12579 = vmatmul.f32.gmra.mxu0 %v10718
    %v12580 = vpop.f32.mrf.mxu0
    %v12581 = vadd.f32 0.0, %v12580
    %12582 = vmatmul.f32.gmra.mxu0 %v10720
    %v12583 = vpop.f32.mrf.mxu0
    %v12584 = vadd.f32 0.0, %v12583
    %12585 = vmatmul.f32.gmra.mxu0 %v10722
    %v12586 = vpop.f32.mrf.mxu0
    %v12587 = vadd.f32 0.0, %v12586
    %12588 = vmatmul.f32.gmra.mxu0 %v10724
    %v12589 = vpop.f32.mrf.mxu0
    %v12590 = vadd.f32 0.0, %v12589
    %12591 = vmatmul.f32.gmra.mxu0 %v11591
    %v12592 = vpop.f32.mrf.mxu0
    %v12593 = vadd.f32 0.0, %v12592
    %12594 = vmatmul.f32.gmra.mxu0 %v10696
    %v12595 = vpop.f32.mrf.mxu0
    %v12596 = vadd.f32 0.0, %v12595
    %12597 = vmatmul.f32.gmra.mxu0 %v10728
    %v12598 = vpop.f32.mrf.mxu0
    %v12599 = vadd.f32 0.0, %v12598
    %12600 = vmatmul.f32.gmra.mxu0 %v10730
    %v12601 = vpop.f32.mrf.mxu0
    %v12602 = vadd.f32 0.0, %v12601
    %12603 = vmatmul.f32.gmra.mxu0 %v10732
    %v12604 = vpop.f32.mrf.mxu0
    %v12605 = vadd.f32 0.0, %v12604
    %12606 = vmatmul.f32.gmra.mxu0 %v10734
    %v12607 = vpop.f32.mrf.mxu0
    %v12608 = vadd.f32 0.0, %v12607
    %12609 = vmatmul.f32.gmra.mxu0 %v10736
    %v12610 = vpop.f32.mrf.mxu0
    %v12611 = vadd.f32 0.0, %v12610
    %12612 = vmatmul.f32.gmra.mxu0 %v10738
    %v12613 = vpop.f32.mrf.mxu0
    %v12614 = vadd.f32 0.0, %v12613
    %12615 = vmatmul.f32.gmra.mxu0 %v11594
    %v12616 = vpop.f32.mrf.mxu0
    %v12617 = vadd.f32 0.0, %v12616
    %12618 = vmatmul.f32.gmra.mxu0 %v10696
    %v12619 = vpop.f32.mrf.mxu0
    %v12620 = vadd.f32 0.0, %v12619
    %12621 = vmatmul.f32.gmra.mxu0 %v10742
    %v12622 = vpop.f32.mrf.mxu0
    %v12623 = vadd.f32 0.0, %v12622
    %12624 = vmatmul.f32.gmra.mxu0 %v10744
    %v12625 = vpop.f32.mrf.mxu0
    %v12626 = vadd.f32 0.0, %v12625
    %12627 = vmatmul.f32.gmra.mxu0 %v10746
    %v12628 = vpop.f32.mrf.mxu0
    %v12629 = vadd.f32 0.0, %v12628
    %12630 = vmatmul.f32.gmra.mxu0 %v10748
    %v12631 = vpop.f32.mrf.mxu0
    %v12632 = vadd.f32 0.0, %v12631
    %12633 = vmatmul.f32.gmra.mxu0 %v10750
    %v12634 = vpop.f32.mrf.mxu0
    %v12635 = vadd.f32 0.0, %v12634
    %12636 = vmatmul.f32.gmra.mxu0 %v10752
    %v12637 = vpop.f32.mrf.mxu0
    %v12638 = vadd.f32 0.0, %v12637
    %12639 = vmatmul.f32.gmra.mxu0 %v11597
    %v12640 = vpop.f32.mrf.mxu0
    %v12641 = vadd.f32 0.0, %v12640
    %12642 = vmatmul.f32.gmra.mxu0 %v10696
    %v12643 = vpop.f32.mrf.mxu0
    %v12644 = vadd.f32 0.0, %v12643
    %12645 = vmatmul.f32.gmra.mxu0 %v10756
    %v12646 = vpop.f32.mrf.mxu0
    %v12647 = vadd.f32 0.0, %v12646
    %12648 = vmatmul.f32.gmra.mxu0 %v10758
    %v12649 = vpop.f32.mrf.mxu0
    %v12650 = vadd.f32 0.0, %v12649
    %12651 = vmatmul.f32.gmra.mxu0 %v10760
    %v12652 = vpop.f32.mrf.mxu0
    %v12653 = vadd.f32 0.0, %v12652
    %12654 = vmatmul.f32.gmra.mxu0 %v10762
    %v12655 = vpop.f32.mrf.mxu0
    %v12656 = vadd.f32 0.0, %v12655
    %12657 = vmatmul.f32.gmra.mxu0 %v10764
    %v12658 = vpop.f32.mrf.mxu0
    %v12659 = vadd.f32 0.0, %v12658
    %12660 = vmatmul.f32.gmra.mxu0 %v10766
    %v12661 = vpop.f32.mrf.mxu0
    %v12662 = vadd.f32 0.0, %v12661
    %12663 = vmatmul.f32.gmra.mxu0 %v11600
    %v12664 = vpop.f32.mrf.mxu0
    %v12665 = vadd.f32 0.0, %v12664
    %12666 = vmatmul.f32.gmra.mxu0 %v10696
    %v12667 = vpop.f32.mrf.mxu0
    %v12668 = vadd.f32 0.0, %v12667
    %12669 = vmatmul.f32.gmra.mxu0 %v10770
    %v12670 = vpop.f32.mrf.mxu0
    %v12671 = vadd.f32 0.0, %v12670
    %12672 = vmatmul.f32.gmra.mxu0 %v10772
    %v12673 = vpop.f32.mrf.mxu0
    %v12674 = vadd.f32 0.0, %v12673
    %12675 = vmatmul.f32.gmra.mxu0 %v10774
    %v12676 = vpop.f32.mrf.mxu0
    %v12677 = vadd.f32 0.0, %v12676
    %12678 = vmatmul.f32.gmra.mxu0 %v10776
    %v12679 = vpop.f32.mrf.mxu0
    %v12680 = vadd.f32 0.0, %v12679
    %12681 = vmatmul.f32.gmra.mxu0 %v10778
    %v12682 = vpop.f32.mrf.mxu0
    %v12683 = vadd.f32 0.0, %v12682
    %12684 = vmatmul.f32.gmra.mxu0 %v10780
    %v12685 = vpop.f32.mrf.mxu0
    %v12686 = vadd.f32 0.0, %v12685
    %12687 = vmatmul.f32.gmra.mxu0 %v11603
    %v12688 = vpop.f32.mrf.mxu0
    %v12689 = vadd.f32 0.0, %v12688
    %12690 = vmatmul.f32.gmra.mxu0 %v10696
    %v12691 = vpop.f32.mrf.mxu0
    %v12692 = vadd.f32 0.0, %v12691
    %12693 = vmatmul.f32.gmra.mxu0 %v10784
    %v12694 = vpop.f32.mrf.mxu0
    %v12695 = vadd.f32 0.0, %v12694
    %12696 = vmatmul.f32.gmra.mxu0 %v10786
    %v12697 = vpop.f32.mrf.mxu0
    %v12698 = vadd.f32 0.0, %v12697
    %12699 = vmatmul.f32.gmra.mxu0 %v10788
    %v12700 = vpop.f32.mrf.mxu0
    %v12701 = vadd.f32 0.0, %v12700
    %12702 = vmatmul.f32.gmra.mxu0 %v10790
    %v12703 = vpop.f32.mrf.mxu0
    %v12704 = vadd.f32 0.0, %v12703
    %12705 = vmatmul.f32.gmra.mxu0 %v10792
    %v12706 = vpop.f32.mrf.mxu0
    %v12707 = vadd.f32 0.0, %v12706
    %12708 = vmatmul.f32.gmra.mxu0 %v10794
    %v12709 = vpop.f32.mrf.mxu0
    %v12710 = vadd.f32 0.0, %v12709
    %12711 = vmatmul.f32.gmra.mxu0 %v11606
    %v12712 = vpop.f32.mrf.mxu0
    %v12713 = vadd.f32 0.0, %v12712
    %12714 = vmatmul.f32.gmra.mxu0 %v10696
    %v12715 = vpop.f32.mrf.mxu0
    %v12716 = vadd.f32 0.0, %v12715
    %12717 = vmatmul.f32.gmra.mxu0 %v10798
    %v12718 = vpop.f32.mrf.mxu0
    %v12719 = vadd.f32 0.0, %v12718
    %12720 = vmatmul.f32.gmra.mxu0 %v10800
    %v12721 = vpop.f32.mrf.mxu0
    %v12722 = vadd.f32 0.0, %v12721
    %12723 = vmatmul.f32.gmra.mxu0 %v10802
    %v12724 = vpop.f32.mrf.mxu0
    %v12725 = vadd.f32 0.0, %v12724
    %12726 = vmatmul.f32.gmra.mxu0 %v10804
    %v12727 = vpop.f32.mrf.mxu0
    %v12728 = vadd.f32 0.0, %v12727
    %12729 = vmatmul.f32.gmra.mxu0 %v10806
    %v12730 = vpop.f32.mrf.mxu0
    %v12731 = vadd.f32 0.0, %v12730
    %12732 = vmatmul.f32.gmra.mxu0 %v10808
    %v12733 = vpop.f32.mrf.mxu0
    %v12734 = vadd.f32 0.0, %v12733
    %12735 = vmatmul.f32.gmra.mxu0 %v11609
    %v12736 = vpop.f32.mrf.mxu0
    %v12737 = vadd.f32 0.0, %v12736
    %12738 = vmatmul.f32.gmra.mxu0 %v10696
    %v12739 = vpop.f32.mrf.mxu0
    %v12740 = vadd.f32 0.0, %v12739
    %12741 = vdwg.mxu0
    %v12742 = vadd.f32 %v12464, %v12551
    %v12743 = vadd.f32 %v12465, %v12554
    %v12744 = vadd.f32 %v12466, %v12557
    %v12745 = vadd.f32 %v12467, %v12560
    %v12746 = vadd.f32 %v12468, %v12563
    %v12747 = vadd.f32 %v12469, %v12566
    %v12748 = vadd.f32 %v12470, %v12569
    %v12749 = vadd.f32 %v12471, %v12572
    %v12750 = vadd.f32 %v12472, %v12575
    %v12751 = vadd.f32 %v12473, %v12578
    %v12752 = vadd.f32 %v12474, %v12581
    %v12753 = vadd.f32 %v12475, %v12584
    %v12754 = vadd.f32 %v12476, %v12587
    %v12755 = vadd.f32 %v12477, %v12590
    %v12756 = vadd.f32 %v12478, %v12593
    %v12757 = vadd.f32 %v12479, %v12596
    %v12758 = vadd.f32 %v12480, %v12599
    %v12759 = vadd.f32 %v12481, %v12602
    %v12760 = vadd.f32 %v12482, %v12605
    %v12761 = vadd.f32 %v12483, %v12608
    %v12762 = vadd.f32 %v12484, %v12611
    %v12763 = vadd.f32 %v12485, %v12614
    %v12764 = vadd.f32 %v12486, %v12617
    %v12765 = vadd.f32 %v12487, %v12620
    %v12766 = vadd.f32 %v12488, %v12623
    %v12767 = vadd.f32 %v12489, %v12626
    %v12768 = vadd.f32 %v12490, %v12629
    %v12769 = vadd.f32 %v12491, %v12632
    %v12770 = vadd.f32 %v12492, %v12635
    %v12771 = vadd.f32 %v12493, %v12638
    %v12772 = vadd.f32 %v12494, %v12641
    %v12773 = vadd.f32 %v12495, %v12644
    %v12774 = vadd.f32 %v12496, %v12647
    %v12775 = vadd.f32 %v12497, %v12650
    %v12776 = vadd.f32 %v12498, %v12653
    %v12777 = vadd.f32 %v12499, %v12656
    %v12778 = vadd.f32 %v12500, %v12659
    %v12779 = vadd.f32 %v12501, %v12662
    %v12780 = vadd.f32 %v12502, %v12665
    %v12781 = vadd.f32 %v12503, %v12668
    %v12782 = vadd.f32 %v12504, %v12671
    %v12783 = vadd.f32 %v12505, %v12674
    %v12784 = vadd.f32 %v12506, %v12677
    %v12785 = vadd.f32 %v12507, %v12680
    %v12786 = vadd.f32 %v12508, %v12683
    %v12787 = vadd.f32 %v12509, %v12686
    %v12788 = vadd.f32 %v12510, %v12689
    %v12789 = vadd.f32 %v12511, %v12692
    %v12790 = vadd.f32 %v12512, %v12695
    %v12791 = vadd.f32 %v12513, %v12698
    %v12792 = vadd.f32 %v12514, %v12701
    %v12793 = vadd.f32 %v12515, %v12704
    %v12794 = vadd.f32 %v12516, %v12707
    %v12795 = vadd.f32 %v12517, %v12710
    %v12796 = vadd.f32 %v12518, %v12713
    %v12797 = vadd.f32 %v12519, %v12716
    %v12798 = vadd.f32 %v12520, %v12719
    %v12799 = vadd.f32 %v12521, %v12722
    %v12800 = vadd.f32 %v12522, %v12725
    %v12801 = vadd.f32 %v12523, %v12728
    %v12802 = vadd.f32 %v12524, %v12731
    %v12803 = vadd.f32 %v12525, %v12734
    %v12804 = vadd.f32 %v12526, %v12737
    %v12805 = vadd.f32 %v12527, %v12740
    %v12806 = vld [vmem:[%s3 + $0x118] sm:$0xff]
    %v12807 = vld [vmem:[%s3 + $0x120] sm:$0xff]
    %v12808 = vld [vmem:[%s3 + $0x128] sm:$0xff]
    %v12809 = vld [vmem:[%s3 + $0x130] sm:$0xff]
    %v12810 = vld [vmem:[%s3 + $0x138] sm:$0xff]
    %12811 = vmatpush.msra.mxu0 0.0
    %12812 = vmatpush.msra.mxu0 0.0
    %12813 = vmatpush.msra.mxu0 0.0
    %12814 = vmatpush.msra.mxu0 0.0
    %12815 = vmatpush.msra.mxu0 0.0
    %12816 = vmatpush.msra.mxu0 0.0
    %12817 = vmatpush.msra.mxu0 0.0
    %12818 = vmatpush.msra.mxu0 0.0
    %12819 = vmatpush.msra.mxu0 0.0
    %12820 = vmatpush.msra.mxu0 0.0
    %12821 = vmatpush.msra.mxu0 0.0
    %12822 = vmatpush.msra.mxu0 %v12810
    %12823 = vmatpush.msra.mxu0 %v12809
    %12824 = vmatpush.msra.mxu0 %v12808
    %12825 = vmatpush.msra.mxu0 %v12807
    %12826 = vmatpush.msra.mxu0 %v12806
    %12827 = vmatmul.f32.gmra.mxu0 %v10377
    %v12828 = vpop.f32.mrf.mxu0
    %v12829 = vadd.f32 0.0, %v12828
    %12830 = vmatmul.f32.gmra.mxu0 %v10379
    %v12831 = vpop.f32.mrf.mxu0
    %v12832 = vadd.f32 0.0, %v12831
    %12833 = vmatmul.f32.gmra.mxu0 %v10381
    %v12834 = vpop.f32.mrf.mxu0
    %v12835 = vadd.f32 0.0, %v12834
    %12836 = vmatmul.f32.gmra.mxu0 %v10383
    %v12837 = vpop.f32.mrf.mxu0
    %v12838 = vadd.f32 0.0, %v12837
    %12839 = vmatmul.f32.gmra.mxu0 %v10385
    %v12840 = vpop.f32.mrf.mxu0
    %v12841 = vadd.f32 0.0, %v12840
    %12842 = vmatmul.f32.gmra.mxu0 %v10387
    %v12843 = vpop.f32.mrf.mxu0
    %v12844 = vadd.f32 0.0, %v12843
    %12845 = vmatmul.f32.gmra.mxu0 %v11921
    %v12846 = vpop.f32.mrf.mxu0
    %v12847 = vadd.f32 0.0, %v12846
    %12848 = vmatmul.f32.gmra.mxu0 %v10373
    %v12849 = vpop.f32.mrf.mxu0
    %v12850 = vadd.f32 0.0, %v12849
    %12851 = vmatmul.f32.gmra.mxu0 %v10391
    %v12852 = vpop.f32.mrf.mxu0
    %v12853 = vadd.f32 0.0, %v12852
    %12854 = vmatmul.f32.gmra.mxu0 %v10393
    %v12855 = vpop.f32.mrf.mxu0
    %v12856 = vadd.f32 0.0, %v12855
    %12857 = vmatmul.f32.gmra.mxu0 %v10395
    %v12858 = vpop.f32.mrf.mxu0
    %v12859 = vadd.f32 0.0, %v12858
    %12860 = vmatmul.f32.gmra.mxu0 %v10397
    %v12861 = vpop.f32.mrf.mxu0
    %v12862 = vadd.f32 0.0, %v12861
    %12863 = vmatmul.f32.gmra.mxu0 %v10399
    %v12864 = vpop.f32.mrf.mxu0
    %v12865 = vadd.f32 0.0, %v12864
    %12866 = vmatmul.f32.gmra.mxu0 %v10401
    %v12867 = vpop.f32.mrf.mxu0
    %v12868 = vadd.f32 0.0, %v12867
    %12869 = vmatmul.f32.gmra.mxu0 %v11923
    %v12870 = vpop.f32.mrf.mxu0
    %v12871 = vadd.f32 0.0, %v12870
    %12872 = vmatmul.f32.gmra.mxu0 %v10373
    %v12873 = vpop.f32.mrf.mxu0
    %v12874 = vadd.f32 0.0, %v12873
    %12875 = vmatmul.f32.gmra.mxu0 %v10405
    %v12876 = vpop.f32.mrf.mxu0
    %v12877 = vadd.f32 0.0, %v12876
    %12878 = vmatmul.f32.gmra.mxu0 %v10407
    %v12879 = vpop.f32.mrf.mxu0
    %v12880 = vadd.f32 0.0, %v12879
    %12881 = vmatmul.f32.gmra.mxu0 %v10409
    %v12882 = vpop.f32.mrf.mxu0
    %v12883 = vadd.f32 0.0, %v12882
    %12884 = vmatmul.f32.gmra.mxu0 %v10411
    %v12885 = vpop.f32.mrf.mxu0
    %v12886 = vadd.f32 0.0, %v12885
    %12887 = vmatmul.f32.gmra.mxu0 %v10413
    %v12888 = vpop.f32.mrf.mxu0
    %v12889 = vadd.f32 0.0, %v12888
    %12890 = vmatmul.f32.gmra.mxu0 %v10415
    %v12891 = vpop.f32.mrf.mxu0
    %v12892 = vadd.f32 0.0, %v12891
    %12893 = vmatmul.f32.gmra.mxu0 %v11925
    %v12894 = vpop.f32.mrf.mxu0
    %v12895 = vadd.f32 0.0, %v12894
    %12896 = vmatmul.f32.gmra.mxu0 %v10373
    %v12897 = vpop.f32.mrf.mxu0
    %v12898 = vadd.f32 0.0, %v12897
    %12899 = vmatmul.f32.gmra.mxu0 %v10419
    %v12900 = vpop.f32.mrf.mxu0
    %v12901 = vadd.f32 0.0, %v12900
    %12902 = vmatmul.f32.gmra.mxu0 %v10421
    %v12903 = vpop.f32.mrf.mxu0
    %v12904 = vadd.f32 0.0, %v12903
    %12905 = vmatmul.f32.gmra.mxu0 %v10423
    %v12906 = vpop.f32.mrf.mxu0
    %v12907 = vadd.f32 0.0, %v12906
    %12908 = vmatmul.f32.gmra.mxu0 %v10425
    %v12909 = vpop.f32.mrf.mxu0
    %v12910 = vadd.f32 0.0, %v12909
    %12911 = vmatmul.f32.gmra.mxu0 %v10427
    %v12912 = vpop.f32.mrf.mxu0
    %v12913 = vadd.f32 0.0, %v12912
    %12914 = vmatmul.f32.gmra.mxu0 %v10429
    %v12915 = vpop.f32.mrf.mxu0
    %v12916 = vadd.f32 0.0, %v12915
    %12917 = vmatmul.f32.gmra.mxu0 %v11927
    %v12918 = vpop.f32.mrf.mxu0
    %v12919 = vadd.f32 0.0, %v12918
    %12920 = vmatmul.f32.gmra.mxu0 %v10373
    %v12921 = vpop.f32.mrf.mxu0
    %v12922 = vadd.f32 0.0, %v12921
    %12923 = vmatmul.f32.gmra.mxu0 %v10433
    %v12924 = vpop.f32.mrf.mxu0
    %v12925 = vadd.f32 0.0, %v12924
    %12926 = vmatmul.f32.gmra.mxu0 %v10435
    %v12927 = vpop.f32.mrf.mxu0
    %v12928 = vadd.f32 0.0, %v12927
    %12929 = vmatmul.f32.gmra.mxu0 %v10437
    %v12930 = vpop.f32.mrf.mxu0
    %v12931 = vadd.f32 0.0, %v12930
    %12932 = vmatmul.f32.gmra.mxu0 %v10439
    %v12933 = vpop.f32.mrf.mxu0
    %v12934 = vadd.f32 0.0, %v12933
    %12935 = vmatmul.f32.gmra.mxu0 %v10441
    %v12936 = vpop.f32.mrf.mxu0
    %v12937 = vadd.f32 0.0, %v12936
    %12938 = vmatmul.f32.gmra.mxu0 %v10443
    %v12939 = vpop.f32.mrf.mxu0
    %v12940 = vadd.f32 0.0, %v12939
    %12941 = vmatmul.f32.gmra.mxu0 %v11929
    %v12942 = vpop.f32.mrf.mxu0
    %v12943 = vadd.f32 0.0, %v12942
    %12944 = vmatmul.f32.gmra.mxu0 %v10373
    %v12945 = vpop.f32.mrf.mxu0
    %v12946 = vadd.f32 0.0, %v12945
    %12947 = vmatmul.f32.gmra.mxu0 %v10447
    %v12948 = vpop.f32.mrf.mxu0
    %v12949 = vadd.f32 0.0, %v12948
    %12950 = vmatmul.f32.gmra.mxu0 %v10449
    %v12951 = vpop.f32.mrf.mxu0
    %v12952 = vadd.f32 0.0, %v12951
    %12953 = vmatmul.f32.gmra.mxu0 %v10451
    %v12954 = vpop.f32.mrf.mxu0
    %v12955 = vadd.f32 0.0, %v12954
    %12956 = vmatmul.f32.gmra.mxu0 %v10453
    %v12957 = vpop.f32.mrf.mxu0
    %v12958 = vadd.f32 0.0, %v12957
    %12959 = vmatmul.f32.gmra.mxu0 %v10455
    %v12960 = vpop.f32.mrf.mxu0
    %v12961 = vadd.f32 0.0, %v12960
    %12962 = vmatmul.f32.gmra.mxu0 %v10457
    %v12963 = vpop.f32.mrf.mxu0
    %v12964 = vadd.f32 0.0, %v12963
    %12965 = vmatmul.f32.gmra.mxu0 %v11931
    %v12966 = vpop.f32.mrf.mxu0
    %v12967 = vadd.f32 0.0, %v12966
    %12968 = vmatmul.f32.gmra.mxu0 %v10373
    %v12969 = vpop.f32.mrf.mxu0
    %v12970 = vadd.f32 0.0, %v12969
    %12971 = vmatmul.f32.gmra.mxu0 %v10461
    %v12972 = vpop.f32.mrf.mxu0
    %v12973 = vadd.f32 0.0, %v12972
    %12974 = vmatmul.f32.gmra.mxu0 %v10463
    %v12975 = vpop.f32.mrf.mxu0
    %v12976 = vadd.f32 0.0, %v12975
    %12977 = vmatmul.f32.gmra.mxu0 %v10465
    %v12978 = vpop.f32.mrf.mxu0
    %v12979 = vadd.f32 0.0, %v12978
    %12980 = vmatmul.f32.gmra.mxu0 %v10467
    %v12981 = vpop.f32.mrf.mxu0
    %v12982 = vadd.f32 0.0, %v12981
    %12983 = vmatmul.f32.gmra.mxu0 %v10469
    %v12984 = vpop.f32.mrf.mxu0
    %v12985 = vadd.f32 0.0, %v12984
    %12986 = vmatmul.f32.gmra.mxu0 %v10471
    %v12987 = vpop.f32.mrf.mxu0
    %v12988 = vadd.f32 0.0, %v12987
    %12989 = vmatmul.f32.gmra.mxu0 %v11933
    %v12990 = vpop.f32.mrf.mxu0
    %v12991 = vadd.f32 0.0, %v12990
    %12992 = vmatmul.f32.gmra.mxu0 %v10373
    %v12993 = vpop.f32.mrf.mxu0
    %v12994 = vadd.f32 0.0, %v12993
    %12995 = vmatmul.f32.gmra.mxu0 %v10475
    %v12996 = vpop.f32.mrf.mxu0
    %v12997 = vadd.f32 0.0, %v12996
    %12998 = vmatmul.f32.gmra.mxu0 %v10477
    %v12999 = vpop.f32.mrf.mxu0
    %v13000 = vadd.f32 0.0, %v12999
    %13001 = vmatmul.f32.gmra.mxu0 %v10479
    %v13002 = vpop.f32.mrf.mxu0
    %v13003 = vadd.f32 0.0, %v13002
    %13004 = vmatmul.f32.gmra.mxu0 %v10481
    %v13005 = vpop.f32.mrf.mxu0
    %v13006 = vadd.f32 0.0, %v13005
    %13007 = vmatmul.f32.gmra.mxu0 %v10483
    %v13008 = vpop.f32.mrf.mxu0
    %v13009 = vadd.f32 0.0, %v13008
    %13010 = vmatmul.f32.gmra.mxu0 %v10485
    %v13011 = vpop.f32.mrf.mxu0
    %v13012 = vadd.f32 0.0, %v13011
    %13013 = vmatmul.f32.gmra.mxu0 %v11935
    %v13014 = vpop.f32.mrf.mxu0
    %v13015 = vadd.f32 0.0, %v13014
    %13016 = vmatmul.f32.gmra.mxu0 %v10373
    %v13017 = vpop.f32.mrf.mxu0
    %v13018 = vadd.f32 0.0, %v13017
    %13019 = vdwg.mxu0
    %v13020 = vadd.f32 %v12742, %v12829
    %v13021 = vadd.f32 %v12743, %v12832
    %v13022 = vadd.f32 %v12744, %v12835
    %v13023 = vadd.f32 %v12745, %v12838
    %v13024 = vadd.f32 %v12746, %v12841
    %v13025 = vadd.f32 %v12747, %v12844
    %v13026 = vadd.f32 %v12748, %v12847
    %v13027 = vadd.f32 %v12749, %v12850
    %v13028 = vadd.f32 %v12750, %v12853
    %v13029 = vadd.f32 %v12751, %v12856
    %v13030 = vadd.f32 %v12752, %v12859
    %v13031 = vadd.f32 %v12753, %v12862
    %v13032 = vadd.f32 %v12754, %v12865
    %v13033 = vadd.f32 %v12755, %v12868
    %v13034 = vadd.f32 %v12756, %v12871
    %v13035 = vadd.f32 %v12757, %v12874
    %v13036 = vadd.f32 %v12758, %v12877
    %v13037 = vadd.f32 %v12759, %v12880
    %v13038 = vadd.f32 %v12760, %v12883
    %v13039 = vadd.f32 %v12761, %v12886
    %v13040 = vadd.f32 %v12762, %v12889
    %v13041 = vadd.f32 %v12763, %v12892
    %v13042 = vadd.f32 %v12764, %v12895
    %v13043 = vadd.f32 %v12765, %v12898
    %v13044 = vadd.f32 %v12766, %v12901
    %v13045 = vadd.f32 %v12767, %v12904
    %v13046 = vadd.f32 %v12768, %v12907
    %v13047 = vadd.f32 %v12769, %v12910
    %v13048 = vadd.f32 %v12770, %v12913
    %v13049 = vadd.f32 %v12771, %v12916
    %v13050 = vadd.f32 %v12772, %v12919
    %v13051 = vadd.f32 %v12773, %v12922
    %v13052 = vadd.f32 %v12774, %v12925
    %v13053 = vadd.f32 %v12775, %v12928
    %v13054 = vadd.f32 %v12776, %v12931
    %v13055 = vadd.f32 %v12777, %v12934
    %v13056 = vadd.f32 %v12778, %v12937
    %v13057 = vadd.f32 %v12779, %v12940
    %v13058 = vadd.f32 %v12780, %v12943
    %v13059 = vadd.f32 %v12781, %v12946
    %v13060 = vadd.f32 %v12782, %v12949
    %v13061 = vadd.f32 %v12783, %v12952
    %v13062 = vadd.f32 %v12784, %v12955
    %v13063 = vadd.f32 %v12785, %v12958
    %v13064 = vadd.f32 %v12786, %v12961
    %v13065 = vadd.f32 %v12787, %v12964
    %v13066 = vadd.f32 %v12788, %v12967
    %v13067 = vadd.f32 %v12789, %v12970
    %v13068 = vadd.f32 %v12790, %v12973
    %v13069 = vadd.f32 %v12791, %v12976
    %v13070 = vadd.f32 %v12792, %v12979
    %v13071 = vadd.f32 %v12793, %v12982
    %v13072 = vadd.f32 %v12794, %v12985
    %v13073 = vadd.f32 %v12795, %v12988
    %v13074 = vadd.f32 %v12796, %v12991
    %v13075 = vadd.f32 %v12797, %v12994
    %v13076 = vadd.f32 %v12798, %v12997
    %v13077 = vadd.f32 %v12799, %v13000
    %v13078 = vadd.f32 %v12800, %v13003
    %v13079 = vadd.f32 %v12801, %v13006
    %v13080 = vadd.f32 %v12802, %v13009
    %v13081 = vadd.f32 %v12803, %v13012
    %v13082 = vadd.f32 %v12804, %v13015
    %v13083 = vadd.f32 %v12805, %v13018
    %v13084 = vld [vmem:[%s3 + $0x140] sm:$0xff]
    %v13085 = vld [vmem:[%s3 + $0x148] sm:$0xff]
    %v13086 = vld [vmem:[%s3 + $0x150] sm:$0xff]
    %v13087 = vld [vmem:[%s3 + $0x158] sm:$0xff]
    %v13088 = vld [vmem:[%s3 + $0x160] sm:$0xff]
    %13089 = vmatpush.msra.mxu0 0.0
    %13090 = vmatpush.msra.mxu0 0.0
    %13091 = vmatpush.msra.mxu0 0.0
    %13092 = vmatpush.msra.mxu0 0.0
    %13093 = vmatpush.msra.mxu0 0.0
    %13094 = vmatpush.msra.mxu0 0.0
    %13095 = vmatpush.msra.mxu0 0.0
    %13096 = vmatpush.msra.mxu0 0.0
    %13097 = vmatpush.msra.mxu0 0.0
    %13098 = vmatpush.msra.mxu0 0.0
    %13099 = vmatpush.msra.mxu0 0.0
    %13100 = vmatpush.msra.mxu0 %v13088
    %13101 = vmatpush.msra.mxu0 %v13087
    %13102 = vmatpush.msra.mxu0 %v13086
    %13103 = vmatpush.msra.mxu0 %v13085
    %13104 = vmatpush.msra.mxu0 %v13084
    %13105 = vmatmul.f32.gmra.mxu0 %v11199
    %v13106 = vpop.f32.mrf.mxu0
    %v13107 = vadd.f32 0.0, %v13106
    %13108 = vmatmul.f32.gmra.mxu0 %v11201
    %v13109 = vpop.f32.mrf.mxu0
    %v13110 = vadd.f32 0.0, %v13109
    %13111 = vmatmul.f32.gmra.mxu0 %v11203
    %v13112 = vpop.f32.mrf.mxu0
    %v13113 = vadd.f32 0.0, %v13112
    %13114 = vmatmul.f32.gmra.mxu0 %v11205
    %v13115 = vpop.f32.mrf.mxu0
    %v13116 = vadd.f32 0.0, %v13115
    %13117 = vmatmul.f32.gmra.mxu0 %v11207
    %v13118 = vpop.f32.mrf.mxu0
    %v13119 = vadd.f32 0.0, %v13118
    %13120 = vmatmul.f32.gmra.mxu0 %v11209
    %v13121 = vpop.f32.mrf.mxu0
    %v13122 = vadd.f32 0.0, %v13121
    %13123 = vmatmul.f32.gmra.mxu0 %v12239
    %v13124 = vpop.f32.mrf.mxu0
    %v13125 = vadd.f32 0.0, %v13124
    %13126 = vmatmul.f32.gmra.mxu0 %v11195
    %v13127 = vpop.f32.mrf.mxu0
    %v13128 = vadd.f32 0.0, %v13127
    %13129 = vmatmul.f32.gmra.mxu0 %v11213
    %v13130 = vpop.f32.mrf.mxu0
    %v13131 = vadd.f32 0.0, %v13130
    %13132 = vmatmul.f32.gmra.mxu0 %v11215
    %v13133 = vpop.f32.mrf.mxu0
    %v13134 = vadd.f32 0.0, %v13133
    %13135 = vmatmul.f32.gmra.mxu0 %v11217
    %v13136 = vpop.f32.mrf.mxu0
    %v13137 = vadd.f32 0.0, %v13136
    %13138 = vmatmul.f32.gmra.mxu0 %v11219
    %v13139 = vpop.f32.mrf.mxu0
    %v13140 = vadd.f32 0.0, %v13139
    %13141 = vmatmul.f32.gmra.mxu0 %v11221
    %v13142 = vpop.f32.mrf.mxu0
    %v13143 = vadd.f32 0.0, %v13142
    %13144 = vmatmul.f32.gmra.mxu0 %v11223
    %v13145 = vpop.f32.mrf.mxu0
    %v13146 = vadd.f32 0.0, %v13145
    %13147 = vmatmul.f32.gmra.mxu0 %v12241
    %v13148 = vpop.f32.mrf.mxu0
    %v13149 = vadd.f32 0.0, %v13148
    %13150 = vmatmul.f32.gmra.mxu0 %v11195
    %v13151 = vpop.f32.mrf.mxu0
    %v13152 = vadd.f32 0.0, %v13151
    %13153 = vmatmul.f32.gmra.mxu0 %v11227
    %v13154 = vpop.f32.mrf.mxu0
    %v13155 = vadd.f32 0.0, %v13154
    %13156 = vmatmul.f32.gmra.mxu0 %v11229
    %v13157 = vpop.f32.mrf.mxu0
    %v13158 = vadd.f32 0.0, %v13157
    %13159 = vmatmul.f32.gmra.mxu0 %v11231
    %v13160 = vpop.f32.mrf.mxu0
    %v13161 = vadd.f32 0.0, %v13160
    %13162 = vmatmul.f32.gmra.mxu0 %v11233
    %v13163 = vpop.f32.mrf.mxu0
    %v13164 = vadd.f32 0.0, %v13163
    %13165 = vmatmul.f32.gmra.mxu0 %v11235
    %v13166 = vpop.f32.mrf.mxu0
    %v13167 = vadd.f32 0.0, %v13166
    %13168 = vmatmul.f32.gmra.mxu0 %v11237
    %v13169 = vpop.f32.mrf.mxu0
    %v13170 = vadd.f32 0.0, %v13169
    %13171 = vmatmul.f32.gmra.mxu0 %v12243
    %v13172 = vpop.f32.mrf.mxu0
    %v13173 = vadd.f32 0.0, %v13172
    %13174 = vmatmul.f32.gmra.mxu0 %v11195
    %v13175 = vpop.f32.mrf.mxu0
    %v13176 = vadd.f32 0.0, %v13175
    %13177 = vmatmul.f32.gmra.mxu0 %v11241
    %v13178 = vpop.f32.mrf.mxu0
    %v13179 = vadd.f32 0.0, %v13178
    %13180 = vmatmul.f32.gmra.mxu0 %v11243
    %v13181 = vpop.f32.mrf.mxu0
    %v13182 = vadd.f32 0.0, %v13181
    %13183 = vmatmul.f32.gmra.mxu0 %v11245
    %v13184 = vpop.f32.mrf.mxu0
    %v13185 = vadd.f32 0.0, %v13184
    %13186 = vmatmul.f32.gmra.mxu0 %v11247
    %v13187 = vpop.f32.mrf.mxu0
    %v13188 = vadd.f32 0.0, %v13187
    %13189 = vmatmul.f32.gmra.mxu0 %v11249
    %v13190 = vpop.f32.mrf.mxu0
    %v13191 = vadd.f32 0.0, %v13190
    %13192 = vmatmul.f32.gmra.mxu0 %v11251
    %v13193 = vpop.f32.mrf.mxu0
    %v13194 = vadd.f32 0.0, %v13193
    %13195 = vmatmul.f32.gmra.mxu0 %v12245
    %v13196 = vpop.f32.mrf.mxu0
    %v13197 = vadd.f32 0.0, %v13196
    %13198 = vmatmul.f32.gmra.mxu0 %v11195
    %v13199 = vpop.f32.mrf.mxu0
    %v13200 = vadd.f32 0.0, %v13199
    %13201 = vmatmul.f32.gmra.mxu0 %v11255
    %v13202 = vpop.f32.mrf.mxu0
    %v13203 = vadd.f32 0.0, %v13202
    %13204 = vmatmul.f32.gmra.mxu0 %v11257
    %v13205 = vpop.f32.mrf.mxu0
    %v13206 = vadd.f32 0.0, %v13205
    %13207 = vmatmul.f32.gmra.mxu0 %v11259
    %v13208 = vpop.f32.mrf.mxu0
    %v13209 = vadd.f32 0.0, %v13208
    %13210 = vmatmul.f32.gmra.mxu0 %v11261
    %v13211 = vpop.f32.mrf.mxu0
    %v13212 = vadd.f32 0.0, %v13211
    %13213 = vmatmul.f32.gmra.mxu0 %v11263
    %v13214 = vpop.f32.mrf.mxu0
    %v13215 = vadd.f32 0.0, %v13214
    %13216 = vmatmul.f32.gmra.mxu0 %v11265
    %v13217 = vpop.f32.mrf.mxu0
    %v13218 = vadd.f32 0.0, %v13217
    %13219 = vmatmul.f32.gmra.mxu0 %v12247
    %v13220 = vpop.f32.mrf.mxu0
    %v13221 = vadd.f32 0.0, %v13220
    %13222 = vmatmul.f32.gmra.mxu0 %v11195
    %v13223 = vpop.f32.mrf.mxu0
    %v13224 = vadd.f32 0.0, %v13223
    %13225 = vmatmul.f32.gmra.mxu0 %v11269
    %v13226 = vpop.f32.mrf.mxu0
    %v13227 = vadd.f32 0.0, %v13226
    %13228 = vmatmul.f32.gmra.mxu0 %v11271
    %v13229 = vpop.f32.mrf.mxu0
    %v13230 = vadd.f32 0.0, %v13229
    %13231 = vmatmul.f32.gmra.mxu0 %v11273
    %v13232 = vpop.f32.mrf.mxu0
    %v13233 = vadd.f32 0.0, %v13232
    %13234 = vmatmul.f32.gmra.mxu0 %v11275
    %v13235 = vpop.f32.mrf.mxu0
    %v13236 = vadd.f32 0.0, %v13235
    %13237 = vmatmul.f32.gmra.mxu0 %v11277
    %v13238 = vpop.f32.mrf.mxu0
    %v13239 = vadd.f32 0.0, %v13238
    %13240 = vmatmul.f32.gmra.mxu0 %v11279
    %v13241 = vpop.f32.mrf.mxu0
    %v13242 = vadd.f32 0.0, %v13241
    %13243 = vmatmul.f32.gmra.mxu0 %v12249
    %v13244 = vpop.f32.mrf.mxu0
    %v13245 = vadd.f32 0.0, %v13244
    %13246 = vmatmul.f32.gmra.mxu0 %v11195
    %v13247 = vpop.f32.mrf.mxu0
    %v13248 = vadd.f32 0.0, %v13247
    %13249 = vmatmul.f32.gmra.mxu0 %v11283
    %v13250 = vpop.f32.mrf.mxu0
    %v13251 = vadd.f32 0.0, %v13250
    %13252 = vmatmul.f32.gmra.mxu0 %v11285
    %v13253 = vpop.f32.mrf.mxu0
    %v13254 = vadd.f32 0.0, %v13253
    %13255 = vmatmul.f32.gmra.mxu0 %v11287
    %v13256 = vpop.f32.mrf.mxu0
    %v13257 = vadd.f32 0.0, %v13256
    %13258 = vmatmul.f32.gmra.mxu0 %v11289
    %v13259 = vpop.f32.mrf.mxu0
    %v13260 = vadd.f32 0.0, %v13259
    %13261 = vmatmul.f32.gmra.mxu0 %v11291
    %v13262 = vpop.f32.mrf.mxu0
    %v13263 = vadd.f32 0.0, %v13262
    %13264 = vmatmul.f32.gmra.mxu0 %v11293
    %v13265 = vpop.f32.mrf.mxu0
    %v13266 = vadd.f32 0.0, %v13265
    %13267 = vmatmul.f32.gmra.mxu0 %v12251
    %v13268 = vpop.f32.mrf.mxu0
    %v13269 = vadd.f32 0.0, %v13268
    %13270 = vmatmul.f32.gmra.mxu0 %v11195
    %v13271 = vpop.f32.mrf.mxu0
    %v13272 = vadd.f32 0.0, %v13271
    %13273 = vmatmul.f32.gmra.mxu0 %v11297
    %v13274 = vpop.f32.mrf.mxu0
    %v13275 = vadd.f32 0.0, %v13274
    %13276 = vmatmul.f32.gmra.mxu0 %v11299
    %v13277 = vpop.f32.mrf.mxu0
    %v13278 = vadd.f32 0.0, %v13277
    %13279 = vmatmul.f32.gmra.mxu0 %v11301
    %v13280 = vpop.f32.mrf.mxu0
    %v13281 = vadd.f32 0.0, %v13280
    %13282 = vmatmul.f32.gmra.mxu0 %v11303
    %v13283 = vpop.f32.mrf.mxu0
    %v13284 = vadd.f32 0.0, %v13283
    %13285 = vmatmul.f32.gmra.mxu0 %v11305
    %v13286 = vpop.f32.mrf.mxu0
    %v13287 = vadd.f32 0.0, %v13286
    %13288 = vmatmul.f32.gmra.mxu0 %v11307
    %v13289 = vpop.f32.mrf.mxu0
    %v13290 = vadd.f32 0.0, %v13289
    %13291 = vmatmul.f32.gmra.mxu0 %v12253
    %v13292 = vpop.f32.mrf.mxu0
    %v13293 = vadd.f32 0.0, %v13292
    %13294 = vmatmul.f32.gmra.mxu0 %v11195
    %v13295 = vpop.f32.mrf.mxu0
    %v13296 = vadd.f32 0.0, %v13295
    %13297 = vdwg.mxu0
    %v13298 = vadd.f32 %v13020, %v13107
    %v13299 = vadd.f32 %v13021, %v13110
    %v13300 = vadd.f32 %v13022, %v13113
    %v13301 = vadd.f32 %v13023, %v13116
    %v13302 = vadd.f32 %v13024, %v13119
    %v13303 = vadd.f32 %v13025, %v13122
    %v13304 = vadd.f32 %v13026, %v13125
    %v13305 = vadd.f32 %v13027, %v13128
    %v13306 = vadd.f32 %v13028, %v13131
    %v13307 = vadd.f32 %v13029, %v13134
    %v13308 = vadd.f32 %v13030, %v13137
    %v13309 = vadd.f32 %v13031, %v13140
    %v13310 = vadd.f32 %v13032, %v13143
    %v13311 = vadd.f32 %v13033, %v13146
    %v13312 = vadd.f32 %v13034, %v13149
    %v13313 = vadd.f32 %v13035, %v13152
    %v13314 = vadd.f32 %v13036, %v13155
    %v13315 = vadd.f32 %v13037, %v13158
    %v13316 = vadd.f32 %v13038, %v13161
    %v13317 = vadd.f32 %v13039, %v13164
    %v13318 = vadd.f32 %v13040, %v13167
    %v13319 = vadd.f32 %v13041, %v13170
    %v13320 = vadd.f32 %v13042, %v13173
    %v13321 = vadd.f32 %v13043, %v13176
    %v13322 = vadd.f32 %v13044, %v13179
    %v13323 = vadd.f32 %v13045, %v13182
    %v13324 = vadd.f32 %v13046, %v13185
    %v13325 = vadd.f32 %v13047, %v13188
    %v13326 = vadd.f32 %v13048, %v13191
    %v13327 = vadd.f32 %v13049, %v13194
    %v13328 = vadd.f32 %v13050, %v13197
    %v13329 = vadd.f32 %v13051, %v13200
    %v13330 = vadd.f32 %v13052, %v13203
    %v13331 = vadd.f32 %v13053, %v13206
    %v13332 = vadd.f32 %v13054, %v13209
    %v13333 = vadd.f32 %v13055, %v13212
    %v13334 = vadd.f32 %v13056, %v13215
    %v13335 = vadd.f32 %v13057, %v13218
    %v13336 = vadd.f32 %v13058, %v13221
    %v13337 = vadd.f32 %v13059, %v13224
    %v13338 = vadd.f32 %v13060, %v13227
    %v13339 = vadd.f32 %v13061, %v13230
    %v13340 = vadd.f32 %v13062, %v13233
    %v13341 = vadd.f32 %v13063, %v13236
    %v13342 = vadd.f32 %v13064, %v13239
    %v13343 = vadd.f32 %v13065, %v13242
    %v13344 = vadd.f32 %v13066, %v13245
    %v13345 = vadd.f32 %v13067, %v13248
    %v13346 = vadd.f32 %v13068, %v13251
    %v13347 = vadd.f32 %v13069, %v13254
    %v13348 = vadd.f32 %v13070, %v13257
    %v13349 = vadd.f32 %v13071, %v13260
    %v13350 = vadd.f32 %v13072, %v13263
    %v13351 = vadd.f32 %v13073, %v13266
    %v13352 = vadd.f32 %v13074, %v13269
    %v13353 = vadd.f32 %v13075, %v13272
    %v13354 = vadd.f32 %v13076, %v13275
    %v13355 = vadd.f32 %v13077, %v13278
    %v13356 = vadd.f32 %v13078, %v13281
    %v13357 = vadd.f32 %v13079, %v13284
    %v13358 = vadd.f32 %v13080, %v13287
    %v13359 = vadd.f32 %v13081, %v13290
    %v13360 = vadd.f32 %v13082, %v13293
    %v13361 = vadd.f32 %v13083, %v13296
    %v13362 = vld [vmem:[%s4] sm:$0x1]
    %v13364 = vperm.slane %v13362, 0
    %v13366 = vadd.f32 %v13298, %v13364
    %v13367 = vadd.f32 %v13299, %v13364
    %v13368 = vadd.f32 %v13300, %v13364
    %v13369 = vadd.f32 %v13301, %v13364
    %v13370 = vadd.f32 %v13302, %v13364
    %v13371 = vadd.f32 %v13303, %v13364
    %v13372 = vadd.f32 %v13304, %v13364
    %v13373 = vadd.f32 %v13305, %v13364
    %v13374 = vadd.f32 %v13306, %v13364
    %v13375 = vadd.f32 %v13307, %v13364
    %v13376 = vadd.f32 %v13308, %v13364
    %v13377 = vadd.f32 %v13309, %v13364
    %v13378 = vadd.f32 %v13310, %v13364
    %v13379 = vadd.f32 %v13311, %v13364
    %v13380 = vadd.f32 %v13312, %v13364
    %v13381 = vadd.f32 %v13313, %v13364
    %v13382 = vadd.f32 %v13314, %v13364
    %v13383 = vadd.f32 %v13315, %v13364
    %v13384 = vadd.f32 %v13316, %v13364
    %v13385 = vadd.f32 %v13317, %v13364
    %v13386 = vadd.f32 %v13318, %v13364
    %v13387 = vadd.f32 %v13319, %v13364
    %v13388 = vadd.f32 %v13320, %v13364
    %v13389 = vadd.f32 %v13321, %v13364
    %v13390 = vadd.f32 %v13322, %v13364
    %v13391 = vadd.f32 %v13323, %v13364
    %v13392 = vadd.f32 %v13324, %v13364
    %v13393 = vadd.f32 %v13325, %v13364
    %v13394 = vadd.f32 %v13326, %v13364
    %v13395 = vadd.f32 %v13327, %v13364
    %v13396 = vadd.f32 %v13328, %v13364
    %v13397 = vadd.f32 %v13329, %v13364
    %v13398 = vadd.f32 %v13330, %v13364
    %v13399 = vadd.f32 %v13331, %v13364
    %v13400 = vadd.f32 %v13332, %v13364
    %v13401 = vadd.f32 %v13333, %v13364
    %v13402 = vadd.f32 %v13334, %v13364
    %v13403 = vadd.f32 %v13335, %v13364
    %v13404 = vadd.f32 %v13336, %v13364
    %v13405 = vadd.f32 %v13337, %v13364
    %v13406 = vadd.f32 %v13338, %v13364
    %v13407 = vadd.f32 %v13339, %v13364
    %v13408 = vadd.f32 %v13340, %v13364
    %v13409 = vadd.f32 %v13341, %v13364
    %v13410 = vadd.f32 %v13342, %v13364
    %v13411 = vadd.f32 %v13343, %v13364
    %v13412 = vadd.f32 %v13344, %v13364
    %v13413 = vadd.f32 %v13345, %v13364
    %v13414 = vadd.f32 %v13346, %v13364
    %v13415 = vadd.f32 %v13347, %v13364
    %v13416 = vadd.f32 %v13348, %v13364
    %v13417 = vadd.f32 %v13349, %v13364
    %v13418 = vadd.f32 %v13350, %v13364
    %v13419 = vadd.f32 %v13351, %v13364
    %v13420 = vadd.f32 %v13352, %v13364
    %v13421 = vadd.f32 %v13353, %v13364
    %v13422 = vadd.f32 %v13354, %v13364
    %v13423 = vadd.f32 %v13355, %v13364
    %v13424 = vadd.f32 %v13356, %v13364
    %v13425 = vadd.f32 %v13357, %v13364
    %v13426 = vadd.f32 %v13358, %v13364
    %v13427 = vadd.f32 %v13359, %v13364
    %v13428 = vadd.f32 %v13360, %v13364
    %v13429 = vadd.f32 %v13361, %v13364
    %vm13430 = vcmask 490496
    %v13431 = vsel %vm13430, %v13366, -inf
    %v13432 = vsel %vm13430, %v13367, -inf
    %v13433 = vmax.f32 %v13431, %v13432
    %v13434 = vsel %vm13430, %v13368, -inf
    %v13435 = vsel %vm13430, %v13369, -inf
    %v13436 = vmax.f32 %v13434, %v13435
    %v13437 = vsel %vm13430, %v13370, -inf
    %v13438 = vsel %vm13430, %v13371, -inf
    %v13439 = vmax.f32 %v13437, %v13438
    %v13440 = vsel %vm13430, %v13372, -inf
    %v13441 = vsel %vm13430, %v13373, -inf
    %v13442 = vmax.f32 %v13440, %v13441
    %v13443 = vsel %vm13430, %v13374, -inf
    %v13444 = vsel %vm13430, %v13375, -inf
    %v13445 = vmax.f32 %v13443, %v13444
    %v13446 = vsel %vm13430, %v13376, -inf
    %v13447 = vsel %vm13430, %v13377, -inf
    %v13448 = vmax.f32 %v13446, %v13447
    %v13449 = vsel %vm13430, %v13378, -inf
    %v13450 = vsel %vm13430, %v13379, -inf
    %v13451 = vmax.f32 %v13449, %v13450
    %v13452 = vsel %vm13430, %v13380, -inf
    %v13453 = vsel %vm13430, %v13381, -inf
    %v13454 = vmax.f32 %v13452, %v13453
    %v13455 = vsel %vm13430, %v13382, -inf
    %v13456 = vsel %vm13430, %v13383, -inf
    %v13457 = vmax.f32 %v13455, %v13456
    %v13458 = vsel %vm13430, %v13384, -inf
    %v13459 = vsel %vm13430, %v13385, -inf
    %v13460 = vmax.f32 %v13458, %v13459
    %v13461 = vsel %vm13430, %v13386, -inf
    %v13462 = vsel %vm13430, %v13387, -inf
    %v13463 = vmax.f32 %v13461, %v13462
    %v13464 = vsel %vm13430, %v13388, -inf
    %v13465 = vsel %vm13430, %v13389, -inf
    %v13466 = vmax.f32 %v13464, %v13465
    %v13467 = vsel %vm13430, %v13390, -inf
    %v13468 = vsel %vm13430, %v13391, -inf
    %v13469 = vmax.f32 %v13467, %v13468
    %v13470 = vsel %vm13430, %v13392, -inf
    %v13471 = vsel %vm13430, %v13393, -inf
    %v13472 = vmax.f32 %v13470, %v13471
    %v13473 = vsel %vm13430, %v13394, -inf
    %v13474 = vsel %vm13430, %v13395, -inf
    %v13475 = vmax.f32 %v13473, %v13474
    %v13476 = vsel %vm13430, %v13396, -inf
    %v13477 = vsel %vm13430, %v13397, -inf
    %v13478 = vmax.f32 %v13476, %v13477
    %v13479 = vsel %vm13430, %v13398, -inf
    %v13480 = vsel %vm13430, %v13399, -inf
    %v13481 = vmax.f32 %v13479, %v13480
    %v13482 = vsel %vm13430, %v13400, -inf
    %v13483 = vsel %vm13430, %v13401, -inf
    %v13484 = vmax.f32 %v13482, %v13483
    %v13485 = vsel %vm13430, %v13402, -inf
    %v13486 = vsel %vm13430, %v13403, -inf
    %v13487 = vmax.f32 %v13485, %v13486
    %v13488 = vsel %vm13430, %v13404, -inf
    %v13489 = vsel %vm13430, %v13405, -inf
    %v13490 = vmax.f32 %v13488, %v13489
    %v13491 = vsel %vm13430, %v13406, -inf
    %v13492 = vsel %vm13430, %v13407, -inf
    %v13493 = vmax.f32 %v13491, %v13492
    %v13494 = vsel %vm13430, %v13408, -inf
    %v13495 = vsel %vm13430, %v13409, -inf
    %v13496 = vmax.f32 %v13494, %v13495
    %v13497 = vsel %vm13430, %v13410, -inf
    %v13498 = vsel %vm13430, %v13411, -inf
    %v13499 = vmax.f32 %v13497, %v13498
    %v13500 = vsel %vm13430, %v13412, -inf
    %v13501 = vsel %vm13430, %v13413, -inf
    %v13502 = vmax.f32 %v13500, %v13501
    %v13503 = vsel %vm13430, %v13414, -inf
    %v13504 = vsel %vm13430, %v13415, -inf
    %v13505 = vmax.f32 %v13503, %v13504
    %v13506 = vsel %vm13430, %v13416, -inf
    %v13507 = vsel %vm13430, %v13417, -inf
    %v13508 = vmax.f32 %v13506, %v13507
    %v13509 = vsel %vm13430, %v13418, -inf
    %v13510 = vsel %vm13430, %v13419, -inf
    %v13511 = vmax.f32 %v13509, %v13510
    %v13512 = vsel %vm13430, %v13420, -inf
    %v13513 = vsel %vm13430, %v13421, -inf
    %v13514 = vmax.f32 %v13512, %v13513
    %v13515 = vsel %vm13430, %v13422, -inf
    %v13516 = vsel %vm13430, %v13423, -inf
    %v13517 = vmax.f32 %v13515, %v13516
    %v13518 = vsel %vm13430, %v13424, -inf
    %v13519 = vsel %vm13430, %v13425, -inf
    %v13520 = vmax.f32 %v13518, %v13519
    %v13521 = vsel %vm13430, %v13426, -inf
    %v13522 = vsel %vm13430, %v13427, -inf
    %v13523 = vmax.f32 %v13521, %v13522
    %v13524 = vsel %vm13430, %v13428, -inf
    %v13525 = vsel %vm13430, %v13429, -inf
    %v13526 = vmax.f32 %v13524, %v13525
    %13527 = vst.msk [vmem:[#allocation3] sm:$0xff] %vm13430, %v13433
    %13528 = vst.msk [vmem:[#allocation3 + $0x8] sm:$0xff] %vm13430, %v13436
    %13529 = vst.msk [vmem:[#allocation3 + $0x10] sm:$0xff] %vm13430, %v13439
    %13530 = vst.msk [vmem:[#allocation3 + $0x18] sm:$0xff] %vm13430, %v13442
    %13531 = vst.msk [vmem:[#allocation3 + $0x20] sm:$0xff] %vm13430, %v13445
    %13532 = vst.msk [vmem:[#allocation3 + $0x28] sm:$0xff] %vm13430, %v13448
    %13533 = vst.msk [vmem:[#allocation3 + $0x30] sm:$0xff] %vm13430, %v13451
    %13534 = vst.msk [vmem:[#allocation3 + $0x38] sm:$0xff] %vm13430, %v13454
    %13535 = vst.msk [vmem:[#allocation3 + $0x40] sm:$0xff] %vm13430, %v13457
    %13536 = vst.msk [vmem:[#allocation3 + $0x48] sm:$0xff] %vm13430, %v13460
    %13537 = vst.msk [vmem:[#allocation3 + $0x50] sm:$0xff] %vm13430, %v13463
    %13538 = vst.msk [vmem:[#allocation3 + $0x58] sm:$0xff] %vm13430, %v13466
    %13539 = vst.msk [vmem:[#allocation3 + $0x60] sm:$0xff] %vm13430, %v13469
    %13540 = vst.msk [vmem:[#allocation3 + $0x68] sm:$0xff] %vm13430, %v13472
    %13541 = vst.msk [vmem:[#allocation3 + $0x70] sm:$0xff] %vm13430, %v13475
    %13542 = vst.msk [vmem:[#allocation3 + $0x78] sm:$0xff] %vm13430, %v13478
    %13543 = vst.msk [vmem:[#allocation3 + $0x80] sm:$0xff] %vm13430, %v13481
    %13544 = vst.msk [vmem:[#allocation3 + $0x88] sm:$0xff] %vm13430, %v13484
    %13545 = vst.msk [vmem:[#allocation3 + $0x90] sm:$0xff] %vm13430, %v13487
    %13546 = vst.msk [vmem:[#allocation3 + $0x98] sm:$0xff] %vm13430, %v13490
    %13547 = vst.msk [vmem:[#allocation3 + $0xa0] sm:$0xff] %vm13430, %v13493
    %13548 = vst.msk [vmem:[#allocation3 + $0xa8] sm:$0xff] %vm13430, %v13496
    %13549 = vst.msk [vmem:[#allocation3 + $0xb0] sm:$0xff] %vm13430, %v13499
    %13550 = vst.msk [vmem:[#allocation3 + $0xb8] sm:$0xff] %vm13430, %v13502
    %13551 = vst.msk [vmem:[#allocation3 + $0xc0] sm:$0xff] %vm13430, %v13505
    %13552 = vst.msk [vmem:[#allocation3 + $0xc8] sm:$0xff] %vm13430, %v13508
    %13553 = vst.msk [vmem:[#allocation3 + $0xd0] sm:$0xff] %vm13430, %v13511
    %13554 = vst.msk [vmem:[#allocation3 + $0xd8] sm:$0xff] %vm13430, %v13514
    %13555 = vst.msk [vmem:[#allocation3 + $0xe0] sm:$0xff] %vm13430, %v13517
    %13556 = vst.msk [vmem:[#allocation3 + $0xe8] sm:$0xff] %vm13430, %v13520
    %13557 = vst.msk [vmem:[#allocation3 + $0xf0] sm:$0xff] %vm13430, %v13523
    %13558 = vst.msk [vmem:[#allocation3 + $0xf8] sm:$0xff] %vm13430, %v13526
    %v13559 = vld [vmem:[#allocation3] ss:$2 sm:$0xf]
    %s13560 = scalar_lea.vmem [#allocation3], 8
    %v13561 = vld [vmem:[%s13560] ss:$2 sm:$0xf]
    %s13562 = scalar_lea.vmem [#allocation3], 16
    %v13563 = vld [vmem:[%s13562] ss:$2 sm:$0xf]
    %s13564 = scalar_lea.vmem [#allocation3], 24
    %v13565 = vld [vmem:[%s13564] ss:$2 sm:$0xf]
    %s13566 = scalar_lea.vmem [#allocation3], 32
    %v13567 = vld [vmem:[%s13566] ss:$2 sm:$0xf]
    %s13568 = scalar_lea.vmem [#allocation3], 40
    %v13569 = vld [vmem:[%s13568] ss:$2 sm:$0xf]
    %s13570 = scalar_lea.vmem [#allocation3], 48
    %v13571 = vld [vmem:[%s13570] ss:$2 sm:$0xf]
    %s13572 = scalar_lea.vmem [#allocation3], 56
    %v13573 = vld [vmem:[%s13572] ss:$2 sm:$0xf]
    %s13574 = scalar_lea.vmem [#allocation3], 64
    %v13575 = vld [vmem:[%s13574] ss:$2 sm:$0xf]
    %s13576 = scalar_lea.vmem [#allocation3], 72
    %v13577 = vld [vmem:[%s13576] ss:$2 sm:$0xf]
    %s13578 = scalar_lea.vmem [#allocation3], 80
    %v13579 = vld [vmem:[%s13578] ss:$2 sm:$0xf]
    %s13580 = scalar_lea.vmem [#allocation3], 88
    %v13581 = vld [vmem:[%s13580] ss:$2 sm:$0xf]
    %s13582 = scalar_lea.vmem [#allocation3], 96
    %v13583 = vld [vmem:[%s13582] ss:$2 sm:$0xf]
    %s13584 = scalar_lea.vmem [#allocation3], 104
    %v13585 = vld [vmem:[%s13584] ss:$2 sm:$0xf]
    %s13586 = scalar_lea.vmem [#allocation3], 112
    %v13587 = vld [vmem:[%s13586] ss:$2 sm:$0xf]
    %s13588 = scalar_lea.vmem [#allocation3], 120
    %v13589 = vld [vmem:[%s13588] ss:$2 sm:$0xf]
    %s13590 = scalar_lea.vmem [#allocation3], 128
    %v13591 = vld [vmem:[%s13590] ss:$2 sm:$0xf]
    %s13592 = scalar_lea.vmem [#allocation3], 136
    %v13593 = vld [vmem:[%s13592] ss:$2 sm:$0xf]
    %s13594 = scalar_lea.vmem [#allocation3], 144
    %v13595 = vld [vmem:[%s13594] ss:$2 sm:$0xf]
    %s13596 = scalar_lea.vmem [#allocation3], 152
    %v13597 = vld [vmem:[%s13596] ss:$2 sm:$0xf]
    %s13598 = scalar_lea.vmem [#allocation3], 160
    %v13599 = vld [vmem:[%s13598] ss:$2 sm:$0xf]
    %s13600 = scalar_lea.vmem [#allocation3], 168
    %v13601 = vld [vmem:[%s13600] ss:$2 sm:$0xf]
    %s13602 = scalar_lea.vmem [#allocation3], 176
    %v13603 = vld [vmem:[%s13602] ss:$2 sm:$0xf]
    %s13604 = scalar_lea.vmem [#allocation3], 184
    %v13605 = vld [vmem:[%s13604] ss:$2 sm:$0xf]
    %s13606 = scalar_lea.vmem [#allocation3], 192
    %v13607 = vld [vmem:[%s13606] ss:$2 sm:$0xf]
    %s13608 = scalar_lea.vmem [#allocation3], 200
    %v13609 = vld [vmem:[%s13608] ss:$2 sm:$0xf]
    %s13610 = scalar_lea.vmem [#allocation3], 208
    %v13611 = vld [vmem:[%s13610] ss:$2 sm:$0xf]
    %s13612 = scalar_lea.vmem [#allocation3], 216
    %v13613 = vld [vmem:[%s13612] ss:$2 sm:$0xf]
    %s13614 = scalar_lea.vmem [#allocation3], 224
    %v13615 = vld [vmem:[%s13614] ss:$2 sm:$0xf]
    %s13616 = scalar_lea.vmem [#allocation3], 232
    %v13617 = vld [vmem:[%s13616] ss:$2 sm:$0xf]
    %s13618 = scalar_lea.vmem [#allocation3], 240
    %v13619 = vld [vmem:[%s13618] ss:$2 sm:$0xf]
    %s13620 = scalar_lea.vmem [#allocation3], 248
    %v13621 = vld [vmem:[%s13620] ss:$2 sm:$0xf]
    %s13622 = scalar_lea.vmem [#allocation3], 1
    %v13623 = vld [vmem:[%s13622] ss:$2 sm:$0xf]
    %s13624 = scalar_lea.vmem [#allocation3], 9
    %v13625 = vld [vmem:[%s13624] ss:$2 sm:$0xf]
    %s13626 = scalar_lea.vmem [#allocation3], 17
    %v13627 = vld [vmem:[%s13626] ss:$2 sm:$0xf]
    %s13628 = scalar_lea.vmem [#allocation3], 25
    %v13629 = vld [vmem:[%s13628] ss:$2 sm:$0xf]
    %s13630 = scalar_lea.vmem [#allocation3], 33
    %v13631 = vld [vmem:[%s13630] ss:$2 sm:$0xf]
    %s13632 = scalar_lea.vmem [#allocation3], 41
    %v13633 = vld [vmem:[%s13632] ss:$2 sm:$0xf]
    %s13634 = scalar_lea.vmem [#allocation3], 49
    %v13635 = vld [vmem:[%s13634] ss:$2 sm:$0xf]
    %s13636 = scalar_lea.vmem [#allocation3], 57
    %v13637 = vld [vmem:[%s13636] ss:$2 sm:$0xf]
    %s13638 = scalar_lea.vmem [#allocation3], 65
    %v13639 = vld [vmem:[%s13638] ss:$2 sm:$0xf]
    %s13640 = scalar_lea.vmem [#allocation3], 73
    %v13641 = vld [vmem:[%s13640] ss:$2 sm:$0xf]
    %s13642 = scalar_lea.vmem [#allocation3], 81
    %v13643 = vld [vmem:[%s13642] ss:$2 sm:$0xf]
    %s13644 = scalar_lea.vmem [#allocation3], 89
    %v13645 = vld [vmem:[%s13644] ss:$2 sm:$0xf]
    %s13646 = scalar_lea.vmem [#allocation3], 97
    %v13647 = vld [vmem:[%s13646] ss:$2 sm:$0xf]
    %s13648 = scalar_lea.vmem [#allocation3], 105
    %v13649 = vld [vmem:[%s13648] ss:$2 sm:$0xf]
    %s13650 = scalar_lea.vmem [#allocation3], 113
    %v13651 = vld [vmem:[%s13650] ss:$2 sm:$0xf]
    %s13652 = scalar_lea.vmem [#allocation3], 121
    %v13653 = vld [vmem:[%s13652] ss:$2 sm:$0xf]
    %s13654 = scalar_lea.vmem [#allocation3], 129
    %v13655 = vld [vmem:[%s13654] ss:$2 sm:$0xf]
    %s13656 = scalar_lea.vmem [#allocation3], 137
    %v13657 = vld [vmem:[%s13656] ss:$2 sm:$0xf]
    %s13658 = scalar_lea.vmem [#allocation3], 145
    %v13659 = vld [vmem:[%s13658] ss:$2 sm:$0xf]
    %s13660 = scalar_lea.vmem [#allocation3], 153
    %v13661 = vld [vmem:[%s13660] ss:$2 sm:$0xf]
    %s13662 = scalar_lea.vmem [#allocation3], 161
    %v13663 = vld [vmem:[%s13662] ss:$2 sm:$0xf]
    %s13664 = scalar_lea.vmem [#allocation3], 169
    %v13665 = vld [vmem:[%s13664] ss:$2 sm:$0xf]
    %s13666 = scalar_lea.vmem [#allocation3], 177
    %v13667 = vld [vmem:[%s13666] ss:$2 sm:$0xf]
    %s13668 = scalar_lea.vmem [#allocation3], 185
    %v13669 = vld [vmem:[%s13668] ss:$2 sm:$0xf]
    %s13670 = scalar_lea.vmem [#allocation3], 193
    %v13671 = vld [vmem:[%s13670] ss:$2 sm:$0xf]
    %s13672 = scalar_lea.vmem [#allocation3], 201
    %v13673 = vld [vmem:[%s13672] ss:$2 sm:$0xf]
    %s13674 = scalar_lea.vmem [#allocation3], 209
    %v13675 = vld [vmem:[%s13674] ss:$2 sm:$0xf]
    %s13676 = scalar_lea.vmem [#allocation3], 217
    %v13677 = vld [vmem:[%s13676] ss:$2 sm:$0xf]
    %s13678 = scalar_lea.vmem [#allocation3], 225
    %v13679 = vld [vmem:[%s13678] ss:$2 sm:$0xf]
    %s13680 = scalar_lea.vmem [#allocation3], 233
    %v13681 = vld [vmem:[%s13680] ss:$2 sm:$0xf]
    %s13682 = scalar_lea.vmem [#allocation3], 241
    %v13683 = vld [vmem:[%s13682] ss:$2 sm:$0xf]
    %s13684 = scalar_lea.vmem [#allocation3], 249
    %v13685 = vld [vmem:[%s13684] ss:$2 sm:$0xf]
    %v13686 = vmax.f32 %v13559, %v13623
    %v13687 = vmax.f32 %v13561, %v13625
    %v13688 = vmax.f32 %v13563, %v13627
    %v13689 = vmax.f32 %v13565, %v13629
    %v13690 = vmax.f32 %v13567, %v13631
    %v13691 = vmax.f32 %v13569, %v13633
    %v13692 = vmax.f32 %v13571, %v13635
    %v13693 = vmax.f32 %v13573, %v13637
    %v13694 = vmax.f32 %v13575, %v13639
    %v13695 = vmax.f32 %v13577, %v13641
    %v13696 = vmax.f32 %v13579, %v13643
    %v13697 = vmax.f32 %v13581, %v13645
    %v13698 = vmax.f32 %v13583, %v13647
    %v13699 = vmax.f32 %v13585, %v13649
    %v13700 = vmax.f32 %v13587, %v13651
    %v13701 = vmax.f32 %v13589, %v13653
    %v13702 = vmax.f32 %v13591, %v13655
    %v13703 = vmax.f32 %v13593, %v13657
    %v13704 = vmax.f32 %v13595, %v13659
    %v13705 = vmax.f32 %v13597, %v13661
    %v13706 = vmax.f32 %v13599, %v13663
    %v13707 = vmax.f32 %v13601, %v13665
    %v13708 = vmax.f32 %v13603, %v13667
    %v13709 = vmax.f32 %v13605, %v13669
    %v13710 = vmax.f32 %v13607, %v13671
    %v13711 = vmax.f32 %v13609, %v13673
    %v13712 = vmax.f32 %v13611, %v13675
    %v13713 = vmax.f32 %v13613, %v13677
    %v13714 = vmax.f32 %v13615, %v13679
    %v13715 = vmax.f32 %v13617, %v13681
    %v13716 = vmax.f32 %v13619, %v13683
    %v13717 = vmax.f32 %v13621, %v13685
    %v13718 = vmax.f32 %v13686, 0.0
    %v13719 = vmax.f32 %v13687, 0.0
    %v13720 = vmax.f32 %v13688, 0.0
    %v13721 = vmax.f32 %v13689, 0.0
    %v13722 = vmax.f32 %v13690, 0.0
    %v13723 = vmax.f32 %v13691, 0.0
    %v13724 = vmax.f32 %v13692, 0.0
    %v13725 = vmax.f32 %v13693, 0.0
    %v13726 = vmax.f32 %v13694, 0.0
    %v13727 = vmax.f32 %v13695, 0.0
    %v13728 = vmax.f32 %v13696, 0.0
    %v13729 = vmax.f32 %v13697, 0.0
    %v13730 = vmax.f32 %v13698, 0.0
    %v13731 = vmax.f32 %v13699, 0.0
    %v13732 = vmax.f32 %v13700, 0.0
    %v13733 = vmax.f32 %v13701, 0.0
    %v13734 = vmax.f32 %v13702, 0.0
    %v13735 = vmax.f32 %v13703, 0.0
    %v13736 = vmax.f32 %v13704, 0.0
    %v13737 = vmax.f32 %v13705, 0.0
    %v13738 = vmax.f32 %v13706, 0.0
    %v13739 = vmax.f32 %v13707, 0.0
    %v13740 = vmax.f32 %v13708, 0.0
    %v13741 = vmax.f32 %v13709, 0.0
    %v13742 = vmax.f32 %v13710, 0.0
    %v13743 = vmax.f32 %v13711, 0.0
    %v13744 = vmax.f32 %v13712, 0.0
    %v13745 = vmax.f32 %v13713, 0.0
    %v13746 = vmax.f32 %v13714, 0.0
    %v13747 = vmax.f32 %v13715, 0.0
    %v13748 = vmax.f32 %v13716, 0.0
    %v13749 = vmax.f32 %v13717, 0.0
    %vm13750 = vcmask 486400
    %v13751 = vsel %vm13750, %v13718, 0.0
    %v13752 = vsel %vm13750, %v13719, 0.0
    %v13753 = vadd.f32 %v13751, %v13752
    %v13754 = vsel %vm13750, %v13720, 0.0
    %v13755 = vadd.f32 %v13753, %v13754
    %v13756 = vsel %vm13750, %v13721, 0.0
    %v13757 = vadd.f32 %v13755, %v13756
    %v13758 = vsel %vm13750, %v13722, 0.0
    %v13759 = vsel %vm13750, %v13723, 0.0
    %v13760 = vadd.f32 %v13758, %v13759
    %v13761 = vsel %vm13750, %v13724, 0.0
    %v13762 = vadd.f32 %v13760, %v13761
    %v13763 = vsel %vm13750, %v13725, 0.0
    %v13764 = vadd.f32 %v13762, %v13763
    %v13765 = vsel %vm13750, %v13726, 0.0
    %v13766 = vsel %vm13750, %v13727, 0.0
    %v13767 = vadd.f32 %v13765, %v13766
    %v13768 = vsel %vm13750, %v13728, 0.0
    %v13769 = vadd.f32 %v13767, %v13768
    %v13770 = vsel %vm13750, %v13729, 0.0
    %v13771 = vadd.f32 %v13769, %v13770
    %v13772 = vsel %vm13750, %v13730, 0.0
    %v13773 = vsel %vm13750, %v13731, 0.0
    %v13774 = vadd.f32 %v13772, %v13773
    %v13775 = vsel %vm13750, %v13732, 0.0
    %v13776 = vadd.f32 %v13774, %v13775
    %v13777 = vsel %vm13750, %v13733, 0.0
    %v13778 = vadd.f32 %v13776, %v13777
    %v13779 = vsel %vm13750, %v13734, 0.0
    %v13780 = vsel %vm13750, %v13735, 0.0
    %v13781 = vadd.f32 %v13779, %v13780
    %v13782 = vsel %vm13750, %v13736, 0.0
    %v13783 = vadd.f32 %v13781, %v13782
    %v13784 = vsel %vm13750, %v13737, 0.0
    %v13785 = vadd.f32 %v13783, %v13784
    %v13786 = vsel %vm13750, %v13738, 0.0
    %v13787 = vsel %vm13750, %v13739, 0.0
    %v13788 = vadd.f32 %v13786, %v13787
    %v13789 = vsel %vm13750, %v13740, 0.0
    %v13790 = vadd.f32 %v13788, %v13789
    %v13791 = vsel %vm13750, %v13741, 0.0
    %v13792 = vadd.f32 %v13790, %v13791
    %v13793 = vsel %vm13750, %v13742, 0.0
    %v13794 = vsel %vm13750, %v13743, 0.0
    %v13795 = vadd.f32 %v13793, %v13794
    %v13796 = vsel %vm13750, %v13744, 0.0
    %v13797 = vadd.f32 %v13795, %v13796
    %v13798 = vsel %vm13750, %v13745, 0.0
    %v13799 = vadd.f32 %v13797, %v13798
    %v13800 = vsel %vm13750, %v13746, 0.0
    %v13801 = vsel %vm13750, %v13747, 0.0
    %v13802 = vadd.f32 %v13800, %v13801
    %v13803 = vsel %vm13750, %v13748, 0.0
    %v13804 = vadd.f32 %v13802, %v13803
    %v13805 = vsel %vm13750, %v13749, 0.0
    %v13806 = vadd.f32 %v13804, %v13805
    %v13807 = vrcp.pop 4.0
    %v13808 = vmul.f32 4.0, %v13807
    %v13809 = vsub.f32 1.0, %v13808
    %v13810 = vmul.f32 %v13807, %v13809
    %v13811 = vadd.f32 %v13807, %v13810
    %vm13812 = vweird.f32 %v13807
    %v13813 = vsel %vm13812, %v13807, %v13811
    %v13814 = vmul.f32 %v13757, %v13813
    %v13815 = vmul.f32 %v13764, %v13813
    %v13816 = vmul.f32 %v13771, %v13813
    %v13817 = vmul.f32 %v13778, %v13813
    %v13818 = vmul.f32 %v13785, %v13813
    %v13819 = vmul.f32 %v13792, %v13813
    %v13820 = vmul.f32 %v13799, %v13813
    %v13821 = vmul.f32 %v13806, %v13813
    %v13822 = vld [vmem:[%s5] sm:$0xff]
    %v13823 = vld [vmem:[%s5 + $0x8] sm:$0xff]
    %v13824 = vld [vmem:[%s5 + $0x10] sm:$0xff]
    %v13825 = vld [vmem:[%s5 + $0x18] sm:$0xff]
    %v13826 = vld [vmem:[%s5 + $0x20] sm:$0xff]
    %v13827 = vld [vmem:[%s5 + $0x28] sm:$0xff]
    %v13828 = vld [vmem:[%s5 + $0x30] sm:$0xff]
    %v13829 = vld [vmem:[%s5 + $0x38] sm:$0xf]
    %v13830 = vld [vmem:[%s6] sm:$0x1]
    %v13832 = vperm.slane %v13830, 0
    %13842 = vst [vmem:[#allocation1] ss:$2 sm:$0xff] %v13814
    %s13843 = scalar_lea.vmem [#allocation1], 1
    %13844 = vst [vmem:[%s13843] ss:$2 sm:$0xff] %v13815
    %s13845 = scalar_lea.vmem [#allocation1], 16
    %13846 = vst [vmem:[%s13845] ss:$2 sm:$0xff] %v13816
    %s13847 = scalar_lea.vmem [#allocation1], 17
    %13848 = vst [vmem:[%s13847] ss:$2 sm:$0xff] %v13817
    %s13849 = scalar_lea.vmem [#allocation1], 32
    %13850 = vst [vmem:[%s13849] ss:$2 sm:$0xff] %v13818
    %s13851 = scalar_lea.vmem [#allocation1], 33
    %13852 = vst [vmem:[%s13851] ss:$2 sm:$0xff] %v13819
    %s13853 = scalar_lea.vmem [#allocation1], 48
    %13854 = vst [vmem:[%s13853] ss:$2 sm:$0xff] %v13820
    %s13855 = scalar_lea.vmem [#allocation1], 49
    %13856 = vst [vmem:[%s13855] ss:$2 sm:$0xff] %v13821
    %v13857 = vld.sshfl [vmem:[#allocation1] sm:$0xff pattern:$0x75316420]
    %v13858 = vld.sshfl [vmem:[#allocation1 + $0x10] sm:$0xff pattern:$0x75316420]
    %v13859 = vld.sshfl [vmem:[#allocation1 + $0x20] sm:$0xff pattern:$0x75316420]
    %v13860 = vld.sshfl [vmem:[#allocation1 + $0x30] sm:$0xff pattern:$0x75316420]
    %v13861 = vsel %vm13430, %v13857, 0
    %v13863 = vsel %vm13430, %v13858, 0
    %v13865 = vsel %vm13430, %v13859, 0
    %v13867 = vsel %vm13430, %v13860, 0
    %vm13869 = vcmask 1043456
    %v13871 = vsel %vm13869, %v13829, 0
    %13873 = vmatpush.msra.mxu0 0.0
    %13874 = vmatpush.msra.mxu0 0.0
    %13875 = vmatpush.msra.mxu0 0.0
    %13876 = vmatpush.msra.mxu0 0.0
    %13877 = vmatpush.msra.mxu0 0.0
    %13878 = vmatpush.msra.mxu0 0.0
    %13879 = vmatpush.msra.mxu0 0.0
    %13880 = vmatpush.msra.mxu0 0.0
    %13881 = vmatpush.msra.mxu0 %v13871
    %13882 = vmatpush.msra.mxu0 %v13828
    %13883 = vmatpush.msra.mxu0 %v13827
    %13884 = vmatpush.msra.mxu0 %v13826
    %13885 = vmatpush.msra.mxu0 %v13825
    %13886 = vmatpush.msra.mxu0 %v13824
    %13887 = vmatpush.msra.mxu0 %v13823
    %13888 = vmatpush.msra.mxu0 %v13822
    %13889 = vmatmul.f32.gmra.mxu0 %v13861
    %v13890 = vpop.f32.mrf.mxu0
    %v13891 = vadd.f32 %v13832, %v13890
    %13892 = vmatmul.f32.gmra.mxu0 %v13863
    %v13893 = vpop.f32.mrf.mxu0
    %v13894 = vadd.f32 %v13832, %v13893
    %13895 = vmatmul.f32.gmra.mxu0 %v13865
    %v13896 = vpop.f32.mrf.mxu0
    %v13897 = vadd.f32 %v13832, %v13896
    %13898 = vmatmul.f32.gmra.mxu0 %v13867
    %v13899 = vpop.f32.mrf.mxu0
    %v13900 = vadd.f32 %v13832, %v13899
    %13901 = vdwg.mxu0
    %v13906 = vrot.slane %v13891, 4
    %v13907 = vrot.slane %v13894, 4
    %v13908 = vrot.slane %v13897, 4
    %v13909 = vrot.slane %v13900, 4
    %vm13914 = vcmask 257024
    %v13915 = vsel %vm13914, %v13891, -inf
    %13916 = vmax.xlane.f32.xlu0 %v13915
    %v13917 = vpop.xlane.xlu0 %13916
    %v13918 = vsel %vm13914, %v13906, -inf
    %13919 = vmax.xlane.f32.xlu0 %v13918
    %v13920 = vpop.xlane.xlu0 %13919
    %v13921 = vsel %vm13914, %v13894, -inf
    %13922 = vmax.xlane.f32.xlu0 %v13921
    %v13923 = vpop.xlane.xlu0 %13922
    %v13924 = vsel %vm13914, %v13907, -inf
    %13925 = vmax.xlane.f32.xlu0 %v13924
    %v13926 = vpop.xlane.xlu0 %13925
    %v13927 = vsel %vm13914, %v13897, -inf
    %13928 = vmax.xlane.f32.xlu0 %v13927
    %v13929 = vpop.xlane.xlu0 %13928
    %v13930 = vsel %vm13914, %v13908, -inf
    %13931 = vmax.xlane.f32.xlu0 %v13930
    %v13932 = vpop.xlane.xlu0 %13931
    %v13933 = vsel %vm13914, %v13900, -inf
    %13934 = vmax.xlane.f32.xlu0 %v13933
    %v13935 = vpop.xlane.xlu0 %13934
    %v13936 = vsel %vm13914, %v13909, -inf
    %13937 = vmax.xlane.f32.xlu0 %v13936
    %v13938 = vpop.xlane.xlu0 %13937
    %v13939 = vsub.f32 %v13891, %v13917
    %v13940 = vsub.f32 %v13906, %v13920
    %v13941 = vsub.f32 %v13894, %v13923
    %v13942 = vsub.f32 %v13907, %v13926
    %v13943 = vsub.f32 %v13897, %v13929
    %v13944 = vsub.f32 %v13908, %v13932
    %v13945 = vsub.f32 %v13900, %v13935
    %v13946 = vsub.f32 %v13909, %v13938
    %v13947 = vmul.f32 %v13939, 1.442695
    %v13948 = vpow.pop %v13947
    %v13949 = vmul.f32 %v13940, 1.442695
    %v13950 = vpow.pop %v13949
    %v13951 = vmul.f32 %v13941, 1.442695
    %v13952 = vpow.pop %v13951
    %v13953 = vmul.f32 %v13942, 1.442695
    %v13954 = vpow.pop %v13953
    %v13955 = vmul.f32 %v13943, 1.442695
    %v13956 = vpow.pop %v13955
    %v13957 = vmul.f32 %v13944, 1.442695
    %v13958 = vpow.pop %v13957
    %v13959 = vmul.f32 %v13945, 1.442695
    %v13960 = vpow.pop %v13959
    %v13961 = vmul.f32 %v13946, 1.442695
    %v13962 = vpow.pop %v13961
    %v13963 = vsel %vm13914, %v13948, 0.0
    %13964 = vadd.xlane.f32.xlu0 %v13963
    %v13965 = vpop.xlane.xlu0 %13964
    %v13966 = vsel %vm13914, %v13950, 0.0
    %13967 = vadd.xlane.f32.xlu0 %v13966
    %v13968 = vpop.xlane.xlu0 %13967
    %v13969 = vsel %vm13914, %v13952, 0.0
    %13970 = vadd.xlane.f32.xlu0 %v13969
    %v13971 = vpop.xlane.xlu0 %13970
    %v13972 = vsel %vm13914, %v13954, 0.0
    %13973 = vadd.xlane.f32.xlu0 %v13972
    %v13974 = vpop.xlane.xlu0 %13973
    %v13975 = vsel %vm13914, %v13956, 0.0
    %13976 = vadd.xlane.f32.xlu0 %v13975
    %v13977 = vpop.xlane.xlu0 %13976
    %v13978 = vsel %vm13914, %v13958, 0.0
    %13979 = vadd.xlane.f32.xlu0 %v13978
    %v13980 = vpop.xlane.xlu0 %13979
    %v13981 = vsel %vm13914, %v13960, 0.0
    %13982 = vadd.xlane.f32.xlu0 %v13981
    %v13983 = vpop.xlane.xlu0 %13982
    %v13984 = vsel %vm13914, %v13962, 0.0
    %13985 = vadd.xlane.f32.xlu0 %v13984
    %v13986 = vpop.xlane.xlu0 %13985
    %v13987 = vlog2.pop %v13965
    %v13988 = vmul.f32 %v13987, 0.6931472
    %v13989 = vlog2.pop %v13968
    %v13990 = vmul.f32 %v13989, 0.6931472
    %v13991 = vlog2.pop %v13971
    %v13992 = vmul.f32 %v13991, 0.6931472
    %v13993 = vlog2.pop %v13974
    %v13994 = vmul.f32 %v13993, 0.6931472
    %v13995 = vlog2.pop %v13977
    %v13996 = vmul.f32 %v13995, 0.6931472
    %v13997 = vlog2.pop %v13980
    %v13998 = vmul.f32 %v13997, 0.6931472
    %v13999 = vlog2.pop %v13983
    %v14000 = vmul.f32 %v13999, 0.6931472
    %v14001 = vlog2.pop %v13986
    %v14002 = vmul.f32 %v14001, 0.6931472
    %v14003 = vsub.f32 %v13939, %v13988
    %v14004 = vsub.f32 %v13940, %v13990
    %v14005 = vsub.f32 %v13941, %v13992
    %v14006 = vsub.f32 %v13942, %v13994
    %v14007 = vsub.f32 %v13943, %v13996
    %v14008 = vsub.f32 %v13944, %v13998
    %v14009 = vsub.f32 %v13945, %v14000
    %v14010 = vsub.f32 %v13946, %v14002
    %v14011 = vrot.slane %v14005, 4
    %vm14012 = vcmask 1047556
    %v14013 = vsel %vm14012, %v14011, %v14003
    %v14015 = vunpack.c.l.s4 1983009808
    %v14016 = vunpack.c.0.s8 %v14015
    %v14017 = vperm.slane %v14013, %v14016
    %v14018 = vrot.slane %v14006, 4
    %v14019 = vsel %vm14012, %v14018, %v14004
    %v14021 = vunpack.c.l.s4 1983009808
    %v14022 = vunpack.c.0.s8 %v14021
    %v14023 = vperm.slane %v14019, %v14022
    %v14024 = vrot.slane %v14023, 4
    %v14025 = vsel %vm14012, %v14024, %v14017
    %v14026 = vrot.slane %v14017, 4
    %v14027 = vsel %vm14012, %v14023, %v14026
    %v14029 = vunpack.c.l.s4 1934713408
    %v14030 = vunpack.c.0.s8 %v14029
    %v14031 = vperm.slane %v14025, %v14030
    %v14033 = vunpack.c.l.s4 1934713408
    %v14034 = vunpack.c.0.s8 %v14033
    %v14035 = vperm.slane %v14027, %v14034
    %v14036 = vrot.slane %v14031, 4
    %v14037 = vsel %vm14012, 0.0, %v14036
    %v14038 = vrot.slane %v14035, 4
    %v14039 = vsel %vm14012, 0.0, %v14038
    %v14040 = vrot.slane %v14009, 4
    %v14041 = vsel %vm14012, %v14040, %v14007
    %v14043 = vunpack.c.l.s4 1983009808
    %v14044 = vunpack.c.0.s8 %v14043
    %v14045 = vperm.slane %v14041, %v14044
    %v14046 = vrot.slane %v14010, 4
    %v14047 = vsel %vm14012, %v14046, %v14008
    %v14049 = vunpack.c.l.s4 1983009808
    %v14050 = vunpack.c.0.s8 %v14049
    %v14051 = vperm.slane %v14047, %v14050
    %v14052 = vrot.slane %v14051, 4
    %v14053 = vsel %vm14012, %v14052, %v14045
    %v14054 = vrot.slane %v14045, 4
    %v14055 = vsel %vm14012, %v14051, %v14054
    %v14057 = vunpack.c.l.s4 1934713408
    %v14058 = vunpack.c.0.s8 %v14057
    %v14059 = vperm.slane %v14053, %v14058
    %v14061 = vunpack.c.l.s4 1934713408
    %v14062 = vunpack.c.0.s8 %v14061
    %v14063 = vperm.slane %v14055, %v14062
    %v14064 = vrot.slane %v14059, 4
    %v14065 = vsel %vm14012, 0.0, %v14064
    %v14066 = vrot.slane %v14063, 4
    %v14067 = vsel %vm14012, 0.0, %v14066
    %14070 = vst [vmem:[#allocation1] ss:$2 sm:$0xff] %v14031
    %s14071 = scalar_lea.vmem [#allocation1], 1
    %14072 = vst [vmem:[%s14071] ss:$2 sm:$0xff] %v14059
    %v14073 = vld.sshfl [vmem:[#allocation1] sm:$0xff pattern:$0x75316420]
    %14077 = vst [vmem:[#allocation1] ss:$2 sm:$0xff] %v14037
    %s14078 = scalar_lea.vmem [#allocation1], 1
    %14079 = vst [vmem:[%s14078] ss:$2 sm:$0xff] %v14065
    %v14080 = vld.sshfl [vmem:[#allocation1] sm:$0xff pattern:$0x75316420]
    %14081 = vrot.lane.b32.xlu0 %v14080, 32
    %v14082 = vpop.permute.xlu0 %14081
    %14086 = vst [vmem:[#allocation1] ss:$2 sm:$0xff] %v14035
    %s14087 = scalar_lea.vmem [#allocation1], 1
    %14088 = vst [vmem:[%s14087] ss:$2 sm:$0xff] %v14063
    %v14089 = vld.sshfl [vmem:[#allocation1] sm:$0xff pattern:$0x75316420]
    %14090 = vrot.lane.b32.xlu0 %v14089, 64
    %v14091 = vpop.permute.xlu0 %14090
    %14095 = vst [vmem:[#allocation1] ss:$2 sm:$0xff] %v14039
    %s14096 = scalar_lea.vmem [#allocation1], 1
    %14097 = vst [vmem:[%s14096] ss:$2 sm:$0xff] %v14067
    %v14098 = vld.sshfl [vmem:[#allocation1] sm:$0xff pattern:$0x75316420]
    %14099 = vrot.lane.b32.xlu0 %v14098, 96
    %v14100 = vpop.permute.xlu0 %14099
    %vm14102 = vcmask 261120
    %v14103 = vsel %vm14102, %v14073, %v14082
    %vm14104 = vcmask 523264
    %v14105 = vsel %vm14104, %v14103, %v14091
    %vm14106 = vcmask 785408
    %v14107 = vsel %vm14106, %v14105, %v14100
    %14108 = vst [vmem:[#allocation4] sm:$0xff] %v14107
    // Predicated region
    $region30: #{tpu_custom_call.1} parent=1 // pred_check
      _
    $region31: #{tpu_custom_call.1} parent=1 // pred_check_branch
      %14110 = sbr.rel (0) target = $region33
    $region32: #{tpu_custom_call.1} parent=1 // pred_region
      %14112 = vsyncadd [#allocation5], 0
      %s14114 = sshll.u32 [#allocation4], 4
      %s14115 = int_to_ptr.vmem [resolvable:$true] %s14114
      %s14116 = sshll.u32 %s7, 4
      %s14117 = int_to_ptr.hbm [resolvable:$true] %s14116
      %14119 = dma.vmem_to_hbm [thread:$0]  %s14115, 128, %s14117, [#allocation5]
    $region33: #{tpu_custom_call.1} parent=1 // pred_fallthru
      _
    // Predicated region
    $region34: #{tpu_custom_call.1} parent=1 // pred_check
      _
    $region35: #{tpu_custom_call.1} parent=1 // pred_check_branch
      %14121 = sbr.rel (0) target = $region37
    $region36: #{tpu_custom_call.1} parent=1 // pred_region
      %14123 = dma.done [#allocation5], 128
    $region37: #{tpu_custom_call.1} parent=1 // pred_fallthru
      _
    %14124 = vsyncpa [#allocation5], 1

</llo_original>
